<compile_context>
chip_gen: v7x
topology: tpu7x:2x2x1
jax: 0.10.0
libtpu: 0.0.40
codegen_flags: <defaults>
</compile_context>

<pallas_src>
import functools

import jax
import jax.numpy as jnp
from jax.experimental import pallas as pl
from jax.experimental.pallas import tpu as pltpu


# ----------------------------------------------------------------------------
# Pallas kernels
# ----------------------------------------------------------------------------
def _mm_epi_kernel(a_ref, b_ref, s_ref, t_ref, o_ref, acc_ref, *, relu):
    k = pl.program_id(2)

    @pl.when(k == 0)
    def _():
        acc_ref[...] = jnp.zeros_like(acc_ref)

    acc_ref[...] += jnp.dot(a_ref[...], b_ref[...],
                            preferred_element_type=jnp.float32)

    @pl.when(k == pl.num_programs(2) - 1)
    def _():
        y = acc_ref[...] * s_ref[...] + t_ref[...]
        if relu:
            y = jnp.maximum(y, 0.0)
        o_ref[...] = y


def _mm_epi_res_kernel(a_ref, b_ref, s_ref, t_ref, r_ref, o_ref, acc_ref, *,
                       relu):
    k = pl.program_id(2)

    @pl.when(k == 0)
    def _():
        acc_ref[...] = jnp.zeros_like(acc_ref)

    acc_ref[...] += jnp.dot(a_ref[...], b_ref[...],
                            preferred_element_type=jnp.float32)

    @pl.when(k == pl.num_programs(2) - 1)
    def _():
        y = acc_ref[...] * s_ref[...] + t_ref[...] + r_ref[...]
        if relu:
            y = jnp.maximum(y, 0.0)
        o_ref[...] = y


def _max_reduce_kernel(x_ref, o_ref):
    n = x_ref.shape[0]
    m = x_ref[0]
    for i in range(1, n):
        m = jnp.maximum(m, x_ref[i])
    o_ref[...] = m


# ----------------------------------------------------------------------------
# Pallas wrappers
# ----------------------------------------------------------------------------
_TM = 256
_TN = 256
_TK = 512
_K_TILE_THRESHOLD = 2048          # tile K only when the block would get large
_VMEM_LIMIT = 32 * 1024 * 1024    # safe on v5e/v6e/v7x with the tiles below


def _ceil_to(x, m):
    return ((x + m - 1) // m) * m


def matmul_bn_act(a, b, scale, shift, relu=False, residual=None):
    """f32 out = act((a @ b) * scale + shift [+ residual]).

    a: (M, K), b: (K, N), scale/shift: (N,), residual: (M, N) or None.
    Operands are cast to bf16 for the MXU; accumulation is f32 in VMEM scratch.
    """
    M, K = a.shape
    K2, N = b.shape
    assert K == K2

    # Tile selection / padding ------------------------------------------------
    if M <= _TM:
        Mp = _ceil_to(M, 8)
        tm = Mp
    else:
        Mp = _ceil_to(M, _TM)
        tm = _TM
    if K <= _K_TILE_THRESHOLD:
        Kp = _ceil_to(K, 8)
        tk = Kp
    else:
        Kp = _ceil_to(K, _TK)
        tk = _TK
    Np = _ceil_to(N, 128)                       # lane-dense output stores
    tn = _TN if (Np % _TN == 0 and Np > 128) else 128

    a = jnp.pad(a, ((0, Mp - M), (0, Kp - K))).astype(jnp.bfloat16)
    b = jnp.pad(b, ((0, Kp - K), (0, Np - N))).astype(jnp.bfloat16)
    scale = jnp.pad(scale.astype(jnp.float32), (0, Np - N)).reshape(1, Np)
    shift = jnp.pad(shift.astype(jnp.float32), (0, Np - N)).reshape(1, Np)

    gm, gn, gk = Mp // tm, Np // tn, Kp // tk

    in_specs = [pl.BlockSpec((tm, tk), lambda i, j, k: (i, k)),
                pl.BlockSpec((tk, tn), lambda i, j, k: (k, j)),
                pl.BlockSpec((1, tn), lambda i, j, k: (0, j)),
                pl.BlockSpec((1, tn), lambda i, j, k: (0, j))]
    args = [a, b, scale, shift]
    if residual is not None:
        r = jnp.pad(residual.astype(jnp.float32), ((0, Mp - M), (0, Np - N)))
        in_specs.append(pl.BlockSpec((tm, tn), lambda i, j, k: (i, j)))
        args.append(r)
        kern = functools.partial(_mm_epi_res_kernel, relu=relu)
    else:
        kern = functools.partial(_mm_epi_kernel, relu=relu)

    out = pl.pallas_call(
        kern,
        out_shape=jax.ShapeDtypeStruct((Mp, Np), jnp.float32),
        grid=(gm, gn, gk),
        in_specs=in_specs,
        out_specs=pl.BlockSpec((tm, tn), lambda i, j, k: (i, j)),
        scratch_shapes=[pltpu.VMEM((tm, tn), jnp.float32)],
        compiler_params=pltpu.CompilerParams(
            dimension_semantics=("parallel", "parallel", "arbitrary"),
            vmem_limit_bytes=_VMEM_LIMIT),
    )(*args)
    return out[:M, :N]


def pallas_window_max(stacked):
    """(KW, M, C) -> (M, C) elementwise max over the KW window taps."""
    KW, M, C = stacked.shape
    TM = 512
    if M <= TM:
        Mp = _ceil_to(M, 8)
        tm = Mp
    else:
        Mp = _ceil_to(M, TM)
        tm = TM
    if Mp != M:
        stacked = jnp.pad(stacked, ((0, 0), (0, Mp - M), (0, 0)))
    gm = Mp // tm
    out = pl.pallas_call(
        _max_reduce_kernel,
        out_shape=jax.ShapeDtypeStruct((Mp, C), jnp.float32),
        grid=(gm,),
        in_specs=[pl.BlockSpec((KW, tm, C), lambda i: (0, i, 0))],
        out_specs=pl.BlockSpec((tm, C), lambda i: (i, 0)),
        compiler_params=pltpu.CompilerParams(
            dimension_semantics=("parallel",),
            vmem_limit_bytes=_VMEM_LIMIT),
    )(stacked)
    return out[:M]


# ----------------------------------------------------------------------------
# Layer helpers (glue is plain JAX, hot paths are the Pallas kernels above)
# ----------------------------------------------------------------------------
def im2col(x, kh, kw, stride, pad):
    N, H, W, C = x.shape
    Ho = (H + 2 * pad - kh) // stride + 1
    Wo = (W + 2 * pad - kw) // stride + 1
    if kh == 1 and kw == 1 and pad == 0:
        xs = x[:, ::stride, ::stride, :]
        return xs.reshape(N * Ho * Wo, C), (N, Ho, Wo)
    xp = jnp.pad(x, ((0, 0), (pad, pad), (pad, pad), (0, 0)))
    cols = [xp[:, i:i + stride * Ho:stride, j:j + stride * Wo:stride, :]
            for i in range(kh) for j in range(kw)]
    patches = jnp.concatenate(cols, axis=-1)          # (N, Ho, Wo, kh*kw*C)
    return patches.reshape(N * Ho * Wo, kh * kw * C), (N, Ho, Wo)


def conv_bn(x, w, stride, pad, bn, relu, residual=None):
    """Conv (NHWC, weight (kh,kw,Cin,Cout)) fused with BN affine (+ReLU, +res)."""
    kh, kw, cin, cout = w.shape
    cols, (N, Ho, Wo) = im2col(x, kh, kw, stride, pad)
    res2d = (residual.reshape(N * Ho * Wo, cout)
             if residual is not None else None)
    y = matmul_bn_act(cols, w.reshape(kh * kw * cin, cout),
                      bn["scale"], bn["shift"], relu=relu, residual=res2d)
    return y.reshape(N, Ho, Wo, cout)


def maxpool3x3s2(x):
    N, H, W, C = x.shape
    xp = jnp.pad(x, ((0, 0), (1, 1), (1, 1), (0, 0)),
                 constant_values=-jnp.inf)
    Ho = (H + 2 - 3) // 2 + 1
    Wo = (W + 2 - 3) // 2 + 1
    wins = [xp[:, i:i + 2 * Ho:2, j:j + 2 * Wo:2, :]
            for i in range(3) for j in range(3)]
    stacked = jnp.stack(wins, 0).reshape(9, N * Ho * Wo, C)
    return pallas_window_max(stacked).reshape(N, Ho, Wo, C)


def conv_transpose2x2(x, w, bias):
    """ConvTranspose2d(k=2, s=2).  w: (Cin, 2, 2, Cout), bias folded in epilogue."""
    N, H, W, Cin = x.shape
    Cout = w.shape[-1]
    ones = jnp.ones((4 * Cout,), jnp.float32)
    y = matmul_bn_act(x.reshape(N * H * W, Cin), w.reshape(Cin, 4 * Cout),
                      ones, jnp.tile(bias, 4), relu=False)
    y = y.reshape(N, H, W, 2, 2, Cout).transpose(0, 1, 3, 2, 4, 5)
    return y.reshape(N, 2 * H, 2 * W, Cout)


def double_conv(x, p):
    x = conv_bn(x, p["w1"], 1, 1, p["bn1"], relu=True)
    # Dropout2d -> identity (inference mode)
    x = conv_bn(x, p["w2"], 1, 1, p["bn2"], relu=True)
    return x


def bottleneck(x, p, stride):
    if "dconv" in p:
        sc = conv_bn(x, p["dconv"], stride, 0, p["dbn"], relu=False)
    else:
        sc = x
    out = conv_bn(x, p["conv1"], 1, 0, p["bn1"], relu=True)
    out = conv_bn(out, p["conv2"], stride, 1, p["bn2"], relu=True)
    # conv3 + bn3 + residual add + ReLU fused into one matmul epilogue
    out = conv_bn(out, p["conv3"], 1, 0, p["bn3"], relu=True, residual=sc)
    return out


def run_layer(x, blocks, stride):
    for i, bp in enumerate(blocks):
        x = bottleneck(x, bp, stride if i == 0 else 1)
    return x


def up_block(x1, x2, p):
    x1 = conv_transpose2x2(x1, p["tw"], p["tb"])
    dY = x2.shape[1] - x1.shape[1]
    dX = x2.shape[2] - x1.shape[2]
    x1 = jnp.pad(x1, ((0, 0), (dY // 2, dY - dY // 2),
                      (dX // 2, dX - dX // 2), (0, 0)))
    x = jnp.concatenate([x2, x1], axis=-1)
    return double_conv(x, p["dc"])


def out_conv(x, p):
    N, H, W, C = x.shape
    cout = p["w"].shape[-1]
    y = matmul_bn_act(x.reshape(N * H * W, C), p["w"].reshape(C, cout),
                      jnp.ones((cout,), jnp.float32), p["b"], relu=False)
    return y.reshape(N, H, W, cout)


# ----------------------------------------------------------------------------
# Deterministic parameter initialization (shapes match the PyTorch module)
# ----------------------------------------------------------------------------
class KeyGen:
    def __init__(self, key):
        self.key = key
        self.i = 0

    def __call__(self):
        self.i += 1
        return jax.random.fold_in(self.key, self.i)


def init_conv(kg, kh, kw, cin, cout):
    std = (2.0 / (kh * kw * cin)) ** 0.5
    return std * jax.random.normal(kg(), (kh, kw, cin, cout), jnp.float32)


def init_bn(kg, c, eps=1e-5):
    gamma = 1.0 + 0.01 * jax.random.normal(kg(), (c,), jnp.float32)
    beta = 0.01 * jax.random.normal(kg(), (c,), jnp.float32)
    mean = jnp.zeros((c,), jnp.float32)
    var = jnp.ones((c,), jnp.float32)
    scale = gamma * jax.lax.rsqrt(var + eps)
    return {"scale": scale, "shift": beta - mean * scale}


def init_double_conv(kg, cin, cout, mid=None):
    mid = mid or cout
    return {"w1": init_conv(kg, 3, 3, cin, mid), "bn1": init_bn(kg, mid),
            "w2": init_conv(kg, 3, 3, mid, cout), "bn2": init_bn(kg, cout)}


def init_bottleneck(kg, cin, planes, downsample):
    p = {"conv1": init_conv(kg, 1, 1, cin, planes), "bn1": init_bn(kg, planes),
         "conv2": init_conv(kg, 3, 3, planes, planes), "bn2": init_bn(kg, planes),
         "conv3": init_conv(kg, 1, 1, planes, 4 * planes),
         "bn3": init_bn(kg, 4 * planes)}
    if downsample:
        p["dconv"] = init_conv(kg, 1, 1, cin, 4 * planes)
        p["dbn"] = init_bn(kg, 4 * planes)
    return p


def init_layer(kg, cin, planes, nblocks):
    blocks = [init_bottleneck(kg, cin, planes, True)]
    for _ in range(nblocks - 1):
        blocks.append(init_bottleneck(kg, 4 * planes, planes, False))
    return blocks


def init_tconv(kg, cin, cout):
    std = (1.0 / (4 * cin)) ** 0.5
    w = std * jax.random.normal(kg(), (cin, 2, 2, cout), jnp.float32)
    b = std * jax.random.normal(kg(), (cout,), jnp.float32)
    return w, b


def init_up_block(kg, tconv_in, tconv_out, dc_in, dc_out):
    tw, tb = init_tconv(kg, tconv_in, tconv_out)
    return {"tw": tw, "tb": tb, "dc": init_double_conv(kg, dc_in, dc_out)}


def init_resnet_unet_params(key, in_channels=3, out_channels=2):
    kg = KeyGen(key)
    ch = [3, 64, 256, 512, 1024]                     # resnet101 distribution
    p = {}
    p["inc"] = init_double_conv(kg, in_channels, 64)
    # resnet101 stem (block1) + layer1..3 (block2..4)
    p["conv1"] = init_conv(kg, 7, 7, 3, 64)
    p["bn1"] = init_bn(kg, 64)
    p["layer1"] = init_layer(kg, 64, 64, 3)
    p["layer2"] = init_layer(kg, 256, 128, 4)
    p["layer3"] = init_layer(kg, 512, 256, 23)
    # Up(in, out, bilinear=False):  ConvT(in, in//2) , DoubleConv(in, out)
    p["up1"] = init_up_block(kg, ch[4], ch[4] // 2, ch[4], ch[3])
    p["up2"] = init_up_block(kg, ch[3], ch[3] // 2, ch[3], ch[2])
    # UpResNet(in1, in2, out):      ConvT(in1, in1) , DoubleConv(in1+in2, out)
    p["up3"] = init_up_block(kg, ch[2], ch[2], ch[2] + 64, ch[1])
    p["up4"] = init_up_block(kg, ch[1], ch[1], ch[1] + 64, ch[1])
    p["outc"] = {"w": init_conv(kg, 1, 1, 64, out_channels),
                 "b": 0.01 * jax.random.normal(kg(), (out_channels,),
                                               jnp.float32)}
    return p


# ----------------------------------------------------------------------------
# Full forward pass (matches ResNetUNet.forward outputs)
# ----------------------------------------------------------------------------
def resnet_unet_forward(params, x_nchw, compute_unused_branches=False):
    x = jnp.transpose(x_nchw, (0, 2, 3, 1)).astype(jnp.float32)   # -> NHWC
    x0 = double_conv(x, params["inc"])
    # block1: conv7x7/s2 + BN + ReLU (fused)
    x1 = conv_bn(x, params["conv1"], 2, 3, params["bn1"], relu=True)

    if compute_unused_branches:
        # The reference forward computes x2..x4 and y1..y3, but the returned
        # logits depend only on x0, x1 -> y4.  These branches are dead code
        # w.r.t. the output; skip them by default instead of relying on DCE.
        x2 = maxpool3x3s2(x1)
        x2 = run_layer(x2, params["layer1"], stride=1)
        x3 = run_layer(x2, params["layer2"], stride=2)
        x4 = run_layer(x3, params["layer3"], stride=2)
        _ = up_block(x4, x3, params["up1"])
        _ = up_block(x3, x2, params["up2"])
        _ = up_block(x2, x1, params["up3"])

    y4 = up_block(x1, x0, params["up4"])
    logits = out_conv(y4, params["outc"])
    return jnp.transpose(logits, (0, 3, 1, 2))                    # -> NCHW


if __name__ == "__main__":
    key = jax.random.PRNGKey(0)
    pkey, xkey = jax.random.split(key)
    params = init_resnet_unet_params(pkey, in_channels=3, out_channels=2)
    x = jax.random.normal(xkey, (2, 3, 32, 32), jnp.float32)      # NCHW input

    fwd = jax.jit(resnet_unet_forward)
    logits = jax.block_until_ready(fwd(params, x))

    assert logits.shape == (2, 2, 32, 32), logits.shape
    assert bool(jnp.isfinite(logits).all())
    print("KERNEL_OK")
</pallas_src>

<mosaic_0001>
module attributes {stable_mosaic.version = 11 : i64} {
  func.func @_mm_epi_kernel(%arg0: i32, %arg1: i32, %arg2: i32, %arg3: memref<256x32xbf16, #tpu.memory_space<vmem>>, %arg4: memref<32x128xbf16, #tpu.memory_space<vmem>>, %arg5: memref<1x128xf32, #tpu.memory_space<vmem>>, %arg6: memref<1x128xf32, #tpu.memory_space<vmem>>, %arg7: memref<256x128xf32, #tpu.memory_space<vmem>>, %arg8: memref<256x128xf32, #tpu.memory_space<vmem>>) attributes {dimension_semantics = [#tpu.dimension_semantics<parallel>, #tpu.dimension_semantics<parallel>, #tpu.dimension_semantics<arbitrary>], iteration_bounds = array<i64: 8, 1, 1>, scalar_prefetch = 0 : i64, scratch_operands = 1 : i64, tpu.core_type = #tpu.core_type<tc>, window_params = [{transform_indices = @transform_0, window_bounds = array<i64: 256, 32>}, {transform_indices = @transform_1, window_bounds = array<i64: 32, 128>}, {transform_indices = @transform_2, window_bounds = array<i64: 1, 128>}, {transform_indices = @transform_3, window_bounds = array<i64: 1, 128>}, {transform_indices = @transform_4, window_bounds = array<i64: 256, 128>}]} {
    %c0_i32 = arith.constant 0 : i32
    %0 = arith.cmpi eq, %arg2, %c0_i32 : i32
    %1 = arith.extui %0 : i1 to i32
    %c0_i32_0 = arith.constant 0 : i32
    %2 = arith.cmpi ne, %1, %c0_i32_0 : i32
    scf.if %2 {
      %cst_10 = arith.constant 0.000000e+00 : f32
      %12 = vector.broadcast %cst_10 : f32 to vector<256x128xf32>
      %c0_11 = arith.constant 0 : index
      %c0_12 = arith.constant 0 : index
      %13 = vector.load %arg8[%c0_11, %c0_12] : memref<256x128xf32, #tpu.memory_space<vmem>>, vector<256x128xf32>
      tpu.vector_store %arg8[%c0_11, %c0_12], %12 {strides = array<i32>} : memref<256x128xf32, #tpu.memory_space<vmem>>, vector<256x128xf32>,
    } else {
    }
    %c0 = arith.constant 0 : index
    %c0_1 = arith.constant 0 : index
    %3 = vector.load %arg8[%c0, %c0_1] : memref<256x128xf32, #tpu.memory_space<vmem>>, vector<256x128xf32>
    %c0_2 = arith.constant 0 : index
    %c0_3 = arith.constant 0 : index
    %4 = vector.load %arg3[%c0_2, %c0_3] : memref<256x32xbf16, #tpu.memory_space<vmem>>, vector<256x32xbf16>
    %c0_4 = arith.constant 0 : index
    %c0_5 = arith.constant 0 : index
    %5 = vector.load %arg4[%c0_4, %c0_5] : memref<32x128xbf16, #tpu.memory_space<vmem>>, vector<32x128xbf16>
    %cst = arith.constant dense<0.000000e+00> : vector<256x128xf32>
    %6 = tpu.matmul %4, %5, %cst {dimension_numbers = #tpu.dot_dimension_numbers<[1], [0], [0], [1], [0, 0, 1, 1], [], []>} : vector<256x32xbf16>, vector<32x128xbf16>, vector<256x128xf32> -> vector<256x128xf32>
    %7 = arith.addf %3, %6 : vector<256x128xf32>
    %c0_6 = arith.constant 0 : index
    %c0_7 = arith.constant 0 : index
    %8 = vector.load %arg8[%c0_6, %c0_7] : memref<256x128xf32, #tpu.memory_space<vmem>>, vector<256x128xf32>
    tpu.vector_store %arg8[%c0_6, %c0_7], %7 {strides = array<i32>} : memref<256x128xf32, #tpu.memory_space<vmem>>, vector<256x128xf32>,
    %c0_i32_8 = arith.constant 0 : i32
    %9 = arith.cmpi eq, %arg2, %c0_i32_8 : i32
    %10 = arith.extui %9 : i1 to i32
    %c0_i32_9 = arith.constant 0 : i32
    %11 = arith.cmpi ne, %10, %c0_i32_9 : i32
    scf.if %11 {
      %c0_10 = arith.constant 0 : index
      %c0_11 = arith.constant 0 : index
      %12 = vector.load %arg8[%c0_10, %c0_11] : memref<256x128xf32, #tpu.memory_space<vmem>>, vector<256x128xf32>
      %c0_12 = arith.constant 0 : index
      %c0_13 = arith.constant 0 : index
      %13 = vector.load %arg5[%c0_12, %c0_13] : memref<1x128xf32, #tpu.memory_space<vmem>>, vector<1x128xf32>
      %14 = vector.broadcast %13 : vector<1x128xf32> to vector<256x128xf32>
      %15 = arith.mulf %12, %14 : vector<256x128xf32>
      %c0_14 = arith.constant 0 : index
      %c0_15 = arith.constant 0 : index
      %16 = vector.load %arg6[%c0_14, %c0_15] : memref<1x128xf32, #tpu.memory_space<vmem>>, vector<1x128xf32>
      %17 = vector.broadcast %16 : vector<1x128xf32> to vector<256x128xf32>
      %18 = arith.addf %15, %17 : vector<256x128xf32>
      %cst_16 = arith.constant 0.000000e+00 : f32
      %19 = vector.broadcast %cst_16 : f32 to vector<256x128xf32>
      %20 = arith.maximumf %18, %19 : vector<256x128xf32>
      %c0_17 = arith.constant 0 : index
      %c0_18 = arith.constant 0 : index
      %21 = vector.load %arg7[%c0_17, %c0_18] : memref<256x128xf32, #tpu.memory_space<vmem>>, vector<256x128xf32>
      tpu.vector_store %arg7[%c0_17, %c0_18], %20 {strides = array<i32>} : memref<256x128xf32, #tpu.memory_space<vmem>>, vector<256x128xf32>,
    } else {
    }
    return
  }
  func.func @transform_0(%arg0: i32, %arg1: i32, %arg2: i32) -> (i32, i32) {
    %c0_i32 = arith.constant 0 : i32
    return %arg0, %arg2 : i32, i32
  }
  func.func @transform_1(%arg0: i32, %arg1: i32, %arg2: i32) -> (i32, i32) {
    %c0_i32 = arith.constant 0 : i32
    return %arg2, %arg1 : i32, i32
  }
  func.func @transform_2(%arg0: i32, %arg1: i32, %arg2: i32) -> (i32, i32) {
    %c0_i32 = arith.constant 0 : i32
    %c0_i32_0 = arith.constant 0 : i32
    return %c0_i32, %arg1 : i32, i32
  }
  func.func @transform_3(%arg0: i32, %arg1: i32, %arg2: i32) -> (i32, i32) {
    %c0_i32 = arith.constant 0 : i32
    %c0_i32_0 = arith.constant 0 : i32
    return %c0_i32, %arg1 : i32, i32
  }
  func.func @transform_4(%arg0: i32, %arg1: i32, %arg2: i32) -> (i32, i32) {
    %c0_i32 = arith.constant 0 : i32
    return %arg0, %arg1 : i32, i32
  }
}

module attributes {stable_mosaic.version = 11 : i64} {
  func.func @_mm_epi_kernel(%arg0: i32, %arg1: i32, %arg2: i32, %arg3: memref<256x576xbf16, #tpu.memory_space<vmem>>, %arg4: memref<576x128xbf16, #tpu.memory_space<vmem>>, %arg5: memref<1x128xf32, #tpu.memory_space<vmem>>, %arg6: memref<1x128xf32, #tpu.memory_space<vmem>>, %arg7: memref<256x128xf32, #tpu.memory_space<vmem>>, %arg8: memref<256x128xf32, #tpu.memory_space<vmem>>) attributes {dimension_semantics = [#tpu.dimension_semantics<parallel>, #tpu.dimension_semantics<parallel>, #tpu.dimension_semantics<arbitrary>], iteration_bounds = array<i64: 8, 1, 1>, scalar_prefetch = 0 : i64, scratch_operands = 1 : i64, tpu.core_type = #tpu.core_type<tc>, window_params = [{transform_indices = @transform_0, window_bounds = array<i64: 256, 576>}, {transform_indices = @transform_1, window_bounds = array<i64: 576, 128>}, {transform_indices = @transform_2, window_bounds = array<i64: 1, 128>}, {transform_indices = @transform_3, window_bounds = array<i64: 1, 128>}, {transform_indices = @transform_4, window_bounds = array<i64: 256, 128>}]} {
    %c0_i32 = arith.constant 0 : i32
    %0 = arith.cmpi eq, %arg2, %c0_i32 : i32
    %1 = arith.extui %0 : i1 to i32
    %c0_i32_0 = arith.constant 0 : i32
    %2 = arith.cmpi ne, %1, %c0_i32_0 : i32
    scf.if %2 {
      %cst_10 = arith.constant 0.000000e+00 : f32
      %12 = vector.broadcast %cst_10 : f32 to vector<256x128xf32>
      %c0_11 = arith.constant 0 : index
      %c0_12 = arith.constant 0 : index
      %13 = vector.load %arg8[%c0_11, %c0_12] : memref<256x128xf32, #tpu.memory_space<vmem>>, vector<256x128xf32>
      tpu.vector_store %arg8[%c0_11, %c0_12], %12 {strides = array<i32>} : memref<256x128xf32, #tpu.memory_space<vmem>>, vector<256x128xf32>,
    } else {
    }
    %c0 = arith.constant 0 : index
    %c0_1 = arith.constant 0 : index
    %3 = vector.load %arg8[%c0, %c0_1] : memref<256x128xf32, #tpu.memory_space<vmem>>, vector<256x128xf32>
    %c0_2 = arith.constant 0 : index
    %c0_3 = arith.constant 0 : index
    %4 = vector.load %arg3[%c0_2, %c0_3] : memref<256x576xbf16, #tpu.memory_space<vmem>>, vector<256x576xbf16>
    %c0_4 = arith.constant 0 : index
    %c0_5 = arith.constant 0 : index
    %5 = vector.load %arg4[%c0_4, %c0_5] : memref<576x128xbf16, #tpu.memory_space<vmem>>, vector<576x128xbf16>
    %cst = arith.constant dense<0.000000e+00> : vector<256x128xf32>
    %6 = tpu.matmul %4, %5, %cst {dimension_numbers = #tpu.dot_dimension_numbers<[1], [0], [0], [1], [0, 0, 1, 1], [], []>} : vector<256x576xbf16>, vector<576x128xbf16>, vector<256x128xf32> -> vector<256x128xf32>
    %7 = arith.addf %3, %6 : vector<256x128xf32>
    %c0_6 = arith.constant 0 : index
    %c0_7 = arith.constant 0 : index
    %8 = vector.load %arg8[%c0_6, %c0_7] : memref<256x128xf32, #tpu.memory_space<vmem>>, vector<256x128xf32>
    tpu.vector_store %arg8[%c0_6, %c0_7], %7 {strides = array<i32>} : memref<256x128xf32, #tpu.memory_space<vmem>>, vector<256x128xf32>,
    %c0_i32_8 = arith.constant 0 : i32
    %9 = arith.cmpi eq, %arg2, %c0_i32_8 : i32
    %10 = arith.extui %9 : i1 to i32
    %c0_i32_9 = arith.constant 0 : i32
    %11 = arith.cmpi ne, %10, %c0_i32_9 : i32
    scf.if %11 {
      %c0_10 = arith.constant 0 : index
      %c0_11 = arith.constant 0 : index
      %12 = vector.load %arg8[%c0_10, %c0_11] : memref<256x128xf32, #tpu.memory_space<vmem>>, vector<256x128xf32>
      %c0_12 = arith.constant 0 : index
      %c0_13 = arith.constant 0 : index
      %13 = vector.load %arg5[%c0_12, %c0_13] : memref<1x128xf32, #tpu.memory_space<vmem>>, vector<1x128xf32>
      %14 = vector.broadcast %13 : vector<1x128xf32> to vector<256x128xf32>
      %15 = arith.mulf %12, %14 : vector<256x128xf32>
      %c0_14 = arith.constant 0 : index
      %c0_15 = arith.constant 0 : index
      %16 = vector.load %arg6[%c0_14, %c0_15] : memref<1x128xf32, #tpu.memory_space<vmem>>, vector<1x128xf32>
      %17 = vector.broadcast %16 : vector<1x128xf32> to vector<256x128xf32>
      %18 = arith.addf %15, %17 : vector<256x128xf32>
      %cst_16 = arith.constant 0.000000e+00 : f32
      %19 = vector.broadcast %cst_16 : f32 to vector<256x128xf32>
      %20 = arith.maximumf %18, %19 : vector<256x128xf32>
      %c0_17 = arith.constant 0 : index
      %c0_18 = arith.constant 0 : index
      %21 = vector.load %arg7[%c0_17, %c0_18] : memref<256x128xf32, #tpu.memory_space<vmem>>, vector<256x128xf32>
      tpu.vector_store %arg7[%c0_17, %c0_18], %20 {strides = array<i32>} : memref<256x128xf32, #tpu.memory_space<vmem>>, vector<256x128xf32>,
    } else {
    }
    return
  }
  func.func @transform_0(%arg0: i32, %arg1: i32, %arg2: i32) -> (i32, i32) {
    %c0_i32 = arith.constant 0 : i32
    return %arg0, %arg2 : i32, i32
  }
  func.func @transform_1(%arg0: i32, %arg1: i32, %arg2: i32) -> (i32, i32) {
    %c0_i32 = arith.constant 0 : i32
    return %arg2, %arg1 : i32, i32
  }
  func.func @transform_2(%arg0: i32, %arg1: i32, %arg2: i32) -> (i32, i32) {
    %c0_i32 = arith.constant 0 : i32
    %c0_i32_0 = arith.constant 0 : i32
    return %c0_i32, %arg1 : i32, i32
  }
  func.func @transform_3(%arg0: i32, %arg1: i32, %arg2: i32) -> (i32, i32) {
    %c0_i32 = arith.constant 0 : i32
    %c0_i32_0 = arith.constant 0 : i32
    return %c0_i32, %arg1 : i32, i32
  }
  func.func @transform_4(%arg0: i32, %arg1: i32, %arg2: i32) -> (i32, i32) {
    %c0_i32 = arith.constant 0 : i32
    return %arg0, %arg1 : i32, i32
  }
}

module attributes {stable_mosaic.version = 11 : i64} {
  func.func @_mm_epi_kernel(%arg0: i32, %arg1: i32, %arg2: i32, %arg3: memref<256x152xbf16, #tpu.memory_space<vmem>>, %arg4: memref<152x128xbf16, #tpu.memory_space<vmem>>, %arg5: memref<1x128xf32, #tpu.memory_space<vmem>>, %arg6: memref<1x128xf32, #tpu.memory_space<vmem>>, %arg7: memref<256x128xf32, #tpu.memory_space<vmem>>, %arg8: memref<256x128xf32, #tpu.memory_space<vmem>>) attributes {dimension_semantics = [#tpu.dimension_semantics<parallel>, #tpu.dimension_semantics<parallel>, #tpu.dimension_semantics<arbitrary>], iteration_bounds = array<i64: 2, 1, 1>, scalar_prefetch = 0 : i64, scratch_operands = 1 : i64, tpu.core_type = #tpu.core_type<tc>, window_params = [{transform_indices = @transform_0, window_bounds = array<i64: 256, 152>}, {transform_indices = @transform_1, window_bounds = array<i64: 152, 128>}, {transform_indices = @transform_2, window_bounds = array<i64: 1, 128>}, {transform_indices = @transform_3, window_bounds = array<i64: 1, 128>}, {transform_indices = @transform_4, window_bounds = array<i64: 256, 128>}]} {
    %c0_i32 = arith.constant 0 : i32
    %0 = arith.cmpi eq, %arg2, %c0_i32 : i32
    %1 = arith.extui %0 : i1 to i32
    %c0_i32_0 = arith.constant 0 : i32
    %2 = arith.cmpi ne, %1, %c0_i32_0 : i32
    scf.if %2 {
      %cst_10 = arith.constant 0.000000e+00 : f32
      %12 = vector.broadcast %cst_10 : f32 to vector<256x128xf32>
      %c0_11 = arith.constant 0 : index
      %c0_12 = arith.constant 0 : index
      %13 = vector.load %arg8[%c0_11, %c0_12] : memref<256x128xf32, #tpu.memory_space<vmem>>, vector<256x128xf32>
      tpu.vector_store %arg8[%c0_11, %c0_12], %12 {strides = array<i32>} : memref<256x128xf32, #tpu.memory_space<vmem>>, vector<256x128xf32>,
    } else {
    }
    %c0 = arith.constant 0 : index
    %c0_1 = arith.constant 0 : index
    %3 = vector.load %arg8[%c0, %c0_1] : memref<256x128xf32, #tpu.memory_space<vmem>>, vector<256x128xf32>
    %c0_2 = arith.constant 0 : index
    %c0_3 = arith.constant 0 : index
    %4 = vector.load %arg3[%c0_2, %c0_3] : memref<256x152xbf16, #tpu.memory_space<vmem>>, vector<256x152xbf16>
    %c0_4 = arith.constant 0 : index
    %c0_5 = arith.constant 0 : index
    %5 = vector.load %arg4[%c0_4, %c0_5] : memref<152x128xbf16, #tpu.memory_space<vmem>>, vector<152x128xbf16>
    %cst = arith.constant dense<0.000000e+00> : vector<256x128xf32>
    %6 = tpu.matmul %4, %5, %cst {dimension_numbers = #tpu.dot_dimension_numbers<[1], [0], [0], [1], [0, 0, 1, 1], [], []>} : vector<256x152xbf16>, vector<152x128xbf16>, vector<256x128xf32> -> vector<256x128xf32>
    %7 = arith.addf %3, %6 : vector<256x128xf32>
    %c0_6 = arith.constant 0 : index
    %c0_7 = arith.constant 0 : index
    %8 = vector.load %arg8[%c0_6, %c0_7] : memref<256x128xf32, #tpu.memory_space<vmem>>, vector<256x128xf32>
    tpu.vector_store %arg8[%c0_6, %c0_7], %7 {strides = array<i32>} : memref<256x128xf32, #tpu.memory_space<vmem>>, vector<256x128xf32>,
    %c0_i32_8 = arith.constant 0 : i32
    %9 = arith.cmpi eq, %arg2, %c0_i32_8 : i32
    %10 = arith.extui %9 : i1 to i32
    %c0_i32_9 = arith.constant 0 : i32
    %11 = arith.cmpi ne, %10, %c0_i32_9 : i32
    scf.if %11 {
      %c0_10 = arith.constant 0 : index
      %c0_11 = arith.constant 0 : index
      %12 = vector.load %arg8[%c0_10, %c0_11] : memref<256x128xf32, #tpu.memory_space<vmem>>, vector<256x128xf32>
      %c0_12 = arith.constant 0 : index
      %c0_13 = arith.constant 0 : index
      %13 = vector.load %arg5[%c0_12, %c0_13] : memref<1x128xf32, #tpu.memory_space<vmem>>, vector<1x128xf32>
      %14 = vector.broadcast %13 : vector<1x128xf32> to vector<256x128xf32>
      %15 = arith.mulf %12, %14 : vector<256x128xf32>
      %c0_14 = arith.constant 0 : index
      %c0_15 = arith.constant 0 : index
      %16 = vector.load %arg6[%c0_14, %c0_15] : memref<1x128xf32, #tpu.memory_space<vmem>>, vector<1x128xf32>
      %17 = vector.broadcast %16 : vector<1x128xf32> to vector<256x128xf32>
      %18 = arith.addf %15, %17 : vector<256x128xf32>
      %cst_16 = arith.constant 0.000000e+00 : f32
      %19 = vector.broadcast %cst_16 : f32 to vector<256x128xf32>
      %20 = arith.maximumf %18, %19 : vector<256x128xf32>
      %c0_17 = arith.constant 0 : index
      %c0_18 = arith.constant 0 : index
      %21 = vector.load %arg7[%c0_17, %c0_18] : memref<256x128xf32, #tpu.memory_space<vmem>>, vector<256x128xf32>
      tpu.vector_store %arg7[%c0_17, %c0_18], %20 {strides = array<i32>} : memref<256x128xf32, #tpu.memory_space<vmem>>, vector<256x128xf32>,
    } else {
    }
    return
  }
  func.func @transform_0(%arg0: i32, %arg1: i32, %arg2: i32) -> (i32, i32) {
    %c0_i32 = arith.constant 0 : i32
    return %arg0, %arg2 : i32, i32
  }
  func.func @transform_1(%arg0: i32, %arg1: i32, %arg2: i32) -> (i32, i32) {
    %c0_i32 = arith.constant 0 : i32
    return %arg2, %arg1 : i32, i32
  }
  func.func @transform_2(%arg0: i32, %arg1: i32, %arg2: i32) -> (i32, i32) {
    %c0_i32 = arith.constant 0 : i32
    %c0_i32_0 = arith.constant 0 : i32
    return %c0_i32, %arg1 : i32, i32
  }
  func.func @transform_3(%arg0: i32, %arg1: i32, %arg2: i32) -> (i32, i32) {
    %c0_i32 = arith.constant 0 : i32
    %c0_i32_0 = arith.constant 0 : i32
    return %c0_i32, %arg1 : i32, i32
  }
  func.func @transform_4(%arg0: i32, %arg1: i32, %arg2: i32) -> (i32, i32) {
    %c0_i32 = arith.constant 0 : i32
    return %arg0, %arg1 : i32, i32
  }
}

module attributes {stable_mosaic.version = 11 : i64} {
  func.func @_mm_epi_kernel(%arg0: i32, %arg1: i32, %arg2: i32, %arg3: memref<256x64xbf16, #tpu.memory_space<vmem>>, %arg4: memref<64x256xbf16, #tpu.memory_space<vmem>>, %arg5: memref<1x256xf32, #tpu.memory_space<vmem>>, %arg6: memref<1x256xf32, #tpu.memory_space<vmem>>, %arg7: memref<256x256xf32, #tpu.memory_space<vmem>>, %arg8: memref<256x256xf32, #tpu.memory_space<vmem>>) attributes {dimension_semantics = [#tpu.dimension_semantics<parallel>, #tpu.dimension_semantics<parallel>, #tpu.dimension_semantics<arbitrary>], iteration_bounds = array<i64: 2, 1, 1>, scalar_prefetch = 0 : i64, scratch_operands = 1 : i64, tpu.core_type = #tpu.core_type<tc>, window_params = [{transform_indices = @transform_0, window_bounds = array<i64: 256, 64>}, {transform_indices = @transform_1, window_bounds = array<i64: 64, 256>}, {transform_indices = @transform_2, window_bounds = array<i64: 1, 256>}, {transform_indices = @transform_3, window_bounds = array<i64: 1, 256>}, {transform_indices = @transform_4, window_bounds = array<i64: 256, 256>}]} {
    %c0_i32 = arith.constant 0 : i32
    %0 = arith.cmpi eq, %arg2, %c0_i32 : i32
    %1 = arith.extui %0 : i1 to i32
    %c0_i32_0 = arith.constant 0 : i32
    %2 = arith.cmpi ne, %1, %c0_i32_0 : i32
    scf.if %2 {
      %cst_10 = arith.constant 0.000000e+00 : f32
      %12 = vector.broadcast %cst_10 : f32 to vector<256x256xf32>
      %c0_11 = arith.constant 0 : index
      %c0_12 = arith.constant 0 : index
      %13 = vector.load %arg8[%c0_11, %c0_12] : memref<256x256xf32, #tpu.memory_space<vmem>>, vector<256x256xf32>
      tpu.vector_store %arg8[%c0_11, %c0_12], %12 {strides = array<i32>} : memref<256x256xf32, #tpu.memory_space<vmem>>, vector<256x256xf32>,
    } else {
    }
    %c0 = arith.constant 0 : index
    %c0_1 = arith.constant 0 : index
    %3 = vector.load %arg8[%c0, %c0_1] : memref<256x256xf32, #tpu.memory_space<vmem>>, vector<256x256xf32>
    %c0_2 = arith.constant 0 : index
    %c0_3 = arith.constant 0 : index
    %4 = vector.load %arg3[%c0_2, %c0_3] : memref<256x64xbf16, #tpu.memory_space<vmem>>, vector<256x64xbf16>
    %c0_4 = arith.constant 0 : index
    %c0_5 = arith.constant 0 : index
    %5 = vector.load %arg4[%c0_4, %c0_5] : memref<64x256xbf16, #tpu.memory_space<vmem>>, vector<64x256xbf16>
    %cst = arith.constant dense<0.000000e+00> : vector<256x256xf32>
    %6 = tpu.matmul %4, %5, %cst {dimension_numbers = #tpu.dot_dimension_numbers<[1], [0], [0], [1], [0, 0, 1, 1], [], []>} : vector<256x64xbf16>, vector<64x256xbf16>, vector<256x256xf32> -> vector<256x256xf32>
    %7 = arith.addf %3, %6 : vector<256x256xf32>
    %c0_6 = arith.constant 0 : index
    %c0_7 = arith.constant 0 : index
    %8 = vector.load %arg8[%c0_6, %c0_7] : memref<256x256xf32, #tpu.memory_space<vmem>>, vector<256x256xf32>
    tpu.vector_store %arg8[%c0_6, %c0_7], %7 {strides = array<i32>} : memref<256x256xf32, #tpu.memory_space<vmem>>, vector<256x256xf32>,
    %c0_i32_8 = arith.constant 0 : i32
    %9 = arith.cmpi eq, %arg2, %c0_i32_8 : i32
    %10 = arith.extui %9 : i1 to i32
    %c0_i32_9 = arith.constant 0 : i32
    %11 = arith.cmpi ne, %10, %c0_i32_9 : i32
    scf.if %11 {
      %c0_10 = arith.constant 0 : index
      %c0_11 = arith.constant 0 : index
      %12 = vector.load %arg8[%c0_10, %c0_11] : memref<256x256xf32, #tpu.memory_space<vmem>>, vector<256x256xf32>
      %c0_12 = arith.constant 0 : index
      %c0_13 = arith.constant 0 : index
      %13 = vector.load %arg5[%c0_12, %c0_13] : memref<1x256xf32, #tpu.memory_space<vmem>>, vector<1x256xf32>
      %14 = vector.broadcast %13 : vector<1x256xf32> to vector<256x256xf32>
      %15 = arith.mulf %12, %14 : vector<256x256xf32>
      %c0_14 = arith.constant 0 : index
      %c0_15 = arith.constant 0 : index
      %16 = vector.load %arg6[%c0_14, %c0_15] : memref<1x256xf32, #tpu.memory_space<vmem>>, vector<1x256xf32>
      %17 = vector.broadcast %16 : vector<1x256xf32> to vector<256x256xf32>
      %18 = arith.addf %15, %17 : vector<256x256xf32>
      %c0_16 = arith.constant 0 : index
      %c0_17 = arith.constant 0 : index
      %19 = vector.load %arg7[%c0_16, %c0_17] : memref<256x256xf32, #tpu.memory_space<vmem>>, vector<256x256xf32>
      tpu.vector_store %arg7[%c0_16, %c0_17], %18 {strides = array<i32>} : memref<256x256xf32, #tpu.memory_space<vmem>>, vector<256x256xf32>,
    } else {
    }
    return
  }
  func.func @transform_0(%arg0: i32, %arg1: i32, %arg2: i32) -> (i32, i32) {
    %c0_i32 = arith.constant 0 : i32
    return %arg0, %arg2 : i32, i32
  }
  func.func @transform_1(%arg0: i32, %arg1: i32, %arg2: i32) -> (i32, i32) {
    %c0_i32 = arith.constant 0 : i32
    return %arg2, %arg1 : i32, i32
  }
  func.func @transform_2(%arg0: i32, %arg1: i32, %arg2: i32) -> (i32, i32) {
    %c0_i32 = arith.constant 0 : i32
    %c0_i32_0 = arith.constant 0 : i32
    return %c0_i32, %arg1 : i32, i32
  }
  func.func @transform_3(%arg0: i32, %arg1: i32, %arg2: i32) -> (i32, i32) {
    %c0_i32 = arith.constant 0 : i32
    %c0_i32_0 = arith.constant 0 : i32
    return %c0_i32, %arg1 : i32, i32
  }
  func.func @transform_4(%arg0: i32, %arg1: i32, %arg2: i32) -> (i32, i32) {
    %c0_i32 = arith.constant 0 : i32
    return %arg0, %arg1 : i32, i32
  }
}

module attributes {stable_mosaic.version = 11 : i64} {
  func.func @_mm_epi_kernel(%arg0: i32, %arg1: i32, %arg2: i32, %arg3: memref<256x1152xbf16, #tpu.memory_space<vmem>>, %arg4: memref<1152x128xbf16, #tpu.memory_space<vmem>>, %arg5: memref<1x128xf32, #tpu.memory_space<vmem>>, %arg6: memref<1x128xf32, #tpu.memory_space<vmem>>, %arg7: memref<256x128xf32, #tpu.memory_space<vmem>>, %arg8: memref<256x128xf32, #tpu.memory_space<vmem>>) attributes {dimension_semantics = [#tpu.dimension_semantics<parallel>, #tpu.dimension_semantics<parallel>, #tpu.dimension_semantics<arbitrary>], iteration_bounds = array<i64: 8, 1, 1>, scalar_prefetch = 0 : i64, scratch_operands = 1 : i64, tpu.core_type = #tpu.core_type<tc>, window_params = [{transform_indices = @transform_0, window_bounds = array<i64: 256, 1152>}, {transform_indices = @transform_1, window_bounds = array<i64: 1152, 128>}, {transform_indices = @transform_2, window_bounds = array<i64: 1, 128>}, {transform_indices = @transform_3, window_bounds = array<i64: 1, 128>}, {transform_indices = @transform_4, window_bounds = array<i64: 256, 128>}]} {
    %c0_i32 = arith.constant 0 : i32
    %0 = arith.cmpi eq, %arg2, %c0_i32 : i32
    %1 = arith.extui %0 : i1 to i32
    %c0_i32_0 = arith.constant 0 : i32
    %2 = arith.cmpi ne, %1, %c0_i32_0 : i32
    scf.if %2 {
      %cst_10 = arith.constant 0.000000e+00 : f32
      %12 = vector.broadcast %cst_10 : f32 to vector<256x128xf32>
      %c0_11 = arith.constant 0 : index
      %c0_12 = arith.constant 0 : index
      %13 = vector.load %arg8[%c0_11, %c0_12] : memref<256x128xf32, #tpu.memory_space<vmem>>, vector<256x128xf32>
      tpu.vector_store %arg8[%c0_11, %c0_12], %12 {strides = array<i32>} : memref<256x128xf32, #tpu.memory_space<vmem>>, vector<256x128xf32>,
    } else {
    }
    %c0 = arith.constant 0 : index
    %c0_1 = arith.constant 0 : index
    %3 = vector.load %arg8[%c0, %c0_1] : memref<256x128xf32, #tpu.memory_space<vmem>>, vector<256x128xf32>
    %c0_2 = arith.constant 0 : index
    %c0_3 = arith.constant 0 : index
    %4 = vector.load %arg3[%c0_2, %c0_3] : memref<256x1152xbf16, #tpu.memory_space<vmem>>, vector<256x1152xbf16>
    %c0_4 = arith.constant 0 : index
    %c0_5 = arith.constant 0 : index
    %5 = vector.load %arg4[%c0_4, %c0_5] : memref<1152x128xbf16, #tpu.memory_space<vmem>>, vector<1152x128xbf16>
    %cst = arith.constant dense<0.000000e+00> : vector<256x128xf32>
    %6 = tpu.matmul %4, %5, %cst {dimension_numbers = #tpu.dot_dimension_numbers<[1], [0], [0], [1], [0, 0, 1, 1], [], []>} : vector<256x1152xbf16>, vector<1152x128xbf16>, vector<256x128xf32> -> vector<256x128xf32>
    %7 = arith.addf %3, %6 : vector<256x128xf32>
    %c0_6 = arith.constant 0 : index
    %c0_7 = arith.constant 0 : index
    %8 = vector.load %arg8[%c0_6, %c0_7] : memref<256x128xf32, #tpu.memory_space<vmem>>, vector<256x128xf32>
    tpu.vector_store %arg8[%c0_6, %c0_7], %7 {strides = array<i32>} : memref<256x128xf32, #tpu.memory_space<vmem>>, vector<256x128xf32>,
    %c0_i32_8 = arith.constant 0 : i32
    %9 = arith.cmpi eq, %arg2, %c0_i32_8 : i32
    %10 = arith.extui %9 : i1 to i32
    %c0_i32_9 = arith.constant 0 : i32
    %11 = arith.cmpi ne, %10, %c0_i32_9 : i32
    scf.if %11 {
      %c0_10 = arith.constant 0 : index
      %c0_11 = arith.constant 0 : index
      %12 = vector.load %arg8[%c0_10, %c0_11] : memref<256x128xf32, #tpu.memory_space<vmem>>, vector<256x128xf32>
      %c0_12 = arith.constant 0 : index
      %c0_13 = arith.constant 0 : index
      %13 = vector.load %arg5[%c0_12, %c0_13] : memref<1x128xf32, #tpu.memory_space<vmem>>, vector<1x128xf32>
      %14 = vector.broadcast %13 : vector<1x128xf32> to vector<256x128xf32>
      %15 = arith.mulf %12, %14 : vector<256x128xf32>
      %c0_14 = arith.constant 0 : index
      %c0_15 = arith.constant 0 : index
      %16 = vector.load %arg6[%c0_14, %c0_15] : memref<1x128xf32, #tpu.memory_space<vmem>>, vector<1x128xf32>
      %17 = vector.broadcast %16 : vector<1x128xf32> to vector<256x128xf32>
      %18 = arith.addf %15, %17 : vector<256x128xf32>
      %cst_16 = arith.constant 0.000000e+00 : f32
      %19 = vector.broadcast %cst_16 : f32 to vector<256x128xf32>
      %20 = arith.maximumf %18, %19 : vector<256x128xf32>
      %c0_17 = arith.constant 0 : index
      %c0_18 = arith.constant 0 : index
      %21 = vector.load %arg7[%c0_17, %c0_18] : memref<256x128xf32, #tpu.memory_space<vmem>>, vector<256x128xf32>
      tpu.vector_store %arg7[%c0_17, %c0_18], %20 {strides = array<i32>} : memref<256x128xf32, #tpu.memory_space<vmem>>, vector<256x128xf32>,
    } else {
    }
    return
  }
  func.func @transform_0(%arg0: i32, %arg1: i32, %arg2: i32) -> (i32, i32) {
    %c0_i32 = arith.constant 0 : i32
    return %arg0, %arg2 : i32, i32
  }
  func.func @transform_1(%arg0: i32, %arg1: i32, %arg2: i32) -> (i32, i32) {
    %c0_i32 = arith.constant 0 : i32
    return %arg2, %arg1 : i32, i32
  }
  func.func @transform_2(%arg0: i32, %arg1: i32, %arg2: i32) -> (i32, i32) {
    %c0_i32 = arith.constant 0 : i32
    %c0_i32_0 = arith.constant 0 : i32
    return %c0_i32, %arg1 : i32, i32
  }
  func.func @transform_3(%arg0: i32, %arg1: i32, %arg2: i32) -> (i32, i32) {
    %c0_i32 = arith.constant 0 : i32
    %c0_i32_0 = arith.constant 0 : i32
    return %c0_i32, %arg1 : i32, i32
  }
  func.func @transform_4(%arg0: i32, %arg1: i32, %arg2: i32) -> (i32, i32) {
    %c0_i32 = arith.constant 0 : i32
    return %arg0, %arg1 : i32, i32
  }
}

module attributes {stable_mosaic.version = 11 : i64} {
  func.func @_mm_epi_kernel(%arg0: i32, %arg1: i32, %arg2: i32, %arg3: memref<256x64xbf16, #tpu.memory_space<vmem>>, %arg4: memref<64x128xbf16, #tpu.memory_space<vmem>>, %arg5: memref<1x128xf32, #tpu.memory_space<vmem>>, %arg6: memref<1x128xf32, #tpu.memory_space<vmem>>, %arg7: memref<256x128xf32, #tpu.memory_space<vmem>>, %arg8: memref<256x128xf32, #tpu.memory_space<vmem>>) attributes {dimension_semantics = [#tpu.dimension_semantics<parallel>, #tpu.dimension_semantics<parallel>, #tpu.dimension_semantics<arbitrary>], iteration_bounds = array<i64: 8, 1, 1>, scalar_prefetch = 0 : i64, scratch_operands = 1 : i64, tpu.core_type = #tpu.core_type<tc>, window_params = [{transform_indices = @transform_0, window_bounds = array<i64: 256, 64>}, {transform_indices = @transform_1, window_bounds = array<i64: 64, 128>}, {transform_indices = @transform_2, window_bounds = array<i64: 1, 128>}, {transform_indices = @transform_3, window_bounds = array<i64: 1, 128>}, {transform_indices = @transform_4, window_bounds = array<i64: 256, 128>}]} {
    %c0_i32 = arith.constant 0 : i32
    %0 = arith.cmpi eq, %arg2, %c0_i32 : i32
    %1 = arith.extui %0 : i1 to i32
    %c0_i32_0 = arith.constant 0 : i32
    %2 = arith.cmpi ne, %1, %c0_i32_0 : i32
    scf.if %2 {
      %cst_10 = arith.constant 0.000000e+00 : f32
      %12 = vector.broadcast %cst_10 : f32 to vector<256x128xf32>
      %c0_11 = arith.constant 0 : index
      %c0_12 = arith.constant 0 : index
      %13 = vector.load %arg8[%c0_11, %c0_12] : memref<256x128xf32, #tpu.memory_space<vmem>>, vector<256x128xf32>
      tpu.vector_store %arg8[%c0_11, %c0_12], %12 {strides = array<i32>} : memref<256x128xf32, #tpu.memory_space<vmem>>, vector<256x128xf32>,
    } else {
    }
    %c0 = arith.constant 0 : index
    %c0_1 = arith.constant 0 : index
    %3 = vector.load %arg8[%c0, %c0_1] : memref<256x128xf32, #tpu.memory_space<vmem>>, vector<256x128xf32>
    %c0_2 = arith.constant 0 : index
    %c0_3 = arith.constant 0 : index
    %4 = vector.load %arg3[%c0_2, %c0_3] : memref<256x64xbf16, #tpu.memory_space<vmem>>, vector<256x64xbf16>
    %c0_4 = arith.constant 0 : index
    %c0_5 = arith.constant 0 : index
    %5 = vector.load %arg4[%c0_4, %c0_5] : memref<64x128xbf16, #tpu.memory_space<vmem>>, vector<64x128xbf16>
    %cst = arith.constant dense<0.000000e+00> : vector<256x128xf32>
    %6 = tpu.matmul %4, %5, %cst {dimension_numbers = #tpu.dot_dimension_numbers<[1], [0], [0], [1], [0, 0, 1, 1], [], []>} : vector<256x64xbf16>, vector<64x128xbf16>, vector<256x128xf32> -> vector<256x128xf32>
    %7 = arith.addf %3, %6 : vector<256x128xf32>
    %c0_6 = arith.constant 0 : index
    %c0_7 = arith.constant 0 : index
    %8 = vector.load %arg8[%c0_6, %c0_7] : memref<256x128xf32, #tpu.memory_space<vmem>>, vector<256x128xf32>
    tpu.vector_store %arg8[%c0_6, %c0_7], %7 {strides = array<i32>} : memref<256x128xf32, #tpu.memory_space<vmem>>, vector<256x128xf32>,
    %c0_i32_8 = arith.constant 0 : i32
    %9 = arith.cmpi eq, %arg2, %c0_i32_8 : i32
    %10 = arith.extui %9 : i1 to i32
    %c0_i32_9 = arith.constant 0 : i32
    %11 = arith.cmpi ne, %10, %c0_i32_9 : i32
    scf.if %11 {
      %c0_10 = arith.constant 0 : index
      %c0_11 = arith.constant 0 : index
      %12 = vector.load %arg8[%c0_10, %c0_11] : memref<256x128xf32, #tpu.memory_space<vmem>>, vector<256x128xf32>
      %c0_12 = arith.constant 0 : index
      %c0_13 = arith.constant 0 : index
      %13 = vector.load %arg5[%c0_12, %c0_13] : memref<1x128xf32, #tpu.memory_space<vmem>>, vector<1x128xf32>
      %14 = vector.broadcast %13 : vector<1x128xf32> to vector<256x128xf32>
      %15 = arith.mulf %12, %14 : vector<256x128xf32>
      %c0_14 = arith.constant 0 : index
      %c0_15 = arith.constant 0 : index
      %16 = vector.load %arg6[%c0_14, %c0_15] : memref<1x128xf32, #tpu.memory_space<vmem>>, vector<1x128xf32>
      %17 = vector.broadcast %16 : vector<1x128xf32> to vector<256x128xf32>
      %18 = arith.addf %15, %17 : vector<256x128xf32>
      %c0_16 = arith.constant 0 : index
      %c0_17 = arith.constant 0 : index
      %19 = vector.load %arg7[%c0_16, %c0_17] : memref<256x128xf32, #tpu.memory_space<vmem>>, vector<256x128xf32>
      tpu.vector_store %arg7[%c0_16, %c0_17], %18 {strides = array<i32>} : memref<256x128xf32, #tpu.memory_space<vmem>>, vector<256x128xf32>,
    } else {
    }
    return
  }
  func.func @transform_0(%arg0: i32, %arg1: i32, %arg2: i32) -> (i32, i32) {
    %c0_i32 = arith.constant 0 : i32
    return %arg0, %arg2 : i32, i32
  }
  func.func @transform_1(%arg0: i32, %arg1: i32, %arg2: i32) -> (i32, i32) {
    %c0_i32 = arith.constant 0 : i32
    return %arg2, %arg1 : i32, i32
  }
  func.func @transform_2(%arg0: i32, %arg1: i32, %arg2: i32) -> (i32, i32) {
    %c0_i32 = arith.constant 0 : i32
    %c0_i32_0 = arith.constant 0 : i32
    return %c0_i32, %arg1 : i32, i32
  }
  func.func @transform_3(%arg0: i32, %arg1: i32, %arg2: i32) -> (i32, i32) {
    %c0_i32 = arith.constant 0 : i32
    %c0_i32_0 = arith.constant 0 : i32
    return %c0_i32, %arg1 : i32, i32
  }
  func.func @transform_4(%arg0: i32, %arg1: i32, %arg2: i32) -> (i32, i32) {
    %c0_i32 = arith.constant 0 : i32
    return %arg0, %arg1 : i32, i32
  }
}

</mosaic_0001>

<llo_original>
// kernel: resnet_unet_forward.7
$region0: #{resnet_unet_forward.7}
  #allocation0 [shape = 'u32[]', space=smem, size = 0x4, offset = 0x4, fixed_abs, tag = 'smem constant byte address 0x4 - core index']
  #allocation1 [shape = 'u32[144,128]{1,0:T(1,128)}', space=vmem, size = 0x12000, scoped, tag = 'internal scratch']
  #allocation2 [shape = 'f32[256,128]{1,0:T(8,128)}', space=vmem, size = 0x20000, scoped, tag = 'scratch operand']
  %s0 = inlined_call_operand.vmem [shape: bf16[2048,32], index: 0, kind: input, shape index: {}]
  %s1 = inlined_call_operand.vmem [shape: bf16[32,128], index: 1, kind: input, shape index: {}]
  %s2 = inlined_call_operand.vmem [shape: f32[1,128], index: 2, kind: input, shape index: {}]
  %s3 = inlined_call_operand.vmem [shape: f32[1,128], index: 3, kind: input, shape index: {}]
  %s4 = inlined_call_operand.vmem [shape: f32[2048,128], index: 4, kind: output, shape index: {}]
  %s5 = sld [smem:[#allocation0]]
  $region57: #{resnet_unet_forward.7} parent=0
    _
  %s7 = ssub.s32 1, %s5
  %s8 = scalar_select 0, %s7, %s5
  loop: start=0, step=1, limit=10
  $region2: #{resnet_unet_forward.7} parent=0 // loop_pre_header
    _
  $region3: #{resnet_unet_forward.7} parent=0 // loop_header
    %s10 = sphi 0, %s14
    %p11 = scmp.ge.s32.totalorder %s10, 10
    %s17 = sphi 0, %s36
    %s18 = sphi 0, %s32
    %s19 = sphi 0, %s28
    %s20 = sphi 0, %s17
    %s21 = sphi 0, %s18
    %s22 = sphi 0, %s19
    %s23 = sphi 0, %s20
    %s24 = sphi 0, %s21
    %s25 = sphi 0, %s22
    %s41 = sphi 0, %s43
    %s44 = sphi 0, %s41
    %s45 = sphi 0, %s44
    %s61 = sphi 0, %s45
    %s69 = sphi 0, %s71
    %s72 = sphi 0, %s69
    %s73 = sphi 0, %s72
    %s89 = sphi 0, %s73
    %s95 = sphi 0, %s97
    %s98 = sphi 0, %s95
    %s99 = sphi 0, %s98
    %s115 = sphi 0, %s99
    %s121 = sphi 0, %s123
    %s124 = sphi 0, %s121
    %s125 = sphi 0, %s124
    %s141 = sphi 0, %s125
    %s149 = sphi 0, %s151
    %s152 = sphi 0, %s149
    %s153 = sphi 0, %s152
    %s169 = sphi 0, %s153
  $region4: #{resnet_unet_forward.7} parent=0 // loop_header_branch
    %13 = sbr.rel (%p11) target = $region8
  $region5: #{resnet_unet_forward.7} parent=0 // loop_body
    %s15 = ssub.s32 %s10, 1
    %s16 = ssub.s32 %s10, 2
    %s26 = sadd.s32 1, %s19
    %p27 = scmp.ge.s32.totalorder %s26, 1
    %s28 = scalar_select %p27, 0, %s26
    %s29 = sadd.s32 1, %s18
    %s30 = scalar_select %p27, %s29, %s18
    %p31 = scmp.ge.s32.totalorder %s30, 1
    %s32 = scalar_select %p31, 0, %s30
    %s33 = sadd.s32 1, %s17
    %s34 = scalar_select %p31, %s33, %s17
    %p35 = scmp.ge.s32.totalorder %s34, 8
    %s36 = scalar_select %p35, 0, %s34
    %s37 = ssub.s32 %s17, %s36
    %s38 = ssub.s32 %s19, %s28
    %s39 = sor.u32 %s37, %s38
    %p40 = scmp.eq.s32.totalorder %s39, 0
    %s42 = sadd.s32 %s41, 1
    %s43 = scalar_select %p40, %s41, %s42
    %p46 = pneg %p40
    %p47 = scmp.eq.s32.totalorder %s10, 7
    %p48 = por %p46, %p47
    %p49 = scmp.ne.s32.totalorder %s41, %s44
    %p50 = scmp.eq.s32.totalorder %s10, 0
    %p51 = por %p49, %p50
    %p52 = scmp.ne.s32.totalorder %s41, %s44
    %p53 = scmp.eq.s32.totalorder %s15, 7
    %p54 = por %p52, %p53
    %p55 = scmp.ne.s32.totalorder %s44, %s45
    %p56 = scmp.eq.s32.totalorder %s15, 0
    %p57 = por %p55, %p56
    %p58 = scmp.ne.s32.totalorder %s44, %s45
    %p59 = scmp.eq.s32.totalorder %s16, 7
    %p60 = por %p58, %p59
    %p62 = scmp.ne.s32.totalorder %s45, %s61
    %p63 = scmp.eq.s32.totalorder %s16, 0
    %p64 = por %p62, %p63
    %s65 = ssub.s32 %s19, %s28
    %s66 = ssub.s32 %s18, %s32
    %s67 = sor.u32 %s65, %s66
    %p68 = scmp.eq.s32.totalorder %s67, 0
    %s70 = sadd.s32 %s69, 1
    %s71 = scalar_select %p68, %s69, %s70
    %p74 = pneg %p68
    %p75 = scmp.eq.s32.totalorder %s10, 7
    %p76 = por %p74, %p75
    %p77 = scmp.ne.s32.totalorder %s69, %s72
    %p78 = scmp.eq.s32.totalorder %s10, 0
    %p79 = por %p77, %p78
    %p80 = scmp.ne.s32.totalorder %s69, %s72
    %p81 = scmp.eq.s32.totalorder %s15, 7
    %p82 = por %p80, %p81
    %p83 = scmp.ne.s32.totalorder %s72, %s73
    %p84 = scmp.eq.s32.totalorder %s15, 0
    %p85 = por %p83, %p84
    %p86 = scmp.ne.s32.totalorder %s72, %s73
    %p87 = scmp.eq.s32.totalorder %s16, 7
    %p88 = por %p86, %p87
    %p90 = scmp.ne.s32.totalorder %s73, %s89
    %p91 = scmp.eq.s32.totalorder %s16, 0
    %p92 = por %p90, %p91
    %s93 = ssub.s32 %s18, %s32
    %p94 = scmp.eq.s32.totalorder %s93, 0
    %s96 = sadd.s32 %s95, 1
    %s97 = scalar_select %p94, %s95, %s96
    %p100 = pneg %p94
    %p101 = scmp.eq.s32.totalorder %s10, 7
    %p102 = por %p100, %p101
    %p103 = scmp.ne.s32.totalorder %s95, %s98
    %p104 = scmp.eq.s32.totalorder %s10, 0
    %p105 = por %p103, %p104
    %p106 = scmp.ne.s32.totalorder %s95, %s98
    %p107 = scmp.eq.s32.totalorder %s15, 7
    %p108 = por %p106, %p107
    %p109 = scmp.ne.s32.totalorder %s98, %s99
    %p110 = scmp.eq.s32.totalorder %s15, 0
    %p111 = por %p109, %p110
    %p112 = scmp.ne.s32.totalorder %s98, %s99
    %p113 = scmp.eq.s32.totalorder %s16, 7
    %p114 = por %p112, %p113
    %p116 = scmp.ne.s32.totalorder %s99, %s115
    %p117 = scmp.eq.s32.totalorder %s16, 0
    %p118 = por %p116, %p117
    %s119 = ssub.s32 %s18, %s32
    %p120 = scmp.eq.s32.totalorder %s119, 0
    %s122 = sadd.s32 %s121, 1
    %s123 = scalar_select %p120, %s121, %s122
    %p126 = pneg %p120
    %p127 = scmp.eq.s32.totalorder %s10, 7
    %p128 = por %p126, %p127
    %p129 = scmp.ne.s32.totalorder %s121, %s124
    %p130 = scmp.eq.s32.totalorder %s10, 0
    %p131 = por %p129, %p130
    %p132 = scmp.ne.s32.totalorder %s121, %s124
    %p133 = scmp.eq.s32.totalorder %s15, 7
    %p134 = por %p132, %p133
    %p135 = scmp.ne.s32.totalorder %s124, %s125
    %p136 = scmp.eq.s32.totalorder %s15, 0
    %p137 = por %p135, %p136
    %p138 = scmp.ne.s32.totalorder %s124, %s125
    %p139 = scmp.eq.s32.totalorder %s16, 7
    %p140 = por %p138, %p139
    %p142 = scmp.ne.s32.totalorder %s125, %s141
    %p143 = scmp.eq.s32.totalorder %s16, 0
    %p144 = por %p142, %p143
    %s145 = ssub.s32 %s17, %s36
    %s146 = ssub.s32 %s18, %s32
    %s147 = sor.u32 %s145, %s146
    %p148 = scmp.eq.s32.totalorder %s147, 0
    %s150 = sadd.s32 %s149, 1
    %s151 = scalar_select %p148, %s149, %s150
    %p154 = pneg %p148
    %p155 = scmp.eq.s32.totalorder %s10, 7
    %p156 = por %p154, %p155
    %p157 = scmp.ne.s32.totalorder %s149, %s152
    %p158 = scmp.eq.s32.totalorder %s10, 0
    %p159 = por %p157, %p158
    %p160 = scmp.ne.s32.totalorder %s149, %s152
    %p161 = scmp.eq.s32.totalorder %s15, 7
    %p162 = por %p160, %p161
    %p163 = scmp.ne.s32.totalorder %s152, %s153
    %p164 = scmp.eq.s32.totalorder %s15, 0
    %p165 = por %p163, %p164
    %p166 = scmp.ne.s32.totalorder %s152, %s153
    %p167 = scmp.eq.s32.totalorder %s16, 7
    %p168 = por %p166, %p167
    %p170 = scmp.ne.s32.totalorder %s153, %s169
    %p171 = scmp.eq.s32.totalorder %s16, 0
    %p172 = por %p170, %p171
    %p173 = scmp.le.s32.totalorder 1, %s10
    %p174 = scmp.lt.s32.totalorder %s10, 9
    %p175 = pnand %p173, %p174
    %p176 = pneg %p175
    // Predicated region
    $region9: #{resnet_unet_forward.7} parent=5 // pred_check
      _
    $region10: #{resnet_unet_forward.7} parent=5 // pred_check_branch
      %178 = sbr.rel (%p175) target = $region12
    $region11: #{resnet_unet_forward.7} parent=5 // pred_region
      %s179 = ssub.s32 %s10, 1
      // Predicated region
      $region13: #{resnet_unet_forward.7} parent=11 // pred_check
        %p180 = pneg %p85
      $region14: #{resnet_unet_forward.7} parent=11 // pred_check_branch
        %182 = sbr.rel (%p180) target = $region16
      $region15: #{resnet_unet_forward.7} parent=11 // pred_region
        %s183 = smul.u32 4, %s22
        %p184 = scmp.lt.s32.totalorder %s183, 3
        %s185 = scalar_select %p184, %s183, 3
        %p186 = scmp.lt.s32.totalorder %s21, 0
        %s187 = scalar_select %p186, %s21, 0
        %s188 = sadd.s32 %s187, %s185
        %s189 = smul.addr %s188, 4
        %s190 = scalar_lea.vmem %s1, %s189
        %s191 = smul.u32 4, %s22
      $region16: #{resnet_unet_forward.7} parent=11 // pred_fallthru
        _
      // Predicated region
      $region17: #{resnet_unet_forward.7} parent=11 // pred_check
        %p192 = pneg %p111
      $region18: #{resnet_unet_forward.7} parent=11 // pred_check_branch
        %194 = sbr.rel (%p192) target = $region20
      $region19: #{resnet_unet_forward.7} parent=11 // pred_region
        %p195 = scmp.lt.s32.totalorder %s21, 0
        %s196 = scalar_select %p195, %s21, 0
        %s197 = scalar_lea.vmem %s2, %s196
      $region20: #{resnet_unet_forward.7} parent=11 // pred_fallthru
        _
      // Predicated region
      $region21: #{resnet_unet_forward.7} parent=11 // pred_check
        %p198 = pneg %p137
      $region22: #{resnet_unet_forward.7} parent=11 // pred_check_branch
        %200 = sbr.rel (%p198) target = $region24
      $region23: #{resnet_unet_forward.7} parent=11 // pred_region
        %p201 = scmp.lt.s32.totalorder %s21, 0
        %s202 = scalar_select %p201, %s21, 0
        %s203 = scalar_lea.vmem %s3, %s202
      $region24: #{resnet_unet_forward.7} parent=11 // pred_fallthru
        _
    $region12: #{resnet_unet_forward.7} parent=5 // pred_fallthru
      _
    %p204 = scmp.lt.s32.totalorder %s10, 8
    // Predicated region
    $region25: #{resnet_unet_forward.7} parent=5 // pred_check
      %p205 = pneg %p204
    $region26: #{resnet_unet_forward.7} parent=5 // pred_check_branch
      %207 = sbr.rel (%p205) target = $region28
    $region27: #{resnet_unet_forward.7} parent=5 // pred_region
      // Predicated region
      $region29: #{resnet_unet_forward.7} parent=27 // pred_check
        %p208 = pneg %p51
      $region30: #{resnet_unet_forward.7} parent=27 // pred_check_branch
        %210 = sbr.rel (%p208) target = $region32
      $region31: #{resnet_unet_forward.7} parent=27 // pred_region
        %s211 = smul.u32 32, %s17
        %p212 = scmp.lt.s32.totalorder %s211, 255
        %s213 = scalar_select %p212, %s211, 255
        %p214 = scmp.lt.s32.totalorder %s19, 0
        %s215 = scalar_select %p214, %s19, 0
        %s216 = sadd.s32 %s215, %s213
        %s217 = smul.addr %s216, 4
        %s218 = scalar_lea.vmem %s0, %s217
        %s219 = smul.u32 32, %s17
      $region32: #{resnet_unet_forward.7} parent=27 // pred_fallthru
        _
    $region28: #{resnet_unet_forward.7} parent=5 // pred_fallthru
      _
    %p220 = scmp.le.s32.totalorder 1, %s10
    %p221 = scmp.lt.s32.totalorder %s10, 9
    %p222 = pnand %p220, %p221
    %p223 = pneg %p222
    // Predicated region
    $region33: #{resnet_unet_forward.7} parent=5 // pred_check
      _
    $region34: #{resnet_unet_forward.7} parent=5 // pred_check_branch
      %225 = sbr.rel (%p222) target = $region36
    $region35: #{resnet_unet_forward.7} parent=5 // pred_region
      %s226 = ssub.s32 %s10, 1
      %s227 = smul.u32 32, %s20
      %p228 = scmp.lt.s32.totalorder %s227, 255
      %s229 = scalar_select %p228, %s227, 255
      %p230 = scmp.lt.s32.totalorder %s22, 0
      %s231 = scalar_select %p230, %s22, 0
      %s232 = sadd.s32 %s231, %s229
      %s233 = smul.addr %s232, 4
      %s234 = scalar_lea.vmem %s0, %s233
      %p235 = pneg %p57
      %p236 = pneg %p54
      %s237 = smul.u32 4, %s22
      %p238 = scmp.lt.s32.totalorder %s237, 3
      %s239 = scalar_select %p238, %s237, 3
      %p240 = scmp.lt.s32.totalorder %s21, 0
      %s241 = scalar_select %p240, %s21, 0
      %s242 = sadd.s32 %s241, %s239
      %s243 = smul.addr %s242, 4
      %s244 = scalar_lea.vmem %s1, %s243
      %p245 = pneg %p85
      %p246 = pneg %p82
      %p247 = scmp.lt.s32.totalorder %s21, 0
      %s248 = scalar_select %p247, %s21, 0
      %s249 = scalar_lea.vmem %s2, %s248
      %p250 = pneg %p111
      %p251 = pneg %p108
      %p252 = scmp.lt.s32.totalorder %s21, 0
      %s253 = scalar_select %p252, %s21, 0
      %s254 = scalar_lea.vmem %s3, %s253
      %p255 = pneg %p137
      %p256 = pneg %p134
      %p257 = pneg %p165
      %p258 = pneg %p162
      %s259 = smul.u32 32, %s20
      %p260 = scmp.lt.s32.totalorder %s259, 255
      %s261 = scalar_select %p260, %s259, 255
      %p262 = scmp.lt.s32.totalorder %s21, 0
      %s263 = scalar_select %p262, %s21, 0
      %s264 = sadd.s32 %s263, %s261
      %s265 = smul.addr %s264, 8
      %s266 = scalar_lea.vmem %s4, %s265
      %s267 = smul.u32 32, %s20
      %p268 = scmp.lt.s32.totalorder %s267, 255
      %s269 = scalar_select %p268, %s267, 255
      %p270 = scmp.lt.s32.totalorder %s22, 0
      %s271 = scalar_select %p270, %s22, 0
      %s272 = sadd.s32 %s271, %s269
      %s273 = smul.addr %s272, 4
      %s274 = scalar_lea.vmem %s0, %s273
      %s275 = smul.u32 32, %s20
      %s276 = smul.u32 4, %s22
      %p277 = scmp.lt.s32.totalorder %s276, 3
      %s278 = scalar_select %p277, %s276, 3
      %p279 = scmp.lt.s32.totalorder %s21, 0
      %s280 = scalar_select %p279, %s21, 0
      %s281 = sadd.s32 %s280, %s278
      %s282 = smul.addr %s281, 4
      %s283 = scalar_lea.vmem %s1, %s282
      %s284 = smul.u32 4, %s22
      %p285 = scmp.lt.s32.totalorder %s21, 0
      %s286 = scalar_select %p285, %s21, 0
      %s287 = scalar_lea.vmem %s2, %s286
      %p288 = scmp.lt.s32.totalorder %s21, 0
      %s289 = scalar_select %p288, %s21, 0
      %s290 = scalar_lea.vmem %s3, %s289
      %s291 = smul.u32 32, %s20
      %p292 = scmp.lt.s32.totalorder %s291, 255
      %s293 = scalar_select %p292, %s291, 255
      %p294 = scmp.lt.s32.totalorder %s21, 0
      %s295 = scalar_select %p294, %s21, 0
      %s296 = sadd.s32 %s295, %s293
      %s297 = smul.addr %s296, 8
      %s298 = scalar_lea.vmem %s4, %s297
      %s299 = smul.u32 32, %s20
      %p301 = scmp.eq.s32.totalorder %s22, 0
      // Predicated region
      $region37: #{resnet_unet_forward.7} parent=35 // pred_check
        %p302 = pneg %p301
      $region38: #{resnet_unet_forward.7} parent=35 // pred_check_branch
        %304 = sbr.rel (%p302) target = $region40
      $region39: #{resnet_unet_forward.7} parent=35 // pred_region
        %305 = vst [vmem:[#allocation2] sm:$0xff] 0.0
        %306 = vst [vmem:[#allocation2 + $0x8] sm:$0xff] 0.0
        %307 = vst [vmem:[#allocation2 + $0x10] sm:$0xff] 0.0
        %308 = vst [vmem:[#allocation2 + $0x18] sm:$0xff] 0.0
        %309 = vst [vmem:[#allocation2 + $0x20] sm:$0xff] 0.0
        %310 = vst [vmem:[#allocation2 + $0x28] sm:$0xff] 0.0
        %311 = vst [vmem:[#allocation2 + $0x30] sm:$0xff] 0.0
        %312 = vst [vmem:[#allocation2 + $0x38] sm:$0xff] 0.0
        %313 = vst [vmem:[#allocation2 + $0x40] sm:$0xff] 0.0
        %314 = vst [vmem:[#allocation2 + $0x48] sm:$0xff] 0.0
        %315 = vst [vmem:[#allocation2 + $0x50] sm:$0xff] 0.0
        %316 = vst [vmem:[#allocation2 + $0x58] sm:$0xff] 0.0
        %317 = vst [vmem:[#allocation2 + $0x60] sm:$0xff] 0.0
        %318 = vst [vmem:[#allocation2 + $0x68] sm:$0xff] 0.0
        %319 = vst [vmem:[#allocation2 + $0x70] sm:$0xff] 0.0
        %320 = vst [vmem:[#allocation2 + $0x78] sm:$0xff] 0.0
        %321 = vst [vmem:[#allocation2 + $0x80] sm:$0xff] 0.0
        %322 = vst [vmem:[#allocation2 + $0x88] sm:$0xff] 0.0
        %323 = vst [vmem:[#allocation2 + $0x90] sm:$0xff] 0.0
        %324 = vst [vmem:[#allocation2 + $0x98] sm:$0xff] 0.0
        %325 = vst [vmem:[#allocation2 + $0xa0] sm:$0xff] 0.0
        %326 = vst [vmem:[#allocation2 + $0xa8] sm:$0xff] 0.0
        %327 = vst [vmem:[#allocation2 + $0xb0] sm:$0xff] 0.0
        %328 = vst [vmem:[#allocation2 + $0xb8] sm:$0xff] 0.0
        %329 = vst [vmem:[#allocation2 + $0xc0] sm:$0xff] 0.0
        %330 = vst [vmem:[#allocation2 + $0xc8] sm:$0xff] 0.0
        %331 = vst [vmem:[#allocation2 + $0xd0] sm:$0xff] 0.0
        %332 = vst [vmem:[#allocation2 + $0xd8] sm:$0xff] 0.0
        %333 = vst [vmem:[#allocation2 + $0xe0] sm:$0xff] 0.0
        %334 = vst [vmem:[#allocation2 + $0xe8] sm:$0xff] 0.0
        %335 = vst [vmem:[#allocation2 + $0xf0] sm:$0xff] 0.0
        %336 = vst [vmem:[#allocation2 + $0xf8] sm:$0xff] 0.0
      $region40: #{resnet_unet_forward.7} parent=35 // pred_fallthru
        _
      %v337 = vld [vmem:[#allocation2] sm:$0xff]
      %v338 = vld [vmem:[#allocation2 + $0x8] sm:$0xff]
      %v339 = vld [vmem:[#allocation2 + $0x10] sm:$0xff]
      %v340 = vld [vmem:[#allocation2 + $0x18] sm:$0xff]
      %v341 = vld [vmem:[#allocation2 + $0x20] sm:$0xff]
      %v342 = vld [vmem:[#allocation2 + $0x28] sm:$0xff]
      %v343 = vld [vmem:[#allocation2 + $0x30] sm:$0xff]
      %v344 = vld [vmem:[#allocation2 + $0x38] sm:$0xff]
      %v345 = vld [vmem:[#allocation2 + $0x40] sm:$0xff]
      %v346 = vld [vmem:[#allocation2 + $0x48] sm:$0xff]
      %v347 = vld [vmem:[#allocation2 + $0x50] sm:$0xff]
      %v348 = vld [vmem:[#allocation2 + $0x58] sm:$0xff]
      %v349 = vld [vmem:[#allocation2 + $0x60] sm:$0xff]
      %v350 = vld [vmem:[#allocation2 + $0x68] sm:$0xff]
      %v351 = vld [vmem:[#allocation2 + $0x70] sm:$0xff]
      %v352 = vld [vmem:[#allocation2 + $0x78] sm:$0xff]
      %v353 = vld [vmem:[#allocation2 + $0x80] sm:$0xff]
      %v354 = vld [vmem:[#allocation2 + $0x88] sm:$0xff]
      %v355 = vld [vmem:[#allocation2 + $0x90] sm:$0xff]
      %v356 = vld [vmem:[#allocation2 + $0x98] sm:$0xff]
      %v357 = vld [vmem:[#allocation2 + $0xa0] sm:$0xff]
      %v358 = vld [vmem:[#allocation2 + $0xa8] sm:$0xff]
      %v359 = vld [vmem:[#allocation2 + $0xb0] sm:$0xff]
      %v360 = vld [vmem:[#allocation2 + $0xb8] sm:$0xff]
      %v361 = vld [vmem:[#allocation2 + $0xc0] sm:$0xff]
      %v362 = vld [vmem:[#allocation2 + $0xc8] sm:$0xff]
      %v363 = vld [vmem:[#allocation2 + $0xd0] sm:$0xff]
      %v364 = vld [vmem:[#allocation2 + $0xd8] sm:$0xff]
      %v365 = vld [vmem:[#allocation2 + $0xe0] sm:$0xff]
      %v366 = vld [vmem:[#allocation2 + $0xe8] sm:$0xff]
      %v367 = vld [vmem:[#allocation2 + $0xf0] sm:$0xff]
      %v368 = vld [vmem:[#allocation2 + $0xf8] sm:$0xff]
      %v369 = vld [vmem:[%s274] sm:$0xf]
      %v370 = vld [vmem:[%s274 + $0x4] sm:$0xf]
      %v371 = vld [vmem:[%s274 + $0x8] sm:$0xf]
      %v372 = vld [vmem:[%s274 + $0xc] sm:$0xf]
      %v373 = vld [vmem:[%s274 + $0x10] sm:$0xf]
      %v374 = vld [vmem:[%s274 + $0x14] sm:$0xf]
      %v375 = vld [vmem:[%s274 + $0x18] sm:$0xf]
      %v376 = vld [vmem:[%s274 + $0x1c] sm:$0xf]
      %v377 = vld [vmem:[%s274 + $0x20] sm:$0xf]
      %v378 = vld [vmem:[%s274 + $0x24] sm:$0xf]
      %v379 = vld [vmem:[%s274 + $0x28] sm:$0xf]
      %v380 = vld [vmem:[%s274 + $0x2c] sm:$0xf]
      %v381 = vld [vmem:[%s274 + $0x30] sm:$0xf]
      %v382 = vld [vmem:[%s274 + $0x34] sm:$0xf]
      %v383 = vld [vmem:[%s274 + $0x38] sm:$0xf]
      %v384 = vld [vmem:[%s274 + $0x3c] sm:$0xf]
      %v385 = vld [vmem:[%s274 + $0x40] sm:$0xf]
      %v386 = vld [vmem:[%s274 + $0x44] sm:$0xf]
      %v387 = vld [vmem:[%s274 + $0x48] sm:$0xf]
      %v388 = vld [vmem:[%s274 + $0x4c] sm:$0xf]
      %v389 = vld [vmem:[%s274 + $0x50] sm:$0xf]
      %v390 = vld [vmem:[%s274 + $0x54] sm:$0xf]
      %v391 = vld [vmem:[%s274 + $0x58] sm:$0xf]
      %v392 = vld [vmem:[%s274 + $0x5c] sm:$0xf]
      %v393 = vld [vmem:[%s274 + $0x60] sm:$0xf]
      %v394 = vld [vmem:[%s274 + $0x64] sm:$0xf]
      %v395 = vld [vmem:[%s274 + $0x68] sm:$0xf]
      %v396 = vld [vmem:[%s274 + $0x6c] sm:$0xf]
      %v397 = vld [vmem:[%s274 + $0x70] sm:$0xf]
      %v398 = vld [vmem:[%s274 + $0x74] sm:$0xf]
      %v399 = vld [vmem:[%s274 + $0x78] sm:$0xf]
      %v400 = vld [vmem:[%s274 + $0x7c] sm:$0xf]
      %v401 = vld [vmem:[%s283] sm:$0xf]
      %v402 = vld [vmem:[%s283 + $0x4] sm:$0xf]
      %v403 = vld [vmem:[%s283 + $0x8] sm:$0xf]
      %v404 = vld [vmem:[%s283 + $0xc] sm:$0xf]
      %v437 = vunpack.c.l.b16 %v369
      %v438 = vunpack.c.l.b16 %v370
      %v439 = vunpack.c.l.b16 %v371
      %v440 = vunpack.c.l.b16 %v372
      %v441 = vunpack.c.l.b16 %v373
      %v442 = vunpack.c.l.b16 %v374
      %v443 = vunpack.c.l.b16 %v375
      %v444 = vunpack.c.l.b16 %v376
      %v445 = vunpack.c.l.b16 %v377
      %v446 = vunpack.c.l.b16 %v378
      %v447 = vunpack.c.l.b16 %v379
      %v448 = vunpack.c.l.b16 %v380
      %v449 = vunpack.c.l.b16 %v381
      %v450 = vunpack.c.l.b16 %v382
      %v451 = vunpack.c.l.b16 %v383
      %v452 = vunpack.c.l.b16 %v384
      %v453 = vunpack.c.l.b16 %v385
      %v454 = vunpack.c.l.b16 %v386
      %v455 = vunpack.c.l.b16 %v387
      %v456 = vunpack.c.l.b16 %v388
      %v457 = vunpack.c.l.b16 %v389
      %v458 = vunpack.c.l.b16 %v390
      %v459 = vunpack.c.l.b16 %v391
      %v460 = vunpack.c.l.b16 %v392
      %v461 = vunpack.c.l.b16 %v393
      %v462 = vunpack.c.l.b16 %v394
      %v463 = vunpack.c.l.b16 %v395
      %v464 = vunpack.c.l.b16 %v396
      %v465 = vunpack.c.l.b16 %v397
      %v466 = vunpack.c.l.b16 %v398
      %v467 = vunpack.c.l.b16 %v399
      %v468 = vunpack.c.l.b16 %v400
      %v469 = vpack.c.b16 %v438, %v437
      %v470 = vpack.c.b16 %v440, %v439
      %v471 = vpack.c.b16 %v442, %v441
      %v472 = vpack.c.b16 %v444, %v443
      %v473 = vpack.c.b16 %v446, %v445
      %v474 = vpack.c.b16 %v448, %v447
      %v475 = vpack.c.b16 %v450, %v449
      %v476 = vpack.c.b16 %v452, %v451
      %v477 = vpack.c.b16 %v454, %v453
      %v478 = vpack.c.b16 %v456, %v455
      %v479 = vpack.c.b16 %v458, %v457
      %v480 = vpack.c.b16 %v460, %v459
      %v481 = vpack.c.b16 %v462, %v461
      %v482 = vpack.c.b16 %v464, %v463
      %v483 = vpack.c.b16 %v466, %v465
      %v484 = vpack.c.b16 %v468, %v467
      %v489 = vunpack.c.l.b16 %v401
      %v490 = vunpack.c.l.b16 %v402
      %v491 = vunpack.c.l.b16 %v403
      %v492 = vunpack.c.l.b16 %v404
      %v493 = vpack.c.b16 %v490, %v489
      %v494 = vpack.c.b16 %v492, %v491
      %vm497 = vcmask 261120
      %v499 = vsel %vm497, %v469, 0
      %v502 = vsel %vm497, %v470, 0
      %v505 = vsel %vm497, %v471, 0
      %v508 = vsel %vm497, %v472, 0
      %v511 = vsel %vm497, %v473, 0
      %v514 = vsel %vm497, %v474, 0
      %v517 = vsel %vm497, %v475, 0
      %v520 = vsel %vm497, %v476, 0
      %v523 = vsel %vm497, %v477, 0
      %v526 = vsel %vm497, %v478, 0
      %v529 = vsel %vm497, %v479, 0
      %v532 = vsel %vm497, %v480, 0
      %v535 = vsel %vm497, %v481, 0
      %v538 = vsel %vm497, %v482, 0
      %v541 = vsel %vm497, %v483, 0
      %v544 = vsel %vm497, %v484, 0
      %546 = vmatprep.subr.bf16.mxu0 0
      %547 = vmatpush1.bf16.msra.mxu0 %v493
      %548 = vmatprep.subr.bf16.mxu0 0
      %549 = vmatpush1.bf16.msra.mxu0 %v494
      %550 = vmatprep.subr.bf16.mxu0 0
      %551 = vmatpush1.bf16.msra.mxu0 0
      %552 = vmatprep.subr.bf16.mxu0 0
      %553 = vmatpush1.bf16.msra.mxu0 0
      %554 = vmatprep.subr.bf16.mxu0 0
      %555 = vmatpush1.bf16.msra.mxu0 0
      %556 = vmatprep.subr.bf16.mxu0 0
      %557 = vmatpush1.bf16.msra.mxu0 0
      %558 = vmatprep.subr.bf16.mxu0 0
      %559 = vmatpush1.bf16.msra.mxu0 0
      %560 = vmatprep.subr.bf16.mxu0 0
      %561 = vmatpush1.bf16.msra.mxu0 0
      %562 = vmatprep.subr.bf16.mxu0 0
      %563 = vmatpush1.bf16.msra.mxu0 0
      %564 = vmatprep.subr.bf16.mxu0 0
      %565 = vmatpush1.bf16.msra.mxu0 0
      %566 = vmatprep.subr.bf16.mxu0 0
      %567 = vmatpush1.bf16.msra.mxu0 0
      %568 = vmatprep.subr.bf16.mxu0 0
      %569 = vmatpush1.bf16.msra.mxu0 0
      %570 = vmatprep.subr.bf16.mxu0 0
      %571 = vmatpush1.bf16.msra.mxu0 0
      %572 = vmatprep.subr.bf16.mxu0 0
      %573 = vmatpush1.bf16.msra.mxu0 0
      %574 = vmatprep.subr.bf16.mxu0 0
      %575 = vmatpush1.bf16.msra.mxu0 0
      %576 = vmatprep.subr.bf16.mxu0 0
      %577 = vmatpush1.bf16.msra.mxu0 0
      %578 = vmatprep.mubr.bf16.mxu0 0
      %579 = vmatmul.mubr.bf16.gmra.mrb[0].mxu0 %v499
      %v580 = vpop.f32.mrb[0].mxu0
      %v581 = vadd.f32 0.0, %v580
      %v582 = vpop.f32.mrb[0].mxu0
      %v583 = vpop.f32.mrb[0].mxu0
      %v584 = vadd.f32 0.0, %v583
      %v585 = vpop.f32.mrb[0].mxu0
      %586 = vmatprep.mubr.bf16.mxu0 0
      %587 = vmatmul.mubr.bf16.gmra.mrb[0].mxu0 %v502
      %v588 = vpop.f32.mrb[0].mxu0
      %v589 = vadd.f32 0.0, %v588
      %v590 = vpop.f32.mrb[0].mxu0
      %v591 = vpop.f32.mrb[0].mxu0
      %v592 = vadd.f32 0.0, %v591
      %v593 = vpop.f32.mrb[0].mxu0
      %594 = vmatprep.mubr.bf16.mxu0 0
      %595 = vmatmul.mubr.bf16.gmra.mrb[0].mxu0 %v505
      %v596 = vpop.f32.mrb[0].mxu0
      %v597 = vadd.f32 0.0, %v596
      %v598 = vpop.f32.mrb[0].mxu0
      %v599 = vpop.f32.mrb[0].mxu0
      %v600 = vadd.f32 0.0, %v599
      %v601 = vpop.f32.mrb[0].mxu0
      %602 = vmatprep.mubr.bf16.mxu0 0
      %603 = vmatmul.mubr.bf16.gmra.mrb[0].mxu0 %v508
      %v604 = vpop.f32.mrb[0].mxu0
      %v605 = vadd.f32 0.0, %v604
      %v606 = vpop.f32.mrb[0].mxu0
      %v607 = vpop.f32.mrb[0].mxu0
      %v608 = vadd.f32 0.0, %v607
      %v609 = vpop.f32.mrb[0].mxu0
      %610 = vmatprep.mubr.bf16.mxu0 0
      %611 = vmatmul.mubr.bf16.gmra.mrb[0].mxu0 %v511
      %v612 = vpop.f32.mrb[0].mxu0
      %v613 = vadd.f32 0.0, %v612
      %v614 = vpop.f32.mrb[0].mxu0
      %v615 = vpop.f32.mrb[0].mxu0
      %v616 = vadd.f32 0.0, %v615
      %v617 = vpop.f32.mrb[0].mxu0
      %618 = vmatprep.mubr.bf16.mxu0 0
      %619 = vmatmul.mubr.bf16.gmra.mrb[0].mxu0 %v514
      %v620 = vpop.f32.mrb[0].mxu0
      %v621 = vadd.f32 0.0, %v620
      %v622 = vpop.f32.mrb[0].mxu0
      %v623 = vpop.f32.mrb[0].mxu0
      %v624 = vadd.f32 0.0, %v623
      %v625 = vpop.f32.mrb[0].mxu0
      %626 = vmatprep.mubr.bf16.mxu0 0
      %627 = vmatmul.mubr.bf16.gmra.mrb[0].mxu0 %v517
      %v628 = vpop.f32.mrb[0].mxu0
      %v629 = vadd.f32 0.0, %v628
      %v630 = vpop.f32.mrb[0].mxu0
      %v631 = vpop.f32.mrb[0].mxu0
      %v632 = vadd.f32 0.0, %v631
      %v633 = vpop.f32.mrb[0].mxu0
      %634 = vmatprep.mubr.bf16.mxu0 0
      %635 = vmatmul.mubr.bf16.gmra.mrb[0].mxu0 %v520
      %v636 = vpop.f32.mrb[0].mxu0
      %v637 = vadd.f32 0.0, %v636
      %v638 = vpop.f32.mrb[0].mxu0
      %v639 = vpop.f32.mrb[0].mxu0
      %v640 = vadd.f32 0.0, %v639
      %v641 = vpop.f32.mrb[0].mxu0
      %642 = vmatprep.mubr.bf16.mxu0 0
      %643 = vmatmul.mubr.bf16.gmra.mrb[0].mxu0 %v523
      %v644 = vpop.f32.mrb[0].mxu0
      %v645 = vadd.f32 0.0, %v644
      %v646 = vpop.f32.mrb[0].mxu0
      %v647 = vpop.f32.mrb[0].mxu0
      %v648 = vadd.f32 0.0, %v647
      %v649 = vpop.f32.mrb[0].mxu0
      %650 = vmatprep.mubr.bf16.mxu0 0
      %651 = vmatmul.mubr.bf16.gmra.mrb[0].mxu0 %v526
      %v652 = vpop.f32.mrb[0].mxu0
      %v653 = vadd.f32 0.0, %v652
      %v654 = vpop.f32.mrb[0].mxu0
      %v655 = vpop.f32.mrb[0].mxu0
      %v656 = vadd.f32 0.0, %v655
      %v657 = vpop.f32.mrb[0].mxu0
      %658 = vmatprep.mubr.bf16.mxu0 0
      %659 = vmatmul.mubr.bf16.gmra.mrb[0].mxu0 %v529
      %v660 = vpop.f32.mrb[0].mxu0
      %v661 = vadd.f32 0.0, %v660
      %v662 = vpop.f32.mrb[0].mxu0
      %v663 = vpop.f32.mrb[0].mxu0
      %v664 = vadd.f32 0.0, %v663
      %v665 = vpop.f32.mrb[0].mxu0
      %666 = vmatprep.mubr.bf16.mxu0 0
      %667 = vmatmul.mubr.bf16.gmra.mrb[0].mxu0 %v532
      %v668 = vpop.f32.mrb[0].mxu0
      %v669 = vadd.f32 0.0, %v668
      %v670 = vpop.f32.mrb[0].mxu0
      %v671 = vpop.f32.mrb[0].mxu0
      %v672 = vadd.f32 0.0, %v671
      %v673 = vpop.f32.mrb[0].mxu0
      %674 = vmatprep.mubr.bf16.mxu0 0
      %675 = vmatmul.mubr.bf16.gmra.mrb[0].mxu0 %v535
      %v676 = vpop.f32.mrb[0].mxu0
      %v677 = vadd.f32 0.0, %v676
      %v678 = vpop.f32.mrb[0].mxu0
      %v679 = vpop.f32.mrb[0].mxu0
      %v680 = vadd.f32 0.0, %v679
      %v681 = vpop.f32.mrb[0].mxu0
      %682 = vmatprep.mubr.bf16.mxu0 0
      %683 = vmatmul.mubr.bf16.gmra.mrb[0].mxu0 %v538
      %v684 = vpop.f32.mrb[0].mxu0
      %v685 = vadd.f32 0.0, %v684
      %v686 = vpop.f32.mrb[0].mxu0
      %v687 = vpop.f32.mrb[0].mxu0
      %v688 = vadd.f32 0.0, %v687
      %v689 = vpop.f32.mrb[0].mxu0
      %690 = vmatprep.mubr.bf16.mxu0 0
      %691 = vmatmul.mubr.bf16.gmra.mrb[0].mxu0 %v541
      %v692 = vpop.f32.mrb[0].mxu0
      %v693 = vadd.f32 0.0, %v692
      %v694 = vpop.f32.mrb[0].mxu0
      %v695 = vpop.f32.mrb[0].mxu0
      %v696 = vadd.f32 0.0, %v695
      %v697 = vpop.f32.mrb[0].mxu0
      %698 = vmatprep.mubr.bf16.mxu0 0
      %699 = vmatmul.mubr.bf16.gmra.mrb[0].mxu0 %v544
      %v700 = vpop.f32.mrb[0].mxu0
      %v701 = vadd.f32 0.0, %v700
      %v702 = vpop.f32.mrb[0].mxu0
      %v703 = vpop.f32.mrb[0].mxu0
      %v704 = vadd.f32 0.0, %v703
      %v705 = vpop.f32.mrb[0].mxu0
      %706 = vdwg.mxu0
      %v707 = vadd.f32 %v337, %v581
      %v708 = vadd.f32 %v338, %v584
      %v709 = vadd.f32 %v339, %v589
      %v710 = vadd.f32 %v340, %v592
      %v711 = vadd.f32 %v341, %v597
      %v712 = vadd.f32 %v342, %v600
      %v713 = vadd.f32 %v343, %v605
      %v714 = vadd.f32 %v344, %v608
      %v715 = vadd.f32 %v345, %v613
      %v716 = vadd.f32 %v346, %v616
      %v717 = vadd.f32 %v347, %v621
      %v718 = vadd.f32 %v348, %v624
      %v719 = vadd.f32 %v349, %v629
      %v720 = vadd.f32 %v350, %v632
      %v721 = vadd.f32 %v351, %v637
      %v722 = vadd.f32 %v352, %v640
      %v723 = vadd.f32 %v353, %v645
      %v724 = vadd.f32 %v354, %v648
      %v725 = vadd.f32 %v355, %v653
      %v726 = vadd.f32 %v356, %v656
      %v727 = vadd.f32 %v357, %v661
      %v728 = vadd.f32 %v358, %v664
      %v729 = vadd.f32 %v359, %v669
      %v730 = vadd.f32 %v360, %v672
      %v731 = vadd.f32 %v361, %v677
      %v732 = vadd.f32 %v362, %v680
      %v733 = vadd.f32 %v363, %v685
      %v734 = vadd.f32 %v364, %v688
      %v735 = vadd.f32 %v365, %v693
      %v736 = vadd.f32 %v366, %v696
      %v737 = vadd.f32 %v367, %v701
      %v738 = vadd.f32 %v368, %v704
      %739 = vst [vmem:[#allocation2] sm:$0xff] %v707
      %740 = vst [vmem:[#allocation2 + $0x8] sm:$0xff] %v708
      %741 = vst [vmem:[#allocation2 + $0x10] sm:$0xff] %v709
      %742 = vst [vmem:[#allocation2 + $0x18] sm:$0xff] %v710
      %743 = vst [vmem:[#allocation2 + $0x20] sm:$0xff] %v711
      %744 = vst [vmem:[#allocation2 + $0x28] sm:$0xff] %v712
      %745 = vst [vmem:[#allocation2 + $0x30] sm:$0xff] %v713
      %746 = vst [vmem:[#allocation2 + $0x38] sm:$0xff] %v714
      %747 = vst [vmem:[#allocation2 + $0x40] sm:$0xff] %v715
      %748 = vst [vmem:[#allocation2 + $0x48] sm:$0xff] %v716
      %749 = vst [vmem:[#allocation2 + $0x50] sm:$0xff] %v717
      %750 = vst [vmem:[#allocation2 + $0x58] sm:$0xff] %v718
      %751 = vst [vmem:[#allocation2 + $0x60] sm:$0xff] %v719
      %752 = vst [vmem:[#allocation2 + $0x68] sm:$0xff] %v720
      %753 = vst [vmem:[#allocation2 + $0x70] sm:$0xff] %v721
      %754 = vst [vmem:[#allocation2 + $0x78] sm:$0xff] %v722
      %755 = vst [vmem:[#allocation2 + $0x80] sm:$0xff] %v723
      %756 = vst [vmem:[#allocation2 + $0x88] sm:$0xff] %v724
      %757 = vst [vmem:[#allocation2 + $0x90] sm:$0xff] %v725
      %758 = vst [vmem:[#allocation2 + $0x98] sm:$0xff] %v726
      %759 = vst [vmem:[#allocation2 + $0xa0] sm:$0xff] %v727
      %760 = vst [vmem:[#allocation2 + $0xa8] sm:$0xff] %v728
      %761 = vst [vmem:[#allocation2 + $0xb0] sm:$0xff] %v729
      %762 = vst [vmem:[#allocation2 + $0xb8] sm:$0xff] %v730
      %763 = vst [vmem:[#allocation2 + $0xc0] sm:$0xff] %v731
      %764 = vst [vmem:[#allocation2 + $0xc8] sm:$0xff] %v732
      %765 = vst [vmem:[#allocation2 + $0xd0] sm:$0xff] %v733
      %766 = vst [vmem:[#allocation2 + $0xd8] sm:$0xff] %v734
      %767 = vst [vmem:[#allocation2 + $0xe0] sm:$0xff] %v735
      %768 = vst [vmem:[#allocation2 + $0xe8] sm:$0xff] %v736
      %769 = vst [vmem:[#allocation2 + $0xf0] sm:$0xff] %v737
      %770 = vst [vmem:[#allocation2 + $0xf8] sm:$0xff] %v738
      // Predicated region
      $region41: #{resnet_unet_forward.7} parent=35 // pred_check
        %p771 = pneg %p301
      $region42: #{resnet_unet_forward.7} parent=35 // pred_check_branch
        %773 = sbr.rel (%p771) target = $region44
      $region43: #{resnet_unet_forward.7} parent=35 // pred_region
        %v774 = vld [vmem:[#allocation2] sm:$0xff]
        %v775 = vld [vmem:[#allocation2 + $0x8] sm:$0xff]
        %v776 = vld [vmem:[#allocation2 + $0x10] sm:$0xff]
        %v777 = vld [vmem:[#allocation2 + $0x18] sm:$0xff]
        %v778 = vld [vmem:[#allocation2 + $0x20] sm:$0xff]
        %v779 = vld [vmem:[#allocation2 + $0x28] sm:$0xff]
        %v780 = vld [vmem:[#allocation2 + $0x30] sm:$0xff]
        %v781 = vld [vmem:[#allocation2 + $0x38] sm:$0xff]
        %v782 = vld [vmem:[#allocation2 + $0x40] sm:$0xff]
        %v783 = vld [vmem:[#allocation2 + $0x48] sm:$0xff]
        %v784 = vld [vmem:[#allocation2 + $0x50] sm:$0xff]
        %v785 = vld [vmem:[#allocation2 + $0x58] sm:$0xff]
        %v786 = vld [vmem:[#allocation2 + $0x60] sm:$0xff]
        %v787 = vld [vmem:[#allocation2 + $0x68] sm:$0xff]
        %v788 = vld [vmem:[#allocation2 + $0x70] sm:$0xff]
        %v789 = vld [vmem:[#allocation2 + $0x78] sm:$0xff]
        %v790 = vld [vmem:[#allocation2 + $0x80] sm:$0xff]
        %v791 = vld [vmem:[#allocation2 + $0x88] sm:$0xff]
        %v792 = vld [vmem:[#allocation2 + $0x90] sm:$0xff]
        %v793 = vld [vmem:[#allocation2 + $0x98] sm:$0xff]
        %v794 = vld [vmem:[#allocation2 + $0xa0] sm:$0xff]
        %v795 = vld [vmem:[#allocation2 + $0xa8] sm:$0xff]
        %v796 = vld [vmem:[#allocation2 + $0xb0] sm:$0xff]
        %v797 = vld [vmem:[#allocation2 + $0xb8] sm:$0xff]
        %v798 = vld [vmem:[#allocation2 + $0xc0] sm:$0xff]
        %v799 = vld [vmem:[#allocation2 + $0xc8] sm:$0xff]
        %v800 = vld [vmem:[#allocation2 + $0xd0] sm:$0xff]
        %v801 = vld [vmem:[#allocation2 + $0xd8] sm:$0xff]
        %v802 = vld [vmem:[#allocation2 + $0xe0] sm:$0xff]
        %v803 = vld [vmem:[#allocation2 + $0xe8] sm:$0xff]
        %v804 = vld [vmem:[#allocation2 + $0xf0] sm:$0xff]
        %v805 = vld [vmem:[#allocation2 + $0xf8] sm:$0xff]
        %v806 = vld [vmem:[%s287] sm:$0x1]
        %v808 = vlaneseq
        %v809 = vshrl.u32 %v808, 7
        %v810 = vsub.s32 0, %v809
        %v811 = vrot.slane %v806, %v810
        %v813 = vmul.f32 %v774, %v811
        %v814 = vmul.f32 %v775, %v811
        %v815 = vmul.f32 %v776, %v811
        %v816 = vmul.f32 %v777, %v811
        %v817 = vmul.f32 %v778, %v811
        %v818 = vmul.f32 %v779, %v811
        %v819 = vmul.f32 %v780, %v811
        %v820 = vmul.f32 %v781, %v811
        %v821 = vmul.f32 %v782, %v811
        %v822 = vmul.f32 %v783, %v811
        %v823 = vmul.f32 %v784, %v811
        %v824 = vmul.f32 %v785, %v811
        %v825 = vmul.f32 %v786, %v811
        %v826 = vmul.f32 %v787, %v811
        %v827 = vmul.f32 %v788, %v811
        %v828 = vmul.f32 %v789, %v811
        %v829 = vmul.f32 %v790, %v811
        %v830 = vmul.f32 %v791, %v811
        %v831 = vmul.f32 %v792, %v811
        %v832 = vmul.f32 %v793, %v811
        %v833 = vmul.f32 %v794, %v811
        %v834 = vmul.f32 %v795, %v811
        %v835 = vmul.f32 %v796, %v811
        %v836 = vmul.f32 %v797, %v811
        %v837 = vmul.f32 %v798, %v811
        %v838 = vmul.f32 %v799, %v811
        %v839 = vmul.f32 %v800, %v811
        %v840 = vmul.f32 %v801, %v811
        %v841 = vmul.f32 %v802, %v811
        %v842 = vmul.f32 %v803, %v811
        %v843 = vmul.f32 %v804, %v811
        %v844 = vmul.f32 %v805, %v811
        %v845 = vld [vmem:[%s290] sm:$0x1]
        %v847 = vlaneseq
        %v848 = vshrl.u32 %v847, 7
        %v849 = vsub.s32 0, %v848
        %v850 = vrot.slane %v845, %v849
        %v852 = vadd.f32 %v813, %v850
        %v853 = vadd.f32 %v814, %v850
        %v854 = vadd.f32 %v815, %v850
        %v855 = vadd.f32 %v816, %v850
        %v856 = vadd.f32 %v817, %v850
        %v857 = vadd.f32 %v818, %v850
        %v858 = vadd.f32 %v819, %v850
        %v859 = vadd.f32 %v820, %v850
        %v860 = vadd.f32 %v821, %v850
        %v861 = vadd.f32 %v822, %v850
        %v862 = vadd.f32 %v823, %v850
        %v863 = vadd.f32 %v824, %v850
        %v864 = vadd.f32 %v825, %v850
        %v865 = vadd.f32 %v826, %v850
        %v866 = vadd.f32 %v827, %v850
        %v867 = vadd.f32 %v828, %v850
        %v868 = vadd.f32 %v829, %v850
        %v869 = vadd.f32 %v830, %v850
        %v870 = vadd.f32 %v831, %v850
        %v871 = vadd.f32 %v832, %v850
        %v872 = vadd.f32 %v833, %v850
        %v873 = vadd.f32 %v834, %v850
        %v874 = vadd.f32 %v835, %v850
        %v875 = vadd.f32 %v836, %v850
        %v876 = vadd.f32 %v837, %v850
        %v877 = vadd.f32 %v838, %v850
        %v878 = vadd.f32 %v839, %v850
        %v879 = vadd.f32 %v840, %v850
        %v880 = vadd.f32 %v841, %v850
        %v881 = vadd.f32 %v842, %v850
        %v882 = vadd.f32 %v843, %v850
        %v883 = vadd.f32 %v844, %v850
        %v884 = vmax.f32 %v852, 0.0
        %v885 = vmax.f32 %v853, 0.0
        %v886 = vmax.f32 %v854, 0.0
        %v887 = vmax.f32 %v855, 0.0
        %v888 = vmax.f32 %v856, 0.0
        %v889 = vmax.f32 %v857, 0.0
        %v890 = vmax.f32 %v858, 0.0
        %v891 = vmax.f32 %v859, 0.0
        %v892 = vmax.f32 %v860, 0.0
        %v893 = vmax.f32 %v861, 0.0
        %v894 = vmax.f32 %v862, 0.0
        %v895 = vmax.f32 %v863, 0.0
        %v896 = vmax.f32 %v864, 0.0
        %v897 = vmax.f32 %v865, 0.0
        %v898 = vmax.f32 %v866, 0.0
        %v899 = vmax.f32 %v867, 0.0
        %v900 = vmax.f32 %v868, 0.0
        %v901 = vmax.f32 %v869, 0.0
        %v902 = vmax.f32 %v870, 0.0
        %v903 = vmax.f32 %v871, 0.0
        %v904 = vmax.f32 %v872, 0.0
        %v905 = vmax.f32 %v873, 0.0
        %v906 = vmax.f32 %v874, 0.0
        %v907 = vmax.f32 %v875, 0.0
        %v908 = vmax.f32 %v876, 0.0
        %v909 = vmax.f32 %v877, 0.0
        %v910 = vmax.f32 %v878, 0.0
        %v911 = vmax.f32 %v879, 0.0
        %v912 = vmax.f32 %v880, 0.0
        %v913 = vmax.f32 %v881, 0.0
        %v914 = vmax.f32 %v882, 0.0
        %v915 = vmax.f32 %v883, 0.0
        %916 = vst [vmem:[%s298] sm:$0xff] %v884
        %917 = vst [vmem:[%s298 + $0x8] sm:$0xff] %v885
        %918 = vst [vmem:[%s298 + $0x10] sm:$0xff] %v886
        %919 = vst [vmem:[%s298 + $0x18] sm:$0xff] %v887
        %920 = vst [vmem:[%s298 + $0x20] sm:$0xff] %v888
        %921 = vst [vmem:[%s298 + $0x28] sm:$0xff] %v889
        %922 = vst [vmem:[%s298 + $0x30] sm:$0xff] %v890
        %923 = vst [vmem:[%s298 + $0x38] sm:$0xff] %v891
        %924 = vst [vmem:[%s298 + $0x40] sm:$0xff] %v892
        %925 = vst [vmem:[%s298 + $0x48] sm:$0xff] %v893
        %926 = vst [vmem:[%s298 + $0x50] sm:$0xff] %v894
        %927 = vst [vmem:[%s298 + $0x58] sm:$0xff] %v895
        %928 = vst [vmem:[%s298 + $0x60] sm:$0xff] %v896
        %929 = vst [vmem:[%s298 + $0x68] sm:$0xff] %v897
        %930 = vst [vmem:[%s298 + $0x70] sm:$0xff] %v898
        %931 = vst [vmem:[%s298 + $0x78] sm:$0xff] %v899
        %932 = vst [vmem:[%s298 + $0x80] sm:$0xff] %v900
        %933 = vst [vmem:[%s298 + $0x88] sm:$0xff] %v901
        %934 = vst [vmem:[%s298 + $0x90] sm:$0xff] %v902
        %935 = vst [vmem:[%s298 + $0x98] sm:$0xff] %v903
        %936 = vst [vmem:[%s298 + $0xa0] sm:$0xff] %v904
        %937 = vst [vmem:[%s298 + $0xa8] sm:$0xff] %v905
        %938 = vst [vmem:[%s298 + $0xb0] sm:$0xff] %v906
        %939 = vst [vmem:[%s298 + $0xb8] sm:$0xff] %v907
        %940 = vst [vmem:[%s298 + $0xc0] sm:$0xff] %v908
        %941 = vst [vmem:[%s298 + $0xc8] sm:$0xff] %v909
        %942 = vst [vmem:[%s298 + $0xd0] sm:$0xff] %v910
        %943 = vst [vmem:[%s298 + $0xd8] sm:$0xff] %v911
        %944 = vst [vmem:[%s298 + $0xe0] sm:$0xff] %v912
        %945 = vst [vmem:[%s298 + $0xe8] sm:$0xff] %v913
        %946 = vst [vmem:[%s298 + $0xf0] sm:$0xff] %v914
        %947 = vst [vmem:[%s298 + $0xf8] sm:$0xff] %v915
      $region44: #{resnet_unet_forward.7} parent=35 // pred_fallthru
        _
      %s948 = smul.u32 32, %s20
      %p949 = scmp.lt.s32.totalorder %s948, 255
      %s950 = scalar_select %p949, %s948, 255
      %p951 = scmp.lt.s32.totalorder %s21, 0
      %s952 = scalar_select %p951, %s21, 0
      %s953 = sadd.s32 %s952, %s950
      %s954 = smul.addr %s953, 8
      %s955 = scalar_lea.vmem %s4, %s954
      // Predicated region
      $region45: #{resnet_unet_forward.7} parent=35 // pred_check
        %p956 = pneg %p162
      $region46: #{resnet_unet_forward.7} parent=35 // pred_check_branch
        %958 = sbr.rel (%p956) target = $region48
      $region47: #{resnet_unet_forward.7} parent=35 // pred_region
        %s959 = smul.u32 32, %s20
      $region48: #{resnet_unet_forward.7} parent=35 // pred_fallthru
        _
    $region36: #{resnet_unet_forward.7} parent=5 // pred_fallthru
      _
    %p960 = scmp.le.s32.totalorder 2, %s10
    // Predicated region
    $region49: #{resnet_unet_forward.7} parent=5 // pred_check
      %p961 = pneg %p960
    $region50: #{resnet_unet_forward.7} parent=5 // pred_check_branch
      %963 = sbr.rel (%p961) target = $region52
    $region51: #{resnet_unet_forward.7} parent=5 // pred_region
      %s964 = ssub.s32 %s10, 2
      // Predicated region
      $region53: #{resnet_unet_forward.7} parent=51 // pred_check
        %p965 = pneg %p168
      $region54: #{resnet_unet_forward.7} parent=51 // pred_check_branch
        %967 = sbr.rel (%p965) target = $region56
      $region55: #{resnet_unet_forward.7} parent=51 // pred_region
        %s968 = smul.u32 32, %s23
        %p969 = scmp.lt.s32.totalorder %s968, 255
        %s970 = scalar_select %p969, %s968, 255
        %p971 = scmp.lt.s32.totalorder %s24, 0
        %s972 = scalar_select %p971, %s24, 0
        %s973 = sadd.s32 %s972, %s970
        %s974 = smul.addr %s973, 8
        %s975 = scalar_lea.vmem %s4, %s974
      $region56: #{resnet_unet_forward.7} parent=51 // pred_fallthru
        _
    $region52: #{resnet_unet_forward.7} parent=5 // pred_fallthru
      _
  $region6: #{resnet_unet_forward.7} parent=0 // loop_footer
    %s14 = sadd.s32 1, %s10
  $region7: #{resnet_unet_forward.7} parent=0 // loop_footer_branch
    %9 = sbr.rel target = $region3
  $region8: #{resnet_unet_forward.7} parent=0 // loop_exit
    _

// kernel: resnet_unet_forward.8
$region0: #{resnet_unet_forward.8}
  #allocation0 [shape = 'u32[]', space=smem, size = 0x4, offset = 0x4, fixed_abs, tag = 'smem constant byte address 0x4 - core index']
  #allocation1 [shape = 'u32[144,128]{1,0:T(1,128)}', space=vmem, size = 0x12000, scoped, tag = 'internal scratch']
  #allocation2 [shape = 'f32[256,128]{1,0:T(8,128)}', space=vmem, size = 0x20000, scoped, tag = 'scratch operand']
  %s0 = inlined_call_operand.vmem [shape: bf16[2048,576], index: 0, kind: input, shape index: {}]
  %s1 = inlined_call_operand.vmem [shape: bf16[576,128], index: 1, kind: input, shape index: {}]
  %s2 = inlined_call_operand.vmem [shape: f32[1,128], index: 2, kind: input, shape index: {}]
  %s3 = inlined_call_operand.vmem [shape: f32[1,128], index: 3, kind: input, shape index: {}]
  %s4 = inlined_call_operand.vmem [shape: f32[2048,128], index: 4, kind: output, shape index: {}]
  %s5 = sld [smem:[#allocation0]]
  $region57: #{resnet_unet_forward.8} parent=0
    _
  %s7 = ssub.s32 1, %s5
  %s8 = scalar_select 0, %s7, %s5
  loop: start=0, step=1, limit=10
  $region2: #{resnet_unet_forward.8} parent=0 // loop_pre_header
    _
  $region3: #{resnet_unet_forward.8} parent=0 // loop_header
    %s10 = sphi 0, %s14
    %p11 = scmp.ge.s32.totalorder %s10, 10
    %s17 = sphi 0, %s36
    %s18 = sphi 0, %s32
    %s19 = sphi 0, %s28
    %s20 = sphi 0, %s17
    %s21 = sphi 0, %s18
    %s22 = sphi 0, %s19
    %s23 = sphi 0, %s20
    %s24 = sphi 0, %s21
    %s25 = sphi 0, %s22
    %s41 = sphi 0, %s43
    %s44 = sphi 0, %s41
    %s45 = sphi 0, %s44
    %s61 = sphi 0, %s45
    %s69 = sphi 0, %s71
    %s72 = sphi 0, %s69
    %s73 = sphi 0, %s72
    %s89 = sphi 0, %s73
    %s95 = sphi 0, %s97
    %s98 = sphi 0, %s95
    %s99 = sphi 0, %s98
    %s115 = sphi 0, %s99
    %s121 = sphi 0, %s123
    %s124 = sphi 0, %s121
    %s125 = sphi 0, %s124
    %s141 = sphi 0, %s125
    %s149 = sphi 0, %s151
    %s152 = sphi 0, %s149
    %s153 = sphi 0, %s152
    %s169 = sphi 0, %s153
  $region4: #{resnet_unet_forward.8} parent=0 // loop_header_branch
    %13 = sbr.rel (%p11) target = $region8
  $region5: #{resnet_unet_forward.8} parent=0 // loop_body
    %s15 = ssub.s32 %s10, 1
    %s16 = ssub.s32 %s10, 2
    %s26 = sadd.s32 1, %s19
    %p27 = scmp.ge.s32.totalorder %s26, 1
    %s28 = scalar_select %p27, 0, %s26
    %s29 = sadd.s32 1, %s18
    %s30 = scalar_select %p27, %s29, %s18
    %p31 = scmp.ge.s32.totalorder %s30, 1
    %s32 = scalar_select %p31, 0, %s30
    %s33 = sadd.s32 1, %s17
    %s34 = scalar_select %p31, %s33, %s17
    %p35 = scmp.ge.s32.totalorder %s34, 8
    %s36 = scalar_select %p35, 0, %s34
    %s37 = ssub.s32 %s17, %s36
    %s38 = ssub.s32 %s19, %s28
    %s39 = sor.u32 %s37, %s38
    %p40 = scmp.eq.s32.totalorder %s39, 0
    %s42 = sadd.s32 %s41, 1
    %s43 = scalar_select %p40, %s41, %s42
    %p46 = pneg %p40
    %p47 = scmp.eq.s32.totalorder %s10, 7
    %p48 = por %p46, %p47
    %p49 = scmp.ne.s32.totalorder %s41, %s44
    %p50 = scmp.eq.s32.totalorder %s10, 0
    %p51 = por %p49, %p50
    %p52 = scmp.ne.s32.totalorder %s41, %s44
    %p53 = scmp.eq.s32.totalorder %s15, 7
    %p54 = por %p52, %p53
    %p55 = scmp.ne.s32.totalorder %s44, %s45
    %p56 = scmp.eq.s32.totalorder %s15, 0
    %p57 = por %p55, %p56
    %p58 = scmp.ne.s32.totalorder %s44, %s45
    %p59 = scmp.eq.s32.totalorder %s16, 7
    %p60 = por %p58, %p59
    %p62 = scmp.ne.s32.totalorder %s45, %s61
    %p63 = scmp.eq.s32.totalorder %s16, 0
    %p64 = por %p62, %p63
    %s65 = ssub.s32 %s19, %s28
    %s66 = ssub.s32 %s18, %s32
    %s67 = sor.u32 %s65, %s66
    %p68 = scmp.eq.s32.totalorder %s67, 0
    %s70 = sadd.s32 %s69, 1
    %s71 = scalar_select %p68, %s69, %s70
    %p74 = pneg %p68
    %p75 = scmp.eq.s32.totalorder %s10, 7
    %p76 = por %p74, %p75
    %p77 = scmp.ne.s32.totalorder %s69, %s72
    %p78 = scmp.eq.s32.totalorder %s10, 0
    %p79 = por %p77, %p78
    %p80 = scmp.ne.s32.totalorder %s69, %s72
    %p81 = scmp.eq.s32.totalorder %s15, 7
    %p82 = por %p80, %p81
    %p83 = scmp.ne.s32.totalorder %s72, %s73
    %p84 = scmp.eq.s32.totalorder %s15, 0
    %p85 = por %p83, %p84
    %p86 = scmp.ne.s32.totalorder %s72, %s73
    %p87 = scmp.eq.s32.totalorder %s16, 7
    %p88 = por %p86, %p87
    %p90 = scmp.ne.s32.totalorder %s73, %s89
    %p91 = scmp.eq.s32.totalorder %s16, 0
    %p92 = por %p90, %p91
    %s93 = ssub.s32 %s18, %s32
    %p94 = scmp.eq.s32.totalorder %s93, 0
    %s96 = sadd.s32 %s95, 1
    %s97 = scalar_select %p94, %s95, %s96
    %p100 = pneg %p94
    %p101 = scmp.eq.s32.totalorder %s10, 7
    %p102 = por %p100, %p101
    %p103 = scmp.ne.s32.totalorder %s95, %s98
    %p104 = scmp.eq.s32.totalorder %s10, 0
    %p105 = por %p103, %p104
    %p106 = scmp.ne.s32.totalorder %s95, %s98
    %p107 = scmp.eq.s32.totalorder %s15, 7
    %p108 = por %p106, %p107
    %p109 = scmp.ne.s32.totalorder %s98, %s99
    %p110 = scmp.eq.s32.totalorder %s15, 0
    %p111 = por %p109, %p110
    %p112 = scmp.ne.s32.totalorder %s98, %s99
    %p113 = scmp.eq.s32.totalorder %s16, 7
    %p114 = por %p112, %p113
    %p116 = scmp.ne.s32.totalorder %s99, %s115
    %p117 = scmp.eq.s32.totalorder %s16, 0
    %p118 = por %p116, %p117
    %s119 = ssub.s32 %s18, %s32
    %p120 = scmp.eq.s32.totalorder %s119, 0
    %s122 = sadd.s32 %s121, 1
    %s123 = scalar_select %p120, %s121, %s122
    %p126 = pneg %p120
    %p127 = scmp.eq.s32.totalorder %s10, 7
    %p128 = por %p126, %p127
    %p129 = scmp.ne.s32.totalorder %s121, %s124
    %p130 = scmp.eq.s32.totalorder %s10, 0
    %p131 = por %p129, %p130
    %p132 = scmp.ne.s32.totalorder %s121, %s124
    %p133 = scmp.eq.s32.totalorder %s15, 7
    %p134 = por %p132, %p133
    %p135 = scmp.ne.s32.totalorder %s124, %s125
    %p136 = scmp.eq.s32.totalorder %s15, 0
    %p137 = por %p135, %p136
    %p138 = scmp.ne.s32.totalorder %s124, %s125
    %p139 = scmp.eq.s32.totalorder %s16, 7
    %p140 = por %p138, %p139
    %p142 = scmp.ne.s32.totalorder %s125, %s141
    %p143 = scmp.eq.s32.totalorder %s16, 0
    %p144 = por %p142, %p143
    %s145 = ssub.s32 %s17, %s36
    %s146 = ssub.s32 %s18, %s32
    %s147 = sor.u32 %s145, %s146
    %p148 = scmp.eq.s32.totalorder %s147, 0
    %s150 = sadd.s32 %s149, 1
    %s151 = scalar_select %p148, %s149, %s150
    %p154 = pneg %p148
    %p155 = scmp.eq.s32.totalorder %s10, 7
    %p156 = por %p154, %p155
    %p157 = scmp.ne.s32.totalorder %s149, %s152
    %p158 = scmp.eq.s32.totalorder %s10, 0
    %p159 = por %p157, %p158
    %p160 = scmp.ne.s32.totalorder %s149, %s152
    %p161 = scmp.eq.s32.totalorder %s15, 7
    %p162 = por %p160, %p161
    %p163 = scmp.ne.s32.totalorder %s152, %s153
    %p164 = scmp.eq.s32.totalorder %s15, 0
    %p165 = por %p163, %p164
    %p166 = scmp.ne.s32.totalorder %s152, %s153
    %p167 = scmp.eq.s32.totalorder %s16, 7
    %p168 = por %p166, %p167
    %p170 = scmp.ne.s32.totalorder %s153, %s169
    %p171 = scmp.eq.s32.totalorder %s16, 0
    %p172 = por %p170, %p171
    %p173 = scmp.le.s32.totalorder 1, %s10
    %p174 = scmp.lt.s32.totalorder %s10, 9
    %p175 = pnand %p173, %p174
    %p176 = pneg %p175
    // Predicated region
    $region9: #{resnet_unet_forward.8} parent=5 // pred_check
      _
    $region10: #{resnet_unet_forward.8} parent=5 // pred_check_branch
      %178 = sbr.rel (%p175) target = $region12
    $region11: #{resnet_unet_forward.8} parent=5 // pred_region
      %s179 = ssub.s32 %s10, 1
      // Predicated region
      $region13: #{resnet_unet_forward.8} parent=11 // pred_check
        %p180 = pneg %p85
      $region14: #{resnet_unet_forward.8} parent=11 // pred_check_branch
        %182 = sbr.rel (%p180) target = $region16
      $region15: #{resnet_unet_forward.8} parent=11 // pred_region
        %s183 = smul.u32 72, %s22
        %p184 = scmp.lt.s32.totalorder %s183, 71
        %s185 = scalar_select %p184, %s183, 71
        %p186 = scmp.lt.s32.totalorder %s21, 0
        %s187 = scalar_select %p186, %s21, 0
        %s188 = sadd.s32 %s187, %s185
        %s189 = smul.addr %s188, 4
        %s190 = scalar_lea.vmem %s1, %s189
        %s191 = smul.u32 72, %s22
      $region16: #{resnet_unet_forward.8} parent=11 // pred_fallthru
        _
      // Predicated region
      $region17: #{resnet_unet_forward.8} parent=11 // pred_check
        %p192 = pneg %p111
      $region18: #{resnet_unet_forward.8} parent=11 // pred_check_branch
        %194 = sbr.rel (%p192) target = $region20
      $region19: #{resnet_unet_forward.8} parent=11 // pred_region
        %p195 = scmp.lt.s32.totalorder %s21, 0
        %s196 = scalar_select %p195, %s21, 0
        %s197 = scalar_lea.vmem %s2, %s196
      $region20: #{resnet_unet_forward.8} parent=11 // pred_fallthru
        _
      // Predicated region
      $region21: #{resnet_unet_forward.8} parent=11 // pred_check
        %p198 = pneg %p137
      $region22: #{resnet_unet_forward.8} parent=11 // pred_check_branch
        %200 = sbr.rel (%p198) target = $region24
      $region23: #{resnet_unet_forward.8} parent=11 // pred_region
        %p201 = scmp.lt.s32.totalorder %s21, 0
        %s202 = scalar_select %p201, %s21, 0
        %s203 = scalar_lea.vmem %s3, %s202
      $region24: #{resnet_unet_forward.8} parent=11 // pred_fallthru
        _
    $region12: #{resnet_unet_forward.8} parent=5 // pred_fallthru
      _
    %p204 = scmp.lt.s32.totalorder %s10, 8
    // Predicated region
    $region25: #{resnet_unet_forward.8} parent=5 // pred_check
      %p205 = pneg %p204
    $region26: #{resnet_unet_forward.8} parent=5 // pred_check_branch
      %207 = sbr.rel (%p205) target = $region28
    $region27: #{resnet_unet_forward.8} parent=5 // pred_region
      // Predicated region
      $region29: #{resnet_unet_forward.8} parent=27 // pred_check
        %p208 = pneg %p51
      $region30: #{resnet_unet_forward.8} parent=27 // pred_check_branch
        %210 = sbr.rel (%p208) target = $region32
      $region31: #{resnet_unet_forward.8} parent=27 // pred_region
        %s211 = smul.u32 32, %s17
        %s212 = smul.u32 5, %s19
        %p213 = scmp.lt.s32.totalorder %s211, 255
        %s214 = scalar_select %p213, %s211, 255
        %p215 = scmp.lt.s32.totalorder %s212, 4
        %s216 = scalar_select %p215, %s212, 4
        %s217 = smul.addr %s214, 5
        %s218 = sadd.s32 %s216, %s217
        %s219 = smul.addr %s218, 4
        %s220 = scalar_lea.vmem %s0, %s219
        %s221 = smul.u32 32, %s17
        %s222 = smul.u32 5, %s19
      $region32: #{resnet_unet_forward.8} parent=27 // pred_fallthru
        _
    $region28: #{resnet_unet_forward.8} parent=5 // pred_fallthru
      _
    %p223 = scmp.le.s32.totalorder 1, %s10
    %p224 = scmp.lt.s32.totalorder %s10, 9
    %p225 = pnand %p223, %p224
    %p226 = pneg %p225
    // Predicated region
    $region33: #{resnet_unet_forward.8} parent=5 // pred_check
      _
    $region34: #{resnet_unet_forward.8} parent=5 // pred_check_branch
      %228 = sbr.rel (%p225) target = $region36
    $region35: #{resnet_unet_forward.8} parent=5 // pred_region
      %s229 = ssub.s32 %s10, 1
      %s230 = smul.u32 32, %s20
      %s231 = smul.u32 5, %s22
      %p232 = scmp.lt.s32.totalorder %s230, 255
      %s233 = scalar_select %p232, %s230, 255
      %p234 = scmp.lt.s32.totalorder %s231, 4
      %s235 = scalar_select %p234, %s231, 4
      %s236 = smul.addr %s233, 5
      %s237 = sadd.s32 %s235, %s236
      %s238 = smul.addr %s237, 4
      %s239 = scalar_lea.vmem %s0, %s238
      %p240 = pneg %p57
      %p241 = pneg %p54
      %s242 = smul.u32 72, %s22
      %p243 = scmp.lt.s32.totalorder %s242, 71
      %s244 = scalar_select %p243, %s242, 71
      %p245 = scmp.lt.s32.totalorder %s21, 0
      %s246 = scalar_select %p245, %s21, 0
      %s247 = sadd.s32 %s246, %s244
      %s248 = smul.addr %s247, 4
      %s249 = scalar_lea.vmem %s1, %s248
      %p250 = pneg %p85
      %p251 = pneg %p82
      %p252 = scmp.lt.s32.totalorder %s21, 0
      %s253 = scalar_select %p252, %s21, 0
      %s254 = scalar_lea.vmem %s2, %s253
      %p255 = pneg %p111
      %p256 = pneg %p108
      %p257 = scmp.lt.s32.totalorder %s21, 0
      %s258 = scalar_select %p257, %s21, 0
      %s259 = scalar_lea.vmem %s3, %s258
      %p260 = pneg %p137
      %p261 = pneg %p134
      %p262 = pneg %p165
      %p263 = pneg %p162
      %s264 = smul.u32 32, %s20
      %p265 = scmp.lt.s32.totalorder %s264, 255
      %s266 = scalar_select %p265, %s264, 255
      %p267 = scmp.lt.s32.totalorder %s21, 0
      %s268 = scalar_select %p267, %s21, 0
      %s269 = sadd.s32 %s268, %s266
      %s270 = smul.addr %s269, 8
      %s271 = scalar_lea.vmem %s4, %s270
      %s272 = smul.u32 32, %s20
      %s273 = smul.u32 5, %s22
      %p274 = scmp.lt.s32.totalorder %s272, 255
      %s275 = scalar_select %p274, %s272, 255
      %p276 = scmp.lt.s32.totalorder %s273, 4
      %s277 = scalar_select %p276, %s273, 4
      %s278 = smul.addr %s275, 5
      %s279 = sadd.s32 %s277, %s278
      %s280 = smul.addr %s279, 4
      %s281 = scalar_lea.vmem %s0, %s280
      %s282 = smul.u32 32, %s20
      %s283 = smul.u32 5, %s22
      %s284 = smul.u32 72, %s22
      %p285 = scmp.lt.s32.totalorder %s284, 71
      %s286 = scalar_select %p285, %s284, 71
      %p287 = scmp.lt.s32.totalorder %s21, 0
      %s288 = scalar_select %p287, %s21, 0
      %s289 = sadd.s32 %s288, %s286
      %s290 = smul.addr %s289, 4
      %s291 = scalar_lea.vmem %s1, %s290
      %s292 = smul.u32 72, %s22
      %p293 = scmp.lt.s32.totalorder %s21, 0
      %s294 = scalar_select %p293, %s21, 0
      %s295 = scalar_lea.vmem %s2, %s294
      %p296 = scmp.lt.s32.totalorder %s21, 0
      %s297 = scalar_select %p296, %s21, 0
      %s298 = scalar_lea.vmem %s3, %s297
      %s299 = smul.u32 32, %s20
      %p300 = scmp.lt.s32.totalorder %s299, 255
      %s301 = scalar_select %p300, %s299, 255
      %p302 = scmp.lt.s32.totalorder %s21, 0
      %s303 = scalar_select %p302, %s21, 0
      %s304 = sadd.s32 %s303, %s301
      %s305 = smul.addr %s304, 8
      %s306 = scalar_lea.vmem %s4, %s305
      %s307 = smul.u32 32, %s20
      %p309 = scmp.eq.s32.totalorder %s22, 0
      // Predicated region
      $region37: #{resnet_unet_forward.8} parent=35 // pred_check
        %p310 = pneg %p309
      $region38: #{resnet_unet_forward.8} parent=35 // pred_check_branch
        %312 = sbr.rel (%p310) target = $region40
      $region39: #{resnet_unet_forward.8} parent=35 // pred_region
        %313 = vst [vmem:[#allocation2] sm:$0xff] 0.0
        %314 = vst [vmem:[#allocation2 + $0x8] sm:$0xff] 0.0
        %315 = vst [vmem:[#allocation2 + $0x10] sm:$0xff] 0.0
        %316 = vst [vmem:[#allocation2 + $0x18] sm:$0xff] 0.0
        %317 = vst [vmem:[#allocation2 + $0x20] sm:$0xff] 0.0
        %318 = vst [vmem:[#allocation2 + $0x28] sm:$0xff] 0.0
        %319 = vst [vmem:[#allocation2 + $0x30] sm:$0xff] 0.0
        %320 = vst [vmem:[#allocation2 + $0x38] sm:$0xff] 0.0
        %321 = vst [vmem:[#allocation2 + $0x40] sm:$0xff] 0.0
        %322 = vst [vmem:[#allocation2 + $0x48] sm:$0xff] 0.0
        %323 = vst [vmem:[#allocation2 + $0x50] sm:$0xff] 0.0
        %324 = vst [vmem:[#allocation2 + $0x58] sm:$0xff] 0.0
        %325 = vst [vmem:[#allocation2 + $0x60] sm:$0xff] 0.0
        %326 = vst [vmem:[#allocation2 + $0x68] sm:$0xff] 0.0
        %327 = vst [vmem:[#allocation2 + $0x70] sm:$0xff] 0.0
        %328 = vst [vmem:[#allocation2 + $0x78] sm:$0xff] 0.0
        %329 = vst [vmem:[#allocation2 + $0x80] sm:$0xff] 0.0
        %330 = vst [vmem:[#allocation2 + $0x88] sm:$0xff] 0.0
        %331 = vst [vmem:[#allocation2 + $0x90] sm:$0xff] 0.0
        %332 = vst [vmem:[#allocation2 + $0x98] sm:$0xff] 0.0
        %333 = vst [vmem:[#allocation2 + $0xa0] sm:$0xff] 0.0
        %334 = vst [vmem:[#allocation2 + $0xa8] sm:$0xff] 0.0
        %335 = vst [vmem:[#allocation2 + $0xb0] sm:$0xff] 0.0
        %336 = vst [vmem:[#allocation2 + $0xb8] sm:$0xff] 0.0
        %337 = vst [vmem:[#allocation2 + $0xc0] sm:$0xff] 0.0
        %338 = vst [vmem:[#allocation2 + $0xc8] sm:$0xff] 0.0
        %339 = vst [vmem:[#allocation2 + $0xd0] sm:$0xff] 0.0
        %340 = vst [vmem:[#allocation2 + $0xd8] sm:$0xff] 0.0
        %341 = vst [vmem:[#allocation2 + $0xe0] sm:$0xff] 0.0
        %342 = vst [vmem:[#allocation2 + $0xe8] sm:$0xff] 0.0
        %343 = vst [vmem:[#allocation2 + $0xf0] sm:$0xff] 0.0
        %344 = vst [vmem:[#allocation2 + $0xf8] sm:$0xff] 0.0
      $region40: #{resnet_unet_forward.8} parent=35 // pred_fallthru
        _
      %v345 = vld [vmem:[#allocation2] sm:$0xff]
      %v346 = vld [vmem:[#allocation2 + $0x8] sm:$0xff]
      %v347 = vld [vmem:[#allocation2 + $0x10] sm:$0xff]
      %v348 = vld [vmem:[#allocation2 + $0x18] sm:$0xff]
      %v349 = vld [vmem:[#allocation2 + $0x20] sm:$0xff]
      %v350 = vld [vmem:[#allocation2 + $0x28] sm:$0xff]
      %v351 = vld [vmem:[#allocation2 + $0x30] sm:$0xff]
      %v352 = vld [vmem:[#allocation2 + $0x38] sm:$0xff]
      %v353 = vld [vmem:[#allocation2 + $0x40] sm:$0xff]
      %v354 = vld [vmem:[#allocation2 + $0x48] sm:$0xff]
      %v355 = vld [vmem:[#allocation2 + $0x50] sm:$0xff]
      %v356 = vld [vmem:[#allocation2 + $0x58] sm:$0xff]
      %v357 = vld [vmem:[#allocation2 + $0x60] sm:$0xff]
      %v358 = vld [vmem:[#allocation2 + $0x68] sm:$0xff]
      %v359 = vld [vmem:[#allocation2 + $0x70] sm:$0xff]
      %v360 = vld [vmem:[#allocation2 + $0x78] sm:$0xff]
      %v361 = vld [vmem:[#allocation2 + $0x80] sm:$0xff]
      %v362 = vld [vmem:[#allocation2 + $0x88] sm:$0xff]
      %v363 = vld [vmem:[#allocation2 + $0x90] sm:$0xff]
      %v364 = vld [vmem:[#allocation2 + $0x98] sm:$0xff]
      %v365 = vld [vmem:[#allocation2 + $0xa0] sm:$0xff]
      %v366 = vld [vmem:[#allocation2 + $0xa8] sm:$0xff]
      %v367 = vld [vmem:[#allocation2 + $0xb0] sm:$0xff]
      %v368 = vld [vmem:[#allocation2 + $0xb8] sm:$0xff]
      %v369 = vld [vmem:[#allocation2 + $0xc0] sm:$0xff]
      %v370 = vld [vmem:[#allocation2 + $0xc8] sm:$0xff]
      %v371 = vld [vmem:[#allocation2 + $0xd0] sm:$0xff]
      %v372 = vld [vmem:[#allocation2 + $0xd8] sm:$0xff]
      %v373 = vld [vmem:[#allocation2 + $0xe0] sm:$0xff]
      %v374 = vld [vmem:[#allocation2 + $0xe8] sm:$0xff]
      %v375 = vld [vmem:[#allocation2 + $0xf0] sm:$0xff]
      %v376 = vld [vmem:[#allocation2 + $0xf8] sm:$0xff]
      %v377 = vld [vmem:[%s281] sm:$0xff]
      %v378 = vld [vmem:[%s281 + $0x8] sm:$0xff]
      %v379 = vld [vmem:[%s281 + $0x10] sm:$0xf]
      %v380 = vld [vmem:[%s281 + $0x14] sm:$0xff]
      %v381 = vld [vmem:[%s281 + $0x1c] sm:$0xff]
      %v382 = vld [vmem:[%s281 + $0x24] sm:$0xf]
      %v383 = vld [vmem:[%s281 + $0x28] sm:$0xff]
      %v384 = vld [vmem:[%s281 + $0x30] sm:$0xff]
      %v385 = vld [vmem:[%s281 + $0x38] sm:$0xf]
      %v386 = vld [vmem:[%s281 + $0x3c] sm:$0xff]
      %v387 = vld [vmem:[%s281 + $0x44] sm:$0xff]
      %v388 = vld [vmem:[%s281 + $0x4c] sm:$0xf]
      %v389 = vld [vmem:[%s281 + $0x50] sm:$0xff]
      %v390 = vld [vmem:[%s281 + $0x58] sm:$0xff]
      %v391 = vld [vmem:[%s281 + $0x60] sm:$0xf]
      %v392 = vld [vmem:[%s281 + $0x64] sm:$0xff]
      %v393 = vld [vmem:[%s281 + $0x6c] sm:$0xff]
      %v394 = vld [vmem:[%s281 + $0x74] sm:$0xf]
      %v395 = vld [vmem:[%s281 + $0x78] sm:$0xff]
      %v396 = vld [vmem:[%s281 + $0x80] sm:$0xff]
      %v397 = vld [vmem:[%s281 + $0x88] sm:$0xf]
      %v398 = vld [vmem:[%s281 + $0x8c] sm:$0xff]
      %v399 = vld [vmem:[%s281 + $0x94] sm:$0xff]
      %v400 = vld [vmem:[%s281 + $0x9c] sm:$0xf]
      %v401 = vld [vmem:[%s281 + $0xa0] sm:$0xff]
      %v402 = vld [vmem:[%s281 + $0xa8] sm:$0xff]
      %v403 = vld [vmem:[%s281 + $0xb0] sm:$0xf]
      %v404 = vld [vmem:[%s281 + $0xb4] sm:$0xff]
      %v405 = vld [vmem:[%s281 + $0xbc] sm:$0xff]
      %v406 = vld [vmem:[%s281 + $0xc4] sm:$0xf]
      %v407 = vld [vmem:[%s281 + $0xc8] sm:$0xff]
      %v408 = vld [vmem:[%s281 + $0xd0] sm:$0xff]
      %v409 = vld [vmem:[%s281 + $0xd8] sm:$0xf]
      %v410 = vld [vmem:[%s281 + $0xdc] sm:$0xff]
      %v411 = vld [vmem:[%s281 + $0xe4] sm:$0xff]
      %v412 = vld [vmem:[%s281 + $0xec] sm:$0xf]
      %v413 = vld [vmem:[%s281 + $0xf0] sm:$0xff]
      %v414 = vld [vmem:[%s281 + $0xf8] sm:$0xff]
      %v415 = vld [vmem:[%s281 + $0x100] sm:$0xf]
      %v416 = vld [vmem:[%s281 + $0x104] sm:$0xff]
      %v417 = vld [vmem:[%s281 + $0x10c] sm:$0xff]
      %v418 = vld [vmem:[%s281 + $0x114] sm:$0xf]
      %v419 = vld [vmem:[%s281 + $0x118] sm:$0xff]
      %v420 = vld [vmem:[%s281 + $0x120] sm:$0xff]
      %v421 = vld [vmem:[%s281 + $0x128] sm:$0xf]
      %v422 = vld [vmem:[%s281 + $0x12c] sm:$0xff]
      %v423 = vld [vmem:[%s281 + $0x134] sm:$0xff]
      %v424 = vld [vmem:[%s281 + $0x13c] sm:$0xf]
      %v425 = vld [vmem:[%s281 + $0x140] sm:$0xff]
      %v426 = vld [vmem:[%s281 + $0x148] sm:$0xff]
      %v427 = vld [vmem:[%s281 + $0x150] sm:$0xf]
      %v428 = vld [vmem:[%s281 + $0x154] sm:$0xff]
      %v429 = vld [vmem:[%s281 + $0x15c] sm:$0xff]
      %v430 = vld [vmem:[%s281 + $0x164] sm:$0xf]
      %v431 = vld [vmem:[%s281 + $0x168] sm:$0xff]
      %v432 = vld [vmem:[%s281 + $0x170] sm:$0xff]
      %v433 = vld [vmem:[%s281 + $0x178] sm:$0xf]
      %v434 = vld [vmem:[%s281 + $0x17c] sm:$0xff]
      %v435 = vld [vmem:[%s281 + $0x184] sm:$0xff]
      %v436 = vld [vmem:[%s281 + $0x18c] sm:$0xf]
      %v437 = vld [vmem:[%s281 + $0x190] sm:$0xff]
      %v438 = vld [vmem:[%s281 + $0x198] sm:$0xff]
      %v439 = vld [vmem:[%s281 + $0x1a0] sm:$0xf]
      %v440 = vld [vmem:[%s281 + $0x1a4] sm:$0xff]
      %v441 = vld [vmem:[%s281 + $0x1ac] sm:$0xff]
      %v442 = vld [vmem:[%s281 + $0x1b4] sm:$0xf]
      %v443 = vld [vmem:[%s281 + $0x1b8] sm:$0xff]
      %v444 = vld [vmem:[%s281 + $0x1c0] sm:$0xff]
      %v445 = vld [vmem:[%s281 + $0x1c8] sm:$0xf]
      %v446 = vld [vmem:[%s281 + $0x1cc] sm:$0xff]
      %v447 = vld [vmem:[%s281 + $0x1d4] sm:$0xff]
      %v448 = vld [vmem:[%s281 + $0x1dc] sm:$0xf]
      %v449 = vld [vmem:[%s281 + $0x1e0] sm:$0xff]
      %v450 = vld [vmem:[%s281 + $0x1e8] sm:$0xff]
      %v451 = vld [vmem:[%s281 + $0x1f0] sm:$0xf]
      %v452 = vld [vmem:[%s281 + $0x1f4] sm:$0xff]
      %v453 = vld [vmem:[%s281 + $0x1fc] sm:$0xff]
      %v454 = vld [vmem:[%s281 + $0x204] sm:$0xf]
      %v455 = vld [vmem:[%s281 + $0x208] sm:$0xff]
      %v456 = vld [vmem:[%s281 + $0x210] sm:$0xff]
      %v457 = vld [vmem:[%s281 + $0x218] sm:$0xf]
      %v458 = vld [vmem:[%s281 + $0x21c] sm:$0xff]
      %v459 = vld [vmem:[%s281 + $0x224] sm:$0xff]
      %v460 = vld [vmem:[%s281 + $0x22c] sm:$0xf]
      %v461 = vld [vmem:[%s281 + $0x230] sm:$0xff]
      %v462 = vld [vmem:[%s281 + $0x238] sm:$0xff]
      %v463 = vld [vmem:[%s281 + $0x240] sm:$0xf]
      %v464 = vld [vmem:[%s281 + $0x244] sm:$0xff]
      %v465 = vld [vmem:[%s281 + $0x24c] sm:$0xff]
      %v466 = vld [vmem:[%s281 + $0x254] sm:$0xf]
      %v467 = vld [vmem:[%s281 + $0x258] sm:$0xff]
      %v468 = vld [vmem:[%s281 + $0x260] sm:$0xff]
      %v469 = vld [vmem:[%s281 + $0x268] sm:$0xf]
      %v470 = vld [vmem:[%s281 + $0x26c] sm:$0xff]
      %v471 = vld [vmem:[%s281 + $0x274] sm:$0xff]
      %v472 = vld [vmem:[%s281 + $0x27c] sm:$0xf]
      %v473 = vld [vmem:[%s291] sm:$0xf]
      %v474 = vld [vmem:[%s291 + $0x4] sm:$0xf]
      %v475 = vld [vmem:[%s291 + $0x8] sm:$0xf]
      %v476 = vld [vmem:[%s291 + $0xc] sm:$0xf]
      %v477 = vld [vmem:[%s291 + $0x10] sm:$0xf]
      %v478 = vld [vmem:[%s291 + $0x14] sm:$0xf]
      %v479 = vld [vmem:[%s291 + $0x18] sm:$0xf]
      %v480 = vld [vmem:[%s291 + $0x1c] sm:$0xf]
      %v481 = vld [vmem:[%s291 + $0x20] sm:$0xf]
      %v482 = vld [vmem:[%s291 + $0x24] sm:$0xf]
      %v483 = vld [vmem:[%s291 + $0x28] sm:$0xf]
      %v484 = vld [vmem:[%s291 + $0x2c] sm:$0xf]
      %v485 = vld [vmem:[%s291 + $0x30] sm:$0xf]
      %v486 = vld [vmem:[%s291 + $0x34] sm:$0xf]
      %v487 = vld [vmem:[%s291 + $0x38] sm:$0xf]
      %v488 = vld [vmem:[%s291 + $0x3c] sm:$0xf]
      %v489 = vld [vmem:[%s291 + $0x40] sm:$0xf]
      %v490 = vld [vmem:[%s291 + $0x44] sm:$0xf]
      %v491 = vld [vmem:[%s291 + $0x48] sm:$0xf]
      %v492 = vld [vmem:[%s291 + $0x4c] sm:$0xf]
      %v493 = vld [vmem:[%s291 + $0x50] sm:$0xf]
      %v494 = vld [vmem:[%s291 + $0x54] sm:$0xf]
      %v495 = vld [vmem:[%s291 + $0x58] sm:$0xf]
      %v496 = vld [vmem:[%s291 + $0x5c] sm:$0xf]
      %v497 = vld [vmem:[%s291 + $0x60] sm:$0xf]
      %v498 = vld [vmem:[%s291 + $0x64] sm:$0xf]
      %v499 = vld [vmem:[%s291 + $0x68] sm:$0xf]
      %v500 = vld [vmem:[%s291 + $0x6c] sm:$0xf]
      %v501 = vld [vmem:[%s291 + $0x70] sm:$0xf]
      %v502 = vld [vmem:[%s291 + $0x74] sm:$0xf]
      %v503 = vld [vmem:[%s291 + $0x78] sm:$0xf]
      %v504 = vld [vmem:[%s291 + $0x7c] sm:$0xf]
      %v505 = vld [vmem:[%s291 + $0x80] sm:$0xf]
      %v506 = vld [vmem:[%s291 + $0x84] sm:$0xf]
      %v507 = vld [vmem:[%s291 + $0x88] sm:$0xf]
      %v508 = vld [vmem:[%s291 + $0x8c] sm:$0xf]
      %v509 = vld [vmem:[%s291 + $0x90] sm:$0xf]
      %v510 = vld [vmem:[%s291 + $0x94] sm:$0xf]
      %v511 = vld [vmem:[%s291 + $0x98] sm:$0xf]
      %v512 = vld [vmem:[%s291 + $0x9c] sm:$0xf]
      %v513 = vld [vmem:[%s291 + $0xa0] sm:$0xf]
      %v514 = vld [vmem:[%s291 + $0xa4] sm:$0xf]
      %v515 = vld [vmem:[%s291 + $0xa8] sm:$0xf]
      %v516 = vld [vmem:[%s291 + $0xac] sm:$0xf]
      %v517 = vld [vmem:[%s291 + $0xb0] sm:$0xf]
      %v518 = vld [vmem:[%s291 + $0xb4] sm:$0xf]
      %v519 = vld [vmem:[%s291 + $0xb8] sm:$0xf]
      %v520 = vld [vmem:[%s291 + $0xbc] sm:$0xf]
      %v521 = vld [vmem:[%s291 + $0xc0] sm:$0xf]
      %v522 = vld [vmem:[%s291 + $0xc4] sm:$0xf]
      %v523 = vld [vmem:[%s291 + $0xc8] sm:$0xf]
      %v524 = vld [vmem:[%s291 + $0xcc] sm:$0xf]
      %v525 = vld [vmem:[%s291 + $0xd0] sm:$0xf]
      %v526 = vld [vmem:[%s291 + $0xd4] sm:$0xf]
      %v527 = vld [vmem:[%s291 + $0xd8] sm:$0xf]
      %v528 = vld [vmem:[%s291 + $0xdc] sm:$0xf]
      %v529 = vld [vmem:[%s291 + $0xe0] sm:$0xf]
      %v530 = vld [vmem:[%s291 + $0xe4] sm:$0xf]
      %v531 = vld [vmem:[%s291 + $0xe8] sm:$0xf]
      %v532 = vld [vmem:[%s291 + $0xec] sm:$0xf]
      %v533 = vld [vmem:[%s291 + $0xf0] sm:$0xf]
      %v534 = vld [vmem:[%s291 + $0xf4] sm:$0xf]
      %v535 = vld [vmem:[%s291 + $0xf8] sm:$0xf]
      %v536 = vld [vmem:[%s291 + $0xfc] sm:$0xf]
      %v537 = vld [vmem:[%s291 + $0x100] sm:$0xf]
      %v538 = vld [vmem:[%s291 + $0x104] sm:$0xf]
      %v539 = vld [vmem:[%s291 + $0x108] sm:$0xf]
      %v540 = vld [vmem:[%s291 + $0x10c] sm:$0xf]
      %v541 = vld [vmem:[%s291 + $0x110] sm:$0xf]
      %v542 = vld [vmem:[%s291 + $0x114] sm:$0xf]
      %v543 = vld [vmem:[%s291 + $0x118] sm:$0xf]
      %v544 = vld [vmem:[%s291 + $0x11c] sm:$0xf]
      %v641 = vunpack.c.l.b16 %v377
      %v642 = vunpack.c.h.b16 %v377
      %v643 = vunpack.c.l.b16 %v378
      %v644 = vunpack.c.h.b16 %v378
      %v645 = vunpack.c.l.b16 %v379
      %v646 = vunpack.c.l.b16 %v380
      %v647 = vunpack.c.h.b16 %v380
      %v648 = vunpack.c.l.b16 %v381
      %v649 = vunpack.c.h.b16 %v381
      %v650 = vunpack.c.l.b16 %v382
      %v651 = vunpack.c.l.b16 %v383
      %v652 = vunpack.c.h.b16 %v383
      %v653 = vunpack.c.l.b16 %v384
      %v654 = vunpack.c.h.b16 %v384
      %v655 = vunpack.c.l.b16 %v385
      %v656 = vunpack.c.l.b16 %v386
      %v657 = vunpack.c.h.b16 %v386
      %v658 = vunpack.c.l.b16 %v387
      %v659 = vunpack.c.h.b16 %v387
      %v660 = vunpack.c.l.b16 %v388
      %v661 = vunpack.c.l.b16 %v389
      %v662 = vunpack.c.h.b16 %v389
      %v663 = vunpack.c.l.b16 %v390
      %v664 = vunpack.c.h.b16 %v390
      %v665 = vunpack.c.l.b16 %v391
      %v666 = vunpack.c.l.b16 %v392
      %v667 = vunpack.c.h.b16 %v392
      %v668 = vunpack.c.l.b16 %v393
      %v669 = vunpack.c.h.b16 %v393
      %v670 = vunpack.c.l.b16 %v394
      %v671 = vunpack.c.l.b16 %v395
      %v672 = vunpack.c.h.b16 %v395
      %v673 = vunpack.c.l.b16 %v396
      %v674 = vunpack.c.h.b16 %v396
      %v675 = vunpack.c.l.b16 %v397
      %v676 = vunpack.c.l.b16 %v398
      %v677 = vunpack.c.h.b16 %v398
      %v678 = vunpack.c.l.b16 %v399
      %v679 = vunpack.c.h.b16 %v399
      %v680 = vunpack.c.l.b16 %v400
      %v681 = vunpack.c.l.b16 %v401
      %v682 = vunpack.c.h.b16 %v401
      %v683 = vunpack.c.l.b16 %v402
      %v684 = vunpack.c.h.b16 %v402
      %v685 = vunpack.c.l.b16 %v403
      %v686 = vunpack.c.l.b16 %v404
      %v687 = vunpack.c.h.b16 %v404
      %v688 = vunpack.c.l.b16 %v405
      %v689 = vunpack.c.h.b16 %v405
      %v690 = vunpack.c.l.b16 %v406
      %v691 = vunpack.c.l.b16 %v407
      %v692 = vunpack.c.h.b16 %v407
      %v693 = vunpack.c.l.b16 %v408
      %v694 = vunpack.c.h.b16 %v408
      %v695 = vunpack.c.l.b16 %v409
      %v696 = vunpack.c.l.b16 %v410
      %v697 = vunpack.c.h.b16 %v410
      %v698 = vunpack.c.l.b16 %v411
      %v699 = vunpack.c.h.b16 %v411
      %v700 = vunpack.c.l.b16 %v412
      %v701 = vunpack.c.l.b16 %v413
      %v702 = vunpack.c.h.b16 %v413
      %v703 = vunpack.c.l.b16 %v414
      %v704 = vunpack.c.h.b16 %v414
      %v705 = vunpack.c.l.b16 %v415
      %v706 = vunpack.c.l.b16 %v416
      %v707 = vunpack.c.h.b16 %v416
      %v708 = vunpack.c.l.b16 %v417
      %v709 = vunpack.c.h.b16 %v417
      %v710 = vunpack.c.l.b16 %v418
      %v711 = vunpack.c.l.b16 %v419
      %v712 = vunpack.c.h.b16 %v419
      %v713 = vunpack.c.l.b16 %v420
      %v714 = vunpack.c.h.b16 %v420
      %v715 = vunpack.c.l.b16 %v421
      %v716 = vunpack.c.l.b16 %v422
      %v717 = vunpack.c.h.b16 %v422
      %v718 = vunpack.c.l.b16 %v423
      %v719 = vunpack.c.h.b16 %v423
      %v720 = vunpack.c.l.b16 %v424
      %v721 = vunpack.c.l.b16 %v425
      %v722 = vunpack.c.h.b16 %v425
      %v723 = vunpack.c.l.b16 %v426
      %v724 = vunpack.c.h.b16 %v426
      %v725 = vunpack.c.l.b16 %v427
      %v726 = vunpack.c.l.b16 %v428
      %v727 = vunpack.c.h.b16 %v428
      %v728 = vunpack.c.l.b16 %v429
      %v729 = vunpack.c.h.b16 %v429
      %v730 = vunpack.c.l.b16 %v430
      %v731 = vunpack.c.l.b16 %v431
      %v732 = vunpack.c.h.b16 %v431
      %v733 = vunpack.c.l.b16 %v432
      %v734 = vunpack.c.h.b16 %v432
      %v735 = vunpack.c.l.b16 %v433
      %v736 = vunpack.c.l.b16 %v434
      %v737 = vunpack.c.h.b16 %v434
      %v738 = vunpack.c.l.b16 %v435
      %v739 = vunpack.c.h.b16 %v435
      %v740 = vunpack.c.l.b16 %v436
      %v741 = vunpack.c.l.b16 %v437
      %v742 = vunpack.c.h.b16 %v437
      %v743 = vunpack.c.l.b16 %v438
      %v744 = vunpack.c.h.b16 %v438
      %v745 = vunpack.c.l.b16 %v439
      %v746 = vunpack.c.l.b16 %v440
      %v747 = vunpack.c.h.b16 %v440
      %v748 = vunpack.c.l.b16 %v441
      %v749 = vunpack.c.h.b16 %v441
      %v750 = vunpack.c.l.b16 %v442
      %v751 = vunpack.c.l.b16 %v443
      %v752 = vunpack.c.h.b16 %v443
      %v753 = vunpack.c.l.b16 %v444
      %v754 = vunpack.c.h.b16 %v444
      %v755 = vunpack.c.l.b16 %v445
      %v756 = vunpack.c.l.b16 %v446
      %v757 = vunpack.c.h.b16 %v446
      %v758 = vunpack.c.l.b16 %v447
      %v759 = vunpack.c.h.b16 %v447
      %v760 = vunpack.c.l.b16 %v448
      %v761 = vunpack.c.l.b16 %v449
      %v762 = vunpack.c.h.b16 %v449
      %v763 = vunpack.c.l.b16 %v450
      %v764 = vunpack.c.h.b16 %v450
      %v765 = vunpack.c.l.b16 %v451
      %v766 = vunpack.c.l.b16 %v452
      %v767 = vunpack.c.h.b16 %v452
      %v768 = vunpack.c.l.b16 %v453
      %v769 = vunpack.c.h.b16 %v453
      %v770 = vunpack.c.l.b16 %v454
      %v771 = vunpack.c.l.b16 %v455
      %v772 = vunpack.c.h.b16 %v455
      %v773 = vunpack.c.l.b16 %v456
      %v774 = vunpack.c.h.b16 %v456
      %v775 = vunpack.c.l.b16 %v457
      %v776 = vunpack.c.l.b16 %v458
      %v777 = vunpack.c.h.b16 %v458
      %v778 = vunpack.c.l.b16 %v459
      %v779 = vunpack.c.h.b16 %v459
      %v780 = vunpack.c.l.b16 %v460
      %v781 = vunpack.c.l.b16 %v461
      %v782 = vunpack.c.h.b16 %v461
      %v783 = vunpack.c.l.b16 %v462
      %v784 = vunpack.c.h.b16 %v462
      %v785 = vunpack.c.l.b16 %v463
      %v786 = vunpack.c.l.b16 %v464
      %v787 = vunpack.c.h.b16 %v464
      %v788 = vunpack.c.l.b16 %v465
      %v789 = vunpack.c.h.b16 %v465
      %v790 = vunpack.c.l.b16 %v466
      %v791 = vunpack.c.l.b16 %v467
      %v792 = vunpack.c.h.b16 %v467
      %v793 = vunpack.c.l.b16 %v468
      %v794 = vunpack.c.h.b16 %v468
      %v795 = vunpack.c.l.b16 %v469
      %v796 = vunpack.c.l.b16 %v470
      %v797 = vunpack.c.h.b16 %v470
      %v798 = vunpack.c.l.b16 %v471
      %v799 = vunpack.c.h.b16 %v471
      %v800 = vunpack.c.l.b16 %v472
      %v801 = vpack.c.b16 %v646, %v641
      %v802 = vpack.c.b16 %v647, %v642
      %v803 = vpack.c.b16 %v648, %v643
      %v804 = vpack.c.b16 %v649, %v644
      %v805 = vpack.c.b16 %v650, %v645
      %v806 = vpack.c.b16 %v656, %v651
      %v807 = vpack.c.b16 %v657, %v652
      %v808 = vpack.c.b16 %v658, %v653
      %v809 = vpack.c.b16 %v659, %v654
      %v810 = vpack.c.b16 %v660, %v655
      %v811 = vpack.c.b16 %v666, %v661
      %v812 = vpack.c.b16 %v667, %v662
      %v813 = vpack.c.b16 %v668, %v663
      %v814 = vpack.c.b16 %v669, %v664
      %v815 = vpack.c.b16 %v670, %v665
      %v816 = vpack.c.b16 %v676, %v671
      %v817 = vpack.c.b16 %v677, %v672
      %v818 = vpack.c.b16 %v678, %v673
      %v819 = vpack.c.b16 %v679, %v674
      %v820 = vpack.c.b16 %v680, %v675
      %v821 = vpack.c.b16 %v686, %v681
      %v822 = vpack.c.b16 %v687, %v682
      %v823 = vpack.c.b16 %v688, %v683
      %v824 = vpack.c.b16 %v689, %v684
      %v825 = vpack.c.b16 %v690, %v685
      %v826 = vpack.c.b16 %v696, %v691
      %v827 = vpack.c.b16 %v697, %v692
      %v828 = vpack.c.b16 %v698, %v693
      %v829 = vpack.c.b16 %v699, %v694
      %v830 = vpack.c.b16 %v700, %v695
      %v831 = vpack.c.b16 %v706, %v701
      %v832 = vpack.c.b16 %v707, %v702
      %v833 = vpack.c.b16 %v708, %v703
      %v834 = vpack.c.b16 %v709, %v704
      %v835 = vpack.c.b16 %v710, %v705
      %v836 = vpack.c.b16 %v716, %v711
      %v837 = vpack.c.b16 %v717, %v712
      %v838 = vpack.c.b16 %v718, %v713
      %v839 = vpack.c.b16 %v719, %v714
      %v840 = vpack.c.b16 %v720, %v715
      %v841 = vpack.c.b16 %v726, %v721
      %v842 = vpack.c.b16 %v727, %v722
      %v843 = vpack.c.b16 %v728, %v723
      %v844 = vpack.c.b16 %v729, %v724
      %v845 = vpack.c.b16 %v730, %v725
      %v846 = vpack.c.b16 %v736, %v731
      %v847 = vpack.c.b16 %v737, %v732
      %v848 = vpack.c.b16 %v738, %v733
      %v849 = vpack.c.b16 %v739, %v734
      %v850 = vpack.c.b16 %v740, %v735
      %v851 = vpack.c.b16 %v746, %v741
      %v852 = vpack.c.b16 %v747, %v742
      %v853 = vpack.c.b16 %v748, %v743
      %v854 = vpack.c.b16 %v749, %v744
      %v855 = vpack.c.b16 %v750, %v745
      %v856 = vpack.c.b16 %v756, %v751
      %v857 = vpack.c.b16 %v757, %v752
      %v858 = vpack.c.b16 %v758, %v753
      %v859 = vpack.c.b16 %v759, %v754
      %v860 = vpack.c.b16 %v760, %v755
      %v861 = vpack.c.b16 %v766, %v761
      %v862 = vpack.c.b16 %v767, %v762
      %v863 = vpack.c.b16 %v768, %v763
      %v864 = vpack.c.b16 %v769, %v764
      %v865 = vpack.c.b16 %v770, %v765
      %v866 = vpack.c.b16 %v776, %v771
      %v867 = vpack.c.b16 %v777, %v772
      %v868 = vpack.c.b16 %v778, %v773
      %v869 = vpack.c.b16 %v779, %v774
      %v870 = vpack.c.b16 %v780, %v775
      %v871 = vpack.c.b16 %v786, %v781
      %v872 = vpack.c.b16 %v787, %v782
      %v873 = vpack.c.b16 %v788, %v783
      %v874 = vpack.c.b16 %v789, %v784
      %v875 = vpack.c.b16 %v790, %v785
      %v876 = vpack.c.b16 %v796, %v791
      %v877 = vpack.c.b16 %v797, %v792
      %v878 = vpack.c.b16 %v798, %v793
      %v879 = vpack.c.b16 %v799, %v794
      %v880 = vpack.c.b16 %v800, %v795
      %v1017 = vunpack.c.l.b16 %v473
      %v1018 = vunpack.c.l.b16 %v474
      %v1019 = vunpack.c.l.b16 %v475
      %v1020 = vunpack.c.l.b16 %v476
      %v1021 = vunpack.c.l.b16 %v477
      %v1022 = vunpack.c.l.b16 %v478
      %v1023 = vunpack.c.l.b16 %v479
      %v1024 = vunpack.c.l.b16 %v480
      %v1025 = vunpack.c.l.b16 %v481
      %v1026 = vunpack.c.l.b16 %v482
      %v1027 = vunpack.c.l.b16 %v483
      %v1028 = vunpack.c.l.b16 %v484
      %v1029 = vunpack.c.l.b16 %v485
      %v1030 = vunpack.c.l.b16 %v486
      %v1031 = vunpack.c.l.b16 %v487
      %v1032 = vunpack.c.l.b16 %v488
      %v1033 = vunpack.c.l.b16 %v489
      %v1034 = vunpack.c.l.b16 %v490
      %v1035 = vunpack.c.l.b16 %v491
      %v1036 = vunpack.c.l.b16 %v492
      %v1037 = vunpack.c.l.b16 %v493
      %v1038 = vunpack.c.l.b16 %v494
      %v1039 = vunpack.c.l.b16 %v495
      %v1040 = vunpack.c.l.b16 %v496
      %v1041 = vunpack.c.l.b16 %v497
      %v1042 = vunpack.c.l.b16 %v498
      %v1043 = vunpack.c.l.b16 %v499
      %v1044 = vunpack.c.l.b16 %v500
      %v1045 = vunpack.c.l.b16 %v501
      %v1046 = vunpack.c.l.b16 %v502
      %v1047 = vunpack.c.l.b16 %v503
      %v1048 = vunpack.c.l.b16 %v504
      %v1049 = vunpack.c.l.b16 %v505
      %v1050 = vunpack.c.l.b16 %v506
      %v1051 = vunpack.c.l.b16 %v507
      %v1052 = vunpack.c.l.b16 %v508
      %v1053 = vunpack.c.l.b16 %v509
      %v1054 = vunpack.c.l.b16 %v510
      %v1055 = vunpack.c.l.b16 %v511
      %v1056 = vunpack.c.l.b16 %v512
      %v1057 = vunpack.c.l.b16 %v513
      %v1058 = vunpack.c.l.b16 %v514
      %v1059 = vunpack.c.l.b16 %v515
      %v1060 = vunpack.c.l.b16 %v516
      %v1061 = vunpack.c.l.b16 %v517
      %v1062 = vunpack.c.l.b16 %v518
      %v1063 = vunpack.c.l.b16 %v519
      %v1064 = vunpack.c.l.b16 %v520
      %v1065 = vunpack.c.l.b16 %v521
      %v1066 = vunpack.c.l.b16 %v522
      %v1067 = vunpack.c.l.b16 %v523
      %v1068 = vunpack.c.l.b16 %v524
      %v1069 = vunpack.c.l.b16 %v525
      %v1070 = vunpack.c.l.b16 %v526
      %v1071 = vunpack.c.l.b16 %v527
      %v1072 = vunpack.c.l.b16 %v528
      %v1073 = vunpack.c.l.b16 %v529
      %v1074 = vunpack.c.l.b16 %v530
      %v1075 = vunpack.c.l.b16 %v531
      %v1076 = vunpack.c.l.b16 %v532
      %v1077 = vunpack.c.l.b16 %v533
      %v1078 = vunpack.c.l.b16 %v534
      %v1079 = vunpack.c.l.b16 %v535
      %v1080 = vunpack.c.l.b16 %v536
      %v1081 = vunpack.c.l.b16 %v537
      %v1082 = vunpack.c.l.b16 %v538
      %v1083 = vunpack.c.l.b16 %v539
      %v1084 = vunpack.c.l.b16 %v540
      %v1085 = vunpack.c.l.b16 %v541
      %v1086 = vunpack.c.l.b16 %v542
      %v1087 = vunpack.c.l.b16 %v543
      %v1088 = vunpack.c.l.b16 %v544
      %v1089 = vpack.c.b16 %v1018, %v1017
      %v1090 = vpack.c.b16 %v1020, %v1019
      %v1091 = vpack.c.b16 %v1022, %v1021
      %v1092 = vpack.c.b16 %v1024, %v1023
      %v1093 = vpack.c.b16 %v1026, %v1025
      %v1094 = vpack.c.b16 %v1028, %v1027
      %v1095 = vpack.c.b16 %v1030, %v1029
      %v1096 = vpack.c.b16 %v1032, %v1031
      %v1097 = vpack.c.b16 %v1034, %v1033
      %v1098 = vpack.c.b16 %v1036, %v1035
      %v1099 = vpack.c.b16 %v1038, %v1037
      %v1100 = vpack.c.b16 %v1040, %v1039
      %v1101 = vpack.c.b16 %v1042, %v1041
      %v1102 = vpack.c.b16 %v1044, %v1043
      %v1103 = vpack.c.b16 %v1046, %v1045
      %v1104 = vpack.c.b16 %v1048, %v1047
      %v1105 = vpack.c.b16 %v1050, %v1049
      %v1106 = vpack.c.b16 %v1052, %v1051
      %v1107 = vpack.c.b16 %v1054, %v1053
      %v1108 = vpack.c.b16 %v1056, %v1055
      %v1109 = vpack.c.b16 %v1058, %v1057
      %v1110 = vpack.c.b16 %v1060, %v1059
      %v1111 = vpack.c.b16 %v1062, %v1061
      %v1112 = vpack.c.b16 %v1064, %v1063
      %v1113 = vpack.c.b16 %v1066, %v1065
      %v1114 = vpack.c.b16 %v1068, %v1067
      %v1115 = vpack.c.b16 %v1070, %v1069
      %v1116 = vpack.c.b16 %v1072, %v1071
      %v1117 = vpack.c.b16 %v1074, %v1073
      %v1118 = vpack.c.b16 %v1076, %v1075
      %v1119 = vpack.c.b16 %v1078, %v1077
      %v1120 = vpack.c.b16 %v1080, %v1079
      %v1121 = vpack.c.b16 %v1082, %v1081
      %v1122 = vpack.c.b16 %v1084, %v1083
      %v1123 = vpack.c.b16 %v1086, %v1085
      %v1124 = vpack.c.b16 %v1088, %v1087
      %vm1161 = vcmask 523264
      %v1163 = vsel %vm1161, %v805, 0
      %v1166 = vsel %vm1161, %v810, 0
      %v1169 = vsel %vm1161, %v815, 0
      %v1172 = vsel %vm1161, %v820, 0
      %v1175 = vsel %vm1161, %v825, 0
      %v1178 = vsel %vm1161, %v830, 0
      %v1181 = vsel %vm1161, %v835, 0
      %v1184 = vsel %vm1161, %v840, 0
      %v1187 = vsel %vm1161, %v845, 0
      %v1190 = vsel %vm1161, %v850, 0
      %v1193 = vsel %vm1161, %v855, 0
      %v1196 = vsel %vm1161, %v860, 0
      %v1199 = vsel %vm1161, %v865, 0
      %v1202 = vsel %vm1161, %v870, 0
      %v1205 = vsel %vm1161, %v875, 0
      %v1208 = vsel %vm1161, %v880, 0
      %1210 = vmatprep.subr.bf16.mxu0 0
      %1211 = vmatpush1.bf16.msra.mxu0 %v1089
      %1212 = vmatprep.subr.bf16.mxu0 0
      %1213 = vmatpush1.bf16.msra.mxu0 %v1090
      %1214 = vmatprep.subr.bf16.mxu0 0
      %1215 = vmatpush1.bf16.msra.mxu0 %v1091
      %1216 = vmatprep.subr.bf16.mxu0 0
      %1217 = vmatpush1.bf16.msra.mxu0 %v1092
      %1218 = vmatprep.subr.bf16.mxu0 0
      %1219 = vmatpush1.bf16.msra.mxu0 %v1093
      %1220 = vmatprep.subr.bf16.mxu0 0
      %1221 = vmatpush1.bf16.msra.mxu0 %v1094
      %1222 = vmatprep.subr.bf16.mxu0 0
      %1223 = vmatpush1.bf16.msra.mxu0 %v1095
      %1224 = vmatprep.subr.bf16.mxu0 0
      %1225 = vmatpush1.bf16.msra.mxu0 %v1096
      %1226 = vmatprep.subr.bf16.mxu0 0
      %1227 = vmatpush1.bf16.msra.mxu0 %v1097
      %1228 = vmatprep.subr.bf16.mxu0 0
      %1229 = vmatpush1.bf16.msra.mxu0 %v1098
      %1230 = vmatprep.subr.bf16.mxu0 0
      %1231 = vmatpush1.bf16.msra.mxu0 %v1099
      %1232 = vmatprep.subr.bf16.mxu0 0
      %1233 = vmatpush1.bf16.msra.mxu0 %v1100
      %1234 = vmatprep.subr.bf16.mxu0 0
      %1235 = vmatpush1.bf16.msra.mxu0 %v1101
      %1236 = vmatprep.subr.bf16.mxu0 0
      %1237 = vmatpush1.bf16.msra.mxu0 %v1102
      %1238 = vmatprep.subr.bf16.mxu0 0
      %1239 = vmatpush1.bf16.msra.mxu0 %v1103
      %1240 = vmatprep.subr.bf16.mxu0 0
      %1241 = vmatpush1.bf16.msra.mxu0 %v1104
      %1242 = vmatprep.mubr.bf16.mxu0 %v802
      %1243 = vmatmul.mubr.bf16.gmra.mrb[0].mxu0 %v801
      %v1244 = vpop.f32.mrb[0].mxu0
      %v1245 = vadd.f32 0.0, %v1244
      %v1246 = vpop.f32.mrb[0].mxu0
      %v1247 = vpop.f32.mrb[0].mxu0
      %v1248 = vadd.f32 0.0, %v1247
      %v1249 = vpop.f32.mrb[0].mxu0
      %1250 = vmatprep.mubr.bf16.mxu0 %v807
      %1251 = vmatmul.mubr.bf16.gmra.mrb[0].mxu0 %v806
      %v1252 = vpop.f32.mrb[0].mxu0
      %v1253 = vadd.f32 0.0, %v1252
      %v1254 = vpop.f32.mrb[0].mxu0
      %v1255 = vpop.f32.mrb[0].mxu0
      %v1256 = vadd.f32 0.0, %v1255
      %v1257 = vpop.f32.mrb[0].mxu0
      %1258 = vmatprep.mubr.bf16.mxu0 %v812
      %1259 = vmatmul.mubr.bf16.gmra.mrb[0].mxu0 %v811
      %v1260 = vpop.f32.mrb[0].mxu0
      %v1261 = vadd.f32 0.0, %v1260
      %v1262 = vpop.f32.mrb[0].mxu0
      %v1263 = vpop.f32.mrb[0].mxu0
      %v1264 = vadd.f32 0.0, %v1263
      %v1265 = vpop.f32.mrb[0].mxu0
      %1266 = vmatprep.mubr.bf16.mxu0 %v817
      %1267 = vmatmul.mubr.bf16.gmra.mrb[0].mxu0 %v816
      %v1268 = vpop.f32.mrb[0].mxu0
      %v1269 = vadd.f32 0.0, %v1268
      %v1270 = vpop.f32.mrb[0].mxu0
      %v1271 = vpop.f32.mrb[0].mxu0
      %v1272 = vadd.f32 0.0, %v1271
      %v1273 = vpop.f32.mrb[0].mxu0
      %1274 = vmatprep.mubr.bf16.mxu0 %v822
      %1275 = vmatmul.mubr.bf16.gmra.mrb[0].mxu0 %v821
      %v1276 = vpop.f32.mrb[0].mxu0
      %v1277 = vadd.f32 0.0, %v1276
      %v1278 = vpop.f32.mrb[0].mxu0
      %v1279 = vpop.f32.mrb[0].mxu0
      %v1280 = vadd.f32 0.0, %v1279
      %v1281 = vpop.f32.mrb[0].mxu0
      %1282 = vmatprep.mubr.bf16.mxu0 %v827
      %1283 = vmatmul.mubr.bf16.gmra.mrb[0].mxu0 %v826
      %v1284 = vpop.f32.mrb[0].mxu0
      %v1285 = vadd.f32 0.0, %v1284
      %v1286 = vpop.f32.mrb[0].mxu0
      %v1287 = vpop.f32.mrb[0].mxu0
      %v1288 = vadd.f32 0.0, %v1287
      %v1289 = vpop.f32.mrb[0].mxu0
      %1290 = vmatprep.mubr.bf16.mxu0 %v832
      %1291 = vmatmul.mubr.bf16.gmra.mrb[0].mxu0 %v831
      %v1292 = vpop.f32.mrb[0].mxu0
      %v1293 = vadd.f32 0.0, %v1292
      %v1294 = vpop.f32.mrb[0].mxu0
      %v1295 = vpop.f32.mrb[0].mxu0
      %v1296 = vadd.f32 0.0, %v1295
      %v1297 = vpop.f32.mrb[0].mxu0
      %1298 = vmatprep.mubr.bf16.mxu0 %v837
      %1299 = vmatmul.mubr.bf16.gmra.mrb[0].mxu0 %v836
      %v1300 = vpop.f32.mrb[0].mxu0
      %v1301 = vadd.f32 0.0, %v1300
      %v1302 = vpop.f32.mrb[0].mxu0
      %v1303 = vpop.f32.mrb[0].mxu0
      %v1304 = vadd.f32 0.0, %v1303
      %v1305 = vpop.f32.mrb[0].mxu0
      %1306 = vmatprep.mubr.bf16.mxu0 %v842
      %1307 = vmatmul.mubr.bf16.gmra.mrb[0].mxu0 %v841
      %v1308 = vpop.f32.mrb[0].mxu0
      %v1309 = vadd.f32 0.0, %v1308
      %v1310 = vpop.f32.mrb[0].mxu0
      %v1311 = vpop.f32.mrb[0].mxu0
      %v1312 = vadd.f32 0.0, %v1311
      %v1313 = vpop.f32.mrb[0].mxu0
      %1314 = vmatprep.mubr.bf16.mxu0 %v847
      %1315 = vmatmul.mubr.bf16.gmra.mrb[0].mxu0 %v846
      %v1316 = vpop.f32.mrb[0].mxu0
      %v1317 = vadd.f32 0.0, %v1316
      %v1318 = vpop.f32.mrb[0].mxu0
      %v1319 = vpop.f32.mrb[0].mxu0
      %v1320 = vadd.f32 0.0, %v1319
      %v1321 = vpop.f32.mrb[0].mxu0
      %1322 = vmatprep.mubr.bf16.mxu0 %v852
      %1323 = vmatmul.mubr.bf16.gmra.mrb[0].mxu0 %v851
      %v1324 = vpop.f32.mrb[0].mxu0
      %v1325 = vadd.f32 0.0, %v1324
      %v1326 = vpop.f32.mrb[0].mxu0
      %v1327 = vpop.f32.mrb[0].mxu0
      %v1328 = vadd.f32 0.0, %v1327
      %v1329 = vpop.f32.mrb[0].mxu0
      %1330 = vmatprep.mubr.bf16.mxu0 %v857
      %1331 = vmatmul.mubr.bf16.gmra.mrb[0].mxu0 %v856
      %v1332 = vpop.f32.mrb[0].mxu0
      %v1333 = vadd.f32 0.0, %v1332
      %v1334 = vpop.f32.mrb[0].mxu0
      %v1335 = vpop.f32.mrb[0].mxu0
      %v1336 = vadd.f32 0.0, %v1335
      %v1337 = vpop.f32.mrb[0].mxu0
      %1338 = vmatprep.mubr.bf16.mxu0 %v862
      %1339 = vmatmul.mubr.bf16.gmra.mrb[0].mxu0 %v861
      %v1340 = vpop.f32.mrb[0].mxu0
      %v1341 = vadd.f32 0.0, %v1340
      %v1342 = vpop.f32.mrb[0].mxu0
      %v1343 = vpop.f32.mrb[0].mxu0
      %v1344 = vadd.f32 0.0, %v1343
      %v1345 = vpop.f32.mrb[0].mxu0
      %1346 = vmatprep.mubr.bf16.mxu0 %v867
      %1347 = vmatmul.mubr.bf16.gmra.mrb[0].mxu0 %v866
      %v1348 = vpop.f32.mrb[0].mxu0
      %v1349 = vadd.f32 0.0, %v1348
      %v1350 = vpop.f32.mrb[0].mxu0
      %v1351 = vpop.f32.mrb[0].mxu0
      %v1352 = vadd.f32 0.0, %v1351
      %v1353 = vpop.f32.mrb[0].mxu0
      %1354 = vmatprep.mubr.bf16.mxu0 %v872
      %1355 = vmatmul.mubr.bf16.gmra.mrb[0].mxu0 %v871
      %v1356 = vpop.f32.mrb[0].mxu0
      %v1357 = vadd.f32 0.0, %v1356
      %v1358 = vpop.f32.mrb[0].mxu0
      %v1359 = vpop.f32.mrb[0].mxu0
      %v1360 = vadd.f32 0.0, %v1359
      %v1361 = vpop.f32.mrb[0].mxu0
      %1362 = vmatprep.mubr.bf16.mxu0 %v877
      %1363 = vmatmul.mubr.bf16.gmra.mrb[0].mxu0 %v876
      %v1364 = vpop.f32.mrb[0].mxu0
      %v1365 = vadd.f32 0.0, %v1364
      %v1366 = vpop.f32.mrb[0].mxu0
      %v1367 = vpop.f32.mrb[0].mxu0
      %v1368 = vadd.f32 0.0, %v1367
      %v1369 = vpop.f32.mrb[0].mxu0
      %1370 = vdwg.mxu0
      %1371 = vmatprep.subr.bf16.mxu0 0
      %1372 = vmatpush1.bf16.msra.mxu0 %v1105
      %1373 = vmatprep.subr.bf16.mxu0 0
      %1374 = vmatpush1.bf16.msra.mxu0 %v1106
      %1375 = vmatprep.subr.bf16.mxu0 0
      %1376 = vmatpush1.bf16.msra.mxu0 %v1107
      %1377 = vmatprep.subr.bf16.mxu0 0
      %1378 = vmatpush1.bf16.msra.mxu0 %v1108
      %1379 = vmatprep.subr.bf16.mxu0 0
      %1380 = vmatpush1.bf16.msra.mxu0 %v1109
      %1381 = vmatprep.subr.bf16.mxu0 0
      %1382 = vmatpush1.bf16.msra.mxu0 %v1110
      %1383 = vmatprep.subr.bf16.mxu0 0
      %1384 = vmatpush1.bf16.msra.mxu0 %v1111
      %1385 = vmatprep.subr.bf16.mxu0 0
      %1386 = vmatpush1.bf16.msra.mxu0 %v1112
      %1387 = vmatprep.subr.bf16.mxu0 0
      %1388 = vmatpush1.bf16.msra.mxu0 %v1113
      %1389 = vmatprep.subr.bf16.mxu0 0
      %1390 = vmatpush1.bf16.msra.mxu0 %v1114
      %1391 = vmatprep.subr.bf16.mxu0 0
      %1392 = vmatpush1.bf16.msra.mxu0 %v1115
      %1393 = vmatprep.subr.bf16.mxu0 0
      %1394 = vmatpush1.bf16.msra.mxu0 %v1116
      %1395 = vmatprep.subr.bf16.mxu0 0
      %1396 = vmatpush1.bf16.msra.mxu0 %v1117
      %1397 = vmatprep.subr.bf16.mxu0 0
      %1398 = vmatpush1.bf16.msra.mxu0 %v1118
      %1399 = vmatprep.subr.bf16.mxu0 0
      %1400 = vmatpush1.bf16.msra.mxu0 %v1119
      %1401 = vmatprep.subr.bf16.mxu0 0
      %1402 = vmatpush1.bf16.msra.mxu0 %v1120
      %1403 = vmatprep.mubr.bf16.mxu0 %v804
      %1404 = vmatmul.mubr.bf16.gmra.mrb[0].mxu0 %v803
      %v1405 = vpop.f32.mrb[0].mxu0
      %v1406 = vadd.f32 %v1245, %v1405
      %v1407 = vpop.f32.mrb[0].mxu0
      %v1408 = vpop.f32.mrb[0].mxu0
      %v1409 = vadd.f32 %v1248, %v1408
      %v1410 = vpop.f32.mrb[0].mxu0
      %1411 = vmatprep.mubr.bf16.mxu0 %v809
      %1412 = vmatmul.mubr.bf16.gmra.mrb[0].mxu0 %v808
      %v1413 = vpop.f32.mrb[0].mxu0
      %v1414 = vadd.f32 %v1253, %v1413
      %v1415 = vpop.f32.mrb[0].mxu0
      %v1416 = vpop.f32.mrb[0].mxu0
      %v1417 = vadd.f32 %v1256, %v1416
      %v1418 = vpop.f32.mrb[0].mxu0
      %1419 = vmatprep.mubr.bf16.mxu0 %v814
      %1420 = vmatmul.mubr.bf16.gmra.mrb[0].mxu0 %v813
      %v1421 = vpop.f32.mrb[0].mxu0
      %v1422 = vadd.f32 %v1261, %v1421
      %v1423 = vpop.f32.mrb[0].mxu0
      %v1424 = vpop.f32.mrb[0].mxu0
      %v1425 = vadd.f32 %v1264, %v1424
      %v1426 = vpop.f32.mrb[0].mxu0
      %1427 = vmatprep.mubr.bf16.mxu0 %v819
      %1428 = vmatmul.mubr.bf16.gmra.mrb[0].mxu0 %v818
      %v1429 = vpop.f32.mrb[0].mxu0
      %v1430 = vadd.f32 %v1269, %v1429
      %v1431 = vpop.f32.mrb[0].mxu0
      %v1432 = vpop.f32.mrb[0].mxu0
      %v1433 = vadd.f32 %v1272, %v1432
      %v1434 = vpop.f32.mrb[0].mxu0
      %1435 = vmatprep.mubr.bf16.mxu0 %v824
      %1436 = vmatmul.mubr.bf16.gmra.mrb[0].mxu0 %v823
      %v1437 = vpop.f32.mrb[0].mxu0
      %v1438 = vadd.f32 %v1277, %v1437
      %v1439 = vpop.f32.mrb[0].mxu0
      %v1440 = vpop.f32.mrb[0].mxu0
      %v1441 = vadd.f32 %v1280, %v1440
      %v1442 = vpop.f32.mrb[0].mxu0
      %1443 = vmatprep.mubr.bf16.mxu0 %v829
      %1444 = vmatmul.mubr.bf16.gmra.mrb[0].mxu0 %v828
      %v1445 = vpop.f32.mrb[0].mxu0
      %v1446 = vadd.f32 %v1285, %v1445
      %v1447 = vpop.f32.mrb[0].mxu0
      %v1448 = vpop.f32.mrb[0].mxu0
      %v1449 = vadd.f32 %v1288, %v1448
      %v1450 = vpop.f32.mrb[0].mxu0
      %1451 = vmatprep.mubr.bf16.mxu0 %v834
      %1452 = vmatmul.mubr.bf16.gmra.mrb[0].mxu0 %v833
      %v1453 = vpop.f32.mrb[0].mxu0
      %v1454 = vadd.f32 %v1293, %v1453
      %v1455 = vpop.f32.mrb[0].mxu0
      %v1456 = vpop.f32.mrb[0].mxu0
      %v1457 = vadd.f32 %v1296, %v1456
      %v1458 = vpop.f32.mrb[0].mxu0
      %1459 = vmatprep.mubr.bf16.mxu0 %v839
      %1460 = vmatmul.mubr.bf16.gmra.mrb[0].mxu0 %v838
      %v1461 = vpop.f32.mrb[0].mxu0
      %v1462 = vadd.f32 %v1301, %v1461
      %v1463 = vpop.f32.mrb[0].mxu0
      %v1464 = vpop.f32.mrb[0].mxu0
      %v1465 = vadd.f32 %v1304, %v1464
      %v1466 = vpop.f32.mrb[0].mxu0
      %1467 = vmatprep.mubr.bf16.mxu0 %v844
      %1468 = vmatmul.mubr.bf16.gmra.mrb[0].mxu0 %v843
      %v1469 = vpop.f32.mrb[0].mxu0
      %v1470 = vadd.f32 %v1309, %v1469
      %v1471 = vpop.f32.mrb[0].mxu0
      %v1472 = vpop.f32.mrb[0].mxu0
      %v1473 = vadd.f32 %v1312, %v1472
      %v1474 = vpop.f32.mrb[0].mxu0
      %1475 = vmatprep.mubr.bf16.mxu0 %v849
      %1476 = vmatmul.mubr.bf16.gmra.mrb[0].mxu0 %v848
      %v1477 = vpop.f32.mrb[0].mxu0
      %v1478 = vadd.f32 %v1317, %v1477
      %v1479 = vpop.f32.mrb[0].mxu0
      %v1480 = vpop.f32.mrb[0].mxu0
      %v1481 = vadd.f32 %v1320, %v1480
      %v1482 = vpop.f32.mrb[0].mxu0
      %1483 = vmatprep.mubr.bf16.mxu0 %v854
      %1484 = vmatmul.mubr.bf16.gmra.mrb[0].mxu0 %v853
      %v1485 = vpop.f32.mrb[0].mxu0
      %v1486 = vadd.f32 %v1325, %v1485
      %v1487 = vpop.f32.mrb[0].mxu0
      %v1488 = vpop.f32.mrb[0].mxu0
      %v1489 = vadd.f32 %v1328, %v1488
      %v1490 = vpop.f32.mrb[0].mxu0
      %1491 = vmatprep.mubr.bf16.mxu0 %v859
      %1492 = vmatmul.mubr.bf16.gmra.mrb[0].mxu0 %v858
      %v1493 = vpop.f32.mrb[0].mxu0
      %v1494 = vadd.f32 %v1333, %v1493
      %v1495 = vpop.f32.mrb[0].mxu0
      %v1496 = vpop.f32.mrb[0].mxu0
      %v1497 = vadd.f32 %v1336, %v1496
      %v1498 = vpop.f32.mrb[0].mxu0
      %1499 = vmatprep.mubr.bf16.mxu0 %v864
      %1500 = vmatmul.mubr.bf16.gmra.mrb[0].mxu0 %v863
      %v1501 = vpop.f32.mrb[0].mxu0
      %v1502 = vadd.f32 %v1341, %v1501
      %v1503 = vpop.f32.mrb[0].mxu0
      %v1504 = vpop.f32.mrb[0].mxu0
      %v1505 = vadd.f32 %v1344, %v1504
      %v1506 = vpop.f32.mrb[0].mxu0
      %1507 = vmatprep.mubr.bf16.mxu0 %v869
      %1508 = vmatmul.mubr.bf16.gmra.mrb[0].mxu0 %v868
      %v1509 = vpop.f32.mrb[0].mxu0
      %v1510 = vadd.f32 %v1349, %v1509
      %v1511 = vpop.f32.mrb[0].mxu0
      %v1512 = vpop.f32.mrb[0].mxu0
      %v1513 = vadd.f32 %v1352, %v1512
      %v1514 = vpop.f32.mrb[0].mxu0
      %1515 = vmatprep.mubr.bf16.mxu0 %v874
      %1516 = vmatmul.mubr.bf16.gmra.mrb[0].mxu0 %v873
      %v1517 = vpop.f32.mrb[0].mxu0
      %v1518 = vadd.f32 %v1357, %v1517
      %v1519 = vpop.f32.mrb[0].mxu0
      %v1520 = vpop.f32.mrb[0].mxu0
      %v1521 = vadd.f32 %v1360, %v1520
      %v1522 = vpop.f32.mrb[0].mxu0
      %1523 = vmatprep.mubr.bf16.mxu0 %v879
      %1524 = vmatmul.mubr.bf16.gmra.mrb[0].mxu0 %v878
      %v1525 = vpop.f32.mrb[0].mxu0
      %v1526 = vadd.f32 %v1365, %v1525
      %v1527 = vpop.f32.mrb[0].mxu0
      %v1528 = vpop.f32.mrb[0].mxu0
      %v1529 = vadd.f32 %v1368, %v1528
      %v1530 = vpop.f32.mrb[0].mxu0
      %1531 = vdwg.mxu0
      %1532 = vmatprep.subr.bf16.mxu0 0
      %1533 = vmatpush1.bf16.msra.mxu0 %v1121
      %1534 = vmatprep.subr.bf16.mxu0 0
      %1535 = vmatpush1.bf16.msra.mxu0 %v1122
      %1536 = vmatprep.subr.bf16.mxu0 0
      %1537 = vmatpush1.bf16.msra.mxu0 %v1123
      %1538 = vmatprep.subr.bf16.mxu0 0
      %1539 = vmatpush1.bf16.msra.mxu0 %v1124
      %1540 = vmatprep.subr.bf16.mxu0 0
      %1541 = vmatpush1.bf16.msra.mxu0 0
      %1542 = vmatprep.subr.bf16.mxu0 0
      %1543 = vmatpush1.bf16.msra.mxu0 0
      %1544 = vmatprep.subr.bf16.mxu0 0
      %1545 = vmatpush1.bf16.msra.mxu0 0
      %1546 = vmatprep.subr.bf16.mxu0 0
      %1547 = vmatpush1.bf16.msra.mxu0 0
      %1548 = vmatprep.subr.bf16.mxu0 0
      %1549 = vmatpush1.bf16.msra.mxu0 0
      %1550 = vmatprep.subr.bf16.mxu0 0
      %1551 = vmatpush1.bf16.msra.mxu0 0
      %1552 = vmatprep.subr.bf16.mxu0 0
      %1553 = vmatpush1.bf16.msra.mxu0 0
      %1554 = vmatprep.subr.bf16.mxu0 0
      %1555 = vmatpush1.bf16.msra.mxu0 0
      %1556 = vmatprep.subr.bf16.mxu0 0
      %1557 = vmatpush1.bf16.msra.mxu0 0
      %1558 = vmatprep.subr.bf16.mxu0 0
      %1559 = vmatpush1.bf16.msra.mxu0 0
      %1560 = vmatprep.subr.bf16.mxu0 0
      %1561 = vmatpush1.bf16.msra.mxu0 0
      %1562 = vmatprep.subr.bf16.mxu0 0
      %1563 = vmatpush1.bf16.msra.mxu0 0
      %1564 = vmatprep.mubr.bf16.mxu0 0
      %1565 = vmatmul.mubr.bf16.gmra.mrb[0].mxu0 %v1163
      %v1566 = vpop.f32.mrb[0].mxu0
      %v1567 = vadd.f32 %v1406, %v1566
      %v1568 = vpop.f32.mrb[0].mxu0
      %v1569 = vpop.f32.mrb[0].mxu0
      %v1570 = vadd.f32 %v1409, %v1569
      %v1571 = vpop.f32.mrb[0].mxu0
      %1572 = vmatprep.mubr.bf16.mxu0 0
      %1573 = vmatmul.mubr.bf16.gmra.mrb[0].mxu0 %v1166
      %v1574 = vpop.f32.mrb[0].mxu0
      %v1575 = vadd.f32 %v1414, %v1574
      %v1576 = vpop.f32.mrb[0].mxu0
      %v1577 = vpop.f32.mrb[0].mxu0
      %v1578 = vadd.f32 %v1417, %v1577
      %v1579 = vpop.f32.mrb[0].mxu0
      %1580 = vmatprep.mubr.bf16.mxu0 0
      %1581 = vmatmul.mubr.bf16.gmra.mrb[0].mxu0 %v1169
      %v1582 = vpop.f32.mrb[0].mxu0
      %v1583 = vadd.f32 %v1422, %v1582
      %v1584 = vpop.f32.mrb[0].mxu0
      %v1585 = vpop.f32.mrb[0].mxu0
      %v1586 = vadd.f32 %v1425, %v1585
      %v1587 = vpop.f32.mrb[0].mxu0
      %1588 = vmatprep.mubr.bf16.mxu0 0
      %1589 = vmatmul.mubr.bf16.gmra.mrb[0].mxu0 %v1172
      %v1590 = vpop.f32.mrb[0].mxu0
      %v1591 = vadd.f32 %v1430, %v1590
      %v1592 = vpop.f32.mrb[0].mxu0
      %v1593 = vpop.f32.mrb[0].mxu0
      %v1594 = vadd.f32 %v1433, %v1593
      %v1595 = vpop.f32.mrb[0].mxu0
      %1596 = vmatprep.mubr.bf16.mxu0 0
      %1597 = vmatmul.mubr.bf16.gmra.mrb[0].mxu0 %v1175
      %v1598 = vpop.f32.mrb[0].mxu0
      %v1599 = vadd.f32 %v1438, %v1598
      %v1600 = vpop.f32.mrb[0].mxu0
      %v1601 = vpop.f32.mrb[0].mxu0
      %v1602 = vadd.f32 %v1441, %v1601
      %v1603 = vpop.f32.mrb[0].mxu0
      %1604 = vmatprep.mubr.bf16.mxu0 0
      %1605 = vmatmul.mubr.bf16.gmra.mrb[0].mxu0 %v1178
      %v1606 = vpop.f32.mrb[0].mxu0
      %v1607 = vadd.f32 %v1446, %v1606
      %v1608 = vpop.f32.mrb[0].mxu0
      %v1609 = vpop.f32.mrb[0].mxu0
      %v1610 = vadd.f32 %v1449, %v1609
      %v1611 = vpop.f32.mrb[0].mxu0
      %1612 = vmatprep.mubr.bf16.mxu0 0
      %1613 = vmatmul.mubr.bf16.gmra.mrb[0].mxu0 %v1181
      %v1614 = vpop.f32.mrb[0].mxu0
      %v1615 = vadd.f32 %v1454, %v1614
      %v1616 = vpop.f32.mrb[0].mxu0
      %v1617 = vpop.f32.mrb[0].mxu0
      %v1618 = vadd.f32 %v1457, %v1617
      %v1619 = vpop.f32.mrb[0].mxu0
      %1620 = vmatprep.mubr.bf16.mxu0 0
      %1621 = vmatmul.mubr.bf16.gmra.mrb[0].mxu0 %v1184
      %v1622 = vpop.f32.mrb[0].mxu0
      %v1623 = vadd.f32 %v1462, %v1622
      %v1624 = vpop.f32.mrb[0].mxu0
      %v1625 = vpop.f32.mrb[0].mxu0
      %v1626 = vadd.f32 %v1465, %v1625
      %v1627 = vpop.f32.mrb[0].mxu0
      %1628 = vmatprep.mubr.bf16.mxu0 0
      %1629 = vmatmul.mubr.bf16.gmra.mrb[0].mxu0 %v1187
      %v1630 = vpop.f32.mrb[0].mxu0
      %v1631 = vadd.f32 %v1470, %v1630
      %v1632 = vpop.f32.mrb[0].mxu0
      %v1633 = vpop.f32.mrb[0].mxu0
      %v1634 = vadd.f32 %v1473, %v1633
      %v1635 = vpop.f32.mrb[0].mxu0
      %1636 = vmatprep.mubr.bf16.mxu0 0
      %1637 = vmatmul.mubr.bf16.gmra.mrb[0].mxu0 %v1190
      %v1638 = vpop.f32.mrb[0].mxu0
      %v1639 = vadd.f32 %v1478, %v1638
      %v1640 = vpop.f32.mrb[0].mxu0
      %v1641 = vpop.f32.mrb[0].mxu0
      %v1642 = vadd.f32 %v1481, %v1641
      %v1643 = vpop.f32.mrb[0].mxu0
      %1644 = vmatprep.mubr.bf16.mxu0 0
      %1645 = vmatmul.mubr.bf16.gmra.mrb[0].mxu0 %v1193
      %v1646 = vpop.f32.mrb[0].mxu0
      %v1647 = vadd.f32 %v1486, %v1646
      %v1648 = vpop.f32.mrb[0].mxu0
      %v1649 = vpop.f32.mrb[0].mxu0
      %v1650 = vadd.f32 %v1489, %v1649
      %v1651 = vpop.f32.mrb[0].mxu0
      %1652 = vmatprep.mubr.bf16.mxu0 0
      %1653 = vmatmul.mubr.bf16.gmra.mrb[0].mxu0 %v1196
      %v1654 = vpop.f32.mrb[0].mxu0
      %v1655 = vadd.f32 %v1494, %v1654
      %v1656 = vpop.f32.mrb[0].mxu0
      %v1657 = vpop.f32.mrb[0].mxu0
      %v1658 = vadd.f32 %v1497, %v1657
      %v1659 = vpop.f32.mrb[0].mxu0
      %1660 = vmatprep.mubr.bf16.mxu0 0
      %1661 = vmatmul.mubr.bf16.gmra.mrb[0].mxu0 %v1199
      %v1662 = vpop.f32.mrb[0].mxu0
      %v1663 = vadd.f32 %v1502, %v1662
      %v1664 = vpop.f32.mrb[0].mxu0
      %v1665 = vpop.f32.mrb[0].mxu0
      %v1666 = vadd.f32 %v1505, %v1665
      %v1667 = vpop.f32.mrb[0].mxu0
      %1668 = vmatprep.mubr.bf16.mxu0 0
      %1669 = vmatmul.mubr.bf16.gmra.mrb[0].mxu0 %v1202
      %v1670 = vpop.f32.mrb[0].mxu0
      %v1671 = vadd.f32 %v1510, %v1670
      %v1672 = vpop.f32.mrb[0].mxu0
      %v1673 = vpop.f32.mrb[0].mxu0
      %v1674 = vadd.f32 %v1513, %v1673
      %v1675 = vpop.f32.mrb[0].mxu0
      %1676 = vmatprep.mubr.bf16.mxu0 0
      %1677 = vmatmul.mubr.bf16.gmra.mrb[0].mxu0 %v1205
      %v1678 = vpop.f32.mrb[0].mxu0
      %v1679 = vadd.f32 %v1518, %v1678
      %v1680 = vpop.f32.mrb[0].mxu0
      %v1681 = vpop.f32.mrb[0].mxu0
      %v1682 = vadd.f32 %v1521, %v1681
      %v1683 = vpop.f32.mrb[0].mxu0
      %1684 = vmatprep.mubr.bf16.mxu0 0
      %1685 = vmatmul.mubr.bf16.gmra.mrb[0].mxu0 %v1208
      %v1686 = vpop.f32.mrb[0].mxu0
      %v1687 = vadd.f32 %v1526, %v1686
      %v1688 = vpop.f32.mrb[0].mxu0
      %v1689 = vpop.f32.mrb[0].mxu0
      %v1690 = vadd.f32 %v1529, %v1689
      %v1691 = vpop.f32.mrb[0].mxu0
      %1692 = vdwg.mxu0
      %v1693 = vadd.f32 %v345, %v1567
      %v1694 = vadd.f32 %v346, %v1570
      %v1695 = vadd.f32 %v347, %v1575
      %v1696 = vadd.f32 %v348, %v1578
      %v1697 = vadd.f32 %v349, %v1583
      %v1698 = vadd.f32 %v350, %v1586
      %v1699 = vadd.f32 %v351, %v1591
      %v1700 = vadd.f32 %v352, %v1594
      %v1701 = vadd.f32 %v353, %v1599
      %v1702 = vadd.f32 %v354, %v1602
      %v1703 = vadd.f32 %v355, %v1607
      %v1704 = vadd.f32 %v356, %v1610
      %v1705 = vadd.f32 %v357, %v1615
      %v1706 = vadd.f32 %v358, %v1618
      %v1707 = vadd.f32 %v359, %v1623
      %v1708 = vadd.f32 %v360, %v1626
      %v1709 = vadd.f32 %v361, %v1631
      %v1710 = vadd.f32 %v362, %v1634
      %v1711 = vadd.f32 %v363, %v1639
      %v1712 = vadd.f32 %v364, %v1642
      %v1713 = vadd.f32 %v365, %v1647
      %v1714 = vadd.f32 %v366, %v1650
      %v1715 = vadd.f32 %v367, %v1655
      %v1716 = vadd.f32 %v368, %v1658
      %v1717 = vadd.f32 %v369, %v1663
      %v1718 = vadd.f32 %v370, %v1666
      %v1719 = vadd.f32 %v371, %v1671
      %v1720 = vadd.f32 %v372, %v1674
      %v1721 = vadd.f32 %v373, %v1679
      %v1722 = vadd.f32 %v374, %v1682
      %v1723 = vadd.f32 %v375, %v1687
      %v1724 = vadd.f32 %v376, %v1690
      %1725 = vst [vmem:[#allocation2] sm:$0xff] %v1693
      %1726 = vst [vmem:[#allocation2 + $0x8] sm:$0xff] %v1694
      %1727 = vst [vmem:[#allocation2 + $0x10] sm:$0xff] %v1695
      %1728 = vst [vmem:[#allocation2 + $0x18] sm:$0xff] %v1696
      %1729 = vst [vmem:[#allocation2 + $0x20] sm:$0xff] %v1697
      %1730 = vst [vmem:[#allocation2 + $0x28] sm:$0xff] %v1698
      %1731 = vst [vmem:[#allocation2 + $0x30] sm:$0xff] %v1699
      %1732 = vst [vmem:[#allocation2 + $0x38] sm:$0xff] %v1700
      %1733 = vst [vmem:[#allocation2 + $0x40] sm:$0xff] %v1701
      %1734 = vst [vmem:[#allocation2 + $0x48] sm:$0xff] %v1702
      %1735 = vst [vmem:[#allocation2 + $0x50] sm:$0xff] %v1703
      %1736 = vst [vmem:[#allocation2 + $0x58] sm:$0xff] %v1704
      %1737 = vst [vmem:[#allocation2 + $0x60] sm:$0xff] %v1705
      %1738 = vst [vmem:[#allocation2 + $0x68] sm:$0xff] %v1706
      %1739 = vst [vmem:[#allocation2 + $0x70] sm:$0xff] %v1707
      %1740 = vst [vmem:[#allocation2 + $0x78] sm:$0xff] %v1708
      %1741 = vst [vmem:[#allocation2 + $0x80] sm:$0xff] %v1709
      %1742 = vst [vmem:[#allocation2 + $0x88] sm:$0xff] %v1710
      %1743 = vst [vmem:[#allocation2 + $0x90] sm:$0xff] %v1711
      %1744 = vst [vmem:[#allocation2 + $0x98] sm:$0xff] %v1712
      %1745 = vst [vmem:[#allocation2 + $0xa0] sm:$0xff] %v1713
      %1746 = vst [vmem:[#allocation2 + $0xa8] sm:$0xff] %v1714
      %1747 = vst [vmem:[#allocation2 + $0xb0] sm:$0xff] %v1715
      %1748 = vst [vmem:[#allocation2 + $0xb8] sm:$0xff] %v1716
      %1749 = vst [vmem:[#allocation2 + $0xc0] sm:$0xff] %v1717
      %1750 = vst [vmem:[#allocation2 + $0xc8] sm:$0xff] %v1718
      %1751 = vst [vmem:[#allocation2 + $0xd0] sm:$0xff] %v1719
      %1752 = vst [vmem:[#allocation2 + $0xd8] sm:$0xff] %v1720
      %1753 = vst [vmem:[#allocation2 + $0xe0] sm:$0xff] %v1721
      %1754 = vst [vmem:[#allocation2 + $0xe8] sm:$0xff] %v1722
      %1755 = vst [vmem:[#allocation2 + $0xf0] sm:$0xff] %v1723
      %1756 = vst [vmem:[#allocation2 + $0xf8] sm:$0xff] %v1724
      // Predicated region
      $region41: #{resnet_unet_forward.8} parent=35 // pred_check
        %p1757 = pneg %p309
      $region42: #{resnet_unet_forward.8} parent=35 // pred_check_branch
        %1759 = sbr.rel (%p1757) target = $region44
      $region43: #{resnet_unet_forward.8} parent=35 // pred_region
        %v1760 = vld [vmem:[#allocation2] sm:$0xff]
        %v1761 = vld [vmem:[#allocation2 + $0x8] sm:$0xff]
        %v1762 = vld [vmem:[#allocation2 + $0x10] sm:$0xff]
        %v1763 = vld [vmem:[#allocation2 + $0x18] sm:$0xff]
        %v1764 = vld [vmem:[#allocation2 + $0x20] sm:$0xff]
        %v1765 = vld [vmem:[#allocation2 + $0x28] sm:$0xff]
        %v1766 = vld [vmem:[#allocation2 + $0x30] sm:$0xff]
        %v1767 = vld [vmem:[#allocation2 + $0x38] sm:$0xff]
        %v1768 = vld [vmem:[#allocation2 + $0x40] sm:$0xff]
        %v1769 = vld [vmem:[#allocation2 + $0x48] sm:$0xff]
        %v1770 = vld [vmem:[#allocation2 + $0x50] sm:$0xff]
        %v1771 = vld [vmem:[#allocation2 + $0x58] sm:$0xff]
        %v1772 = vld [vmem:[#allocation2 + $0x60] sm:$0xff]
        %v1773 = vld [vmem:[#allocation2 + $0x68] sm:$0xff]
        %v1774 = vld [vmem:[#allocation2 + $0x70] sm:$0xff]
        %v1775 = vld [vmem:[#allocation2 + $0x78] sm:$0xff]
        %v1776 = vld [vmem:[#allocation2 + $0x80] sm:$0xff]
        %v1777 = vld [vmem:[#allocation2 + $0x88] sm:$0xff]
        %v1778 = vld [vmem:[#allocation2 + $0x90] sm:$0xff]
        %v1779 = vld [vmem:[#allocation2 + $0x98] sm:$0xff]
        %v1780 = vld [vmem:[#allocation2 + $0xa0] sm:$0xff]
        %v1781 = vld [vmem:[#allocation2 + $0xa8] sm:$0xff]
        %v1782 = vld [vmem:[#allocation2 + $0xb0] sm:$0xff]
        %v1783 = vld [vmem:[#allocation2 + $0xb8] sm:$0xff]
        %v1784 = vld [vmem:[#allocation2 + $0xc0] sm:$0xff]
        %v1785 = vld [vmem:[#allocation2 + $0xc8] sm:$0xff]
        %v1786 = vld [vmem:[#allocation2 + $0xd0] sm:$0xff]
        %v1787 = vld [vmem:[#allocation2 + $0xd8] sm:$0xff]
        %v1788 = vld [vmem:[#allocation2 + $0xe0] sm:$0xff]
        %v1789 = vld [vmem:[#allocation2 + $0xe8] sm:$0xff]
        %v1790 = vld [vmem:[#allocation2 + $0xf0] sm:$0xff]
        %v1791 = vld [vmem:[#allocation2 + $0xf8] sm:$0xff]
        %v1792 = vld [vmem:[%s295] sm:$0x1]
        %v1794 = vlaneseq
        %v1795 = vshrl.u32 %v1794, 7
        %v1796 = vsub.s32 0, %v1795
        %v1797 = vrot.slane %v1792, %v1796
        %v1799 = vmul.f32 %v1760, %v1797
        %v1800 = vmul.f32 %v1761, %v1797
        %v1801 = vmul.f32 %v1762, %v1797
        %v1802 = vmul.f32 %v1763, %v1797
        %v1803 = vmul.f32 %v1764, %v1797
        %v1804 = vmul.f32 %v1765, %v1797
        %v1805 = vmul.f32 %v1766, %v1797
        %v1806 = vmul.f32 %v1767, %v1797
        %v1807 = vmul.f32 %v1768, %v1797
        %v1808 = vmul.f32 %v1769, %v1797
        %v1809 = vmul.f32 %v1770, %v1797
        %v1810 = vmul.f32 %v1771, %v1797
        %v1811 = vmul.f32 %v1772, %v1797
        %v1812 = vmul.f32 %v1773, %v1797
        %v1813 = vmul.f32 %v1774, %v1797
        %v1814 = vmul.f32 %v1775, %v1797
        %v1815 = vmul.f32 %v1776, %v1797
        %v1816 = vmul.f32 %v1777, %v1797
        %v1817 = vmul.f32 %v1778, %v1797
        %v1818 = vmul.f32 %v1779, %v1797
        %v1819 = vmul.f32 %v1780, %v1797
        %v1820 = vmul.f32 %v1781, %v1797
        %v1821 = vmul.f32 %v1782, %v1797
        %v1822 = vmul.f32 %v1783, %v1797
        %v1823 = vmul.f32 %v1784, %v1797
        %v1824 = vmul.f32 %v1785, %v1797
        %v1825 = vmul.f32 %v1786, %v1797
        %v1826 = vmul.f32 %v1787, %v1797
        %v1827 = vmul.f32 %v1788, %v1797
        %v1828 = vmul.f32 %v1789, %v1797
        %v1829 = vmul.f32 %v1790, %v1797
        %v1830 = vmul.f32 %v1791, %v1797
        %v1831 = vld [vmem:[%s298] sm:$0x1]
        %v1833 = vlaneseq
        %v1834 = vshrl.u32 %v1833, 7
        %v1835 = vsub.s32 0, %v1834
        %v1836 = vrot.slane %v1831, %v1835
        %v1838 = vadd.f32 %v1799, %v1836
        %v1839 = vadd.f32 %v1800, %v1836
        %v1840 = vadd.f32 %v1801, %v1836
        %v1841 = vadd.f32 %v1802, %v1836
        %v1842 = vadd.f32 %v1803, %v1836
        %v1843 = vadd.f32 %v1804, %v1836
        %v1844 = vadd.f32 %v1805, %v1836
        %v1845 = vadd.f32 %v1806, %v1836
        %v1846 = vadd.f32 %v1807, %v1836
        %v1847 = vadd.f32 %v1808, %v1836
        %v1848 = vadd.f32 %v1809, %v1836
        %v1849 = vadd.f32 %v1810, %v1836
        %v1850 = vadd.f32 %v1811, %v1836
        %v1851 = vadd.f32 %v1812, %v1836
        %v1852 = vadd.f32 %v1813, %v1836
        %v1853 = vadd.f32 %v1814, %v1836
        %v1854 = vadd.f32 %v1815, %v1836
        %v1855 = vadd.f32 %v1816, %v1836
        %v1856 = vadd.f32 %v1817, %v1836
        %v1857 = vadd.f32 %v1818, %v1836
        %v1858 = vadd.f32 %v1819, %v1836
        %v1859 = vadd.f32 %v1820, %v1836
        %v1860 = vadd.f32 %v1821, %v1836
        %v1861 = vadd.f32 %v1822, %v1836
        %v1862 = vadd.f32 %v1823, %v1836
        %v1863 = vadd.f32 %v1824, %v1836
        %v1864 = vadd.f32 %v1825, %v1836
        %v1865 = vadd.f32 %v1826, %v1836
        %v1866 = vadd.f32 %v1827, %v1836
        %v1867 = vadd.f32 %v1828, %v1836
        %v1868 = vadd.f32 %v1829, %v1836
        %v1869 = vadd.f32 %v1830, %v1836
        %v1870 = vmax.f32 %v1838, 0.0
        %v1871 = vmax.f32 %v1839, 0.0
        %v1872 = vmax.f32 %v1840, 0.0
        %v1873 = vmax.f32 %v1841, 0.0
        %v1874 = vmax.f32 %v1842, 0.0
        %v1875 = vmax.f32 %v1843, 0.0
        %v1876 = vmax.f32 %v1844, 0.0
        %v1877 = vmax.f32 %v1845, 0.0
        %v1878 = vmax.f32 %v1846, 0.0
        %v1879 = vmax.f32 %v1847, 0.0
        %v1880 = vmax.f32 %v1848, 0.0
        %v1881 = vmax.f32 %v1849, 0.0
        %v1882 = vmax.f32 %v1850, 0.0
        %v1883 = vmax.f32 %v1851, 0.0
        %v1884 = vmax.f32 %v1852, 0.0
        %v1885 = vmax.f32 %v1853, 0.0
        %v1886 = vmax.f32 %v1854, 0.0
        %v1887 = vmax.f32 %v1855, 0.0
        %v1888 = vmax.f32 %v1856, 0.0
        %v1889 = vmax.f32 %v1857, 0.0
        %v1890 = vmax.f32 %v1858, 0.0
        %v1891 = vmax.f32 %v1859, 0.0
        %v1892 = vmax.f32 %v1860, 0.0
        %v1893 = vmax.f32 %v1861, 0.0
        %v1894 = vmax.f32 %v1862, 0.0
        %v1895 = vmax.f32 %v1863, 0.0
        %v1896 = vmax.f32 %v1864, 0.0
        %v1897 = vmax.f32 %v1865, 0.0
        %v1898 = vmax.f32 %v1866, 0.0
        %v1899 = vmax.f32 %v1867, 0.0
        %v1900 = vmax.f32 %v1868, 0.0
        %v1901 = vmax.f32 %v1869, 0.0
        %1902 = vst [vmem:[%s306] sm:$0xff] %v1870
        %1903 = vst [vmem:[%s306 + $0x8] sm:$0xff] %v1871
        %1904 = vst [vmem:[%s306 + $0x10] sm:$0xff] %v1872
        %1905 = vst [vmem:[%s306 + $0x18] sm:$0xff] %v1873
        %1906 = vst [vmem:[%s306 + $0x20] sm:$0xff] %v1874
        %1907 = vst [vmem:[%s306 + $0x28] sm:$0xff] %v1875
        %1908 = vst [vmem:[%s306 + $0x30] sm:$0xff] %v1876
        %1909 = vst [vmem:[%s306 + $0x38] sm:$0xff] %v1877
        %1910 = vst [vmem:[%s306 + $0x40] sm:$0xff] %v1878
        %1911 = vst [vmem:[%s306 + $0x48] sm:$0xff] %v1879
        %1912 = vst [vmem:[%s306 + $0x50] sm:$0xff] %v1880
        %1913 = vst [vmem:[%s306 + $0x58] sm:$0xff] %v1881
        %1914 = vst [vmem:[%s306 + $0x60] sm:$0xff] %v1882
        %1915 = vst [vmem:[%s306 + $0x68] sm:$0xff] %v1883
        %1916 = vst [vmem:[%s306 + $0x70] sm:$0xff] %v1884
        %1917 = vst [vmem:[%s306 + $0x78] sm:$0xff] %v1885
        %1918 = vst [vmem:[%s306 + $0x80] sm:$0xff] %v1886
        %1919 = vst [vmem:[%s306 + $0x88] sm:$0xff] %v1887
        %1920 = vst [vmem:[%s306 + $0x90] sm:$0xff] %v1888
        %1921 = vst [vmem:[%s306 + $0x98] sm:$0xff] %v1889
        %1922 = vst [vmem:[%s306 + $0xa0] sm:$0xff] %v1890
        %1923 = vst [vmem:[%s306 + $0xa8] sm:$0xff] %v1891
        %1924 = vst [vmem:[%s306 + $0xb0] sm:$0xff] %v1892
        %1925 = vst [vmem:[%s306 + $0xb8] sm:$0xff] %v1893
        %1926 = vst [vmem:[%s306 + $0xc0] sm:$0xff] %v1894
        %1927 = vst [vmem:[%s306 + $0xc8] sm:$0xff] %v1895
        %1928 = vst [vmem:[%s306 + $0xd0] sm:$0xff] %v1896
        %1929 = vst [vmem:[%s306 + $0xd8] sm:$0xff] %v1897
        %1930 = vst [vmem:[%s306 + $0xe0] sm:$0xff] %v1898
        %1931 = vst [vmem:[%s306 + $0xe8] sm:$0xff] %v1899
        %1932 = vst [vmem:[%s306 + $0xf0] sm:$0xff] %v1900
        %1933 = vst [vmem:[%s306 + $0xf8] sm:$0xff] %v1901
      $region44: #{resnet_unet_forward.8} parent=35 // pred_fallthru
        _
      %s1934 = smul.u32 32, %s20
      %p1935 = scmp.lt.s32.totalorder %s1934, 255
      %s1936 = scalar_select %p1935, %s1934, 255
      %p1937 = scmp.lt.s32.totalorder %s21, 0
      %s1938 = scalar_select %p1937, %s21, 0
      %s1939 = sadd.s32 %s1938, %s1936
      %s1940 = smul.addr %s1939, 8
      %s1941 = scalar_lea.vmem %s4, %s1940
      // Predicated region
      $region45: #{resnet_unet_forward.8} parent=35 // pred_check
        %p1942 = pneg %p162
      $region46: #{resnet_unet_forward.8} parent=35 // pred_check_branch
        %1944 = sbr.rel (%p1942) target = $region48
      $region47: #{resnet_unet_forward.8} parent=35 // pred_region
        %s1945 = smul.u32 32, %s20
      $region48: #{resnet_unet_forward.8} parent=35 // pred_fallthru
        _
    $region36: #{resnet_unet_forward.8} parent=5 // pred_fallthru
      _
    %p1946 = scmp.le.s32.totalorder 2, %s10
    // Predicated region
    $region49: #{resnet_unet_forward.8} parent=5 // pred_check
      %p1947 = pneg %p1946
    $region50: #{resnet_unet_forward.8} parent=5 // pred_check_branch
      %1949 = sbr.rel (%p1947) target = $region52
    $region51: #{resnet_unet_forward.8} parent=5 // pred_region
      %s1950 = ssub.s32 %s10, 2
      // Predicated region
      $region53: #{resnet_unet_forward.8} parent=51 // pred_check
        %p1951 = pneg %p168
      $region54: #{resnet_unet_forward.8} parent=51 // pred_check_branch
        %1953 = sbr.rel (%p1951) target = $region56
      $region55: #{resnet_unet_forward.8} parent=51 // pred_region
        %s1954 = smul.u32 32, %s23
        %p1955 = scmp.lt.s32.totalorder %s1954, 255
        %s1956 = scalar_select %p1955, %s1954, 255
        %p1957 = scmp.lt.s32.totalorder %s24, 0
        %s1958 = scalar_select %p1957, %s24, 0
        %s1959 = sadd.s32 %s1958, %s1956
        %s1960 = smul.addr %s1959, 8
        %s1961 = scalar_lea.vmem %s4, %s1960
      $region56: #{resnet_unet_forward.8} parent=51 // pred_fallthru
        _
    $region52: #{resnet_unet_forward.8} parent=5 // pred_fallthru
      _
  $region6: #{resnet_unet_forward.8} parent=0 // loop_footer
    %s14 = sadd.s32 1, %s10
  $region7: #{resnet_unet_forward.8} parent=0 // loop_footer_branch
    %9 = sbr.rel target = $region3
  $region8: #{resnet_unet_forward.8} parent=0 // loop_exit
    _

// kernel: resnet_unet_forward.9
$region0: #{resnet_unet_forward.9}
  #allocation0 [shape = 'u32[]', space=smem, size = 0x4, offset = 0x4, fixed_abs, tag = 'smem constant byte address 0x4 - core index']
  #allocation1 [shape = 'u32[144,128]{1,0:T(1,128)}', space=vmem, size = 0x12000, scoped, tag = 'internal scratch']
  #allocation2 [shape = 'f32[256,128]{1,0:T(8,128)}', space=vmem, size = 0x20000, scoped, tag = 'scratch operand']
  %s0 = inlined_call_operand.vmem [shape: bf16[512,152], index: 0, kind: input, shape index: {}]
  %s1 = inlined_call_operand.vmem [shape: bf16[152,128], index: 1, kind: input, shape index: {}]
  %s2 = inlined_call_operand.vmem [shape: f32[1,128], index: 2, kind: input, shape index: {}]
  %s3 = inlined_call_operand.vmem [shape: f32[1,128], index: 3, kind: input, shape index: {}]
  %s4 = inlined_call_operand.vmem [shape: f32[512,128], index: 4, kind: output, shape index: {}]
  %s5 = sld [smem:[#allocation0]]
  $region57: #{resnet_unet_forward.9} parent=0
    _
  %s7 = ssub.s32 1, %s5
  %s8 = scalar_select 0, %s7, %s5
  loop: start=0, step=1, limit=4
  $region2: #{resnet_unet_forward.9} parent=0 // loop_pre_header
    _
  $region3: #{resnet_unet_forward.9} parent=0 // loop_header
    %s10 = sphi 0, %s14
    %p11 = scmp.ge.s32.totalorder %s10, 4
    %s17 = sphi 0, %s36
    %s18 = sphi 0, %s32
    %s19 = sphi 0, %s28
    %s20 = sphi 0, %s17
    %s21 = sphi 0, %s18
    %s22 = sphi 0, %s19
    %s23 = sphi 0, %s20
    %s24 = sphi 0, %s21
    %s25 = sphi 0, %s22
    %s41 = sphi 0, %s43
    %s44 = sphi 0, %s41
    %s45 = sphi 0, %s44
    %s61 = sphi 0, %s45
    %s69 = sphi 0, %s71
    %s72 = sphi 0, %s69
    %s73 = sphi 0, %s72
    %s89 = sphi 0, %s73
    %s95 = sphi 0, %s97
    %s98 = sphi 0, %s95
    %s99 = sphi 0, %s98
    %s115 = sphi 0, %s99
    %s121 = sphi 0, %s123
    %s124 = sphi 0, %s121
    %s125 = sphi 0, %s124
    %s141 = sphi 0, %s125
    %s149 = sphi 0, %s151
    %s152 = sphi 0, %s149
    %s153 = sphi 0, %s152
    %s169 = sphi 0, %s153
  $region4: #{resnet_unet_forward.9} parent=0 // loop_header_branch
    %13 = sbr.rel (%p11) target = $region8
  $region5: #{resnet_unet_forward.9} parent=0 // loop_body
    %s15 = ssub.s32 %s10, 1
    %s16 = ssub.s32 %s10, 2
    %s26 = sadd.s32 1, %s19
    %p27 = scmp.ge.s32.totalorder %s26, 1
    %s28 = scalar_select %p27, 0, %s26
    %s29 = sadd.s32 1, %s18
    %s30 = scalar_select %p27, %s29, %s18
    %p31 = scmp.ge.s32.totalorder %s30, 1
    %s32 = scalar_select %p31, 0, %s30
    %s33 = sadd.s32 1, %s17
    %s34 = scalar_select %p31, %s33, %s17
    %p35 = scmp.ge.s32.totalorder %s34, 2
    %s36 = scalar_select %p35, 0, %s34
    %s37 = ssub.s32 %s17, %s36
    %s38 = ssub.s32 %s19, %s28
    %s39 = sor.u32 %s37, %s38
    %p40 = scmp.eq.s32.totalorder %s39, 0
    %s42 = sadd.s32 %s41, 1
    %s43 = scalar_select %p40, %s41, %s42
    %p46 = pneg %p40
    %p47 = scmp.eq.s32.totalorder %s10, 1
    %p48 = por %p46, %p47
    %p49 = scmp.ne.s32.totalorder %s41, %s44
    %p50 = scmp.eq.s32.totalorder %s10, 0
    %p51 = por %p49, %p50
    %p52 = scmp.ne.s32.totalorder %s41, %s44
    %p53 = scmp.eq.s32.totalorder %s15, 1
    %p54 = por %p52, %p53
    %p55 = scmp.ne.s32.totalorder %s44, %s45
    %p56 = scmp.eq.s32.totalorder %s15, 0
    %p57 = por %p55, %p56
    %p58 = scmp.ne.s32.totalorder %s44, %s45
    %p59 = scmp.eq.s32.totalorder %s16, 1
    %p60 = por %p58, %p59
    %p62 = scmp.ne.s32.totalorder %s45, %s61
    %p63 = scmp.eq.s32.totalorder %s16, 0
    %p64 = por %p62, %p63
    %s65 = ssub.s32 %s19, %s28
    %s66 = ssub.s32 %s18, %s32
    %s67 = sor.u32 %s65, %s66
    %p68 = scmp.eq.s32.totalorder %s67, 0
    %s70 = sadd.s32 %s69, 1
    %s71 = scalar_select %p68, %s69, %s70
    %p74 = pneg %p68
    %p75 = scmp.eq.s32.totalorder %s10, 1
    %p76 = por %p74, %p75
    %p77 = scmp.ne.s32.totalorder %s69, %s72
    %p78 = scmp.eq.s32.totalorder %s10, 0
    %p79 = por %p77, %p78
    %p80 = scmp.ne.s32.totalorder %s69, %s72
    %p81 = scmp.eq.s32.totalorder %s15, 1
    %p82 = por %p80, %p81
    %p83 = scmp.ne.s32.totalorder %s72, %s73
    %p84 = scmp.eq.s32.totalorder %s15, 0
    %p85 = por %p83, %p84
    %p86 = scmp.ne.s32.totalorder %s72, %s73
    %p87 = scmp.eq.s32.totalorder %s16, 1
    %p88 = por %p86, %p87
    %p90 = scmp.ne.s32.totalorder %s73, %s89
    %p91 = scmp.eq.s32.totalorder %s16, 0
    %p92 = por %p90, %p91
    %s93 = ssub.s32 %s18, %s32
    %p94 = scmp.eq.s32.totalorder %s93, 0
    %s96 = sadd.s32 %s95, 1
    %s97 = scalar_select %p94, %s95, %s96
    %p100 = pneg %p94
    %p101 = scmp.eq.s32.totalorder %s10, 1
    %p102 = por %p100, %p101
    %p103 = scmp.ne.s32.totalorder %s95, %s98
    %p104 = scmp.eq.s32.totalorder %s10, 0
    %p105 = por %p103, %p104
    %p106 = scmp.ne.s32.totalorder %s95, %s98
    %p107 = scmp.eq.s32.totalorder %s15, 1
    %p108 = por %p106, %p107
    %p109 = scmp.ne.s32.totalorder %s98, %s99
    %p110 = scmp.eq.s32.totalorder %s15, 0
    %p111 = por %p109, %p110
    %p112 = scmp.ne.s32.totalorder %s98, %s99
    %p113 = scmp.eq.s32.totalorder %s16, 1
    %p114 = por %p112, %p113
    %p116 = scmp.ne.s32.totalorder %s99, %s115
    %p117 = scmp.eq.s32.totalorder %s16, 0
    %p118 = por %p116, %p117
    %s119 = ssub.s32 %s18, %s32
    %p120 = scmp.eq.s32.totalorder %s119, 0
    %s122 = sadd.s32 %s121, 1
    %s123 = scalar_select %p120, %s121, %s122
    %p126 = pneg %p120
    %p127 = scmp.eq.s32.totalorder %s10, 1
    %p128 = por %p126, %p127
    %p129 = scmp.ne.s32.totalorder %s121, %s124
    %p130 = scmp.eq.s32.totalorder %s10, 0
    %p131 = por %p129, %p130
    %p132 = scmp.ne.s32.totalorder %s121, %s124
    %p133 = scmp.eq.s32.totalorder %s15, 1
    %p134 = por %p132, %p133
    %p135 = scmp.ne.s32.totalorder %s124, %s125
    %p136 = scmp.eq.s32.totalorder %s15, 0
    %p137 = por %p135, %p136
    %p138 = scmp.ne.s32.totalorder %s124, %s125
    %p139 = scmp.eq.s32.totalorder %s16, 1
    %p140 = por %p138, %p139
    %p142 = scmp.ne.s32.totalorder %s125, %s141
    %p143 = scmp.eq.s32.totalorder %s16, 0
    %p144 = por %p142, %p143
    %s145 = ssub.s32 %s17, %s36
    %s146 = ssub.s32 %s18, %s32
    %s147 = sor.u32 %s145, %s146
    %p148 = scmp.eq.s32.totalorder %s147, 0
    %s150 = sadd.s32 %s149, 1
    %s151 = scalar_select %p148, %s149, %s150
    %p154 = pneg %p148
    %p155 = scmp.eq.s32.totalorder %s10, 1
    %p156 = por %p154, %p155
    %p157 = scmp.ne.s32.totalorder %s149, %s152
    %p158 = scmp.eq.s32.totalorder %s10, 0
    %p159 = por %p157, %p158
    %p160 = scmp.ne.s32.totalorder %s149, %s152
    %p161 = scmp.eq.s32.totalorder %s15, 1
    %p162 = por %p160, %p161
    %p163 = scmp.ne.s32.totalorder %s152, %s153
    %p164 = scmp.eq.s32.totalorder %s15, 0
    %p165 = por %p163, %p164
    %p166 = scmp.ne.s32.totalorder %s152, %s153
    %p167 = scmp.eq.s32.totalorder %s16, 1
    %p168 = por %p166, %p167
    %p170 = scmp.ne.s32.totalorder %s153, %s169
    %p171 = scmp.eq.s32.totalorder %s16, 0
    %p172 = por %p170, %p171
    %p173 = scmp.le.s32.totalorder 1, %s10
    %p174 = scmp.lt.s32.totalorder %s10, 3
    %p175 = pnand %p173, %p174
    %p176 = pneg %p175
    // Predicated region
    $region9: #{resnet_unet_forward.9} parent=5 // pred_check
      _
    $region10: #{resnet_unet_forward.9} parent=5 // pred_check_branch
      %178 = sbr.rel (%p175) target = $region12
    $region11: #{resnet_unet_forward.9} parent=5 // pred_region
      %s179 = ssub.s32 %s10, 1
      // Predicated region
      $region13: #{resnet_unet_forward.9} parent=11 // pred_check
        %p180 = pneg %p85
      $region14: #{resnet_unet_forward.9} parent=11 // pred_check_branch
        %182 = sbr.rel (%p180) target = $region16
      $region15: #{resnet_unet_forward.9} parent=11 // pred_region
        %s183 = smul.u32 19, %s22
        %p184 = scmp.lt.s32.totalorder %s183, 18
        %s185 = scalar_select %p184, %s183, 18
        %p186 = scmp.lt.s32.totalorder %s21, 0
        %s187 = scalar_select %p186, %s21, 0
        %s188 = sadd.s32 %s187, %s185
        %s189 = smul.addr %s188, 4
        %s190 = scalar_lea.vmem %s1, %s189
        %s191 = smul.u32 19, %s22
      $region16: #{resnet_unet_forward.9} parent=11 // pred_fallthru
        _
      // Predicated region
      $region17: #{resnet_unet_forward.9} parent=11 // pred_check
        %p192 = pneg %p111
      $region18: #{resnet_unet_forward.9} parent=11 // pred_check_branch
        %194 = sbr.rel (%p192) target = $region20
      $region19: #{resnet_unet_forward.9} parent=11 // pred_region
        %p195 = scmp.lt.s32.totalorder %s21, 0
        %s196 = scalar_select %p195, %s21, 0
        %s197 = scalar_lea.vmem %s2, %s196
      $region20: #{resnet_unet_forward.9} parent=11 // pred_fallthru
        _
      // Predicated region
      $region21: #{resnet_unet_forward.9} parent=11 // pred_check
        %p198 = pneg %p137
      $region22: #{resnet_unet_forward.9} parent=11 // pred_check_branch
        %200 = sbr.rel (%p198) target = $region24
      $region23: #{resnet_unet_forward.9} parent=11 // pred_region
        %p201 = scmp.lt.s32.totalorder %s21, 0
        %s202 = scalar_select %p201, %s21, 0
        %s203 = scalar_lea.vmem %s3, %s202
      $region24: #{resnet_unet_forward.9} parent=11 // pred_fallthru
        _
    $region12: #{resnet_unet_forward.9} parent=5 // pred_fallthru
      _
    %p204 = scmp.lt.s32.totalorder %s10, 2
    // Predicated region
    $region25: #{resnet_unet_forward.9} parent=5 // pred_check
      %p205 = pneg %p204
    $region26: #{resnet_unet_forward.9} parent=5 // pred_check_branch
      %207 = sbr.rel (%p205) target = $region28
    $region27: #{resnet_unet_forward.9} parent=5 // pred_region
      // Predicated region
      $region29: #{resnet_unet_forward.9} parent=27 // pred_check
        %p208 = pneg %p51
      $region30: #{resnet_unet_forward.9} parent=27 // pred_check_branch
        %210 = sbr.rel (%p208) target = $region32
      $region31: #{resnet_unet_forward.9} parent=27 // pred_region
        %s211 = smul.u32 32, %s17
        %s212 = smul.u32 2, %s19
        %p213 = scmp.lt.s32.totalorder %s211, 63
        %s214 = scalar_select %p213, %s211, 63
        %p215 = scmp.lt.s32.totalorder %s212, 1
        %s216 = scalar_select %p215, %s212, 1
        %s217 = smul.addr %s214, 2
        %s218 = sadd.s32 %s216, %s217
        %s219 = smul.addr %s218, 4
        %s220 = scalar_lea.vmem %s0, %s219
        %s221 = smul.u32 32, %s17
        %s222 = smul.u32 2, %s19
      $region32: #{resnet_unet_forward.9} parent=27 // pred_fallthru
        _
    $region28: #{resnet_unet_forward.9} parent=5 // pred_fallthru
      _
    %p223 = scmp.le.s32.totalorder 1, %s10
    %p224 = scmp.lt.s32.totalorder %s10, 3
    %p225 = pnand %p223, %p224
    %p226 = pneg %p225
    // Predicated region
    $region33: #{resnet_unet_forward.9} parent=5 // pred_check
      _
    $region34: #{resnet_unet_forward.9} parent=5 // pred_check_branch
      %228 = sbr.rel (%p225) target = $region36
    $region35: #{resnet_unet_forward.9} parent=5 // pred_region
      %s229 = ssub.s32 %s10, 1
      %s230 = smul.u32 32, %s20
      %s231 = smul.u32 2, %s22
      %p232 = scmp.lt.s32.totalorder %s230, 63
      %s233 = scalar_select %p232, %s230, 63
      %p234 = scmp.lt.s32.totalorder %s231, 1
      %s235 = scalar_select %p234, %s231, 1
      %s236 = smul.addr %s233, 2
      %s237 = sadd.s32 %s235, %s236
      %s238 = smul.addr %s237, 4
      %s239 = scalar_lea.vmem %s0, %s238
      %p240 = pneg %p57
      %p241 = pneg %p54
      %s242 = smul.u32 19, %s22
      %p243 = scmp.lt.s32.totalorder %s242, 18
      %s244 = scalar_select %p243, %s242, 18
      %p245 = scmp.lt.s32.totalorder %s21, 0
      %s246 = scalar_select %p245, %s21, 0
      %s247 = sadd.s32 %s246, %s244
      %s248 = smul.addr %s247, 4
      %s249 = scalar_lea.vmem %s1, %s248
      %p250 = pneg %p85
      %p251 = pneg %p82
      %p252 = scmp.lt.s32.totalorder %s21, 0
      %s253 = scalar_select %p252, %s21, 0
      %s254 = scalar_lea.vmem %s2, %s253
      %p255 = pneg %p111
      %p256 = pneg %p108
      %p257 = scmp.lt.s32.totalorder %s21, 0
      %s258 = scalar_select %p257, %s21, 0
      %s259 = scalar_lea.vmem %s3, %s258
      %p260 = pneg %p137
      %p261 = pneg %p134
      %p262 = pneg %p165
      %p263 = pneg %p162
      %s264 = smul.u32 32, %s20
      %p265 = scmp.lt.s32.totalorder %s264, 63
      %s266 = scalar_select %p265, %s264, 63
      %p267 = scmp.lt.s32.totalorder %s21, 0
      %s268 = scalar_select %p267, %s21, 0
      %s269 = sadd.s32 %s268, %s266
      %s270 = smul.addr %s269, 8
      %s271 = scalar_lea.vmem %s4, %s270
      %s272 = smul.u32 32, %s20
      %s273 = smul.u32 2, %s22
      %p274 = scmp.lt.s32.totalorder %s272, 63
      %s275 = scalar_select %p274, %s272, 63
      %p276 = scmp.lt.s32.totalorder %s273, 1
      %s277 = scalar_select %p276, %s273, 1
      %s278 = smul.addr %s275, 2
      %s279 = sadd.s32 %s277, %s278
      %s280 = smul.addr %s279, 4
      %s281 = scalar_lea.vmem %s0, %s280
      %s282 = smul.u32 32, %s20
      %s283 = smul.u32 2, %s22
      %s284 = smul.u32 19, %s22
      %p285 = scmp.lt.s32.totalorder %s284, 18
      %s286 = scalar_select %p285, %s284, 18
      %p287 = scmp.lt.s32.totalorder %s21, 0
      %s288 = scalar_select %p287, %s21, 0
      %s289 = sadd.s32 %s288, %s286
      %s290 = smul.addr %s289, 4
      %s291 = scalar_lea.vmem %s1, %s290
      %s292 = smul.u32 19, %s22
      %p293 = scmp.lt.s32.totalorder %s21, 0
      %s294 = scalar_select %p293, %s21, 0
      %s295 = scalar_lea.vmem %s2, %s294
      %p296 = scmp.lt.s32.totalorder %s21, 0
      %s297 = scalar_select %p296, %s21, 0
      %s298 = scalar_lea.vmem %s3, %s297
      %s299 = smul.u32 32, %s20
      %p300 = scmp.lt.s32.totalorder %s299, 63
      %s301 = scalar_select %p300, %s299, 63
      %p302 = scmp.lt.s32.totalorder %s21, 0
      %s303 = scalar_select %p302, %s21, 0
      %s304 = sadd.s32 %s303, %s301
      %s305 = smul.addr %s304, 8
      %s306 = scalar_lea.vmem %s4, %s305
      %s307 = smul.u32 32, %s20
      %p309 = scmp.eq.s32.totalorder %s22, 0
      // Predicated region
      $region37: #{resnet_unet_forward.9} parent=35 // pred_check
        %p310 = pneg %p309
      $region38: #{resnet_unet_forward.9} parent=35 // pred_check_branch
        %312 = sbr.rel (%p310) target = $region40
      $region39: #{resnet_unet_forward.9} parent=35 // pred_region
        %313 = vst [vmem:[#allocation2] sm:$0xff] 0.0
        %314 = vst [vmem:[#allocation2 + $0x8] sm:$0xff] 0.0
        %315 = vst [vmem:[#allocation2 + $0x10] sm:$0xff] 0.0
        %316 = vst [vmem:[#allocation2 + $0x18] sm:$0xff] 0.0
        %317 = vst [vmem:[#allocation2 + $0x20] sm:$0xff] 0.0
        %318 = vst [vmem:[#allocation2 + $0x28] sm:$0xff] 0.0
        %319 = vst [vmem:[#allocation2 + $0x30] sm:$0xff] 0.0
        %320 = vst [vmem:[#allocation2 + $0x38] sm:$0xff] 0.0
        %321 = vst [vmem:[#allocation2 + $0x40] sm:$0xff] 0.0
        %322 = vst [vmem:[#allocation2 + $0x48] sm:$0xff] 0.0
        %323 = vst [vmem:[#allocation2 + $0x50] sm:$0xff] 0.0
        %324 = vst [vmem:[#allocation2 + $0x58] sm:$0xff] 0.0
        %325 = vst [vmem:[#allocation2 + $0x60] sm:$0xff] 0.0
        %326 = vst [vmem:[#allocation2 + $0x68] sm:$0xff] 0.0
        %327 = vst [vmem:[#allocation2 + $0x70] sm:$0xff] 0.0
        %328 = vst [vmem:[#allocation2 + $0x78] sm:$0xff] 0.0
        %329 = vst [vmem:[#allocation2 + $0x80] sm:$0xff] 0.0
        %330 = vst [vmem:[#allocation2 + $0x88] sm:$0xff] 0.0
        %331 = vst [vmem:[#allocation2 + $0x90] sm:$0xff] 0.0
        %332 = vst [vmem:[#allocation2 + $0x98] sm:$0xff] 0.0
        %333 = vst [vmem:[#allocation2 + $0xa0] sm:$0xff] 0.0
        %334 = vst [vmem:[#allocation2 + $0xa8] sm:$0xff] 0.0
        %335 = vst [vmem:[#allocation2 + $0xb0] sm:$0xff] 0.0
        %336 = vst [vmem:[#allocation2 + $0xb8] sm:$0xff] 0.0
        %337 = vst [vmem:[#allocation2 + $0xc0] sm:$0xff] 0.0
        %338 = vst [vmem:[#allocation2 + $0xc8] sm:$0xff] 0.0
        %339 = vst [vmem:[#allocation2 + $0xd0] sm:$0xff] 0.0
        %340 = vst [vmem:[#allocation2 + $0xd8] sm:$0xff] 0.0
        %341 = vst [vmem:[#allocation2 + $0xe0] sm:$0xff] 0.0
        %342 = vst [vmem:[#allocation2 + $0xe8] sm:$0xff] 0.0
        %343 = vst [vmem:[#allocation2 + $0xf0] sm:$0xff] 0.0
        %344 = vst [vmem:[#allocation2 + $0xf8] sm:$0xff] 0.0
      $region40: #{resnet_unet_forward.9} parent=35 // pred_fallthru
        _
      %v345 = vld [vmem:[#allocation2] sm:$0xff]
      %v346 = vld [vmem:[#allocation2 + $0x8] sm:$0xff]
      %v347 = vld [vmem:[#allocation2 + $0x10] sm:$0xff]
      %v348 = vld [vmem:[#allocation2 + $0x18] sm:$0xff]
      %v349 = vld [vmem:[#allocation2 + $0x20] sm:$0xff]
      %v350 = vld [vmem:[#allocation2 + $0x28] sm:$0xff]
      %v351 = vld [vmem:[#allocation2 + $0x30] sm:$0xff]
      %v352 = vld [vmem:[#allocation2 + $0x38] sm:$0xff]
      %v353 = vld [vmem:[#allocation2 + $0x40] sm:$0xff]
      %v354 = vld [vmem:[#allocation2 + $0x48] sm:$0xff]
      %v355 = vld [vmem:[#allocation2 + $0x50] sm:$0xff]
      %v356 = vld [vmem:[#allocation2 + $0x58] sm:$0xff]
      %v357 = vld [vmem:[#allocation2 + $0x60] sm:$0xff]
      %v358 = vld [vmem:[#allocation2 + $0x68] sm:$0xff]
      %v359 = vld [vmem:[#allocation2 + $0x70] sm:$0xff]
      %v360 = vld [vmem:[#allocation2 + $0x78] sm:$0xff]
      %v361 = vld [vmem:[#allocation2 + $0x80] sm:$0xff]
      %v362 = vld [vmem:[#allocation2 + $0x88] sm:$0xff]
      %v363 = vld [vmem:[#allocation2 + $0x90] sm:$0xff]
      %v364 = vld [vmem:[#allocation2 + $0x98] sm:$0xff]
      %v365 = vld [vmem:[#allocation2 + $0xa0] sm:$0xff]
      %v366 = vld [vmem:[#allocation2 + $0xa8] sm:$0xff]
      %v367 = vld [vmem:[#allocation2 + $0xb0] sm:$0xff]
      %v368 = vld [vmem:[#allocation2 + $0xb8] sm:$0xff]
      %v369 = vld [vmem:[#allocation2 + $0xc0] sm:$0xff]
      %v370 = vld [vmem:[#allocation2 + $0xc8] sm:$0xff]
      %v371 = vld [vmem:[#allocation2 + $0xd0] sm:$0xff]
      %v372 = vld [vmem:[#allocation2 + $0xd8] sm:$0xff]
      %v373 = vld [vmem:[#allocation2 + $0xe0] sm:$0xff]
      %v374 = vld [vmem:[#allocation2 + $0xe8] sm:$0xff]
      %v375 = vld [vmem:[#allocation2 + $0xf0] sm:$0xff]
      %v376 = vld [vmem:[#allocation2 + $0xf8] sm:$0xff]
      %v377 = vld [vmem:[%s281] sm:$0xff]
      %v378 = vld [vmem:[%s281 + $0x8] sm:$0xff]
      %v379 = vld [vmem:[%s281 + $0x10] sm:$0xff]
      %v380 = vld [vmem:[%s281 + $0x18] sm:$0xff]
      %v381 = vld [vmem:[%s281 + $0x20] sm:$0xff]
      %v382 = vld [vmem:[%s281 + $0x28] sm:$0xff]
      %v383 = vld [vmem:[%s281 + $0x30] sm:$0xff]
      %v384 = vld [vmem:[%s281 + $0x38] sm:$0xff]
      %v385 = vld [vmem:[%s281 + $0x40] sm:$0xff]
      %v386 = vld [vmem:[%s281 + $0x48] sm:$0xff]
      %v387 = vld [vmem:[%s281 + $0x50] sm:$0xff]
      %v388 = vld [vmem:[%s281 + $0x58] sm:$0xff]
      %v389 = vld [vmem:[%s281 + $0x60] sm:$0xff]
      %v390 = vld [vmem:[%s281 + $0x68] sm:$0xff]
      %v391 = vld [vmem:[%s281 + $0x70] sm:$0xff]
      %v392 = vld [vmem:[%s281 + $0x78] sm:$0xff]
      %v393 = vld [vmem:[%s281 + $0x80] sm:$0xff]
      %v394 = vld [vmem:[%s281 + $0x88] sm:$0xff]
      %v395 = vld [vmem:[%s281 + $0x90] sm:$0xff]
      %v396 = vld [vmem:[%s281 + $0x98] sm:$0xff]
      %v397 = vld [vmem:[%s281 + $0xa0] sm:$0xff]
      %v398 = vld [vmem:[%s281 + $0xa8] sm:$0xff]
      %v399 = vld [vmem:[%s281 + $0xb0] sm:$0xff]
      %v400 = vld [vmem:[%s281 + $0xb8] sm:$0xff]
      %v401 = vld [vmem:[%s281 + $0xc0] sm:$0xff]
      %v402 = vld [vmem:[%s281 + $0xc8] sm:$0xff]
      %v403 = vld [vmem:[%s281 + $0xd0] sm:$0xff]
      %v404 = vld [vmem:[%s281 + $0xd8] sm:$0xff]
      %v405 = vld [vmem:[%s281 + $0xe0] sm:$0xff]
      %v406 = vld [vmem:[%s281 + $0xe8] sm:$0xff]
      %v407 = vld [vmem:[%s281 + $0xf0] sm:$0xff]
      %v408 = vld [vmem:[%s281 + $0xf8] sm:$0xff]
      %v409 = vld [vmem:[%s291] sm:$0xf]
      %v410 = vld [vmem:[%s291 + $0x4] sm:$0xf]
      %v411 = vld [vmem:[%s291 + $0x8] sm:$0xf]
      %v412 = vld [vmem:[%s291 + $0xc] sm:$0xf]
      %v413 = vld [vmem:[%s291 + $0x10] sm:$0xf]
      %v414 = vld [vmem:[%s291 + $0x14] sm:$0xf]
      %v415 = vld [vmem:[%s291 + $0x18] sm:$0xf]
      %v416 = vld [vmem:[%s291 + $0x1c] sm:$0xf]
      %v417 = vld [vmem:[%s291 + $0x20] sm:$0xf]
      %v418 = vld [vmem:[%s291 + $0x24] sm:$0xf]
      %v419 = vld [vmem:[%s291 + $0x28] sm:$0xf]
      %v420 = vld [vmem:[%s291 + $0x2c] sm:$0xf]
      %v421 = vld [vmem:[%s291 + $0x30] sm:$0xf]
      %v422 = vld [vmem:[%s291 + $0x34] sm:$0xf]
      %v423 = vld [vmem:[%s291 + $0x38] sm:$0xf]
      %v424 = vld [vmem:[%s291 + $0x3c] sm:$0xf]
      %v425 = vld [vmem:[%s291 + $0x40] sm:$0xf]
      %v426 = vld [vmem:[%s291 + $0x44] sm:$0xf]
      %v427 = vld [vmem:[%s291 + $0x48] sm:$0xf]
      %v460 = vunpack.c.l.b16 %v377
      %v461 = vunpack.c.h.b16 %v377
      %v462 = vunpack.c.l.b16 %v378
      %v463 = vunpack.c.h.b16 %v378
      %v464 = vunpack.c.l.b16 %v379
      %v465 = vunpack.c.h.b16 %v379
      %v466 = vunpack.c.l.b16 %v380
      %v467 = vunpack.c.h.b16 %v380
      %v468 = vunpack.c.l.b16 %v381
      %v469 = vunpack.c.h.b16 %v381
      %v470 = vunpack.c.l.b16 %v382
      %v471 = vunpack.c.h.b16 %v382
      %v472 = vunpack.c.l.b16 %v383
      %v473 = vunpack.c.h.b16 %v383
      %v474 = vunpack.c.l.b16 %v384
      %v475 = vunpack.c.h.b16 %v384
      %v476 = vunpack.c.l.b16 %v385
      %v477 = vunpack.c.h.b16 %v385
      %v478 = vunpack.c.l.b16 %v386
      %v479 = vunpack.c.h.b16 %v386
      %v480 = vunpack.c.l.b16 %v387
      %v481 = vunpack.c.h.b16 %v387
      %v482 = vunpack.c.l.b16 %v388
      %v483 = vunpack.c.h.b16 %v388
      %v484 = vunpack.c.l.b16 %v389
      %v485 = vunpack.c.h.b16 %v389
      %v486 = vunpack.c.l.b16 %v390
      %v487 = vunpack.c.h.b16 %v390
      %v488 = vunpack.c.l.b16 %v391
      %v489 = vunpack.c.h.b16 %v391
      %v490 = vunpack.c.l.b16 %v392
      %v491 = vunpack.c.h.b16 %v392
      %v492 = vunpack.c.l.b16 %v393
      %v493 = vunpack.c.h.b16 %v393
      %v494 = vunpack.c.l.b16 %v394
      %v495 = vunpack.c.h.b16 %v394
      %v496 = vunpack.c.l.b16 %v395
      %v497 = vunpack.c.h.b16 %v395
      %v498 = vunpack.c.l.b16 %v396
      %v499 = vunpack.c.h.b16 %v396
      %v500 = vunpack.c.l.b16 %v397
      %v501 = vunpack.c.h.b16 %v397
      %v502 = vunpack.c.l.b16 %v398
      %v503 = vunpack.c.h.b16 %v398
      %v504 = vunpack.c.l.b16 %v399
      %v505 = vunpack.c.h.b16 %v399
      %v506 = vunpack.c.l.b16 %v400
      %v507 = vunpack.c.h.b16 %v400
      %v508 = vunpack.c.l.b16 %v401
      %v509 = vunpack.c.h.b16 %v401
      %v510 = vunpack.c.l.b16 %v402
      %v511 = vunpack.c.h.b16 %v402
      %v512 = vunpack.c.l.b16 %v403
      %v513 = vunpack.c.h.b16 %v403
      %v514 = vunpack.c.l.b16 %v404
      %v515 = vunpack.c.h.b16 %v404
      %v516 = vunpack.c.l.b16 %v405
      %v517 = vunpack.c.h.b16 %v405
      %v518 = vunpack.c.l.b16 %v406
      %v519 = vunpack.c.h.b16 %v406
      %v520 = vunpack.c.l.b16 %v407
      %v521 = vunpack.c.h.b16 %v407
      %v522 = vunpack.c.l.b16 %v408
      %v523 = vunpack.c.h.b16 %v408
      %v524 = vpack.c.b16 %v462, %v460
      %v525 = vpack.c.b16 %v463, %v461
      %v526 = vpack.c.b16 %v466, %v464
      %v527 = vpack.c.b16 %v467, %v465
      %v528 = vpack.c.b16 %v470, %v468
      %v529 = vpack.c.b16 %v471, %v469
      %v530 = vpack.c.b16 %v474, %v472
      %v531 = vpack.c.b16 %v475, %v473
      %v532 = vpack.c.b16 %v478, %v476
      %v533 = vpack.c.b16 %v479, %v477
      %v534 = vpack.c.b16 %v482, %v480
      %v535 = vpack.c.b16 %v483, %v481
      %v536 = vpack.c.b16 %v486, %v484
      %v537 = vpack.c.b16 %v487, %v485
      %v538 = vpack.c.b16 %v490, %v488
      %v539 = vpack.c.b16 %v491, %v489
      %v540 = vpack.c.b16 %v494, %v492
      %v541 = vpack.c.b16 %v495, %v493
      %v542 = vpack.c.b16 %v498, %v496
      %v543 = vpack.c.b16 %v499, %v497
      %v544 = vpack.c.b16 %v502, %v500
      %v545 = vpack.c.b16 %v503, %v501
      %v546 = vpack.c.b16 %v506, %v504
      %v547 = vpack.c.b16 %v507, %v505
      %v548 = vpack.c.b16 %v510, %v508
      %v549 = vpack.c.b16 %v511, %v509
      %v550 = vpack.c.b16 %v514, %v512
      %v551 = vpack.c.b16 %v515, %v513
      %v552 = vpack.c.b16 %v518, %v516
      %v553 = vpack.c.b16 %v519, %v517
      %v554 = vpack.c.b16 %v522, %v520
      %v555 = vpack.c.b16 %v523, %v521
      %v591 = vunpack.c.l.b16 %v409
      %v592 = vunpack.c.l.b16 %v410
      %v593 = vunpack.c.l.b16 %v411
      %v594 = vunpack.c.l.b16 %v412
      %v595 = vunpack.c.l.b16 %v413
      %v596 = vunpack.c.l.b16 %v414
      %v597 = vunpack.c.l.b16 %v415
      %v598 = vunpack.c.l.b16 %v416
      %v599 = vunpack.c.l.b16 %v417
      %v600 = vunpack.c.l.b16 %v418
      %v601 = vunpack.c.l.b16 %v419
      %v602 = vunpack.c.l.b16 %v420
      %v603 = vunpack.c.l.b16 %v421
      %v604 = vunpack.c.l.b16 %v422
      %v605 = vunpack.c.l.b16 %v423
      %v606 = vunpack.c.l.b16 %v424
      %v607 = vunpack.c.l.b16 %v425
      %v608 = vunpack.c.l.b16 %v426
      %v609 = vunpack.c.l.b16 %v427
      %v610 = vpack.c.b16 %v592, %v591
      %v611 = vpack.c.b16 %v594, %v593
      %v612 = vpack.c.b16 %v596, %v595
      %v613 = vpack.c.b16 %v598, %v597
      %v614 = vpack.c.b16 %v600, %v599
      %v615 = vpack.c.b16 %v602, %v601
      %v616 = vpack.c.b16 %v604, %v603
      %v617 = vpack.c.b16 %v606, %v605
      %v618 = vpack.c.b16 %v608, %v607
      %v619 = vpack.c.b16 %v609, %v609
      %vm629 = vcmask 195584
      %v631 = vsel %vm629, %v525, 0
      %v634 = vsel %vm629, %v527, 0
      %v637 = vsel %vm629, %v529, 0
      %v640 = vsel %vm629, %v531, 0
      %v643 = vsel %vm629, %v533, 0
      %v646 = vsel %vm629, %v535, 0
      %v649 = vsel %vm629, %v537, 0
      %v652 = vsel %vm629, %v539, 0
      %v655 = vsel %vm629, %v541, 0
      %v658 = vsel %vm629, %v543, 0
      %v661 = vsel %vm629, %v545, 0
      %v664 = vsel %vm629, %v547, 0
      %v667 = vsel %vm629, %v549, 0
      %v670 = vsel %vm629, %v551, 0
      %v673 = vsel %vm629, %v553, 0
      %v676 = vsel %vm629, %v555, 0
      %vm678 = vcmask 1043456
      %v680 = vsel %vm678, %v619, 0
      %682 = vmatprep.subr.bf16.mxu0 0
      %683 = vmatpush1.bf16.msra.mxu0 %v610
      %684 = vmatprep.subr.bf16.mxu0 0
      %685 = vmatpush1.bf16.msra.mxu0 %v611
      %686 = vmatprep.subr.bf16.mxu0 0
      %687 = vmatpush1.bf16.msra.mxu0 %v612
      %688 = vmatprep.subr.bf16.mxu0 0
      %689 = vmatpush1.bf16.msra.mxu0 %v613
      %690 = vmatprep.subr.bf16.mxu0 0
      %691 = vmatpush1.bf16.msra.mxu0 %v614
      %692 = vmatprep.subr.bf16.mxu0 0
      %693 = vmatpush1.bf16.msra.mxu0 %v615
      %694 = vmatprep.subr.bf16.mxu0 0
      %695 = vmatpush1.bf16.msra.mxu0 %v616
      %696 = vmatprep.subr.bf16.mxu0 0
      %697 = vmatpush1.bf16.msra.mxu0 %v617
      %698 = vmatprep.subr.bf16.mxu0 0
      %699 = vmatpush1.bf16.msra.mxu0 %v618
      %700 = vmatprep.subr.bf16.mxu0 0
      %701 = vmatpush1.bf16.msra.mxu0 %v680
      %702 = vmatprep.subr.bf16.mxu0 0
      %703 = vmatpush1.bf16.msra.mxu0 0
      %704 = vmatprep.subr.bf16.mxu0 0
      %705 = vmatpush1.bf16.msra.mxu0 0
      %706 = vmatprep.subr.bf16.mxu0 0
      %707 = vmatpush1.bf16.msra.mxu0 0
      %708 = vmatprep.subr.bf16.mxu0 0
      %709 = vmatpush1.bf16.msra.mxu0 0
      %710 = vmatprep.subr.bf16.mxu0 0
      %711 = vmatpush1.bf16.msra.mxu0 0
      %712 = vmatprep.subr.bf16.mxu0 0
      %713 = vmatpush1.bf16.msra.mxu0 0
      %714 = vmatprep.mubr.bf16.mxu0 %v631
      %715 = vmatmul.mubr.bf16.gmra.mrb[0].mxu0 %v524
      %v716 = vpop.f32.mrb[0].mxu0
      %v717 = vadd.f32 0.0, %v716
      %v718 = vpop.f32.mrb[0].mxu0
      %v719 = vpop.f32.mrb[0].mxu0
      %v720 = vadd.f32 0.0, %v719
      %v721 = vpop.f32.mrb[0].mxu0
      %722 = vmatprep.mubr.bf16.mxu0 %v634
      %723 = vmatmul.mubr.bf16.gmra.mrb[0].mxu0 %v526
      %v724 = vpop.f32.mrb[0].mxu0
      %v725 = vadd.f32 0.0, %v724
      %v726 = vpop.f32.mrb[0].mxu0
      %v727 = vpop.f32.mrb[0].mxu0
      %v728 = vadd.f32 0.0, %v727
      %v729 = vpop.f32.mrb[0].mxu0
      %730 = vmatprep.mubr.bf16.mxu0 %v637
      %731 = vmatmul.mubr.bf16.gmra.mrb[0].mxu0 %v528
      %v732 = vpop.f32.mrb[0].mxu0
      %v733 = vadd.f32 0.0, %v732
      %v734 = vpop.f32.mrb[0].mxu0
      %v735 = vpop.f32.mrb[0].mxu0
      %v736 = vadd.f32 0.0, %v735
      %v737 = vpop.f32.mrb[0].mxu0
      %738 = vmatprep.mubr.bf16.mxu0 %v640
      %739 = vmatmul.mubr.bf16.gmra.mrb[0].mxu0 %v530
      %v740 = vpop.f32.mrb[0].mxu0
      %v741 = vadd.f32 0.0, %v740
      %v742 = vpop.f32.mrb[0].mxu0
      %v743 = vpop.f32.mrb[0].mxu0
      %v744 = vadd.f32 0.0, %v743
      %v745 = vpop.f32.mrb[0].mxu0
      %746 = vmatprep.mubr.bf16.mxu0 %v643
      %747 = vmatmul.mubr.bf16.gmra.mrb[0].mxu0 %v532
      %v748 = vpop.f32.mrb[0].mxu0
      %v749 = vadd.f32 0.0, %v748
      %v750 = vpop.f32.mrb[0].mxu0
      %v751 = vpop.f32.mrb[0].mxu0
      %v752 = vadd.f32 0.0, %v751
      %v753 = vpop.f32.mrb[0].mxu0
      %754 = vmatprep.mubr.bf16.mxu0 %v646
      %755 = vmatmul.mubr.bf16.gmra.mrb[0].mxu0 %v534
      %v756 = vpop.f32.mrb[0].mxu0
      %v757 = vadd.f32 0.0, %v756
      %v758 = vpop.f32.mrb[0].mxu0
      %v759 = vpop.f32.mrb[0].mxu0
      %v760 = vadd.f32 0.0, %v759
      %v761 = vpop.f32.mrb[0].mxu0
      %762 = vmatprep.mubr.bf16.mxu0 %v649
      %763 = vmatmul.mubr.bf16.gmra.mrb[0].mxu0 %v536
      %v764 = vpop.f32.mrb[0].mxu0
      %v765 = vadd.f32 0.0, %v764
      %v766 = vpop.f32.mrb[0].mxu0
      %v767 = vpop.f32.mrb[0].mxu0
      %v768 = vadd.f32 0.0, %v767
      %v769 = vpop.f32.mrb[0].mxu0
      %770 = vmatprep.mubr.bf16.mxu0 %v652
      %771 = vmatmul.mubr.bf16.gmra.mrb[0].mxu0 %v538
      %v772 = vpop.f32.mrb[0].mxu0
      %v773 = vadd.f32 0.0, %v772
      %v774 = vpop.f32.mrb[0].mxu0
      %v775 = vpop.f32.mrb[0].mxu0
      %v776 = vadd.f32 0.0, %v775
      %v777 = vpop.f32.mrb[0].mxu0
      %778 = vmatprep.mubr.bf16.mxu0 %v655
      %779 = vmatmul.mubr.bf16.gmra.mrb[0].mxu0 %v540
      %v780 = vpop.f32.mrb[0].mxu0
      %v781 = vadd.f32 0.0, %v780
      %v782 = vpop.f32.mrb[0].mxu0
      %v783 = vpop.f32.mrb[0].mxu0
      %v784 = vadd.f32 0.0, %v783
      %v785 = vpop.f32.mrb[0].mxu0
      %786 = vmatprep.mubr.bf16.mxu0 %v658
      %787 = vmatmul.mubr.bf16.gmra.mrb[0].mxu0 %v542
      %v788 = vpop.f32.mrb[0].mxu0
      %v789 = vadd.f32 0.0, %v788
      %v790 = vpop.f32.mrb[0].mxu0
      %v791 = vpop.f32.mrb[0].mxu0
      %v792 = vadd.f32 0.0, %v791
      %v793 = vpop.f32.mrb[0].mxu0
      %794 = vmatprep.mubr.bf16.mxu0 %v661
      %795 = vmatmul.mubr.bf16.gmra.mrb[0].mxu0 %v544
      %v796 = vpop.f32.mrb[0].mxu0
      %v797 = vadd.f32 0.0, %v796
      %v798 = vpop.f32.mrb[0].mxu0
      %v799 = vpop.f32.mrb[0].mxu0
      %v800 = vadd.f32 0.0, %v799
      %v801 = vpop.f32.mrb[0].mxu0
      %802 = vmatprep.mubr.bf16.mxu0 %v664
      %803 = vmatmul.mubr.bf16.gmra.mrb[0].mxu0 %v546
      %v804 = vpop.f32.mrb[0].mxu0
      %v805 = vadd.f32 0.0, %v804
      %v806 = vpop.f32.mrb[0].mxu0
      %v807 = vpop.f32.mrb[0].mxu0
      %v808 = vadd.f32 0.0, %v807
      %v809 = vpop.f32.mrb[0].mxu0
      %810 = vmatprep.mubr.bf16.mxu0 %v667
      %811 = vmatmul.mubr.bf16.gmra.mrb[0].mxu0 %v548
      %v812 = vpop.f32.mrb[0].mxu0
      %v813 = vadd.f32 0.0, %v812
      %v814 = vpop.f32.mrb[0].mxu0
      %v815 = vpop.f32.mrb[0].mxu0
      %v816 = vadd.f32 0.0, %v815
      %v817 = vpop.f32.mrb[0].mxu0
      %818 = vmatprep.mubr.bf16.mxu0 %v670
      %819 = vmatmul.mubr.bf16.gmra.mrb[0].mxu0 %v550
      %v820 = vpop.f32.mrb[0].mxu0
      %v821 = vadd.f32 0.0, %v820
      %v822 = vpop.f32.mrb[0].mxu0
      %v823 = vpop.f32.mrb[0].mxu0
      %v824 = vadd.f32 0.0, %v823
      %v825 = vpop.f32.mrb[0].mxu0
      %826 = vmatprep.mubr.bf16.mxu0 %v673
      %827 = vmatmul.mubr.bf16.gmra.mrb[0].mxu0 %v552
      %v828 = vpop.f32.mrb[0].mxu0
      %v829 = vadd.f32 0.0, %v828
      %v830 = vpop.f32.mrb[0].mxu0
      %v831 = vpop.f32.mrb[0].mxu0
      %v832 = vadd.f32 0.0, %v831
      %v833 = vpop.f32.mrb[0].mxu0
      %834 = vmatprep.mubr.bf16.mxu0 %v676
      %835 = vmatmul.mubr.bf16.gmra.mrb[0].mxu0 %v554
      %v836 = vpop.f32.mrb[0].mxu0
      %v837 = vadd.f32 0.0, %v836
      %v838 = vpop.f32.mrb[0].mxu0
      %v839 = vpop.f32.mrb[0].mxu0
      %v840 = vadd.f32 0.0, %v839
      %v841 = vpop.f32.mrb[0].mxu0
      %842 = vdwg.mxu0
      %v843 = vadd.f32 %v345, %v717
      %v844 = vadd.f32 %v346, %v720
      %v845 = vadd.f32 %v347, %v725
      %v846 = vadd.f32 %v348, %v728
      %v847 = vadd.f32 %v349, %v733
      %v848 = vadd.f32 %v350, %v736
      %v849 = vadd.f32 %v351, %v741
      %v850 = vadd.f32 %v352, %v744
      %v851 = vadd.f32 %v353, %v749
      %v852 = vadd.f32 %v354, %v752
      %v853 = vadd.f32 %v355, %v757
      %v854 = vadd.f32 %v356, %v760
      %v855 = vadd.f32 %v357, %v765
      %v856 = vadd.f32 %v358, %v768
      %v857 = vadd.f32 %v359, %v773
      %v858 = vadd.f32 %v360, %v776
      %v859 = vadd.f32 %v361, %v781
      %v860 = vadd.f32 %v362, %v784
      %v861 = vadd.f32 %v363, %v789
      %v862 = vadd.f32 %v364, %v792
      %v863 = vadd.f32 %v365, %v797
      %v864 = vadd.f32 %v366, %v800
      %v865 = vadd.f32 %v367, %v805
      %v866 = vadd.f32 %v368, %v808
      %v867 = vadd.f32 %v369, %v813
      %v868 = vadd.f32 %v370, %v816
      %v869 = vadd.f32 %v371, %v821
      %v870 = vadd.f32 %v372, %v824
      %v871 = vadd.f32 %v373, %v829
      %v872 = vadd.f32 %v374, %v832
      %v873 = vadd.f32 %v375, %v837
      %v874 = vadd.f32 %v376, %v840
      %875 = vst [vmem:[#allocation2] sm:$0xff] %v843
      %876 = vst [vmem:[#allocation2 + $0x8] sm:$0xff] %v844
      %877 = vst [vmem:[#allocation2 + $0x10] sm:$0xff] %v845
      %878 = vst [vmem:[#allocation2 + $0x18] sm:$0xff] %v846
      %879 = vst [vmem:[#allocation2 + $0x20] sm:$0xff] %v847
      %880 = vst [vmem:[#allocation2 + $0x28] sm:$0xff] %v848
      %881 = vst [vmem:[#allocation2 + $0x30] sm:$0xff] %v849
      %882 = vst [vmem:[#allocation2 + $0x38] sm:$0xff] %v850
      %883 = vst [vmem:[#allocation2 + $0x40] sm:$0xff] %v851
      %884 = vst [vmem:[#allocation2 + $0x48] sm:$0xff] %v852
      %885 = vst [vmem:[#allocation2 + $0x50] sm:$0xff] %v853
      %886 = vst [vmem:[#allocation2 + $0x58] sm:$0xff] %v854
      %887 = vst [vmem:[#allocation2 + $0x60] sm:$0xff] %v855
      %888 = vst [vmem:[#allocation2 + $0x68] sm:$0xff] %v856
      %889 = vst [vmem:[#allocation2 + $0x70] sm:$0xff] %v857
      %890 = vst [vmem:[#allocation2 + $0x78] sm:$0xff] %v858
      %891 = vst [vmem:[#allocation2 + $0x80] sm:$0xff] %v859
      %892 = vst [vmem:[#allocation2 + $0x88] sm:$0xff] %v860
      %893 = vst [vmem:[#allocation2 + $0x90] sm:$0xff] %v861
      %894 = vst [vmem:[#allocation2 + $0x98] sm:$0xff] %v862
      %895 = vst [vmem:[#allocation2 + $0xa0] sm:$0xff] %v863
      %896 = vst [vmem:[#allocation2 + $0xa8] sm:$0xff] %v864
      %897 = vst [vmem:[#allocation2 + $0xb0] sm:$0xff] %v865
      %898 = vst [vmem:[#allocation2 + $0xb8] sm:$0xff] %v866
      %899 = vst [vmem:[#allocation2 + $0xc0] sm:$0xff] %v867
      %900 = vst [vmem:[#allocation2 + $0xc8] sm:$0xff] %v868
      %901 = vst [vmem:[#allocation2 + $0xd0] sm:$0xff] %v869
      %902 = vst [vmem:[#allocation2 + $0xd8] sm:$0xff] %v870
      %903 = vst [vmem:[#allocation2 + $0xe0] sm:$0xff] %v871
      %904 = vst [vmem:[#allocation2 + $0xe8] sm:$0xff] %v872
      %905 = vst [vmem:[#allocation2 + $0xf0] sm:$0xff] %v873
      %906 = vst [vmem:[#allocation2 + $0xf8] sm:$0xff] %v874
      // Predicated region
      $region41: #{resnet_unet_forward.9} parent=35 // pred_check
        %p907 = pneg %p309
      $region42: #{resnet_unet_forward.9} parent=35 // pred_check_branch
        %909 = sbr.rel (%p907) target = $region44
      $region43: #{resnet_unet_forward.9} parent=35 // pred_region
        %v910 = vld [vmem:[#allocation2] sm:$0xff]
        %v911 = vld [vmem:[#allocation2 + $0x8] sm:$0xff]
        %v912 = vld [vmem:[#allocation2 + $0x10] sm:$0xff]
        %v913 = vld [vmem:[#allocation2 + $0x18] sm:$0xff]
        %v914 = vld [vmem:[#allocation2 + $0x20] sm:$0xff]
        %v915 = vld [vmem:[#allocation2 + $0x28] sm:$0xff]
        %v916 = vld [vmem:[#allocation2 + $0x30] sm:$0xff]
        %v917 = vld [vmem:[#allocation2 + $0x38] sm:$0xff]
        %v918 = vld [vmem:[#allocation2 + $0x40] sm:$0xff]
        %v919 = vld [vmem:[#allocation2 + $0x48] sm:$0xff]
        %v920 = vld [vmem:[#allocation2 + $0x50] sm:$0xff]
        %v921 = vld [vmem:[#allocation2 + $0x58] sm:$0xff]
        %v922 = vld [vmem:[#allocation2 + $0x60] sm:$0xff]
        %v923 = vld [vmem:[#allocation2 + $0x68] sm:$0xff]
        %v924 = vld [vmem:[#allocation2 + $0x70] sm:$0xff]
        %v925 = vld [vmem:[#allocation2 + $0x78] sm:$0xff]
        %v926 = vld [vmem:[#allocation2 + $0x80] sm:$0xff]
        %v927 = vld [vmem:[#allocation2 + $0x88] sm:$0xff]
        %v928 = vld [vmem:[#allocation2 + $0x90] sm:$0xff]
        %v929 = vld [vmem:[#allocation2 + $0x98] sm:$0xff]
        %v930 = vld [vmem:[#allocation2 + $0xa0] sm:$0xff]
        %v931 = vld [vmem:[#allocation2 + $0xa8] sm:$0xff]
        %v932 = vld [vmem:[#allocation2 + $0xb0] sm:$0xff]
        %v933 = vld [vmem:[#allocation2 + $0xb8] sm:$0xff]
        %v934 = vld [vmem:[#allocation2 + $0xc0] sm:$0xff]
        %v935 = vld [vmem:[#allocation2 + $0xc8] sm:$0xff]
        %v936 = vld [vmem:[#allocation2 + $0xd0] sm:$0xff]
        %v937 = vld [vmem:[#allocation2 + $0xd8] sm:$0xff]
        %v938 = vld [vmem:[#allocation2 + $0xe0] sm:$0xff]
        %v939 = vld [vmem:[#allocation2 + $0xe8] sm:$0xff]
        %v940 = vld [vmem:[#allocation2 + $0xf0] sm:$0xff]
        %v941 = vld [vmem:[#allocation2 + $0xf8] sm:$0xff]
        %v942 = vld [vmem:[%s295] sm:$0x1]
        %v944 = vlaneseq
        %v945 = vshrl.u32 %v944, 7
        %v946 = vsub.s32 0, %v945
        %v947 = vrot.slane %v942, %v946
        %v949 = vmul.f32 %v910, %v947
        %v950 = vmul.f32 %v911, %v947
        %v951 = vmul.f32 %v912, %v947
        %v952 = vmul.f32 %v913, %v947
        %v953 = vmul.f32 %v914, %v947
        %v954 = vmul.f32 %v915, %v947
        %v955 = vmul.f32 %v916, %v947
        %v956 = vmul.f32 %v917, %v947
        %v957 = vmul.f32 %v918, %v947
        %v958 = vmul.f32 %v919, %v947
        %v959 = vmul.f32 %v920, %v947
        %v960 = vmul.f32 %v921, %v947
        %v961 = vmul.f32 %v922, %v947
        %v962 = vmul.f32 %v923, %v947
        %v963 = vmul.f32 %v924, %v947
        %v964 = vmul.f32 %v925, %v947
        %v965 = vmul.f32 %v926, %v947
        %v966 = vmul.f32 %v927, %v947
        %v967 = vmul.f32 %v928, %v947
        %v968 = vmul.f32 %v929, %v947
        %v969 = vmul.f32 %v930, %v947
        %v970 = vmul.f32 %v931, %v947
        %v971 = vmul.f32 %v932, %v947
        %v972 = vmul.f32 %v933, %v947
        %v973 = vmul.f32 %v934, %v947
        %v974 = vmul.f32 %v935, %v947
        %v975 = vmul.f32 %v936, %v947
        %v976 = vmul.f32 %v937, %v947
        %v977 = vmul.f32 %v938, %v947
        %v978 = vmul.f32 %v939, %v947
        %v979 = vmul.f32 %v940, %v947
        %v980 = vmul.f32 %v941, %v947
        %v981 = vld [vmem:[%s298] sm:$0x1]
        %v983 = vlaneseq
        %v984 = vshrl.u32 %v983, 7
        %v985 = vsub.s32 0, %v984
        %v986 = vrot.slane %v981, %v985
        %v988 = vadd.f32 %v949, %v986
        %v989 = vadd.f32 %v950, %v986
        %v990 = vadd.f32 %v951, %v986
        %v991 = vadd.f32 %v952, %v986
        %v992 = vadd.f32 %v953, %v986
        %v993 = vadd.f32 %v954, %v986
        %v994 = vadd.f32 %v955, %v986
        %v995 = vadd.f32 %v956, %v986
        %v996 = vadd.f32 %v957, %v986
        %v997 = vadd.f32 %v958, %v986
        %v998 = vadd.f32 %v959, %v986
        %v999 = vadd.f32 %v960, %v986
        %v1000 = vadd.f32 %v961, %v986
        %v1001 = vadd.f32 %v962, %v986
        %v1002 = vadd.f32 %v963, %v986
        %v1003 = vadd.f32 %v964, %v986
        %v1004 = vadd.f32 %v965, %v986
        %v1005 = vadd.f32 %v966, %v986
        %v1006 = vadd.f32 %v967, %v986
        %v1007 = vadd.f32 %v968, %v986
        %v1008 = vadd.f32 %v969, %v986
        %v1009 = vadd.f32 %v970, %v986
        %v1010 = vadd.f32 %v971, %v986
        %v1011 = vadd.f32 %v972, %v986
        %v1012 = vadd.f32 %v973, %v986
        %v1013 = vadd.f32 %v974, %v986
        %v1014 = vadd.f32 %v975, %v986
        %v1015 = vadd.f32 %v976, %v986
        %v1016 = vadd.f32 %v977, %v986
        %v1017 = vadd.f32 %v978, %v986
        %v1018 = vadd.f32 %v979, %v986
        %v1019 = vadd.f32 %v980, %v986
        %v1020 = vmax.f32 %v988, 0.0
        %v1021 = vmax.f32 %v989, 0.0
        %v1022 = vmax.f32 %v990, 0.0
        %v1023 = vmax.f32 %v991, 0.0
        %v1024 = vmax.f32 %v992, 0.0
        %v1025 = vmax.f32 %v993, 0.0
        %v1026 = vmax.f32 %v994, 0.0
        %v1027 = vmax.f32 %v995, 0.0
        %v1028 = vmax.f32 %v996, 0.0
        %v1029 = vmax.f32 %v997, 0.0
        %v1030 = vmax.f32 %v998, 0.0
        %v1031 = vmax.f32 %v999, 0.0
        %v1032 = vmax.f32 %v1000, 0.0
        %v1033 = vmax.f32 %v1001, 0.0
        %v1034 = vmax.f32 %v1002, 0.0
        %v1035 = vmax.f32 %v1003, 0.0
        %v1036 = vmax.f32 %v1004, 0.0
        %v1037 = vmax.f32 %v1005, 0.0
        %v1038 = vmax.f32 %v1006, 0.0
        %v1039 = vmax.f32 %v1007, 0.0
        %v1040 = vmax.f32 %v1008, 0.0
        %v1041 = vmax.f32 %v1009, 0.0
        %v1042 = vmax.f32 %v1010, 0.0
        %v1043 = vmax.f32 %v1011, 0.0
        %v1044 = vmax.f32 %v1012, 0.0
        %v1045 = vmax.f32 %v1013, 0.0
        %v1046 = vmax.f32 %v1014, 0.0
        %v1047 = vmax.f32 %v1015, 0.0
        %v1048 = vmax.f32 %v1016, 0.0
        %v1049 = vmax.f32 %v1017, 0.0
        %v1050 = vmax.f32 %v1018, 0.0
        %v1051 = vmax.f32 %v1019, 0.0
        %1052 = vst [vmem:[%s306] sm:$0xff] %v1020
        %1053 = vst [vmem:[%s306 + $0x8] sm:$0xff] %v1021
        %1054 = vst [vmem:[%s306 + $0x10] sm:$0xff] %v1022
        %1055 = vst [vmem:[%s306 + $0x18] sm:$0xff] %v1023
        %1056 = vst [vmem:[%s306 + $0x20] sm:$0xff] %v1024
        %1057 = vst [vmem:[%s306 + $0x28] sm:$0xff] %v1025
        %1058 = vst [vmem:[%s306 + $0x30] sm:$0xff] %v1026
        %1059 = vst [vmem:[%s306 + $0x38] sm:$0xff] %v1027
        %1060 = vst [vmem:[%s306 + $0x40] sm:$0xff] %v1028
        %1061 = vst [vmem:[%s306 + $0x48] sm:$0xff] %v1029
        %1062 = vst [vmem:[%s306 + $0x50] sm:$0xff] %v1030
        %1063 = vst [vmem:[%s306 + $0x58] sm:$0xff] %v1031
        %1064 = vst [vmem:[%s306 + $0x60] sm:$0xff] %v1032
        %1065 = vst [vmem:[%s306 + $0x68] sm:$0xff] %v1033
        %1066 = vst [vmem:[%s306 + $0x70] sm:$0xff] %v1034
        %1067 = vst [vmem:[%s306 + $0x78] sm:$0xff] %v1035
        %1068 = vst [vmem:[%s306 + $0x80] sm:$0xff] %v1036
        %1069 = vst [vmem:[%s306 + $0x88] sm:$0xff] %v1037
        %1070 = vst [vmem:[%s306 + $0x90] sm:$0xff] %v1038
        %1071 = vst [vmem:[%s306 + $0x98] sm:$0xff] %v1039
        %1072 = vst [vmem:[%s306 + $0xa0] sm:$0xff] %v1040
        %1073 = vst [vmem:[%s306 + $0xa8] sm:$0xff] %v1041
        %1074 = vst [vmem:[%s306 + $0xb0] sm:$0xff] %v1042
        %1075 = vst [vmem:[%s306 + $0xb8] sm:$0xff] %v1043
        %1076 = vst [vmem:[%s306 + $0xc0] sm:$0xff] %v1044
        %1077 = vst [vmem:[%s306 + $0xc8] sm:$0xff] %v1045
        %1078 = vst [vmem:[%s306 + $0xd0] sm:$0xff] %v1046
        %1079 = vst [vmem:[%s306 + $0xd8] sm:$0xff] %v1047
        %1080 = vst [vmem:[%s306 + $0xe0] sm:$0xff] %v1048
        %1081 = vst [vmem:[%s306 + $0xe8] sm:$0xff] %v1049
        %1082 = vst [vmem:[%s306 + $0xf0] sm:$0xff] %v1050
        %1083 = vst [vmem:[%s306 + $0xf8] sm:$0xff] %v1051
      $region44: #{resnet_unet_forward.9} parent=35 // pred_fallthru
        _
      %s1084 = smul.u32 32, %s20
      %p1085 = scmp.lt.s32.totalorder %s1084, 63
      %s1086 = scalar_select %p1085, %s1084, 63
      %p1087 = scmp.lt.s32.totalorder %s21, 0
      %s1088 = scalar_select %p1087, %s21, 0
      %s1089 = sadd.s32 %s1088, %s1086
      %s1090 = smul.addr %s1089, 8
      %s1091 = scalar_lea.vmem %s4, %s1090
      // Predicated region
      $region45: #{resnet_unet_forward.9} parent=35 // pred_check
        %p1092 = pneg %p162
      $region46: #{resnet_unet_forward.9} parent=35 // pred_check_branch
        %1094 = sbr.rel (%p1092) target = $region48
      $region47: #{resnet_unet_forward.9} parent=35 // pred_region
        %s1095 = smul.u32 32, %s20
      $region48: #{resnet_unet_forward.9} parent=35 // pred_fallthru
        _
    $region36: #{resnet_unet_forward.9} parent=5 // pred_fallthru
      _
    %p1096 = scmp.le.s32.totalorder 2, %s10
    // Predicated region
    $region49: #{resnet_unet_forward.9} parent=5 // pred_check
      %p1097 = pneg %p1096
    $region50: #{resnet_unet_forward.9} parent=5 // pred_check_branch
      %1099 = sbr.rel (%p1097) target = $region52
    $region51: #{resnet_unet_forward.9} parent=5 // pred_region
      %s1100 = ssub.s32 %s10, 2
      // Predicated region
      $region53: #{resnet_unet_forward.9} parent=51 // pred_check
        %p1101 = pneg %p168
      $region54: #{resnet_unet_forward.9} parent=51 // pred_check_branch
        %1103 = sbr.rel (%p1101) target = $region56
      $region55: #{resnet_unet_forward.9} parent=51 // pred_region
        %s1104 = smul.u32 32, %s23
        %p1105 = scmp.lt.s32.totalorder %s1104, 63
        %s1106 = scalar_select %p1105, %s1104, 63
        %p1107 = scmp.lt.s32.totalorder %s24, 0
        %s1108 = scalar_select %p1107, %s24, 0
        %s1109 = sadd.s32 %s1108, %s1106
        %s1110 = smul.addr %s1109, 8
        %s1111 = scalar_lea.vmem %s4, %s1110
      $region56: #{resnet_unet_forward.9} parent=51 // pred_fallthru
        _
    $region52: #{resnet_unet_forward.9} parent=5 // pred_fallthru
      _
  $region6: #{resnet_unet_forward.9} parent=0 // loop_footer
    %s14 = sadd.s32 1, %s10
  $region7: #{resnet_unet_forward.9} parent=0 // loop_footer_branch
    %9 = sbr.rel target = $region3
  $region8: #{resnet_unet_forward.9} parent=0 // loop_exit
    _

// kernel: tile.8
$region0: #{tile.8}
  #allocation0 [shape = 's32[1]{0}', space=sflag, size = 0x4, scoped, tag = 'scoped memory for tile.8']
  %s0 = inlined_call_operand.vmem [shape: f32[64], index: 0, kind: input, shape index: {}]
  %s1 = inlined_call_operand.vmem [shape: f32[4,64], index: 1, kind: output, shape index: {}]
  // Predicated region
  $region2: #{tile.8} parent=0 // pred_check
    _
  $region3: #{tile.8} parent=0 // pred_check_branch
    %3 = sbr.rel (0) target = $region5
  $region4: #{tile.8} parent=0 // pred_region
    _
  $region5: #{tile.8} parent=0 // pred_fallthru
    _
  %v4 = vld [vmem:[%s0] ss:$0 sm:$0xff]
  %5 = vst [vmem:[%s1] sm:$0xf] %v4

// kernel: resnet_unet_forward.10
$region0: #{resnet_unet_forward.10}
  #allocation0 [shape = 'u32[]', space=smem, size = 0x4, offset = 0x4, fixed_abs, tag = 'smem constant byte address 0x4 - core index']
  #allocation1 [shape = 'u32[144,128]{1,0:T(1,128)}', space=vmem, size = 0x12000, scoped, tag = 'internal scratch']
  #allocation2 [shape = 'f32[256,256]{1,0:T(8,128)}', space=vmem, size = 0x40000, scoped, tag = 'scratch operand']
  %s0 = inlined_call_operand.vmem [shape: bf16[512,64], index: 0, kind: input, shape index: {}]
  %s1 = inlined_call_operand.vmem [shape: bf16[64,256], index: 1, kind: input, shape index: {}]
  %s2 = inlined_call_operand.vmem [shape: f32[1,256], index: 2, kind: input, shape index: {}]
  %s3 = inlined_call_operand.vmem [shape: f32[1,256], index: 3, kind: input, shape index: {}]
  %s4 = inlined_call_operand.vmem [shape: f32[512,256], index: 4, kind: output, shape index: {}]
  %s5 = sld [smem:[#allocation0]]
  $region57: #{resnet_unet_forward.10} parent=0
    _
  %s7 = ssub.s32 1, %s5
  %s8 = scalar_select 0, %s7, %s5
  loop: start=0, step=1, limit=4
  $region2: #{resnet_unet_forward.10} parent=0 // loop_pre_header
    _
  $region3: #{resnet_unet_forward.10} parent=0 // loop_header
    %s10 = sphi 0, %s14
    %p11 = scmp.ge.s32.totalorder %s10, 4
    %s17 = sphi 0, %s36
    %s18 = sphi 0, %s32
    %s19 = sphi 0, %s28
    %s20 = sphi 0, %s17
    %s21 = sphi 0, %s18
    %s22 = sphi 0, %s19
    %s23 = sphi 0, %s20
    %s24 = sphi 0, %s21
    %s25 = sphi 0, %s22
    %s41 = sphi 0, %s43
    %s44 = sphi 0, %s41
    %s45 = sphi 0, %s44
    %s61 = sphi 0, %s45
    %s69 = sphi 0, %s71
    %s72 = sphi 0, %s69
    %s73 = sphi 0, %s72
    %s89 = sphi 0, %s73
    %s95 = sphi 0, %s97
    %s98 = sphi 0, %s95
    %s99 = sphi 0, %s98
    %s115 = sphi 0, %s99
    %s121 = sphi 0, %s123
    %s124 = sphi 0, %s121
    %s125 = sphi 0, %s124
    %s141 = sphi 0, %s125
    %s149 = sphi 0, %s151
    %s152 = sphi 0, %s149
    %s153 = sphi 0, %s152
    %s169 = sphi 0, %s153
  $region4: #{resnet_unet_forward.10} parent=0 // loop_header_branch
    %13 = sbr.rel (%p11) target = $region8
  $region5: #{resnet_unet_forward.10} parent=0 // loop_body
    %s15 = ssub.s32 %s10, 1
    %s16 = ssub.s32 %s10, 2
    %s26 = sadd.s32 1, %s19
    %p27 = scmp.ge.s32.totalorder %s26, 1
    %s28 = scalar_select %p27, 0, %s26
    %s29 = sadd.s32 1, %s18
    %s30 = scalar_select %p27, %s29, %s18
    %p31 = scmp.ge.s32.totalorder %s30, 1
    %s32 = scalar_select %p31, 0, %s30
    %s33 = sadd.s32 1, %s17
    %s34 = scalar_select %p31, %s33, %s17
    %p35 = scmp.ge.s32.totalorder %s34, 2
    %s36 = scalar_select %p35, 0, %s34
    %s37 = ssub.s32 %s17, %s36
    %s38 = ssub.s32 %s19, %s28
    %s39 = sor.u32 %s37, %s38
    %p40 = scmp.eq.s32.totalorder %s39, 0
    %s42 = sadd.s32 %s41, 1
    %s43 = scalar_select %p40, %s41, %s42
    %p46 = pneg %p40
    %p47 = scmp.eq.s32.totalorder %s10, 1
    %p48 = por %p46, %p47
    %p49 = scmp.ne.s32.totalorder %s41, %s44
    %p50 = scmp.eq.s32.totalorder %s10, 0
    %p51 = por %p49, %p50
    %p52 = scmp.ne.s32.totalorder %s41, %s44
    %p53 = scmp.eq.s32.totalorder %s15, 1
    %p54 = por %p52, %p53
    %p55 = scmp.ne.s32.totalorder %s44, %s45
    %p56 = scmp.eq.s32.totalorder %s15, 0
    %p57 = por %p55, %p56
    %p58 = scmp.ne.s32.totalorder %s44, %s45
    %p59 = scmp.eq.s32.totalorder %s16, 1
    %p60 = por %p58, %p59
    %p62 = scmp.ne.s32.totalorder %s45, %s61
    %p63 = scmp.eq.s32.totalorder %s16, 0
    %p64 = por %p62, %p63
    %s65 = ssub.s32 %s19, %s28
    %s66 = ssub.s32 %s18, %s32
    %s67 = sor.u32 %s65, %s66
    %p68 = scmp.eq.s32.totalorder %s67, 0
    %s70 = sadd.s32 %s69, 1
    %s71 = scalar_select %p68, %s69, %s70
    %p74 = pneg %p68
    %p75 = scmp.eq.s32.totalorder %s10, 1
    %p76 = por %p74, %p75
    %p77 = scmp.ne.s32.totalorder %s69, %s72
    %p78 = scmp.eq.s32.totalorder %s10, 0
    %p79 = por %p77, %p78
    %p80 = scmp.ne.s32.totalorder %s69, %s72
    %p81 = scmp.eq.s32.totalorder %s15, 1
    %p82 = por %p80, %p81
    %p83 = scmp.ne.s32.totalorder %s72, %s73
    %p84 = scmp.eq.s32.totalorder %s15, 0
    %p85 = por %p83, %p84
    %p86 = scmp.ne.s32.totalorder %s72, %s73
    %p87 = scmp.eq.s32.totalorder %s16, 1
    %p88 = por %p86, %p87
    %p90 = scmp.ne.s32.totalorder %s73, %s89
    %p91 = scmp.eq.s32.totalorder %s16, 0
    %p92 = por %p90, %p91
    %s93 = ssub.s32 %s18, %s32
    %p94 = scmp.eq.s32.totalorder %s93, 0
    %s96 = sadd.s32 %s95, 1
    %s97 = scalar_select %p94, %s95, %s96
    %p100 = pneg %p94
    %p101 = scmp.eq.s32.totalorder %s10, 1
    %p102 = por %p100, %p101
    %p103 = scmp.ne.s32.totalorder %s95, %s98
    %p104 = scmp.eq.s32.totalorder %s10, 0
    %p105 = por %p103, %p104
    %p106 = scmp.ne.s32.totalorder %s95, %s98
    %p107 = scmp.eq.s32.totalorder %s15, 1
    %p108 = por %p106, %p107
    %p109 = scmp.ne.s32.totalorder %s98, %s99
    %p110 = scmp.eq.s32.totalorder %s15, 0
    %p111 = por %p109, %p110
    %p112 = scmp.ne.s32.totalorder %s98, %s99
    %p113 = scmp.eq.s32.totalorder %s16, 1
    %p114 = por %p112, %p113
    %p116 = scmp.ne.s32.totalorder %s99, %s115
    %p117 = scmp.eq.s32.totalorder %s16, 0
    %p118 = por %p116, %p117
    %s119 = ssub.s32 %s18, %s32
    %p120 = scmp.eq.s32.totalorder %s119, 0
    %s122 = sadd.s32 %s121, 1
    %s123 = scalar_select %p120, %s121, %s122
    %p126 = pneg %p120
    %p127 = scmp.eq.s32.totalorder %s10, 1
    %p128 = por %p126, %p127
    %p129 = scmp.ne.s32.totalorder %s121, %s124
    %p130 = scmp.eq.s32.totalorder %s10, 0
    %p131 = por %p129, %p130
    %p132 = scmp.ne.s32.totalorder %s121, %s124
    %p133 = scmp.eq.s32.totalorder %s15, 1
    %p134 = por %p132, %p133
    %p135 = scmp.ne.s32.totalorder %s124, %s125
    %p136 = scmp.eq.s32.totalorder %s15, 0
    %p137 = por %p135, %p136
    %p138 = scmp.ne.s32.totalorder %s124, %s125
    %p139 = scmp.eq.s32.totalorder %s16, 1
    %p140 = por %p138, %p139
    %p142 = scmp.ne.s32.totalorder %s125, %s141
    %p143 = scmp.eq.s32.totalorder %s16, 0
    %p144 = por %p142, %p143
    %s145 = ssub.s32 %s17, %s36
    %s146 = ssub.s32 %s18, %s32
    %s147 = sor.u32 %s145, %s146
    %p148 = scmp.eq.s32.totalorder %s147, 0
    %s150 = sadd.s32 %s149, 1
    %s151 = scalar_select %p148, %s149, %s150
    %p154 = pneg %p148
    %p155 = scmp.eq.s32.totalorder %s10, 1
    %p156 = por %p154, %p155
    %p157 = scmp.ne.s32.totalorder %s149, %s152
    %p158 = scmp.eq.s32.totalorder %s10, 0
    %p159 = por %p157, %p158
    %p160 = scmp.ne.s32.totalorder %s149, %s152
    %p161 = scmp.eq.s32.totalorder %s15, 1
    %p162 = por %p160, %p161
    %p163 = scmp.ne.s32.totalorder %s152, %s153
    %p164 = scmp.eq.s32.totalorder %s15, 0
    %p165 = por %p163, %p164
    %p166 = scmp.ne.s32.totalorder %s152, %s153
    %p167 = scmp.eq.s32.totalorder %s16, 1
    %p168 = por %p166, %p167
    %p170 = scmp.ne.s32.totalorder %s153, %s169
    %p171 = scmp.eq.s32.totalorder %s16, 0
    %p172 = por %p170, %p171
    %p173 = scmp.le.s32.totalorder 1, %s10
    %p174 = scmp.lt.s32.totalorder %s10, 3
    %p175 = pnand %p173, %p174
    %p176 = pneg %p175
    // Predicated region
    $region9: #{resnet_unet_forward.10} parent=5 // pred_check
      _
    $region10: #{resnet_unet_forward.10} parent=5 // pred_check_branch
      %178 = sbr.rel (%p175) target = $region12
    $region11: #{resnet_unet_forward.10} parent=5 // pred_region
      %s179 = ssub.s32 %s10, 1
      // Predicated region
      $region13: #{resnet_unet_forward.10} parent=11 // pred_check
        %p180 = pneg %p85
      $region14: #{resnet_unet_forward.10} parent=11 // pred_check_branch
        %182 = sbr.rel (%p180) target = $region16
      $region15: #{resnet_unet_forward.10} parent=11 // pred_region
        %s183 = smul.u32 8, %s22
        %s184 = smul.u32 2, %s21
        %p185 = scmp.lt.s32.totalorder %s183, 7
        %s186 = scalar_select %p185, %s183, 7
        %p187 = scmp.lt.s32.totalorder %s184, 1
        %s188 = scalar_select %p187, %s184, 1
        %s189 = smul.addr %s186, 2
        %s190 = sadd.s32 %s188, %s189
        %s191 = smul.addr %s190, 4
        %s192 = scalar_lea.vmem %s1, %s191
        %s193 = smul.u32 8, %s22
        %s194 = smul.u32 2, %s21
      $region16: #{resnet_unet_forward.10} parent=11 // pred_fallthru
        _
      // Predicated region
      $region17: #{resnet_unet_forward.10} parent=11 // pred_check
        %p195 = pneg %p111
      $region18: #{resnet_unet_forward.10} parent=11 // pred_check_branch
        %197 = sbr.rel (%p195) target = $region20
      $region19: #{resnet_unet_forward.10} parent=11 // pred_region
        %s198 = smul.u32 2, %s21
        %p199 = scmp.lt.s32.totalorder %s198, 1
        %s200 = scalar_select %p199, %s198, 1
        %s201 = scalar_lea.vmem %s2, %s200
        %s202 = smul.u32 2, %s21
      $region20: #{resnet_unet_forward.10} parent=11 // pred_fallthru
        _
      // Predicated region
      $region21: #{resnet_unet_forward.10} parent=11 // pred_check
        %p203 = pneg %p137
      $region22: #{resnet_unet_forward.10} parent=11 // pred_check_branch
        %205 = sbr.rel (%p203) target = $region24
      $region23: #{resnet_unet_forward.10} parent=11 // pred_region
        %s206 = smul.u32 2, %s21
        %p207 = scmp.lt.s32.totalorder %s206, 1
        %s208 = scalar_select %p207, %s206, 1
        %s209 = scalar_lea.vmem %s3, %s208
        %s210 = smul.u32 2, %s21
      $region24: #{resnet_unet_forward.10} parent=11 // pred_fallthru
        _
    $region12: #{resnet_unet_forward.10} parent=5 // pred_fallthru
      _
    %p211 = scmp.lt.s32.totalorder %s10, 2
    // Predicated region
    $region25: #{resnet_unet_forward.10} parent=5 // pred_check
      %p212 = pneg %p211
    $region26: #{resnet_unet_forward.10} parent=5 // pred_check_branch
      %214 = sbr.rel (%p212) target = $region28
    $region27: #{resnet_unet_forward.10} parent=5 // pred_region
      // Predicated region
      $region29: #{resnet_unet_forward.10} parent=27 // pred_check
        %p215 = pneg %p51
      $region30: #{resnet_unet_forward.10} parent=27 // pred_check_branch
        %217 = sbr.rel (%p215) target = $region32
      $region31: #{resnet_unet_forward.10} parent=27 // pred_region
        %s218 = smul.u32 32, %s17
        %p219 = scmp.lt.s32.totalorder %s218, 63
        %s220 = scalar_select %p219, %s218, 63
        %p221 = scmp.lt.s32.totalorder %s19, 0
        %s222 = scalar_select %p221, %s19, 0
        %s223 = sadd.s32 %s222, %s220
        %s224 = smul.addr %s223, 4
        %s225 = scalar_lea.vmem %s0, %s224
        %s226 = smul.u32 32, %s17
      $region32: #{resnet_unet_forward.10} parent=27 // pred_fallthru
        _
    $region28: #{resnet_unet_forward.10} parent=5 // pred_fallthru
      _
    %p227 = scmp.le.s32.totalorder 1, %s10
    %p228 = scmp.lt.s32.totalorder %s10, 3
    %p229 = pnand %p227, %p228
    %p230 = pneg %p229
    // Predicated region
    $region33: #{resnet_unet_forward.10} parent=5 // pred_check
      _
    $region34: #{resnet_unet_forward.10} parent=5 // pred_check_branch
      %232 = sbr.rel (%p229) target = $region36
    $region35: #{resnet_unet_forward.10} parent=5 // pred_region
      %s233 = ssub.s32 %s10, 1
      %s234 = smul.u32 32, %s20
      %p235 = scmp.lt.s32.totalorder %s234, 63
      %s236 = scalar_select %p235, %s234, 63
      %p237 = scmp.lt.s32.totalorder %s22, 0
      %s238 = scalar_select %p237, %s22, 0
      %s239 = sadd.s32 %s238, %s236
      %s240 = smul.addr %s239, 4
      %s241 = scalar_lea.vmem %s0, %s240
      %p242 = pneg %p57
      %p243 = pneg %p54
      %s244 = smul.u32 8, %s22
      %s245 = smul.u32 2, %s21
      %p246 = scmp.lt.s32.totalorder %s244, 7
      %s247 = scalar_select %p246, %s244, 7
      %p248 = scmp.lt.s32.totalorder %s245, 1
      %s249 = scalar_select %p248, %s245, 1
      %s250 = smul.addr %s247, 2
      %s251 = sadd.s32 %s249, %s250
      %s252 = smul.addr %s251, 4
      %s253 = scalar_lea.vmem %s1, %s252
      %p254 = pneg %p85
      %p255 = pneg %p82
      %s256 = smul.u32 2, %s21
      %p257 = scmp.lt.s32.totalorder %s256, 1
      %s258 = scalar_select %p257, %s256, 1
      %s259 = scalar_lea.vmem %s2, %s258
      %p260 = pneg %p111
      %p261 = pneg %p108
      %s262 = smul.u32 2, %s21
      %p263 = scmp.lt.s32.totalorder %s262, 1
      %s264 = scalar_select %p263, %s262, 1
      %s265 = scalar_lea.vmem %s3, %s264
      %p266 = pneg %p137
      %p267 = pneg %p134
      %p268 = pneg %p165
      %p269 = pneg %p162
      %s270 = smul.u32 32, %s20
      %s271 = smul.u32 2, %s21
      %p272 = scmp.lt.s32.totalorder %s270, 63
      %s273 = scalar_select %p272, %s270, 63
      %p274 = scmp.lt.s32.totalorder %s271, 1
      %s275 = scalar_select %p274, %s271, 1
      %s276 = smul.addr %s273, 2
      %s277 = sadd.s32 %s275, %s276
      %s278 = smul.addr %s277, 8
      %s279 = scalar_lea.vmem %s4, %s278
      %s280 = smul.u32 32, %s20
      %p281 = scmp.lt.s32.totalorder %s280, 63
      %s282 = scalar_select %p281, %s280, 63
      %p283 = scmp.lt.s32.totalorder %s22, 0
      %s284 = scalar_select %p283, %s22, 0
      %s285 = sadd.s32 %s284, %s282
      %s286 = smul.addr %s285, 4
      %s287 = scalar_lea.vmem %s0, %s286
      %s288 = smul.u32 32, %s20
      %s289 = smul.u32 8, %s22
      %s290 = smul.u32 2, %s21
      %p291 = scmp.lt.s32.totalorder %s289, 7
      %s292 = scalar_select %p291, %s289, 7
      %p293 = scmp.lt.s32.totalorder %s290, 1
      %s294 = scalar_select %p293, %s290, 1
      %s295 = smul.addr %s292, 2
      %s296 = sadd.s32 %s294, %s295
      %s297 = smul.addr %s296, 4
      %s298 = scalar_lea.vmem %s1, %s297
      %s299 = smul.u32 8, %s22
      %s300 = smul.u32 2, %s21
      %s301 = smul.u32 2, %s21
      %p302 = scmp.lt.s32.totalorder %s301, 1
      %s303 = scalar_select %p302, %s301, 1
      %s304 = scalar_lea.vmem %s2, %s303
      %s305 = smul.u32 2, %s21
      %s306 = smul.u32 2, %s21
      %p307 = scmp.lt.s32.totalorder %s306, 1
      %s308 = scalar_select %p307, %s306, 1
      %s309 = scalar_lea.vmem %s3, %s308
      %s310 = smul.u32 2, %s21
      %s311 = smul.u32 32, %s20
      %s312 = smul.u32 2, %s21
      %p313 = scmp.lt.s32.totalorder %s311, 63
      %s314 = scalar_select %p313, %s311, 63
      %p315 = scmp.lt.s32.totalorder %s312, 1
      %s316 = scalar_select %p315, %s312, 1
      %s317 = smul.addr %s314, 2
      %s318 = sadd.s32 %s316, %s317
      %s319 = smul.addr %s318, 8
      %s320 = scalar_lea.vmem %s4, %s319
      %s321 = smul.u32 32, %s20
      %s322 = smul.u32 2, %s21
      %p324 = scmp.eq.s32.totalorder %s22, 0
      // Predicated region
      $region37: #{resnet_unet_forward.10} parent=35 // pred_check
        %p325 = pneg %p324
      $region38: #{resnet_unet_forward.10} parent=35 // pred_check_branch
        %327 = sbr.rel (%p325) target = $region40
      $region39: #{resnet_unet_forward.10} parent=35 // pred_region
        %328 = vst [vmem:[#allocation2] sm:$0xff] 0.0
        %329 = vst [vmem:[#allocation2 + $0x8] sm:$0xff] 0.0
        %330 = vst [vmem:[#allocation2 + $0x10] sm:$0xff] 0.0
        %331 = vst [vmem:[#allocation2 + $0x18] sm:$0xff] 0.0
        %332 = vst [vmem:[#allocation2 + $0x20] sm:$0xff] 0.0
        %333 = vst [vmem:[#allocation2 + $0x28] sm:$0xff] 0.0
        %334 = vst [vmem:[#allocation2 + $0x30] sm:$0xff] 0.0
        %335 = vst [vmem:[#allocation2 + $0x38] sm:$0xff] 0.0
        %336 = vst [vmem:[#allocation2 + $0x40] sm:$0xff] 0.0
        %337 = vst [vmem:[#allocation2 + $0x48] sm:$0xff] 0.0
        %338 = vst [vmem:[#allocation2 + $0x50] sm:$0xff] 0.0
        %339 = vst [vmem:[#allocation2 + $0x58] sm:$0xff] 0.0
        %340 = vst [vmem:[#allocation2 + $0x60] sm:$0xff] 0.0
        %341 = vst [vmem:[#allocation2 + $0x68] sm:$0xff] 0.0
        %342 = vst [vmem:[#allocation2 + $0x70] sm:$0xff] 0.0
        %343 = vst [vmem:[#allocation2 + $0x78] sm:$0xff] 0.0
        %344 = vst [vmem:[#allocation2 + $0x80] sm:$0xff] 0.0
        %345 = vst [vmem:[#allocation2 + $0x88] sm:$0xff] 0.0
        %346 = vst [vmem:[#allocation2 + $0x90] sm:$0xff] 0.0
        %347 = vst [vmem:[#allocation2 + $0x98] sm:$0xff] 0.0
        %348 = vst [vmem:[#allocation2 + $0xa0] sm:$0xff] 0.0
        %349 = vst [vmem:[#allocation2 + $0xa8] sm:$0xff] 0.0
        %350 = vst [vmem:[#allocation2 + $0xb0] sm:$0xff] 0.0
        %351 = vst [vmem:[#allocation2 + $0xb8] sm:$0xff] 0.0
        %352 = vst [vmem:[#allocation2 + $0xc0] sm:$0xff] 0.0
        %353 = vst [vmem:[#allocation2 + $0xc8] sm:$0xff] 0.0
        %354 = vst [vmem:[#allocation2 + $0xd0] sm:$0xff] 0.0
        %355 = vst [vmem:[#allocation2 + $0xd8] sm:$0xff] 0.0
        %356 = vst [vmem:[#allocation2 + $0xe0] sm:$0xff] 0.0
        %357 = vst [vmem:[#allocation2 + $0xe8] sm:$0xff] 0.0
        %358 = vst [vmem:[#allocation2 + $0xf0] sm:$0xff] 0.0
        %359 = vst [vmem:[#allocation2 + $0xf8] sm:$0xff] 0.0
        %360 = vst [vmem:[#allocation2 + $0x100] sm:$0xff] 0.0
        %361 = vst [vmem:[#allocation2 + $0x108] sm:$0xff] 0.0
        %362 = vst [vmem:[#allocation2 + $0x110] sm:$0xff] 0.0
        %363 = vst [vmem:[#allocation2 + $0x118] sm:$0xff] 0.0
        %364 = vst [vmem:[#allocation2 + $0x120] sm:$0xff] 0.0
        %365 = vst [vmem:[#allocation2 + $0x128] sm:$0xff] 0.0
        %366 = vst [vmem:[#allocation2 + $0x130] sm:$0xff] 0.0
        %367 = vst [vmem:[#allocation2 + $0x138] sm:$0xff] 0.0
        %368 = vst [vmem:[#allocation2 + $0x140] sm:$0xff] 0.0
        %369 = vst [vmem:[#allocation2 + $0x148] sm:$0xff] 0.0
        %370 = vst [vmem:[#allocation2 + $0x150] sm:$0xff] 0.0
        %371 = vst [vmem:[#allocation2 + $0x158] sm:$0xff] 0.0
        %372 = vst [vmem:[#allocation2 + $0x160] sm:$0xff] 0.0
        %373 = vst [vmem:[#allocation2 + $0x168] sm:$0xff] 0.0
        %374 = vst [vmem:[#allocation2 + $0x170] sm:$0xff] 0.0
        %375 = vst [vmem:[#allocation2 + $0x178] sm:$0xff] 0.0
        %376 = vst [vmem:[#allocation2 + $0x180] sm:$0xff] 0.0
        %377 = vst [vmem:[#allocation2 + $0x188] sm:$0xff] 0.0
        %378 = vst [vmem:[#allocation2 + $0x190] sm:$0xff] 0.0
        %379 = vst [vmem:[#allocation2 + $0x198] sm:$0xff] 0.0
        %380 = vst [vmem:[#allocation2 + $0x1a0] sm:$0xff] 0.0
        %381 = vst [vmem:[#allocation2 + $0x1a8] sm:$0xff] 0.0
        %382 = vst [vmem:[#allocation2 + $0x1b0] sm:$0xff] 0.0
        %383 = vst [vmem:[#allocation2 + $0x1b8] sm:$0xff] 0.0
        %384 = vst [vmem:[#allocation2 + $0x1c0] sm:$0xff] 0.0
        %385 = vst [vmem:[#allocation2 + $0x1c8] sm:$0xff] 0.0
        %386 = vst [vmem:[#allocation2 + $0x1d0] sm:$0xff] 0.0
        %387 = vst [vmem:[#allocation2 + $0x1d8] sm:$0xff] 0.0
        %388 = vst [vmem:[#allocation2 + $0x1e0] sm:$0xff] 0.0
        %389 = vst [vmem:[#allocation2 + $0x1e8] sm:$0xff] 0.0
        %390 = vst [vmem:[#allocation2 + $0x1f0] sm:$0xff] 0.0
        %391 = vst [vmem:[#allocation2 + $0x1f8] sm:$0xff] 0.0
      $region40: #{resnet_unet_forward.10} parent=35 // pred_fallthru
        _
      %v392 = vld [vmem:[#allocation2] sm:$0xff]
      %v393 = vld [vmem:[#allocation2 + $0x8] sm:$0xff]
      %v394 = vld [vmem:[#allocation2 + $0x10] sm:$0xff]
      %v395 = vld [vmem:[#allocation2 + $0x18] sm:$0xff]
      %v396 = vld [vmem:[#allocation2 + $0x20] sm:$0xff]
      %v397 = vld [vmem:[#allocation2 + $0x28] sm:$0xff]
      %v398 = vld [vmem:[#allocation2 + $0x30] sm:$0xff]
      %v399 = vld [vmem:[#allocation2 + $0x38] sm:$0xff]
      %v400 = vld [vmem:[#allocation2 + $0x40] sm:$0xff]
      %v401 = vld [vmem:[#allocation2 + $0x48] sm:$0xff]
      %v402 = vld [vmem:[#allocation2 + $0x50] sm:$0xff]
      %v403 = vld [vmem:[#allocation2 + $0x58] sm:$0xff]
      %v404 = vld [vmem:[#allocation2 + $0x60] sm:$0xff]
      %v405 = vld [vmem:[#allocation2 + $0x68] sm:$0xff]
      %v406 = vld [vmem:[#allocation2 + $0x70] sm:$0xff]
      %v407 = vld [vmem:[#allocation2 + $0x78] sm:$0xff]
      %v408 = vld [vmem:[#allocation2 + $0x80] sm:$0xff]
      %v409 = vld [vmem:[#allocation2 + $0x88] sm:$0xff]
      %v410 = vld [vmem:[#allocation2 + $0x90] sm:$0xff]
      %v411 = vld [vmem:[#allocation2 + $0x98] sm:$0xff]
      %v412 = vld [vmem:[#allocation2 + $0xa0] sm:$0xff]
      %v413 = vld [vmem:[#allocation2 + $0xa8] sm:$0xff]
      %v414 = vld [vmem:[#allocation2 + $0xb0] sm:$0xff]
      %v415 = vld [vmem:[#allocation2 + $0xb8] sm:$0xff]
      %v416 = vld [vmem:[#allocation2 + $0xc0] sm:$0xff]
      %v417 = vld [vmem:[#allocation2 + $0xc8] sm:$0xff]
      %v418 = vld [vmem:[#allocation2 + $0xd0] sm:$0xff]
      %v419 = vld [vmem:[#allocation2 + $0xd8] sm:$0xff]
      %v420 = vld [vmem:[#allocation2 + $0xe0] sm:$0xff]
      %v421 = vld [vmem:[#allocation2 + $0xe8] sm:$0xff]
      %v422 = vld [vmem:[#allocation2 + $0xf0] sm:$0xff]
      %v423 = vld [vmem:[#allocation2 + $0xf8] sm:$0xff]
      %v424 = vld [vmem:[#allocation2 + $0x100] sm:$0xff]
      %v425 = vld [vmem:[#allocation2 + $0x108] sm:$0xff]
      %v426 = vld [vmem:[#allocation2 + $0x110] sm:$0xff]
      %v427 = vld [vmem:[#allocation2 + $0x118] sm:$0xff]
      %v428 = vld [vmem:[#allocation2 + $0x120] sm:$0xff]
      %v429 = vld [vmem:[#allocation2 + $0x128] sm:$0xff]
      %v430 = vld [vmem:[#allocation2 + $0x130] sm:$0xff]
      %v431 = vld [vmem:[#allocation2 + $0x138] sm:$0xff]
      %v432 = vld [vmem:[#allocation2 + $0x140] sm:$0xff]
      %v433 = vld [vmem:[#allocation2 + $0x148] sm:$0xff]
      %v434 = vld [vmem:[#allocation2 + $0x150] sm:$0xff]
      %v435 = vld [vmem:[#allocation2 + $0x158] sm:$0xff]
      %v436 = vld [vmem:[#allocation2 + $0x160] sm:$0xff]
      %v437 = vld [vmem:[#allocation2 + $0x168] sm:$0xff]
      %v438 = vld [vmem:[#allocation2 + $0x170] sm:$0xff]
      %v439 = vld [vmem:[#allocation2 + $0x178] sm:$0xff]
      %v440 = vld [vmem:[#allocation2 + $0x180] sm:$0xff]
      %v441 = vld [vmem:[#allocation2 + $0x188] sm:$0xff]
      %v442 = vld [vmem:[#allocation2 + $0x190] sm:$0xff]
      %v443 = vld [vmem:[#allocation2 + $0x198] sm:$0xff]
      %v444 = vld [vmem:[#allocation2 + $0x1a0] sm:$0xff]
      %v445 = vld [vmem:[#allocation2 + $0x1a8] sm:$0xff]
      %v446 = vld [vmem:[#allocation2 + $0x1b0] sm:$0xff]
      %v447 = vld [vmem:[#allocation2 + $0x1b8] sm:$0xff]
      %v448 = vld [vmem:[#allocation2 + $0x1c0] sm:$0xff]
      %v449 = vld [vmem:[#allocation2 + $0x1c8] sm:$0xff]
      %v450 = vld [vmem:[#allocation2 + $0x1d0] sm:$0xff]
      %v451 = vld [vmem:[#allocation2 + $0x1d8] sm:$0xff]
      %v452 = vld [vmem:[#allocation2 + $0x1e0] sm:$0xff]
      %v453 = vld [vmem:[#allocation2 + $0x1e8] sm:$0xff]
      %v454 = vld [vmem:[#allocation2 + $0x1f0] sm:$0xff]
      %v455 = vld [vmem:[#allocation2 + $0x1f8] sm:$0xff]
      %v456 = vld [vmem:[%s287] sm:$0xf]
      %v457 = vld [vmem:[%s287 + $0x4] sm:$0xf]
      %v458 = vld [vmem:[%s287 + $0x8] sm:$0xf]
      %v459 = vld [vmem:[%s287 + $0xc] sm:$0xf]
      %v460 = vld [vmem:[%s287 + $0x10] sm:$0xf]
      %v461 = vld [vmem:[%s287 + $0x14] sm:$0xf]
      %v462 = vld [vmem:[%s287 + $0x18] sm:$0xf]
      %v463 = vld [vmem:[%s287 + $0x1c] sm:$0xf]
      %v464 = vld [vmem:[%s287 + $0x20] sm:$0xf]
      %v465 = vld [vmem:[%s287 + $0x24] sm:$0xf]
      %v466 = vld [vmem:[%s287 + $0x28] sm:$0xf]
      %v467 = vld [vmem:[%s287 + $0x2c] sm:$0xf]
      %v468 = vld [vmem:[%s287 + $0x30] sm:$0xf]
      %v469 = vld [vmem:[%s287 + $0x34] sm:$0xf]
      %v470 = vld [vmem:[%s287 + $0x38] sm:$0xf]
      %v471 = vld [vmem:[%s287 + $0x3c] sm:$0xf]
      %v472 = vld [vmem:[%s287 + $0x40] sm:$0xf]
      %v473 = vld [vmem:[%s287 + $0x44] sm:$0xf]
      %v474 = vld [vmem:[%s287 + $0x48] sm:$0xf]
      %v475 = vld [vmem:[%s287 + $0x4c] sm:$0xf]
      %v476 = vld [vmem:[%s287 + $0x50] sm:$0xf]
      %v477 = vld [vmem:[%s287 + $0x54] sm:$0xf]
      %v478 = vld [vmem:[%s287 + $0x58] sm:$0xf]
      %v479 = vld [vmem:[%s287 + $0x5c] sm:$0xf]
      %v480 = vld [vmem:[%s287 + $0x60] sm:$0xf]
      %v481 = vld [vmem:[%s287 + $0x64] sm:$0xf]
      %v482 = vld [vmem:[%s287 + $0x68] sm:$0xf]
      %v483 = vld [vmem:[%s287 + $0x6c] sm:$0xf]
      %v484 = vld [vmem:[%s287 + $0x70] sm:$0xf]
      %v485 = vld [vmem:[%s287 + $0x74] sm:$0xf]
      %v486 = vld [vmem:[%s287 + $0x78] sm:$0xf]
      %v487 = vld [vmem:[%s287 + $0x7c] sm:$0xf]
      %v488 = vld [vmem:[%s298] sm:$0xff]
      %v489 = vld [vmem:[%s298 + $0x8] sm:$0xff]
      %v490 = vld [vmem:[%s298 + $0x10] sm:$0xff]
      %v491 = vld [vmem:[%s298 + $0x18] sm:$0xff]
      %v492 = vld [vmem:[%s298 + $0x20] sm:$0xff]
      %v493 = vld [vmem:[%s298 + $0x28] sm:$0xff]
      %v494 = vld [vmem:[%s298 + $0x30] sm:$0xff]
      %v495 = vld [vmem:[%s298 + $0x38] sm:$0xff]
      %v528 = vunpack.c.l.b16 %v456
      %v529 = vunpack.c.l.b16 %v457
      %v530 = vunpack.c.l.b16 %v458
      %v531 = vunpack.c.l.b16 %v459
      %v532 = vunpack.c.l.b16 %v460
      %v533 = vunpack.c.l.b16 %v461
      %v534 = vunpack.c.l.b16 %v462
      %v535 = vunpack.c.l.b16 %v463
      %v536 = vunpack.c.l.b16 %v464
      %v537 = vunpack.c.l.b16 %v465
      %v538 = vunpack.c.l.b16 %v466
      %v539 = vunpack.c.l.b16 %v467
      %v540 = vunpack.c.l.b16 %v468
      %v541 = vunpack.c.l.b16 %v469
      %v542 = vunpack.c.l.b16 %v470
      %v543 = vunpack.c.l.b16 %v471
      %v544 = vunpack.c.l.b16 %v472
      %v545 = vunpack.c.l.b16 %v473
      %v546 = vunpack.c.l.b16 %v474
      %v547 = vunpack.c.l.b16 %v475
      %v548 = vunpack.c.l.b16 %v476
      %v549 = vunpack.c.l.b16 %v477
      %v550 = vunpack.c.l.b16 %v478
      %v551 = vunpack.c.l.b16 %v479
      %v552 = vunpack.c.l.b16 %v480
      %v553 = vunpack.c.l.b16 %v481
      %v554 = vunpack.c.l.b16 %v482
      %v555 = vunpack.c.l.b16 %v483
      %v556 = vunpack.c.l.b16 %v484
      %v557 = vunpack.c.l.b16 %v485
      %v558 = vunpack.c.l.b16 %v486
      %v559 = vunpack.c.l.b16 %v487
      %v560 = vpack.c.b16 %v529, %v528
      %v561 = vpack.c.b16 %v531, %v530
      %v562 = vpack.c.b16 %v533, %v532
      %v563 = vpack.c.b16 %v535, %v534
      %v564 = vpack.c.b16 %v537, %v536
      %v565 = vpack.c.b16 %v539, %v538
      %v566 = vpack.c.b16 %v541, %v540
      %v567 = vpack.c.b16 %v543, %v542
      %v568 = vpack.c.b16 %v545, %v544
      %v569 = vpack.c.b16 %v547, %v546
      %v570 = vpack.c.b16 %v549, %v548
      %v571 = vpack.c.b16 %v551, %v550
      %v572 = vpack.c.b16 %v553, %v552
      %v573 = vpack.c.b16 %v555, %v554
      %v574 = vpack.c.b16 %v557, %v556
      %v575 = vpack.c.b16 %v559, %v558
      %v584 = vunpack.c.l.b16 %v488
      %v585 = vunpack.c.h.b16 %v488
      %v586 = vunpack.c.l.b16 %v489
      %v587 = vunpack.c.h.b16 %v489
      %v588 = vunpack.c.l.b16 %v490
      %v589 = vunpack.c.h.b16 %v490
      %v590 = vunpack.c.l.b16 %v491
      %v591 = vunpack.c.h.b16 %v491
      %v592 = vunpack.c.l.b16 %v492
      %v593 = vunpack.c.h.b16 %v492
      %v594 = vunpack.c.l.b16 %v493
      %v595 = vunpack.c.h.b16 %v493
      %v596 = vunpack.c.l.b16 %v494
      %v597 = vunpack.c.h.b16 %v494
      %v598 = vunpack.c.l.b16 %v495
      %v599 = vunpack.c.h.b16 %v495
      %v600 = vpack.c.b16 %v586, %v584
      %v601 = vpack.c.b16 %v587, %v585
      %v602 = vpack.c.b16 %v590, %v588
      %v603 = vpack.c.b16 %v591, %v589
      %v604 = vpack.c.b16 %v594, %v592
      %v605 = vpack.c.b16 %v595, %v593
      %v606 = vpack.c.b16 %v598, %v596
      %v607 = vpack.c.b16 %v599, %v597
      %vm616 = vcmask 523264
      %v618 = vsel %vm616, %v560, 0
      %v621 = vsel %vm616, %v561, 0
      %v624 = vsel %vm616, %v562, 0
      %v627 = vsel %vm616, %v563, 0
      %v630 = vsel %vm616, %v564, 0
      %v633 = vsel %vm616, %v565, 0
      %v636 = vsel %vm616, %v566, 0
      %v639 = vsel %vm616, %v567, 0
      %v642 = vsel %vm616, %v568, 0
      %v645 = vsel %vm616, %v569, 0
      %v648 = vsel %vm616, %v570, 0
      %v651 = vsel %vm616, %v571, 0
      %v654 = vsel %vm616, %v572, 0
      %v657 = vsel %vm616, %v573, 0
      %v660 = vsel %vm616, %v574, 0
      %v663 = vsel %vm616, %v575, 0
      %665 = vmatprep.subr.bf16.mxu0 %v601
      %666 = vmatpush1.bf16.msra.mxu0 %v600
      %667 = vmatprep.subr.bf16.mxu0 %v603
      %668 = vmatpush1.bf16.msra.mxu0 %v602
      %669 = vmatprep.subr.bf16.mxu0 %v605
      %670 = vmatpush1.bf16.msra.mxu0 %v604
      %671 = vmatprep.subr.bf16.mxu0 %v607
      %672 = vmatpush1.bf16.msra.mxu0 %v606
      %673 = vmatprep.subr.bf16.mxu0 0
      %674 = vmatpush1.bf16.msra.mxu0 0
      %675 = vmatprep.subr.bf16.mxu0 0
      %676 = vmatpush1.bf16.msra.mxu0 0
      %677 = vmatprep.subr.bf16.mxu0 0
      %678 = vmatpush1.bf16.msra.mxu0 0
      %679 = vmatprep.subr.bf16.mxu0 0
      %680 = vmatpush1.bf16.msra.mxu0 0
      %681 = vmatprep.subr.bf16.mxu0 0
      %682 = vmatpush1.bf16.msra.mxu0 0
      %683 = vmatprep.subr.bf16.mxu0 0
      %684 = vmatpush1.bf16.msra.mxu0 0
      %685 = vmatprep.subr.bf16.mxu0 0
      %686 = vmatpush1.bf16.msra.mxu0 0
      %687 = vmatprep.subr.bf16.mxu0 0
      %688 = vmatpush1.bf16.msra.mxu0 0
      %689 = vmatprep.subr.bf16.mxu0 0
      %690 = vmatpush1.bf16.msra.mxu0 0
      %691 = vmatprep.subr.bf16.mxu0 0
      %692 = vmatpush1.bf16.msra.mxu0 0
      %693 = vmatprep.subr.bf16.mxu0 0
      %694 = vmatpush1.bf16.msra.mxu0 0
      %695 = vmatprep.subr.bf16.mxu0 0
      %696 = vmatpush1.bf16.msra.mxu0 0
      %697 = vmatprep.mubr.bf16.mxu0 0
      %698 = vmatmul.mubr.bf16.gmra.mrb[0].mxu0 %v618
      %v699 = vpop.f32.mrb[0].mxu0
      %v700 = vadd.f32 0.0, %v699
      %v701 = vpop.f32.mrb[0].mxu0
      %v702 = vadd.f32 0.0, %v701
      %v703 = vpop.f32.mrb[0].mxu0
      %v704 = vadd.f32 0.0, %v703
      %v705 = vpop.f32.mrb[0].mxu0
      %v706 = vadd.f32 0.0, %v705
      %707 = vmatprep.mubr.bf16.mxu0 0
      %708 = vmatmul.mubr.bf16.gmra.mrb[0].mxu0 %v621
      %v709 = vpop.f32.mrb[0].mxu0
      %v710 = vadd.f32 0.0, %v709
      %v711 = vpop.f32.mrb[0].mxu0
      %v712 = vadd.f32 0.0, %v711
      %v713 = vpop.f32.mrb[0].mxu0
      %v714 = vadd.f32 0.0, %v713
      %v715 = vpop.f32.mrb[0].mxu0
      %v716 = vadd.f32 0.0, %v715
      %717 = vmatprep.mubr.bf16.mxu0 0
      %718 = vmatmul.mubr.bf16.gmra.mrb[0].mxu0 %v624
      %v719 = vpop.f32.mrb[0].mxu0
      %v720 = vadd.f32 0.0, %v719
      %v721 = vpop.f32.mrb[0].mxu0
      %v722 = vadd.f32 0.0, %v721
      %v723 = vpop.f32.mrb[0].mxu0
      %v724 = vadd.f32 0.0, %v723
      %v725 = vpop.f32.mrb[0].mxu0
      %v726 = vadd.f32 0.0, %v725
      %727 = vmatprep.mubr.bf16.mxu0 0
      %728 = vmatmul.mubr.bf16.gmra.mrb[0].mxu0 %v627
      %v729 = vpop.f32.mrb[0].mxu0
      %v730 = vadd.f32 0.0, %v729
      %v731 = vpop.f32.mrb[0].mxu0
      %v732 = vadd.f32 0.0, %v731
      %v733 = vpop.f32.mrb[0].mxu0
      %v734 = vadd.f32 0.0, %v733
      %v735 = vpop.f32.mrb[0].mxu0
      %v736 = vadd.f32 0.0, %v735
      %737 = vmatprep.mubr.bf16.mxu0 0
      %738 = vmatmul.mubr.bf16.gmra.mrb[0].mxu0 %v630
      %v739 = vpop.f32.mrb[0].mxu0
      %v740 = vadd.f32 0.0, %v739
      %v741 = vpop.f32.mrb[0].mxu0
      %v742 = vadd.f32 0.0, %v741
      %v743 = vpop.f32.mrb[0].mxu0
      %v744 = vadd.f32 0.0, %v743
      %v745 = vpop.f32.mrb[0].mxu0
      %v746 = vadd.f32 0.0, %v745
      %747 = vmatprep.mubr.bf16.mxu0 0
      %748 = vmatmul.mubr.bf16.gmra.mrb[0].mxu0 %v633
      %v749 = vpop.f32.mrb[0].mxu0
      %v750 = vadd.f32 0.0, %v749
      %v751 = vpop.f32.mrb[0].mxu0
      %v752 = vadd.f32 0.0, %v751
      %v753 = vpop.f32.mrb[0].mxu0
      %v754 = vadd.f32 0.0, %v753
      %v755 = vpop.f32.mrb[0].mxu0
      %v756 = vadd.f32 0.0, %v755
      %757 = vmatprep.mubr.bf16.mxu0 0
      %758 = vmatmul.mubr.bf16.gmra.mrb[0].mxu0 %v636
      %v759 = vpop.f32.mrb[0].mxu0
      %v760 = vadd.f32 0.0, %v759
      %v761 = vpop.f32.mrb[0].mxu0
      %v762 = vadd.f32 0.0, %v761
      %v763 = vpop.f32.mrb[0].mxu0
      %v764 = vadd.f32 0.0, %v763
      %v765 = vpop.f32.mrb[0].mxu0
      %v766 = vadd.f32 0.0, %v765
      %767 = vmatprep.mubr.bf16.mxu0 0
      %768 = vmatmul.mubr.bf16.gmra.mrb[0].mxu0 %v639
      %v769 = vpop.f32.mrb[0].mxu0
      %v770 = vadd.f32 0.0, %v769
      %v771 = vpop.f32.mrb[0].mxu0
      %v772 = vadd.f32 0.0, %v771
      %v773 = vpop.f32.mrb[0].mxu0
      %v774 = vadd.f32 0.0, %v773
      %v775 = vpop.f32.mrb[0].mxu0
      %v776 = vadd.f32 0.0, %v775
      %777 = vmatprep.mubr.bf16.mxu0 0
      %778 = vmatmul.mubr.bf16.gmra.mrb[0].mxu0 %v642
      %v779 = vpop.f32.mrb[0].mxu0
      %v780 = vadd.f32 0.0, %v779
      %v781 = vpop.f32.mrb[0].mxu0
      %v782 = vadd.f32 0.0, %v781
      %v783 = vpop.f32.mrb[0].mxu0
      %v784 = vadd.f32 0.0, %v783
      %v785 = vpop.f32.mrb[0].mxu0
      %v786 = vadd.f32 0.0, %v785
      %787 = vmatprep.mubr.bf16.mxu0 0
      %788 = vmatmul.mubr.bf16.gmra.mrb[0].mxu0 %v645
      %v789 = vpop.f32.mrb[0].mxu0
      %v790 = vadd.f32 0.0, %v789
      %v791 = vpop.f32.mrb[0].mxu0
      %v792 = vadd.f32 0.0, %v791
      %v793 = vpop.f32.mrb[0].mxu0
      %v794 = vadd.f32 0.0, %v793
      %v795 = vpop.f32.mrb[0].mxu0
      %v796 = vadd.f32 0.0, %v795
      %797 = vmatprep.mubr.bf16.mxu0 0
      %798 = vmatmul.mubr.bf16.gmra.mrb[0].mxu0 %v648
      %v799 = vpop.f32.mrb[0].mxu0
      %v800 = vadd.f32 0.0, %v799
      %v801 = vpop.f32.mrb[0].mxu0
      %v802 = vadd.f32 0.0, %v801
      %v803 = vpop.f32.mrb[0].mxu0
      %v804 = vadd.f32 0.0, %v803
      %v805 = vpop.f32.mrb[0].mxu0
      %v806 = vadd.f32 0.0, %v805
      %807 = vmatprep.mubr.bf16.mxu0 0
      %808 = vmatmul.mubr.bf16.gmra.mrb[0].mxu0 %v651
      %v809 = vpop.f32.mrb[0].mxu0
      %v810 = vadd.f32 0.0, %v809
      %v811 = vpop.f32.mrb[0].mxu0
      %v812 = vadd.f32 0.0, %v811
      %v813 = vpop.f32.mrb[0].mxu0
      %v814 = vadd.f32 0.0, %v813
      %v815 = vpop.f32.mrb[0].mxu0
      %v816 = vadd.f32 0.0, %v815
      %817 = vmatprep.mubr.bf16.mxu0 0
      %818 = vmatmul.mubr.bf16.gmra.mrb[0].mxu0 %v654
      %v819 = vpop.f32.mrb[0].mxu0
      %v820 = vadd.f32 0.0, %v819
      %v821 = vpop.f32.mrb[0].mxu0
      %v822 = vadd.f32 0.0, %v821
      %v823 = vpop.f32.mrb[0].mxu0
      %v824 = vadd.f32 0.0, %v823
      %v825 = vpop.f32.mrb[0].mxu0
      %v826 = vadd.f32 0.0, %v825
      %827 = vmatprep.mubr.bf16.mxu0 0
      %828 = vmatmul.mubr.bf16.gmra.mrb[0].mxu0 %v657
      %v829 = vpop.f32.mrb[0].mxu0
      %v830 = vadd.f32 0.0, %v829
      %v831 = vpop.f32.mrb[0].mxu0
      %v832 = vadd.f32 0.0, %v831
      %v833 = vpop.f32.mrb[0].mxu0
      %v834 = vadd.f32 0.0, %v833
      %v835 = vpop.f32.mrb[0].mxu0
      %v836 = vadd.f32 0.0, %v835
      %837 = vmatprep.mubr.bf16.mxu0 0
      %838 = vmatmul.mubr.bf16.gmra.mrb[0].mxu0 %v660
      %v839 = vpop.f32.mrb[0].mxu0
      %v840 = vadd.f32 0.0, %v839
      %v841 = vpop.f32.mrb[0].mxu0
      %v842 = vadd.f32 0.0, %v841
      %v843 = vpop.f32.mrb[0].mxu0
      %v844 = vadd.f32 0.0, %v843
      %v845 = vpop.f32.mrb[0].mxu0
      %v846 = vadd.f32 0.0, %v845
      %847 = vmatprep.mubr.bf16.mxu0 0
      %848 = vmatmul.mubr.bf16.gmra.mrb[0].mxu0 %v663
      %v849 = vpop.f32.mrb[0].mxu0
      %v850 = vadd.f32 0.0, %v849
      %v851 = vpop.f32.mrb[0].mxu0
      %v852 = vadd.f32 0.0, %v851
      %v853 = vpop.f32.mrb[0].mxu0
      %v854 = vadd.f32 0.0, %v853
      %v855 = vpop.f32.mrb[0].mxu0
      %v856 = vadd.f32 0.0, %v855
      %857 = vdwg.mxu0
      %v858 = vadd.f32 %v392, %v700
      %v859 = vadd.f32 %v393, %v702
      %v860 = vadd.f32 %v394, %v704
      %v861 = vadd.f32 %v395, %v706
      %v862 = vadd.f32 %v396, %v710
      %v863 = vadd.f32 %v397, %v712
      %v864 = vadd.f32 %v398, %v714
      %v865 = vadd.f32 %v399, %v716
      %v866 = vadd.f32 %v400, %v720
      %v867 = vadd.f32 %v401, %v722
      %v868 = vadd.f32 %v402, %v724
      %v869 = vadd.f32 %v403, %v726
      %v870 = vadd.f32 %v404, %v730
      %v871 = vadd.f32 %v405, %v732
      %v872 = vadd.f32 %v406, %v734
      %v873 = vadd.f32 %v407, %v736
      %v874 = vadd.f32 %v408, %v740
      %v875 = vadd.f32 %v409, %v742
      %v876 = vadd.f32 %v410, %v744
      %v877 = vadd.f32 %v411, %v746
      %v878 = vadd.f32 %v412, %v750
      %v879 = vadd.f32 %v413, %v752
      %v880 = vadd.f32 %v414, %v754
      %v881 = vadd.f32 %v415, %v756
      %v882 = vadd.f32 %v416, %v760
      %v883 = vadd.f32 %v417, %v762
      %v884 = vadd.f32 %v418, %v764
      %v885 = vadd.f32 %v419, %v766
      %v886 = vadd.f32 %v420, %v770
      %v887 = vadd.f32 %v421, %v772
      %v888 = vadd.f32 %v422, %v774
      %v889 = vadd.f32 %v423, %v776
      %v890 = vadd.f32 %v424, %v780
      %v891 = vadd.f32 %v425, %v782
      %v892 = vadd.f32 %v426, %v784
      %v893 = vadd.f32 %v427, %v786
      %v894 = vadd.f32 %v428, %v790
      %v895 = vadd.f32 %v429, %v792
      %v896 = vadd.f32 %v430, %v794
      %v897 = vadd.f32 %v431, %v796
      %v898 = vadd.f32 %v432, %v800
      %v899 = vadd.f32 %v433, %v802
      %v900 = vadd.f32 %v434, %v804
      %v901 = vadd.f32 %v435, %v806
      %v902 = vadd.f32 %v436, %v810
      %v903 = vadd.f32 %v437, %v812
      %v904 = vadd.f32 %v438, %v814
      %v905 = vadd.f32 %v439, %v816
      %v906 = vadd.f32 %v440, %v820
      %v907 = vadd.f32 %v441, %v822
      %v908 = vadd.f32 %v442, %v824
      %v909 = vadd.f32 %v443, %v826
      %v910 = vadd.f32 %v444, %v830
      %v911 = vadd.f32 %v445, %v832
      %v912 = vadd.f32 %v446, %v834
      %v913 = vadd.f32 %v447, %v836
      %v914 = vadd.f32 %v448, %v840
      %v915 = vadd.f32 %v449, %v842
      %v916 = vadd.f32 %v450, %v844
      %v917 = vadd.f32 %v451, %v846
      %v918 = vadd.f32 %v452, %v850
      %v919 = vadd.f32 %v453, %v852
      %v920 = vadd.f32 %v454, %v854
      %v921 = vadd.f32 %v455, %v856
      %922 = vst [vmem:[#allocation2] sm:$0xff] %v858
      %923 = vst [vmem:[#allocation2 + $0x8] sm:$0xff] %v859
      %924 = vst [vmem:[#allocation2 + $0x10] sm:$0xff] %v860
      %925 = vst [vmem:[#allocation2 + $0x18] sm:$0xff] %v861
      %926 = vst [vmem:[#allocation2 + $0x20] sm:$0xff] %v862
      %927 = vst [vmem:[#allocation2 + $0x28] sm:$0xff] %v863
      %928 = vst [vmem:[#allocation2 + $0x30] sm:$0xff] %v864
      %929 = vst [vmem:[#allocation2 + $0x38] sm:$0xff] %v865
      %930 = vst [vmem:[#allocation2 + $0x40] sm:$0xff] %v866
      %931 = vst [vmem:[#allocation2 + $0x48] sm:$0xff] %v867
      %932 = vst [vmem:[#allocation2 + $0x50] sm:$0xff] %v868
      %933 = vst [vmem:[#allocation2 + $0x58] sm:$0xff] %v869
      %934 = vst [vmem:[#allocation2 + $0x60] sm:$0xff] %v870
      %935 = vst [vmem:[#allocation2 + $0x68] sm:$0xff] %v871
      %936 = vst [vmem:[#allocation2 + $0x70] sm:$0xff] %v872
      %937 = vst [vmem:[#allocation2 + $0x78] sm:$0xff] %v873
      %938 = vst [vmem:[#allocation2 + $0x80] sm:$0xff] %v874
      %939 = vst [vmem:[#allocation2 + $0x88] sm:$0xff] %v875
      %940 = vst [vmem:[#allocation2 + $0x90] sm:$0xff] %v876
      %941 = vst [vmem:[#allocation2 + $0x98] sm:$0xff] %v877
      %942 = vst [vmem:[#allocation2 + $0xa0] sm:$0xff] %v878
      %943 = vst [vmem:[#allocation2 + $0xa8] sm:$0xff] %v879
      %944 = vst [vmem:[#allocation2 + $0xb0] sm:$0xff] %v880
      %945 = vst [vmem:[#allocation2 + $0xb8] sm:$0xff] %v881
      %946 = vst [vmem:[#allocation2 + $0xc0] sm:$0xff] %v882
      %947 = vst [vmem:[#allocation2 + $0xc8] sm:$0xff] %v883
      %948 = vst [vmem:[#allocation2 + $0xd0] sm:$0xff] %v884
      %949 = vst [vmem:[#allocation2 + $0xd8] sm:$0xff] %v885
      %950 = vst [vmem:[#allocation2 + $0xe0] sm:$0xff] %v886
      %951 = vst [vmem:[#allocation2 + $0xe8] sm:$0xff] %v887
      %952 = vst [vmem:[#allocation2 + $0xf0] sm:$0xff] %v888
      %953 = vst [vmem:[#allocation2 + $0xf8] sm:$0xff] %v889
      %954 = vst [vmem:[#allocation2 + $0x100] sm:$0xff] %v890
      %955 = vst [vmem:[#allocation2 + $0x108] sm:$0xff] %v891
      %956 = vst [vmem:[#allocation2 + $0x110] sm:$0xff] %v892
      %957 = vst [vmem:[#allocation2 + $0x118] sm:$0xff] %v893
      %958 = vst [vmem:[#allocation2 + $0x120] sm:$0xff] %v894
      %959 = vst [vmem:[#allocation2 + $0x128] sm:$0xff] %v895
      %960 = vst [vmem:[#allocation2 + $0x130] sm:$0xff] %v896
      %961 = vst [vmem:[#allocation2 + $0x138] sm:$0xff] %v897
      %962 = vst [vmem:[#allocation2 + $0x140] sm:$0xff] %v898
      %963 = vst [vmem:[#allocation2 + $0x148] sm:$0xff] %v899
      %964 = vst [vmem:[#allocation2 + $0x150] sm:$0xff] %v900
      %965 = vst [vmem:[#allocation2 + $0x158] sm:$0xff] %v901
      %966 = vst [vmem:[#allocation2 + $0x160] sm:$0xff] %v902
      %967 = vst [vmem:[#allocation2 + $0x168] sm:$0xff] %v903
      %968 = vst [vmem:[#allocation2 + $0x170] sm:$0xff] %v904
      %969 = vst [vmem:[#allocation2 + $0x178] sm:$0xff] %v905
      %970 = vst [vmem:[#allocation2 + $0x180] sm:$0xff] %v906
      %971 = vst [vmem:[#allocation2 + $0x188] sm:$0xff] %v907
      %972 = vst [vmem:[#allocation2 + $0x190] sm:$0xff] %v908
      %973 = vst [vmem:[#allocation2 + $0x198] sm:$0xff] %v909
      %974 = vst [vmem:[#allocation2 + $0x1a0] sm:$0xff] %v910
      %975 = vst [vmem:[#allocation2 + $0x1a8] sm:$0xff] %v911
      %976 = vst [vmem:[#allocation2 + $0x1b0] sm:$0xff] %v912
      %977 = vst [vmem:[#allocation2 + $0x1b8] sm:$0xff] %v913
      %978 = vst [vmem:[#allocation2 + $0x1c0] sm:$0xff] %v914
      %979 = vst [vmem:[#allocation2 + $0x1c8] sm:$0xff] %v915
      %980 = vst [vmem:[#allocation2 + $0x1d0] sm:$0xff] %v916
      %981 = vst [vmem:[#allocation2 + $0x1d8] sm:$0xff] %v917
      %982 = vst [vmem:[#allocation2 + $0x1e0] sm:$0xff] %v918
      %983 = vst [vmem:[#allocation2 + $0x1e8] sm:$0xff] %v919
      %984 = vst [vmem:[#allocation2 + $0x1f0] sm:$0xff] %v920
      %985 = vst [vmem:[#allocation2 + $0x1f8] sm:$0xff] %v921
      // Predicated region
      $region41: #{resnet_unet_forward.10} parent=35 // pred_check
        %p986 = pneg %p324
      $region42: #{resnet_unet_forward.10} parent=35 // pred_check_branch
        %988 = sbr.rel (%p986) target = $region44
      $region43: #{resnet_unet_forward.10} parent=35 // pred_region
        %v989 = vld [vmem:[#allocation2] sm:$0xff]
        %v990 = vld [vmem:[#allocation2 + $0x8] sm:$0xff]
        %v991 = vld [vmem:[#allocation2 + $0x10] sm:$0xff]
        %v992 = vld [vmem:[#allocation2 + $0x18] sm:$0xff]
        %v993 = vld [vmem:[#allocation2 + $0x20] sm:$0xff]
        %v994 = vld [vmem:[#allocation2 + $0x28] sm:$0xff]
        %v995 = vld [vmem:[#allocation2 + $0x30] sm:$0xff]
        %v996 = vld [vmem:[#allocation2 + $0x38] sm:$0xff]
        %v997 = vld [vmem:[#allocation2 + $0x40] sm:$0xff]
        %v998 = vld [vmem:[#allocation2 + $0x48] sm:$0xff]
        %v999 = vld [vmem:[#allocation2 + $0x50] sm:$0xff]
        %v1000 = vld [vmem:[#allocation2 + $0x58] sm:$0xff]
        %v1001 = vld [vmem:[#allocation2 + $0x60] sm:$0xff]
        %v1002 = vld [vmem:[#allocation2 + $0x68] sm:$0xff]
        %v1003 = vld [vmem:[#allocation2 + $0x70] sm:$0xff]
        %v1004 = vld [vmem:[#allocation2 + $0x78] sm:$0xff]
        %v1005 = vld [vmem:[#allocation2 + $0x80] sm:$0xff]
        %v1006 = vld [vmem:[#allocation2 + $0x88] sm:$0xff]
        %v1007 = vld [vmem:[#allocation2 + $0x90] sm:$0xff]
        %v1008 = vld [vmem:[#allocation2 + $0x98] sm:$0xff]
        %v1009 = vld [vmem:[#allocation2 + $0xa0] sm:$0xff]
        %v1010 = vld [vmem:[#allocation2 + $0xa8] sm:$0xff]
        %v1011 = vld [vmem:[#allocation2 + $0xb0] sm:$0xff]
        %v1012 = vld [vmem:[#allocation2 + $0xb8] sm:$0xff]
        %v1013 = vld [vmem:[#allocation2 + $0xc0] sm:$0xff]
        %v1014 = vld [vmem:[#allocation2 + $0xc8] sm:$0xff]
        %v1015 = vld [vmem:[#allocation2 + $0xd0] sm:$0xff]
        %v1016 = vld [vmem:[#allocation2 + $0xd8] sm:$0xff]
        %v1017 = vld [vmem:[#allocation2 + $0xe0] sm:$0xff]
        %v1018 = vld [vmem:[#allocation2 + $0xe8] sm:$0xff]
        %v1019 = vld [vmem:[#allocation2 + $0xf0] sm:$0xff]
        %v1020 = vld [vmem:[#allocation2 + $0xf8] sm:$0xff]
        %v1021 = vld [vmem:[#allocation2 + $0x100] sm:$0xff]
        %v1022 = vld [vmem:[#allocation2 + $0x108] sm:$0xff]
        %v1023 = vld [vmem:[#allocation2 + $0x110] sm:$0xff]
        %v1024 = vld [vmem:[#allocation2 + $0x118] sm:$0xff]
        %v1025 = vld [vmem:[#allocation2 + $0x120] sm:$0xff]
        %v1026 = vld [vmem:[#allocation2 + $0x128] sm:$0xff]
        %v1027 = vld [vmem:[#allocation2 + $0x130] sm:$0xff]
        %v1028 = vld [vmem:[#allocation2 + $0x138] sm:$0xff]
        %v1029 = vld [vmem:[#allocation2 + $0x140] sm:$0xff]
        %v1030 = vld [vmem:[#allocation2 + $0x148] sm:$0xff]
        %v1031 = vld [vmem:[#allocation2 + $0x150] sm:$0xff]
        %v1032 = vld [vmem:[#allocation2 + $0x158] sm:$0xff]
        %v1033 = vld [vmem:[#allocation2 + $0x160] sm:$0xff]
        %v1034 = vld [vmem:[#allocation2 + $0x168] sm:$0xff]
        %v1035 = vld [vmem:[#allocation2 + $0x170] sm:$0xff]
        %v1036 = vld [vmem:[#allocation2 + $0x178] sm:$0xff]
        %v1037 = vld [vmem:[#allocation2 + $0x180] sm:$0xff]
        %v1038 = vld [vmem:[#allocation2 + $0x188] sm:$0xff]
        %v1039 = vld [vmem:[#allocation2 + $0x190] sm:$0xff]
        %v1040 = vld [vmem:[#allocation2 + $0x198] sm:$0xff]
        %v1041 = vld [vmem:[#allocation2 + $0x1a0] sm:$0xff]
        %v1042 = vld [vmem:[#allocation2 + $0x1a8] sm:$0xff]
        %v1043 = vld [vmem:[#allocation2 + $0x1b0] sm:$0xff]
        %v1044 = vld [vmem:[#allocation2 + $0x1b8] sm:$0xff]
        %v1045 = vld [vmem:[#allocation2 + $0x1c0] sm:$0xff]
        %v1046 = vld [vmem:[#allocation2 + $0x1c8] sm:$0xff]
        %v1047 = vld [vmem:[#allocation2 + $0x1d0] sm:$0xff]
        %v1048 = vld [vmem:[#allocation2 + $0x1d8] sm:$0xff]
        %v1049 = vld [vmem:[#allocation2 + $0x1e0] sm:$0xff]
        %v1050 = vld [vmem:[#allocation2 + $0x1e8] sm:$0xff]
        %v1051 = vld [vmem:[#allocation2 + $0x1f0] sm:$0xff]
        %v1052 = vld [vmem:[#allocation2 + $0x1f8] sm:$0xff]
        %v1053 = vld [vmem:[%s304] sm:$0x3]
        %v1055 = vlaneseq
        %v1056 = vshrl.u32 %v1055, 7
        %v1057 = vsub.s32 0, %v1056
        %v1058 = vrot.slane %v1053, %v1057
        %v1059 = vlaneseq
        %v1060 = vshrl.u32 %v1059, 7
        %v1061 = vsub.s32 1, %v1060
        %v1062 = vrot.slane %v1053, %v1061
        %v1065 = vmul.f32 %v989, %v1058
        %v1066 = vmul.f32 %v990, %v1062
        %v1067 = vmul.f32 %v991, %v1058
        %v1068 = vmul.f32 %v992, %v1062
        %v1069 = vmul.f32 %v993, %v1058
        %v1070 = vmul.f32 %v994, %v1062
        %v1071 = vmul.f32 %v995, %v1058
        %v1072 = vmul.f32 %v996, %v1062
        %v1073 = vmul.f32 %v997, %v1058
        %v1074 = vmul.f32 %v998, %v1062
        %v1075 = vmul.f32 %v999, %v1058
        %v1076 = vmul.f32 %v1000, %v1062
        %v1077 = vmul.f32 %v1001, %v1058
        %v1078 = vmul.f32 %v1002, %v1062
        %v1079 = vmul.f32 %v1003, %v1058
        %v1080 = vmul.f32 %v1004, %v1062
        %v1081 = vmul.f32 %v1005, %v1058
        %v1082 = vmul.f32 %v1006, %v1062
        %v1083 = vmul.f32 %v1007, %v1058
        %v1084 = vmul.f32 %v1008, %v1062
        %v1085 = vmul.f32 %v1009, %v1058
        %v1086 = vmul.f32 %v1010, %v1062
        %v1087 = vmul.f32 %v1011, %v1058
        %v1088 = vmul.f32 %v1012, %v1062
        %v1089 = vmul.f32 %v1013, %v1058
        %v1090 = vmul.f32 %v1014, %v1062
        %v1091 = vmul.f32 %v1015, %v1058
        %v1092 = vmul.f32 %v1016, %v1062
        %v1093 = vmul.f32 %v1017, %v1058
        %v1094 = vmul.f32 %v1018, %v1062
        %v1095 = vmul.f32 %v1019, %v1058
        %v1096 = vmul.f32 %v1020, %v1062
        %v1097 = vmul.f32 %v1021, %v1058
        %v1098 = vmul.f32 %v1022, %v1062
        %v1099 = vmul.f32 %v1023, %v1058
        %v1100 = vmul.f32 %v1024, %v1062
        %v1101 = vmul.f32 %v1025, %v1058
        %v1102 = vmul.f32 %v1026, %v1062
        %v1103 = vmul.f32 %v1027, %v1058
        %v1104 = vmul.f32 %v1028, %v1062
        %v1105 = vmul.f32 %v1029, %v1058
        %v1106 = vmul.f32 %v1030, %v1062
        %v1107 = vmul.f32 %v1031, %v1058
        %v1108 = vmul.f32 %v1032, %v1062
        %v1109 = vmul.f32 %v1033, %v1058
        %v1110 = vmul.f32 %v1034, %v1062
        %v1111 = vmul.f32 %v1035, %v1058
        %v1112 = vmul.f32 %v1036, %v1062
        %v1113 = vmul.f32 %v1037, %v1058
        %v1114 = vmul.f32 %v1038, %v1062
        %v1115 = vmul.f32 %v1039, %v1058
        %v1116 = vmul.f32 %v1040, %v1062
        %v1117 = vmul.f32 %v1041, %v1058
        %v1118 = vmul.f32 %v1042, %v1062
        %v1119 = vmul.f32 %v1043, %v1058
        %v1120 = vmul.f32 %v1044, %v1062
        %v1121 = vmul.f32 %v1045, %v1058
        %v1122 = vmul.f32 %v1046, %v1062
        %v1123 = vmul.f32 %v1047, %v1058
        %v1124 = vmul.f32 %v1048, %v1062
        %v1125 = vmul.f32 %v1049, %v1058
        %v1126 = vmul.f32 %v1050, %v1062
        %v1127 = vmul.f32 %v1051, %v1058
        %v1128 = vmul.f32 %v1052, %v1062
        %v1129 = vld [vmem:[%s309] sm:$0x3]
        %v1131 = vlaneseq
        %v1132 = vshrl.u32 %v1131, 7
        %v1133 = vsub.s32 0, %v1132
        %v1134 = vrot.slane %v1129, %v1133
        %v1135 = vlaneseq
        %v1136 = vshrl.u32 %v1135, 7
        %v1137 = vsub.s32 1, %v1136
        %v1138 = vrot.slane %v1129, %v1137
        %v1141 = vadd.f32 %v1065, %v1134
        %v1142 = vadd.f32 %v1066, %v1138
        %v1143 = vadd.f32 %v1067, %v1134
        %v1144 = vadd.f32 %v1068, %v1138
        %v1145 = vadd.f32 %v1069, %v1134
        %v1146 = vadd.f32 %v1070, %v1138
        %v1147 = vadd.f32 %v1071, %v1134
        %v1148 = vadd.f32 %v1072, %v1138
        %v1149 = vadd.f32 %v1073, %v1134
        %v1150 = vadd.f32 %v1074, %v1138
        %v1151 = vadd.f32 %v1075, %v1134
        %v1152 = vadd.f32 %v1076, %v1138
        %v1153 = vadd.f32 %v1077, %v1134
        %v1154 = vadd.f32 %v1078, %v1138
        %v1155 = vadd.f32 %v1079, %v1134
        %v1156 = vadd.f32 %v1080, %v1138
        %v1157 = vadd.f32 %v1081, %v1134
        %v1158 = vadd.f32 %v1082, %v1138
        %v1159 = vadd.f32 %v1083, %v1134
        %v1160 = vadd.f32 %v1084, %v1138
        %v1161 = vadd.f32 %v1085, %v1134
        %v1162 = vadd.f32 %v1086, %v1138
        %v1163 = vadd.f32 %v1087, %v1134
        %v1164 = vadd.f32 %v1088, %v1138
        %v1165 = vadd.f32 %v1089, %v1134
        %v1166 = vadd.f32 %v1090, %v1138
        %v1167 = vadd.f32 %v1091, %v1134
        %v1168 = vadd.f32 %v1092, %v1138
        %v1169 = vadd.f32 %v1093, %v1134
        %v1170 = vadd.f32 %v1094, %v1138
        %v1171 = vadd.f32 %v1095, %v1134
        %v1172 = vadd.f32 %v1096, %v1138
        %v1173 = vadd.f32 %v1097, %v1134
        %v1174 = vadd.f32 %v1098, %v1138
        %v1175 = vadd.f32 %v1099, %v1134
        %v1176 = vadd.f32 %v1100, %v1138
        %v1177 = vadd.f32 %v1101, %v1134
        %v1178 = vadd.f32 %v1102, %v1138
        %v1179 = vadd.f32 %v1103, %v1134
        %v1180 = vadd.f32 %v1104, %v1138
        %v1181 = vadd.f32 %v1105, %v1134
        %v1182 = vadd.f32 %v1106, %v1138
        %v1183 = vadd.f32 %v1107, %v1134
        %v1184 = vadd.f32 %v1108, %v1138
        %v1185 = vadd.f32 %v1109, %v1134
        %v1186 = vadd.f32 %v1110, %v1138
        %v1187 = vadd.f32 %v1111, %v1134
        %v1188 = vadd.f32 %v1112, %v1138
        %v1189 = vadd.f32 %v1113, %v1134
        %v1190 = vadd.f32 %v1114, %v1138
        %v1191 = vadd.f32 %v1115, %v1134
        %v1192 = vadd.f32 %v1116, %v1138
        %v1193 = vadd.f32 %v1117, %v1134
        %v1194 = vadd.f32 %v1118, %v1138
        %v1195 = vadd.f32 %v1119, %v1134
        %v1196 = vadd.f32 %v1120, %v1138
        %v1197 = vadd.f32 %v1121, %v1134
        %v1198 = vadd.f32 %v1122, %v1138
        %v1199 = vadd.f32 %v1123, %v1134
        %v1200 = vadd.f32 %v1124, %v1138
        %v1201 = vadd.f32 %v1125, %v1134
        %v1202 = vadd.f32 %v1126, %v1138
        %v1203 = vadd.f32 %v1127, %v1134
        %v1204 = vadd.f32 %v1128, %v1138
        %1205 = vst [vmem:[%s320] sm:$0xff] %v1141
        %1206 = vst [vmem:[%s320 + $0x8] sm:$0xff] %v1142
        %1207 = vst [vmem:[%s320 + $0x10] sm:$0xff] %v1143
        %1208 = vst [vmem:[%s320 + $0x18] sm:$0xff] %v1144
        %1209 = vst [vmem:[%s320 + $0x20] sm:$0xff] %v1145
        %1210 = vst [vmem:[%s320 + $0x28] sm:$0xff] %v1146
        %1211 = vst [vmem:[%s320 + $0x30] sm:$0xff] %v1147
        %1212 = vst [vmem:[%s320 + $0x38] sm:$0xff] %v1148
        %1213 = vst [vmem:[%s320 + $0x40] sm:$0xff] %v1149
        %1214 = vst [vmem:[%s320 + $0x48] sm:$0xff] %v1150
        %1215 = vst [vmem:[%s320 + $0x50] sm:$0xff] %v1151
        %1216 = vst [vmem:[%s320 + $0x58] sm:$0xff] %v1152
        %1217 = vst [vmem:[%s320 + $0x60] sm:$0xff] %v1153
        %1218 = vst [vmem:[%s320 + $0x68] sm:$0xff] %v1154
        %1219 = vst [vmem:[%s320 + $0x70] sm:$0xff] %v1155
        %1220 = vst [vmem:[%s320 + $0x78] sm:$0xff] %v1156
        %1221 = vst [vmem:[%s320 + $0x80] sm:$0xff] %v1157
        %1222 = vst [vmem:[%s320 + $0x88] sm:$0xff] %v1158
        %1223 = vst [vmem:[%s320 + $0x90] sm:$0xff] %v1159
        %1224 = vst [vmem:[%s320 + $0x98] sm:$0xff] %v1160
        %1225 = vst [vmem:[%s320 + $0xa0] sm:$0xff] %v1161
        %1226 = vst [vmem:[%s320 + $0xa8] sm:$0xff] %v1162
        %1227 = vst [vmem:[%s320 + $0xb0] sm:$0xff] %v1163
        %1228 = vst [vmem:[%s320 + $0xb8] sm:$0xff] %v1164
        %1229 = vst [vmem:[%s320 + $0xc0] sm:$0xff] %v1165
        %1230 = vst [vmem:[%s320 + $0xc8] sm:$0xff] %v1166
        %1231 = vst [vmem:[%s320 + $0xd0] sm:$0xff] %v1167
        %1232 = vst [vmem:[%s320 + $0xd8] sm:$0xff] %v1168
        %1233 = vst [vmem:[%s320 + $0xe0] sm:$0xff] %v1169
        %1234 = vst [vmem:[%s320 + $0xe8] sm:$0xff] %v1170
        %1235 = vst [vmem:[%s320 + $0xf0] sm:$0xff] %v1171
        %1236 = vst [vmem:[%s320 + $0xf8] sm:$0xff] %v1172
        %1237 = vst [vmem:[%s320 + $0x100] sm:$0xff] %v1173
        %1238 = vst [vmem:[%s320 + $0x108] sm:$0xff] %v1174
        %1239 = vst [vmem:[%s320 + $0x110] sm:$0xff] %v1175
        %1240 = vst [vmem:[%s320 + $0x118] sm:$0xff] %v1176
        %1241 = vst [vmem:[%s320 + $0x120] sm:$0xff] %v1177
        %1242 = vst [vmem:[%s320 + $0x128] sm:$0xff] %v1178
        %1243 = vst [vmem:[%s320 + $0x130] sm:$0xff] %v1179
        %1244 = vst [vmem:[%s320 + $0x138] sm:$0xff] %v1180
        %1245 = vst [vmem:[%s320 + $0x140] sm:$0xff] %v1181
        %1246 = vst [vmem:[%s320 + $0x148] sm:$0xff] %v1182
        %1247 = vst [vmem:[%s320 + $0x150] sm:$0xff] %v1183
        %1248 = vst [vmem:[%s320 + $0x158] sm:$0xff] %v1184
        %1249 = vst [vmem:[%s320 + $0x160] sm:$0xff] %v1185
        %1250 = vst [vmem:[%s320 + $0x168] sm:$0xff] %v1186
        %1251 = vst [vmem:[%s320 + $0x170] sm:$0xff] %v1187
        %1252 = vst [vmem:[%s320 + $0x178] sm:$0xff] %v1188
        %1253 = vst [vmem:[%s320 + $0x180] sm:$0xff] %v1189
        %1254 = vst [vmem:[%s320 + $0x188] sm:$0xff] %v1190
        %1255 = vst [vmem:[%s320 + $0x190] sm:$0xff] %v1191
        %1256 = vst [vmem:[%s320 + $0x198] sm:$0xff] %v1192
        %1257 = vst [vmem:[%s320 + $0x1a0] sm:$0xff] %v1193
        %1258 = vst [vmem:[%s320 + $0x1a8] sm:$0xff] %v1194
        %1259 = vst [vmem:[%s320 + $0x1b0] sm:$0xff] %v1195
        %1260 = vst [vmem:[%s320 + $0x1b8] sm:$0xff] %v1196
        %1261 = vst [vmem:[%s320 + $0x1c0] sm:$0xff] %v1197
        %1262 = vst [vmem:[%s320 + $0x1c8] sm:$0xff] %v1198
        %1263 = vst [vmem:[%s320 + $0x1d0] sm:$0xff] %v1199
        %1264 = vst [vmem:[%s320 + $0x1d8] sm:$0xff] %v1200
        %1265 = vst [vmem:[%s320 + $0x1e0] sm:$0xff] %v1201
        %1266 = vst [vmem:[%s320 + $0x1e8] sm:$0xff] %v1202
        %1267 = vst [vmem:[%s320 + $0x1f0] sm:$0xff] %v1203
        %1268 = vst [vmem:[%s320 + $0x1f8] sm:$0xff] %v1204
      $region44: #{resnet_unet_forward.10} parent=35 // pred_fallthru
        _
      %s1269 = smul.u32 32, %s20
      %s1270 = smul.u32 2, %s21
      %p1271 = scmp.lt.s32.totalorder %s1269, 63
      %s1272 = scalar_select %p1271, %s1269, 63
      %p1273 = scmp.lt.s32.totalorder %s1270, 1
      %s1274 = scalar_select %p1273, %s1270, 1
      %s1275 = smul.addr %s1272, 2
      %s1276 = sadd.s32 %s1274, %s1275
      %s1277 = smul.addr %s1276, 8
      %s1278 = scalar_lea.vmem %s4, %s1277
      // Predicated region
      $region45: #{resnet_unet_forward.10} parent=35 // pred_check
        %p1279 = pneg %p162
      $region46: #{resnet_unet_forward.10} parent=35 // pred_check_branch
        %1281 = sbr.rel (%p1279) target = $region48
      $region47: #{resnet_unet_forward.10} parent=35 // pred_region
        %s1282 = smul.u32 32, %s20
        %s1283 = smul.u32 2, %s21
      $region48: #{resnet_unet_forward.10} parent=35 // pred_fallthru
        _
    $region36: #{resnet_unet_forward.10} parent=5 // pred_fallthru
      _
    %p1284 = scmp.le.s32.totalorder 2, %s10
    // Predicated region
    $region49: #{resnet_unet_forward.10} parent=5 // pred_check
      %p1285 = pneg %p1284
    $region50: #{resnet_unet_forward.10} parent=5 // pred_check_branch
      %1287 = sbr.rel (%p1285) target = $region52
    $region51: #{resnet_unet_forward.10} parent=5 // pred_region
      %s1288 = ssub.s32 %s10, 2
      // Predicated region
      $region53: #{resnet_unet_forward.10} parent=51 // pred_check
        %p1289 = pneg %p168
      $region54: #{resnet_unet_forward.10} parent=51 // pred_check_branch
        %1291 = sbr.rel (%p1289) target = $region56
      $region55: #{resnet_unet_forward.10} parent=51 // pred_region
        %s1292 = smul.u32 32, %s23
        %s1293 = smul.u32 2, %s24
        %p1294 = scmp.lt.s32.totalorder %s1292, 63
        %s1295 = scalar_select %p1294, %s1292, 63
        %p1296 = scmp.lt.s32.totalorder %s1293, 1
        %s1297 = scalar_select %p1296, %s1293, 1
        %s1298 = smul.addr %s1295, 2
        %s1299 = sadd.s32 %s1297, %s1298
        %s1300 = smul.addr %s1299, 8
        %s1301 = scalar_lea.vmem %s4, %s1300
      $region56: #{resnet_unet_forward.10} parent=51 // pred_fallthru
        _
    $region52: #{resnet_unet_forward.10} parent=5 // pred_fallthru
      _
  $region6: #{resnet_unet_forward.10} parent=0 // loop_footer
    %s14 = sadd.s32 1, %s10
  $region7: #{resnet_unet_forward.10} parent=0 // loop_footer_branch
    %9 = sbr.rel target = $region3
  $region8: #{resnet_unet_forward.10} parent=0 // loop_exit
    _

// kernel: resnet_unet_forward.13
$region0: #{resnet_unet_forward.13}
  #allocation0 [shape = 'u32[]', space=smem, size = 0x4, offset = 0x4, fixed_abs, tag = 'smem constant byte address 0x4 - core index']
  #allocation1 [shape = 'u32[144,128]{1,0:T(1,128)}', space=vmem, size = 0x12000, scoped, tag = 'internal scratch']
  #allocation2 [shape = 'f32[256,128]{1,0:T(8,128)}', space=vmem, size = 0x20000, scoped, tag = 'scratch operand']
  %s0 = inlined_call_operand.vmem [shape: bf16[2048,64], index: 0, kind: input, shape index: {}]
  %s1 = inlined_call_operand.vmem [shape: bf16[64,128], index: 1, kind: input, shape index: {}]
  %s2 = inlined_call_operand.vmem [shape: f32[1,128], index: 2, kind: input, shape index: {}]
  %s3 = inlined_call_operand.vmem [shape: f32[1,128], index: 3, kind: input, shape index: {}]
  %s4 = inlined_call_operand.vmem [shape: f32[2048,128], index: 4, kind: output, shape index: {}]
  %s5 = sld [smem:[#allocation0]]
  $region57: #{resnet_unet_forward.13} parent=0
    _
  %s7 = ssub.s32 1, %s5
  %s8 = scalar_select 0, %s7, %s5
  loop: start=0, step=1, limit=10
  $region2: #{resnet_unet_forward.13} parent=0 // loop_pre_header
    _
  $region3: #{resnet_unet_forward.13} parent=0 // loop_header
    %s10 = sphi 0, %s14
    %p11 = scmp.ge.s32.totalorder %s10, 10
    %s17 = sphi 0, %s36
    %s18 = sphi 0, %s32
    %s19 = sphi 0, %s28
    %s20 = sphi 0, %s17
    %s21 = sphi 0, %s18
    %s22 = sphi 0, %s19
    %s23 = sphi 0, %s20
    %s24 = sphi 0, %s21
    %s25 = sphi 0, %s22
    %s41 = sphi 0, %s43
    %s44 = sphi 0, %s41
    %s45 = sphi 0, %s44
    %s61 = sphi 0, %s45
    %s69 = sphi 0, %s71
    %s72 = sphi 0, %s69
    %s73 = sphi 0, %s72
    %s89 = sphi 0, %s73
    %s95 = sphi 0, %s97
    %s98 = sphi 0, %s95
    %s99 = sphi 0, %s98
    %s115 = sphi 0, %s99
    %s121 = sphi 0, %s123
    %s124 = sphi 0, %s121
    %s125 = sphi 0, %s124
    %s141 = sphi 0, %s125
    %s149 = sphi 0, %s151
    %s152 = sphi 0, %s149
    %s153 = sphi 0, %s152
    %s169 = sphi 0, %s153
  $region4: #{resnet_unet_forward.13} parent=0 // loop_header_branch
    %13 = sbr.rel (%p11) target = $region8
  $region5: #{resnet_unet_forward.13} parent=0 // loop_body
    %s15 = ssub.s32 %s10, 1
    %s16 = ssub.s32 %s10, 2
    %s26 = sadd.s32 1, %s19
    %p27 = scmp.ge.s32.totalorder %s26, 1
    %s28 = scalar_select %p27, 0, %s26
    %s29 = sadd.s32 1, %s18
    %s30 = scalar_select %p27, %s29, %s18
    %p31 = scmp.ge.s32.totalorder %s30, 1
    %s32 = scalar_select %p31, 0, %s30
    %s33 = sadd.s32 1, %s17
    %s34 = scalar_select %p31, %s33, %s17
    %p35 = scmp.ge.s32.totalorder %s34, 8
    %s36 = scalar_select %p35, 0, %s34
    %s37 = ssub.s32 %s17, %s36
    %s38 = ssub.s32 %s19, %s28
    %s39 = sor.u32 %s37, %s38
    %p40 = scmp.eq.s32.totalorder %s39, 0
    %s42 = sadd.s32 %s41, 1
    %s43 = scalar_select %p40, %s41, %s42
    %p46 = pneg %p40
    %p47 = scmp.eq.s32.totalorder %s10, 7
    %p48 = por %p46, %p47
    %p49 = scmp.ne.s32.totalorder %s41, %s44
    %p50 = scmp.eq.s32.totalorder %s10, 0
    %p51 = por %p49, %p50
    %p52 = scmp.ne.s32.totalorder %s41, %s44
    %p53 = scmp.eq.s32.totalorder %s15, 7
    %p54 = por %p52, %p53
    %p55 = scmp.ne.s32.totalorder %s44, %s45
    %p56 = scmp.eq.s32.totalorder %s15, 0
    %p57 = por %p55, %p56
    %p58 = scmp.ne.s32.totalorder %s44, %s45
    %p59 = scmp.eq.s32.totalorder %s16, 7
    %p60 = por %p58, %p59
    %p62 = scmp.ne.s32.totalorder %s45, %s61
    %p63 = scmp.eq.s32.totalorder %s16, 0
    %p64 = por %p62, %p63
    %s65 = ssub.s32 %s19, %s28
    %s66 = ssub.s32 %s18, %s32
    %s67 = sor.u32 %s65, %s66
    %p68 = scmp.eq.s32.totalorder %s67, 0
    %s70 = sadd.s32 %s69, 1
    %s71 = scalar_select %p68, %s69, %s70
    %p74 = pneg %p68
    %p75 = scmp.eq.s32.totalorder %s10, 7
    %p76 = por %p74, %p75
    %p77 = scmp.ne.s32.totalorder %s69, %s72
    %p78 = scmp.eq.s32.totalorder %s10, 0
    %p79 = por %p77, %p78
    %p80 = scmp.ne.s32.totalorder %s69, %s72
    %p81 = scmp.eq.s32.totalorder %s15, 7
    %p82 = por %p80, %p81
    %p83 = scmp.ne.s32.totalorder %s72, %s73
    %p84 = scmp.eq.s32.totalorder %s15, 0
    %p85 = por %p83, %p84
    %p86 = scmp.ne.s32.totalorder %s72, %s73
    %p87 = scmp.eq.s32.totalorder %s16, 7
    %p88 = por %p86, %p87
    %p90 = scmp.ne.s32.totalorder %s73, %s89
    %p91 = scmp.eq.s32.totalorder %s16, 0
    %p92 = por %p90, %p91
    %s93 = ssub.s32 %s18, %s32
    %p94 = scmp.eq.s32.totalorder %s93, 0
    %s96 = sadd.s32 %s95, 1
    %s97 = scalar_select %p94, %s95, %s96
    %p100 = pneg %p94
    %p101 = scmp.eq.s32.totalorder %s10, 7
    %p102 = por %p100, %p101
    %p103 = scmp.ne.s32.totalorder %s95, %s98
    %p104 = scmp.eq.s32.totalorder %s10, 0
    %p105 = por %p103, %p104
    %p106 = scmp.ne.s32.totalorder %s95, %s98
    %p107 = scmp.eq.s32.totalorder %s15, 7
    %p108 = por %p106, %p107
    %p109 = scmp.ne.s32.totalorder %s98, %s99
    %p110 = scmp.eq.s32.totalorder %s15, 0
    %p111 = por %p109, %p110
    %p112 = scmp.ne.s32.totalorder %s98, %s99
    %p113 = scmp.eq.s32.totalorder %s16, 7
    %p114 = por %p112, %p113
    %p116 = scmp.ne.s32.totalorder %s99, %s115
    %p117 = scmp.eq.s32.totalorder %s16, 0
    %p118 = por %p116, %p117
    %s119 = ssub.s32 %s18, %s32
    %p120 = scmp.eq.s32.totalorder %s119, 0
    %s122 = sadd.s32 %s121, 1
    %s123 = scalar_select %p120, %s121, %s122
    %p126 = pneg %p120
    %p127 = scmp.eq.s32.totalorder %s10, 7
    %p128 = por %p126, %p127
    %p129 = scmp.ne.s32.totalorder %s121, %s124
    %p130 = scmp.eq.s32.totalorder %s10, 0
    %p131 = por %p129, %p130
    %p132 = scmp.ne.s32.totalorder %s121, %s124
    %p133 = scmp.eq.s32.totalorder %s15, 7
    %p134 = por %p132, %p133
    %p135 = scmp.ne.s32.totalorder %s124, %s125
    %p136 = scmp.eq.s32.totalorder %s15, 0
    %p137 = por %p135, %p136
    %p138 = scmp.ne.s32.totalorder %s124, %s125
    %p139 = scmp.eq.s32.totalorder %s16, 7
    %p140 = por %p138, %p139
    %p142 = scmp.ne.s32.totalorder %s125, %s141
    %p143 = scmp.eq.s32.totalorder %s16, 0
    %p144 = por %p142, %p143
    %s145 = ssub.s32 %s17, %s36
    %s146 = ssub.s32 %s18, %s32
    %s147 = sor.u32 %s145, %s146
    %p148 = scmp.eq.s32.totalorder %s147, 0
    %s150 = sadd.s32 %s149, 1
    %s151 = scalar_select %p148, %s149, %s150
    %p154 = pneg %p148
    %p155 = scmp.eq.s32.totalorder %s10, 7
    %p156 = por %p154, %p155
    %p157 = scmp.ne.s32.totalorder %s149, %s152
    %p158 = scmp.eq.s32.totalorder %s10, 0
    %p159 = por %p157, %p158
    %p160 = scmp.ne.s32.totalorder %s149, %s152
    %p161 = scmp.eq.s32.totalorder %s15, 7
    %p162 = por %p160, %p161
    %p163 = scmp.ne.s32.totalorder %s152, %s153
    %p164 = scmp.eq.s32.totalorder %s15, 0
    %p165 = por %p163, %p164
    %p166 = scmp.ne.s32.totalorder %s152, %s153
    %p167 = scmp.eq.s32.totalorder %s16, 7
    %p168 = por %p166, %p167
    %p170 = scmp.ne.s32.totalorder %s153, %s169
    %p171 = scmp.eq.s32.totalorder %s16, 0
    %p172 = por %p170, %p171
    %p173 = scmp.le.s32.totalorder 1, %s10
    %p174 = scmp.lt.s32.totalorder %s10, 9
    %p175 = pnand %p173, %p174
    %p176 = pneg %p175
    // Predicated region
    $region9: #{resnet_unet_forward.13} parent=5 // pred_check
      _
    $region10: #{resnet_unet_forward.13} parent=5 // pred_check_branch
      %178 = sbr.rel (%p175) target = $region12
    $region11: #{resnet_unet_forward.13} parent=5 // pred_region
      %s179 = ssub.s32 %s10, 1
      // Predicated region
      $region13: #{resnet_unet_forward.13} parent=11 // pred_check
        %p180 = pneg %p85
      $region14: #{resnet_unet_forward.13} parent=11 // pred_check_branch
        %182 = sbr.rel (%p180) target = $region16
      $region15: #{resnet_unet_forward.13} parent=11 // pred_region
        %s183 = smul.u32 8, %s22
        %p184 = scmp.lt.s32.totalorder %s183, 7
        %s185 = scalar_select %p184, %s183, 7
        %p186 = scmp.lt.s32.totalorder %s21, 0
        %s187 = scalar_select %p186, %s21, 0
        %s188 = sadd.s32 %s187, %s185
        %s189 = smul.addr %s188, 4
        %s190 = scalar_lea.vmem %s1, %s189
        %s191 = smul.u32 8, %s22
      $region16: #{resnet_unet_forward.13} parent=11 // pred_fallthru
        _
      // Predicated region
      $region17: #{resnet_unet_forward.13} parent=11 // pred_check
        %p192 = pneg %p111
      $region18: #{resnet_unet_forward.13} parent=11 // pred_check_branch
        %194 = sbr.rel (%p192) target = $region20
      $region19: #{resnet_unet_forward.13} parent=11 // pred_region
        %p195 = scmp.lt.s32.totalorder %s21, 0
        %s196 = scalar_select %p195, %s21, 0
        %s197 = scalar_lea.vmem %s2, %s196
      $region20: #{resnet_unet_forward.13} parent=11 // pred_fallthru
        _
      // Predicated region
      $region21: #{resnet_unet_forward.13} parent=11 // pred_check
        %p198 = pneg %p137
      $region22: #{resnet_unet_forward.13} parent=11 // pred_check_branch
        %200 = sbr.rel (%p198) target = $region24
      $region23: #{resnet_unet_forward.13} parent=11 // pred_region
        %p201 = scmp.lt.s32.totalorder %s21, 0
        %s202 = scalar_select %p201, %s21, 0
        %s203 = scalar_lea.vmem %s3, %s202
      $region24: #{resnet_unet_forward.13} parent=11 // pred_fallthru
        _
    $region12: #{resnet_unet_forward.13} parent=5 // pred_fallthru
      _
    %p204 = scmp.lt.s32.totalorder %s10, 8
    // Predicated region
    $region25: #{resnet_unet_forward.13} parent=5 // pred_check
      %p205 = pneg %p204
    $region26: #{resnet_unet_forward.13} parent=5 // pred_check_branch
      %207 = sbr.rel (%p205) target = $region28
    $region27: #{resnet_unet_forward.13} parent=5 // pred_region
      // Predicated region
      $region29: #{resnet_unet_forward.13} parent=27 // pred_check
        %p208 = pneg %p51
      $region30: #{resnet_unet_forward.13} parent=27 // pred_check_branch
        %210 = sbr.rel (%p208) target = $region32
      $region31: #{resnet_unet_forward.13} parent=27 // pred_region
        %s211 = smul.u32 32, %s17
        %p212 = scmp.lt.s32.totalorder %s211, 255
        %s213 = scalar_select %p212, %s211, 255
        %p214 = scmp.lt.s32.totalorder %s19, 0
        %s215 = scalar_select %p214, %s19, 0
        %s216 = sadd.s32 %s215, %s213
        %s217 = smul.addr %s216, 4
        %s218 = scalar_lea.vmem %s0, %s217
        %s219 = smul.u32 32, %s17
      $region32: #{resnet_unet_forward.13} parent=27 // pred_fallthru
        _
    $region28: #{resnet_unet_forward.13} parent=5 // pred_fallthru
      _
    %p220 = scmp.le.s32.totalorder 1, %s10
    %p221 = scmp.lt.s32.totalorder %s10, 9
    %p222 = pnand %p220, %p221
    %p223 = pneg %p222
    // Predicated region
    $region33: #{resnet_unet_forward.13} parent=5 // pred_check
      _
    $region34: #{resnet_unet_forward.13} parent=5 // pred_check_branch
      %225 = sbr.rel (%p222) target = $region36
    $region35: #{resnet_unet_forward.13} parent=5 // pred_region
      %s226 = ssub.s32 %s10, 1
      %s227 = smul.u32 32, %s20
      %p228 = scmp.lt.s32.totalorder %s227, 255
      %s229 = scalar_select %p228, %s227, 255
      %p230 = scmp.lt.s32.totalorder %s22, 0
      %s231 = scalar_select %p230, %s22, 0
      %s232 = sadd.s32 %s231, %s229
      %s233 = smul.addr %s232, 4
      %s234 = scalar_lea.vmem %s0, %s233
      %p235 = pneg %p57
      %p236 = pneg %p54
      %s237 = smul.u32 8, %s22
      %p238 = scmp.lt.s32.totalorder %s237, 7
      %s239 = scalar_select %p238, %s237, 7
      %p240 = scmp.lt.s32.totalorder %s21, 0
      %s241 = scalar_select %p240, %s21, 0
      %s242 = sadd.s32 %s241, %s239
      %s243 = smul.addr %s242, 4
      %s244 = scalar_lea.vmem %s1, %s243
      %p245 = pneg %p85
      %p246 = pneg %p82
      %p247 = scmp.lt.s32.totalorder %s21, 0
      %s248 = scalar_select %p247, %s21, 0
      %s249 = scalar_lea.vmem %s2, %s248
      %p250 = pneg %p111
      %p251 = pneg %p108
      %p252 = scmp.lt.s32.totalorder %s21, 0
      %s253 = scalar_select %p252, %s21, 0
      %s254 = scalar_lea.vmem %s3, %s253
      %p255 = pneg %p137
      %p256 = pneg %p134
      %p257 = pneg %p165
      %p258 = pneg %p162
      %s259 = smul.u32 32, %s20
      %p260 = scmp.lt.s32.totalorder %s259, 255
      %s261 = scalar_select %p260, %s259, 255
      %p262 = scmp.lt.s32.totalorder %s21, 0
      %s263 = scalar_select %p262, %s21, 0
      %s264 = sadd.s32 %s263, %s261
      %s265 = smul.addr %s264, 8
      %s266 = scalar_lea.vmem %s4, %s265
      %s267 = smul.u32 32, %s20
      %p268 = scmp.lt.s32.totalorder %s267, 255
      %s269 = scalar_select %p268, %s267, 255
      %p270 = scmp.lt.s32.totalorder %s22, 0
      %s271 = scalar_select %p270, %s22, 0
      %s272 = sadd.s32 %s271, %s269
      %s273 = smul.addr %s272, 4
      %s274 = scalar_lea.vmem %s0, %s273
      %s275 = smul.u32 32, %s20
      %s276 = smul.u32 8, %s22
      %p277 = scmp.lt.s32.totalorder %s276, 7
      %s278 = scalar_select %p277, %s276, 7
      %p279 = scmp.lt.s32.totalorder %s21, 0
      %s280 = scalar_select %p279, %s21, 0
      %s281 = sadd.s32 %s280, %s278
      %s282 = smul.addr %s281, 4
      %s283 = scalar_lea.vmem %s1, %s282
      %s284 = smul.u32 8, %s22
      %p285 = scmp.lt.s32.totalorder %s21, 0
      %s286 = scalar_select %p285, %s21, 0
      %s287 = scalar_lea.vmem %s2, %s286
      %p288 = scmp.lt.s32.totalorder %s21, 0
      %s289 = scalar_select %p288, %s21, 0
      %s290 = scalar_lea.vmem %s3, %s289
      %s291 = smul.u32 32, %s20
      %p292 = scmp.lt.s32.totalorder %s291, 255
      %s293 = scalar_select %p292, %s291, 255
      %p294 = scmp.lt.s32.totalorder %s21, 0
      %s295 = scalar_select %p294, %s21, 0
      %s296 = sadd.s32 %s295, %s293
      %s297 = smul.addr %s296, 8
      %s298 = scalar_lea.vmem %s4, %s297
      %s299 = smul.u32 32, %s20
      %p301 = scmp.eq.s32.totalorder %s22, 0
      // Predicated region
      $region37: #{resnet_unet_forward.13} parent=35 // pred_check
        %p302 = pneg %p301
      $region38: #{resnet_unet_forward.13} parent=35 // pred_check_branch
        %304 = sbr.rel (%p302) target = $region40
      $region39: #{resnet_unet_forward.13} parent=35 // pred_region
        %305 = vst [vmem:[#allocation2] sm:$0xff] 0.0
        %306 = vst [vmem:[#allocation2 + $0x8] sm:$0xff] 0.0
        %307 = vst [vmem:[#allocation2 + $0x10] sm:$0xff] 0.0
        %308 = vst [vmem:[#allocation2 + $0x18] sm:$0xff] 0.0
        %309 = vst [vmem:[#allocation2 + $0x20] sm:$0xff] 0.0
        %310 = vst [vmem:[#allocation2 + $0x28] sm:$0xff] 0.0
        %311 = vst [vmem:[#allocation2 + $0x30] sm:$0xff] 0.0
        %312 = vst [vmem:[#allocation2 + $0x38] sm:$0xff] 0.0
        %313 = vst [vmem:[#allocation2 + $0x40] sm:$0xff] 0.0
        %314 = vst [vmem:[#allocation2 + $0x48] sm:$0xff] 0.0
        %315 = vst [vmem:[#allocation2 + $0x50] sm:$0xff] 0.0
        %316 = vst [vmem:[#allocation2 + $0x58] sm:$0xff] 0.0
        %317 = vst [vmem:[#allocation2 + $0x60] sm:$0xff] 0.0
        %318 = vst [vmem:[#allocation2 + $0x68] sm:$0xff] 0.0
        %319 = vst [vmem:[#allocation2 + $0x70] sm:$0xff] 0.0
        %320 = vst [vmem:[#allocation2 + $0x78] sm:$0xff] 0.0
        %321 = vst [vmem:[#allocation2 + $0x80] sm:$0xff] 0.0
        %322 = vst [vmem:[#allocation2 + $0x88] sm:$0xff] 0.0
        %323 = vst [vmem:[#allocation2 + $0x90] sm:$0xff] 0.0
        %324 = vst [vmem:[#allocation2 + $0x98] sm:$0xff] 0.0
        %325 = vst [vmem:[#allocation2 + $0xa0] sm:$0xff] 0.0
        %326 = vst [vmem:[#allocation2 + $0xa8] sm:$0xff] 0.0
        %327 = vst [vmem:[#allocation2 + $0xb0] sm:$0xff] 0.0
        %328 = vst [vmem:[#allocation2 + $0xb8] sm:$0xff] 0.0
        %329 = vst [vmem:[#allocation2 + $0xc0] sm:$0xff] 0.0
        %330 = vst [vmem:[#allocation2 + $0xc8] sm:$0xff] 0.0
        %331 = vst [vmem:[#allocation2 + $0xd0] sm:$0xff] 0.0
        %332 = vst [vmem:[#allocation2 + $0xd8] sm:$0xff] 0.0
        %333 = vst [vmem:[#allocation2 + $0xe0] sm:$0xff] 0.0
        %334 = vst [vmem:[#allocation2 + $0xe8] sm:$0xff] 0.0
        %335 = vst [vmem:[#allocation2 + $0xf0] sm:$0xff] 0.0
        %336 = vst [vmem:[#allocation2 + $0xf8] sm:$0xff] 0.0
      $region40: #{resnet_unet_forward.13} parent=35 // pred_fallthru
        _
      %v337 = vld [vmem:[#allocation2] sm:$0xff]
      %v338 = vld [vmem:[#allocation2 + $0x8] sm:$0xff]
      %v339 = vld [vmem:[#allocation2 + $0x10] sm:$0xff]
      %v340 = vld [vmem:[#allocation2 + $0x18] sm:$0xff]
      %v341 = vld [vmem:[#allocation2 + $0x20] sm:$0xff]
      %v342 = vld [vmem:[#allocation2 + $0x28] sm:$0xff]
      %v343 = vld [vmem:[#allocation2 + $0x30] sm:$0xff]
      %v344 = vld [vmem:[#allocation2 + $0x38] sm:$0xff]
      %v345 = vld [vmem:[#allocation2 + $0x40] sm:$0xff]
      %v346 = vld [vmem:[#allocation2 + $0x48] sm:$0xff]
      %v347 = vld [vmem:[#allocation2 + $0x50] sm:$0xff]
      %v348 = vld [vmem:[#allocation2 + $0x58] sm:$0xff]
      %v349 = vld [vmem:[#allocation2 + $0x60] sm:$0xff]
      %v350 = vld [vmem:[#allocation2 + $0x68] sm:$0xff]
      %v351 = vld [vmem:[#allocation2 + $0x70] sm:$0xff]
      %v352 = vld [vmem:[#allocation2 + $0x78] sm:$0xff]
      %v353 = vld [vmem:[#allocation2 + $0x80] sm:$0xff]
      %v354 = vld [vmem:[#allocation2 + $0x88] sm:$0xff]
      %v355 = vld [vmem:[#allocation2 + $0x90] sm:$0xff]
      %v356 = vld [vmem:[#allocation2 + $0x98] sm:$0xff]
      %v357 = vld [vmem:[#allocation2 + $0xa0] sm:$0xff]
      %v358 = vld [vmem:[#allocation2 + $0xa8] sm:$0xff]
      %v359 = vld [vmem:[#allocation2 + $0xb0] sm:$0xff]
      %v360 = vld [vmem:[#allocation2 + $0xb8] sm:$0xff]
      %v361 = vld [vmem:[#allocation2 + $0xc0] sm:$0xff]
      %v362 = vld [vmem:[#allocation2 + $0xc8] sm:$0xff]
      %v363 = vld [vmem:[#allocation2 + $0xd0] sm:$0xff]
      %v364 = vld [vmem:[#allocation2 + $0xd8] sm:$0xff]
      %v365 = vld [vmem:[#allocation2 + $0xe0] sm:$0xff]
      %v366 = vld [vmem:[#allocation2 + $0xe8] sm:$0xff]
      %v367 = vld [vmem:[#allocation2 + $0xf0] sm:$0xff]
      %v368 = vld [vmem:[#allocation2 + $0xf8] sm:$0xff]
      %v369 = vld [vmem:[%s274] sm:$0xf]
      %v370 = vld [vmem:[%s274 + $0x4] sm:$0xf]
      %v371 = vld [vmem:[%s274 + $0x8] sm:$0xf]
      %v372 = vld [vmem:[%s274 + $0xc] sm:$0xf]
      %v373 = vld [vmem:[%s274 + $0x10] sm:$0xf]
      %v374 = vld [vmem:[%s274 + $0x14] sm:$0xf]
      %v375 = vld [vmem:[%s274 + $0x18] sm:$0xf]
      %v376 = vld [vmem:[%s274 + $0x1c] sm:$0xf]
      %v377 = vld [vmem:[%s274 + $0x20] sm:$0xf]
      %v378 = vld [vmem:[%s274 + $0x24] sm:$0xf]
      %v379 = vld [vmem:[%s274 + $0x28] sm:$0xf]
      %v380 = vld [vmem:[%s274 + $0x2c] sm:$0xf]
      %v381 = vld [vmem:[%s274 + $0x30] sm:$0xf]
      %v382 = vld [vmem:[%s274 + $0x34] sm:$0xf]
      %v383 = vld [vmem:[%s274 + $0x38] sm:$0xf]
      %v384 = vld [vmem:[%s274 + $0x3c] sm:$0xf]
      %v385 = vld [vmem:[%s274 + $0x40] sm:$0xf]
      %v386 = vld [vmem:[%s274 + $0x44] sm:$0xf]
      %v387 = vld [vmem:[%s274 + $0x48] sm:$0xf]
      %v388 = vld [vmem:[%s274 + $0x4c] sm:$0xf]
      %v389 = vld [vmem:[%s274 + $0x50] sm:$0xf]
      %v390 = vld [vmem:[%s274 + $0x54] sm:$0xf]
      %v391 = vld [vmem:[%s274 + $0x58] sm:$0xf]
      %v392 = vld [vmem:[%s274 + $0x5c] sm:$0xf]
      %v393 = vld [vmem:[%s274 + $0x60] sm:$0xf]
      %v394 = vld [vmem:[%s274 + $0x64] sm:$0xf]
      %v395 = vld [vmem:[%s274 + $0x68] sm:$0xf]
      %v396 = vld [vmem:[%s274 + $0x6c] sm:$0xf]
      %v397 = vld [vmem:[%s274 + $0x70] sm:$0xf]
      %v398 = vld [vmem:[%s274 + $0x74] sm:$0xf]
      %v399 = vld [vmem:[%s274 + $0x78] sm:$0xf]
      %v400 = vld [vmem:[%s274 + $0x7c] sm:$0xf]
      %v401 = vld [vmem:[%s283] sm:$0xf]
      %v402 = vld [vmem:[%s283 + $0x4] sm:$0xf]
      %v403 = vld [vmem:[%s283 + $0x8] sm:$0xf]
      %v404 = vld [vmem:[%s283 + $0xc] sm:$0xf]
      %v405 = vld [vmem:[%s283 + $0x10] sm:$0xf]
      %v406 = vld [vmem:[%s283 + $0x14] sm:$0xf]
      %v407 = vld [vmem:[%s283 + $0x18] sm:$0xf]
      %v408 = vld [vmem:[%s283 + $0x1c] sm:$0xf]
      %v441 = vunpack.c.l.b16 %v369
      %v442 = vunpack.c.l.b16 %v370
      %v443 = vunpack.c.l.b16 %v371
      %v444 = vunpack.c.l.b16 %v372
      %v445 = vunpack.c.l.b16 %v373
      %v446 = vunpack.c.l.b16 %v374
      %v447 = vunpack.c.l.b16 %v375
      %v448 = vunpack.c.l.b16 %v376
      %v449 = vunpack.c.l.b16 %v377
      %v450 = vunpack.c.l.b16 %v378
      %v451 = vunpack.c.l.b16 %v379
      %v452 = vunpack.c.l.b16 %v380
      %v453 = vunpack.c.l.b16 %v381
      %v454 = vunpack.c.l.b16 %v382
      %v455 = vunpack.c.l.b16 %v383
      %v456 = vunpack.c.l.b16 %v384
      %v457 = vunpack.c.l.b16 %v385
      %v458 = vunpack.c.l.b16 %v386
      %v459 = vunpack.c.l.b16 %v387
      %v460 = vunpack.c.l.b16 %v388
      %v461 = vunpack.c.l.b16 %v389
      %v462 = vunpack.c.l.b16 %v390
      %v463 = vunpack.c.l.b16 %v391
      %v464 = vunpack.c.l.b16 %v392
      %v465 = vunpack.c.l.b16 %v393
      %v466 = vunpack.c.l.b16 %v394
      %v467 = vunpack.c.l.b16 %v395
      %v468 = vunpack.c.l.b16 %v396
      %v469 = vunpack.c.l.b16 %v397
      %v470 = vunpack.c.l.b16 %v398
      %v471 = vunpack.c.l.b16 %v399
      %v472 = vunpack.c.l.b16 %v400
      %v473 = vpack.c.b16 %v442, %v441
      %v474 = vpack.c.b16 %v444, %v443
      %v475 = vpack.c.b16 %v446, %v445
      %v476 = vpack.c.b16 %v448, %v447
      %v477 = vpack.c.b16 %v450, %v449
      %v478 = vpack.c.b16 %v452, %v451
      %v479 = vpack.c.b16 %v454, %v453
      %v480 = vpack.c.b16 %v456, %v455
      %v481 = vpack.c.b16 %v458, %v457
      %v482 = vpack.c.b16 %v460, %v459
      %v483 = vpack.c.b16 %v462, %v461
      %v484 = vpack.c.b16 %v464, %v463
      %v485 = vpack.c.b16 %v466, %v465
      %v486 = vpack.c.b16 %v468, %v467
      %v487 = vpack.c.b16 %v470, %v469
      %v488 = vpack.c.b16 %v472, %v471
      %v497 = vunpack.c.l.b16 %v401
      %v498 = vunpack.c.l.b16 %v402
      %v499 = vunpack.c.l.b16 %v403
      %v500 = vunpack.c.l.b16 %v404
      %v501 = vunpack.c.l.b16 %v405
      %v502 = vunpack.c.l.b16 %v406
      %v503 = vunpack.c.l.b16 %v407
      %v504 = vunpack.c.l.b16 %v408
      %v505 = vpack.c.b16 %v498, %v497
      %v506 = vpack.c.b16 %v500, %v499
      %v507 = vpack.c.b16 %v502, %v501
      %v508 = vpack.c.b16 %v504, %v503
      %vm513 = vcmask 523264
      %v515 = vsel %vm513, %v473, 0
      %v518 = vsel %vm513, %v474, 0
      %v521 = vsel %vm513, %v475, 0
      %v524 = vsel %vm513, %v476, 0
      %v527 = vsel %vm513, %v477, 0
      %v530 = vsel %vm513, %v478, 0
      %v533 = vsel %vm513, %v479, 0
      %v536 = vsel %vm513, %v480, 0
      %v539 = vsel %vm513, %v481, 0
      %v542 = vsel %vm513, %v482, 0
      %v545 = vsel %vm513, %v483, 0
      %v548 = vsel %vm513, %v484, 0
      %v551 = vsel %vm513, %v485, 0
      %v554 = vsel %vm513, %v486, 0
      %v557 = vsel %vm513, %v487, 0
      %v560 = vsel %vm513, %v488, 0
      %562 = vmatprep.subr.bf16.mxu0 0
      %563 = vmatpush1.bf16.msra.mxu0 %v505
      %564 = vmatprep.subr.bf16.mxu0 0
      %565 = vmatpush1.bf16.msra.mxu0 %v506
      %566 = vmatprep.subr.bf16.mxu0 0
      %567 = vmatpush1.bf16.msra.mxu0 %v507
      %568 = vmatprep.subr.bf16.mxu0 0
      %569 = vmatpush1.bf16.msra.mxu0 %v508
      %570 = vmatprep.subr.bf16.mxu0 0
      %571 = vmatpush1.bf16.msra.mxu0 0
      %572 = vmatprep.subr.bf16.mxu0 0
      %573 = vmatpush1.bf16.msra.mxu0 0
      %574 = vmatprep.subr.bf16.mxu0 0
      %575 = vmatpush1.bf16.msra.mxu0 0
      %576 = vmatprep.subr.bf16.mxu0 0
      %577 = vmatpush1.bf16.msra.mxu0 0
      %578 = vmatprep.subr.bf16.mxu0 0
      %579 = vmatpush1.bf16.msra.mxu0 0
      %580 = vmatprep.subr.bf16.mxu0 0
      %581 = vmatpush1.bf16.msra.mxu0 0
      %582 = vmatprep.subr.bf16.mxu0 0
      %583 = vmatpush1.bf16.msra.mxu0 0
      %584 = vmatprep.subr.bf16.mxu0 0
      %585 = vmatpush1.bf16.msra.mxu0 0
      %586 = vmatprep.subr.bf16.mxu0 0
      %587 = vmatpush1.bf16.msra.mxu0 0
      %588 = vmatprep.subr.bf16.mxu0 0
      %589 = vmatpush1.bf16.msra.mxu0 0
      %590 = vmatprep.subr.bf16.mxu0 0
      %591 = vmatpush1.bf16.msra.mxu0 0
      %592 = vmatprep.subr.bf16.mxu0 0
      %593 = vmatpush1.bf16.msra.mxu0 0
      %594 = vmatprep.mubr.bf16.mxu0 0
      %595 = vmatmul.mubr.bf16.gmra.mrb[0].mxu0 %v515
      %v596 = vpop.f32.mrb[0].mxu0
      %v597 = vadd.f32 0.0, %v596
      %v598 = vpop.f32.mrb[0].mxu0
      %v599 = vpop.f32.mrb[0].mxu0
      %v600 = vadd.f32 0.0, %v599
      %v601 = vpop.f32.mrb[0].mxu0
      %602 = vmatprep.mubr.bf16.mxu0 0
      %603 = vmatmul.mubr.bf16.gmra.mrb[0].mxu0 %v518
      %v604 = vpop.f32.mrb[0].mxu0
      %v605 = vadd.f32 0.0, %v604
      %v606 = vpop.f32.mrb[0].mxu0
      %v607 = vpop.f32.mrb[0].mxu0
      %v608 = vadd.f32 0.0, %v607
      %v609 = vpop.f32.mrb[0].mxu0
      %610 = vmatprep.mubr.bf16.mxu0 0
      %611 = vmatmul.mubr.bf16.gmra.mrb[0].mxu0 %v521
      %v612 = vpop.f32.mrb[0].mxu0
      %v613 = vadd.f32 0.0, %v612
      %v614 = vpop.f32.mrb[0].mxu0
      %v615 = vpop.f32.mrb[0].mxu0
      %v616 = vadd.f32 0.0, %v615
      %v617 = vpop.f32.mrb[0].mxu0
      %618 = vmatprep.mubr.bf16.mxu0 0
      %619 = vmatmul.mubr.bf16.gmra.mrb[0].mxu0 %v524
      %v620 = vpop.f32.mrb[0].mxu0
      %v621 = vadd.f32 0.0, %v620
      %v622 = vpop.f32.mrb[0].mxu0
      %v623 = vpop.f32.mrb[0].mxu0
      %v624 = vadd.f32 0.0, %v623
      %v625 = vpop.f32.mrb[0].mxu0
      %626 = vmatprep.mubr.bf16.mxu0 0
      %627 = vmatmul.mubr.bf16.gmra.mrb[0].mxu0 %v527
      %v628 = vpop.f32.mrb[0].mxu0
      %v629 = vadd.f32 0.0, %v628
      %v630 = vpop.f32.mrb[0].mxu0
      %v631 = vpop.f32.mrb[0].mxu0
      %v632 = vadd.f32 0.0, %v631
      %v633 = vpop.f32.mrb[0].mxu0
      %634 = vmatprep.mubr.bf16.mxu0 0
      %635 = vmatmul.mubr.bf16.gmra.mrb[0].mxu0 %v530
      %v636 = vpop.f32.mrb[0].mxu0
      %v637 = vadd.f32 0.0, %v636
      %v638 = vpop.f32.mrb[0].mxu0
      %v639 = vpop.f32.mrb[0].mxu0
      %v640 = vadd.f32 0.0, %v639
      %v641 = vpop.f32.mrb[0].mxu0
      %642 = vmatprep.mubr.bf16.mxu0 0
      %643 = vmatmul.mubr.bf16.gmra.mrb[0].mxu0 %v533
      %v644 = vpop.f32.mrb[0].mxu0
      %v645 = vadd.f32 0.0, %v644
      %v646 = vpop.f32.mrb[0].mxu0
      %v647 = vpop.f32.mrb[0].mxu0
      %v648 = vadd.f32 0.0, %v647
      %v649 = vpop.f32.mrb[0].mxu0
      %650 = vmatprep.mubr.bf16.mxu0 0
      %651 = vmatmul.mubr.bf16.gmra.mrb[0].mxu0 %v536
      %v652 = vpop.f32.mrb[0].mxu0
      %v653 = vadd.f32 0.0, %v652
      %v654 = vpop.f32.mrb[0].mxu0
      %v655 = vpop.f32.mrb[0].mxu0
      %v656 = vadd.f32 0.0, %v655
      %v657 = vpop.f32.mrb[0].mxu0
      %658 = vmatprep.mubr.bf16.mxu0 0
      %659 = vmatmul.mubr.bf16.gmra.mrb[0].mxu0 %v539
      %v660 = vpop.f32.mrb[0].mxu0
      %v661 = vadd.f32 0.0, %v660
      %v662 = vpop.f32.mrb[0].mxu0
      %v663 = vpop.f32.mrb[0].mxu0
      %v664 = vadd.f32 0.0, %v663
      %v665 = vpop.f32.mrb[0].mxu0
      %666 = vmatprep.mubr.bf16.mxu0 0
      %667 = vmatmul.mubr.bf16.gmra.mrb[0].mxu0 %v542
      %v668 = vpop.f32.mrb[0].mxu0
      %v669 = vadd.f32 0.0, %v668
      %v670 = vpop.f32.mrb[0].mxu0
      %v671 = vpop.f32.mrb[0].mxu0
      %v672 = vadd.f32 0.0, %v671
      %v673 = vpop.f32.mrb[0].mxu0
      %674 = vmatprep.mubr.bf16.mxu0 0
      %675 = vmatmul.mubr.bf16.gmra.mrb[0].mxu0 %v545
      %v676 = vpop.f32.mrb[0].mxu0
      %v677 = vadd.f32 0.0, %v676
      %v678 = vpop.f32.mrb[0].mxu0
      %v679 = vpop.f32.mrb[0].mxu0
      %v680 = vadd.f32 0.0, %v679
      %v681 = vpop.f32.mrb[0].mxu0
      %682 = vmatprep.mubr.bf16.mxu0 0
      %683 = vmatmul.mubr.bf16.gmra.mrb[0].mxu0 %v548
      %v684 = vpop.f32.mrb[0].mxu0
      %v685 = vadd.f32 0.0, %v684
      %v686 = vpop.f32.mrb[0].mxu0
      %v687 = vpop.f32.mrb[0].mxu0
      %v688 = vadd.f32 0.0, %v687
      %v689 = vpop.f32.mrb[0].mxu0
      %690 = vmatprep.mubr.bf16.mxu0 0
      %691 = vmatmul.mubr.bf16.gmra.mrb[0].mxu0 %v551
      %v692 = vpop.f32.mrb[0].mxu0
      %v693 = vadd.f32 0.0, %v692
      %v694 = vpop.f32.mrb[0].mxu0
      %v695 = vpop.f32.mrb[0].mxu0
      %v696 = vadd.f32 0.0, %v695
      %v697 = vpop.f32.mrb[0].mxu0
      %698 = vmatprep.mubr.bf16.mxu0 0
      %699 = vmatmul.mubr.bf16.gmra.mrb[0].mxu0 %v554
      %v700 = vpop.f32.mrb[0].mxu0
      %v701 = vadd.f32 0.0, %v700
      %v702 = vpop.f32.mrb[0].mxu0
      %v703 = vpop.f32.mrb[0].mxu0
      %v704 = vadd.f32 0.0, %v703
      %v705 = vpop.f32.mrb[0].mxu0
      %706 = vmatprep.mubr.bf16.mxu0 0
      %707 = vmatmul.mubr.bf16.gmra.mrb[0].mxu0 %v557
      %v708 = vpop.f32.mrb[0].mxu0
      %v709 = vadd.f32 0.0, %v708
      %v710 = vpop.f32.mrb[0].mxu0
      %v711 = vpop.f32.mrb[0].mxu0
      %v712 = vadd.f32 0.0, %v711
      %v713 = vpop.f32.mrb[0].mxu0
      %714 = vmatprep.mubr.bf16.mxu0 0
      %715 = vmatmul.mubr.bf16.gmra.mrb[0].mxu0 %v560
      %v716 = vpop.f32.mrb[0].mxu0
      %v717 = vadd.f32 0.0, %v716
      %v718 = vpop.f32.mrb[0].mxu0
      %v719 = vpop.f32.mrb[0].mxu0
      %v720 = vadd.f32 0.0, %v719
      %v721 = vpop.f32.mrb[0].mxu0
      %722 = vdwg.mxu0
      %v723 = vadd.f32 %v337, %v597
      %v724 = vadd.f32 %v338, %v600
      %v725 = vadd.f32 %v339, %v605
      %v726 = vadd.f32 %v340, %v608
      %v727 = vadd.f32 %v341, %v613
      %v728 = vadd.f32 %v342, %v616
      %v729 = vadd.f32 %v343, %v621
      %v730 = vadd.f32 %v344, %v624
      %v731 = vadd.f32 %v345, %v629
      %v732 = vadd.f32 %v346, %v632
      %v733 = vadd.f32 %v347, %v637
      %v734 = vadd.f32 %v348, %v640
      %v735 = vadd.f32 %v349, %v645
      %v736 = vadd.f32 %v350, %v648
      %v737 = vadd.f32 %v351, %v653
      %v738 = vadd.f32 %v352, %v656
      %v739 = vadd.f32 %v353, %v661
      %v740 = vadd.f32 %v354, %v664
      %v741 = vadd.f32 %v355, %v669
      %v742 = vadd.f32 %v356, %v672
      %v743 = vadd.f32 %v357, %v677
      %v744 = vadd.f32 %v358, %v680
      %v745 = vadd.f32 %v359, %v685
      %v746 = vadd.f32 %v360, %v688
      %v747 = vadd.f32 %v361, %v693
      %v748 = vadd.f32 %v362, %v696
      %v749 = vadd.f32 %v363, %v701
      %v750 = vadd.f32 %v364, %v704
      %v751 = vadd.f32 %v365, %v709
      %v752 = vadd.f32 %v366, %v712
      %v753 = vadd.f32 %v367, %v717
      %v754 = vadd.f32 %v368, %v720
      %755 = vst [vmem:[#allocation2] sm:$0xff] %v723
      %756 = vst [vmem:[#allocation2 + $0x8] sm:$0xff] %v724
      %757 = vst [vmem:[#allocation2 + $0x10] sm:$0xff] %v725
      %758 = vst [vmem:[#allocation2 + $0x18] sm:$0xff] %v726
      %759 = vst [vmem:[#allocation2 + $0x20] sm:$0xff] %v727
      %760 = vst [vmem:[#allocation2 + $0x28] sm:$0xff] %v728
      %761 = vst [vmem:[#allocation2 + $0x30] sm:$0xff] %v729
      %762 = vst [vmem:[#allocation2 + $0x38] sm:$0xff] %v730
      %763 = vst [vmem:[#allocation2 + $0x40] sm:$0xff] %v731
      %764 = vst [vmem:[#allocation2 + $0x48] sm:$0xff] %v732
      %765 = vst [vmem:[#allocation2 + $0x50] sm:$0xff] %v733
      %766 = vst [vmem:[#allocation2 + $0x58] sm:$0xff] %v734
      %767 = vst [vmem:[#allocation2 + $0x60] sm:$0xff] %v735
      %768 = vst [vmem:[#allocation2 + $0x68] sm:$0xff] %v736
      %769 = vst [vmem:[#allocation2 + $0x70] sm:$0xff] %v737
      %770 = vst [vmem:[#allocation2 + $0x78] sm:$0xff] %v738
      %771 = vst [vmem:[#allocation2 + $0x80] sm:$0xff] %v739
      %772 = vst [vmem:[#allocation2 + $0x88] sm:$0xff] %v740
      %773 = vst [vmem:[#allocation2 + $0x90] sm:$0xff] %v741
      %774 = vst [vmem:[#allocation2 + $0x98] sm:$0xff] %v742
      %775 = vst [vmem:[#allocation2 + $0xa0] sm:$0xff] %v743
      %776 = vst [vmem:[#allocation2 + $0xa8] sm:$0xff] %v744
      %777 = vst [vmem:[#allocation2 + $0xb0] sm:$0xff] %v745
      %778 = vst [vmem:[#allocation2 + $0xb8] sm:$0xff] %v746
      %779 = vst [vmem:[#allocation2 + $0xc0] sm:$0xff] %v747
      %780 = vst [vmem:[#allocation2 + $0xc8] sm:$0xff] %v748
      %781 = vst [vmem:[#allocation2 + $0xd0] sm:$0xff] %v749
      %782 = vst [vmem:[#allocation2 + $0xd8] sm:$0xff] %v750
      %783 = vst [vmem:[#allocation2 + $0xe0] sm:$0xff] %v751
      %784 = vst [vmem:[#allocation2 + $0xe8] sm:$0xff] %v752
      %785 = vst [vmem:[#allocation2 + $0xf0] sm:$0xff] %v753
      %786 = vst [vmem:[#allocation2 + $0xf8] sm:$0xff] %v754
      // Predicated region
      $region41: #{resnet_unet_forward.13} parent=35 // pred_check
        %p787 = pneg %p301
      $region42: #{resnet_unet_forward.13} parent=35 // pred_check_branch
        %789 = sbr.rel (%p787) target = $region44
      $region43: #{resnet_unet_forward.13} parent=35 // pred_region
        %v790 = vld [vmem:[#allocation2] sm:$0xff]
        %v791 = vld [vmem:[#allocation2 + $0x8] sm:$0xff]
        %v792 = vld [vmem:[#allocation2 + $0x10] sm:$0xff]
        %v793 = vld [vmem:[#allocation2 + $0x18] sm:$0xff]
        %v794 = vld [vmem:[#allocation2 + $0x20] sm:$0xff]
        %v795 = vld [vmem:[#allocation2 + $0x28] sm:$0xff]
        %v796 = vld [vmem:[#allocation2 + $0x30] sm:$0xff]
        %v797 = vld [vmem:[#allocation2 + $0x38] sm:$0xff]
        %v798 = vld [vmem:[#allocation2 + $0x40] sm:$0xff]
        %v799 = vld [vmem:[#allocation2 + $0x48] sm:$0xff]
        %v800 = vld [vmem:[#allocation2 + $0x50] sm:$0xff]
        %v801 = vld [vmem:[#allocation2 + $0x58] sm:$0xff]
        %v802 = vld [vmem:[#allocation2 + $0x60] sm:$0xff]
        %v803 = vld [vmem:[#allocation2 + $0x68] sm:$0xff]
        %v804 = vld [vmem:[#allocation2 + $0x70] sm:$0xff]
        %v805 = vld [vmem:[#allocation2 + $0x78] sm:$0xff]
        %v806 = vld [vmem:[#allocation2 + $0x80] sm:$0xff]
        %v807 = vld [vmem:[#allocation2 + $0x88] sm:$0xff]
        %v808 = vld [vmem:[#allocation2 + $0x90] sm:$0xff]
        %v809 = vld [vmem:[#allocation2 + $0x98] sm:$0xff]
        %v810 = vld [vmem:[#allocation2 + $0xa0] sm:$0xff]
        %v811 = vld [vmem:[#allocation2 + $0xa8] sm:$0xff]
        %v812 = vld [vmem:[#allocation2 + $0xb0] sm:$0xff]
        %v813 = vld [vmem:[#allocation2 + $0xb8] sm:$0xff]
        %v814 = vld [vmem:[#allocation2 + $0xc0] sm:$0xff]
        %v815 = vld [vmem:[#allocation2 + $0xc8] sm:$0xff]
        %v816 = vld [vmem:[#allocation2 + $0xd0] sm:$0xff]
        %v817 = vld [vmem:[#allocation2 + $0xd8] sm:$0xff]
        %v818 = vld [vmem:[#allocation2 + $0xe0] sm:$0xff]
        %v819 = vld [vmem:[#allocation2 + $0xe8] sm:$0xff]
        %v820 = vld [vmem:[#allocation2 + $0xf0] sm:$0xff]
        %v821 = vld [vmem:[#allocation2 + $0xf8] sm:$0xff]
        %v822 = vld [vmem:[%s287] sm:$0x1]
        %v824 = vlaneseq
        %v825 = vshrl.u32 %v824, 7
        %v826 = vsub.s32 0, %v825
        %v827 = vrot.slane %v822, %v826
        %v829 = vmul.f32 %v790, %v827
        %v830 = vmul.f32 %v791, %v827
        %v831 = vmul.f32 %v792, %v827
        %v832 = vmul.f32 %v793, %v827
        %v833 = vmul.f32 %v794, %v827
        %v834 = vmul.f32 %v795, %v827
        %v835 = vmul.f32 %v796, %v827
        %v836 = vmul.f32 %v797, %v827
        %v837 = vmul.f32 %v798, %v827
        %v838 = vmul.f32 %v799, %v827
        %v839 = vmul.f32 %v800, %v827
        %v840 = vmul.f32 %v801, %v827
        %v841 = vmul.f32 %v802, %v827
        %v842 = vmul.f32 %v803, %v827
        %v843 = vmul.f32 %v804, %v827
        %v844 = vmul.f32 %v805, %v827
        %v845 = vmul.f32 %v806, %v827
        %v846 = vmul.f32 %v807, %v827
        %v847 = vmul.f32 %v808, %v827
        %v848 = vmul.f32 %v809, %v827
        %v849 = vmul.f32 %v810, %v827
        %v850 = vmul.f32 %v811, %v827
        %v851 = vmul.f32 %v812, %v827
        %v852 = vmul.f32 %v813, %v827
        %v853 = vmul.f32 %v814, %v827
        %v854 = vmul.f32 %v815, %v827
        %v855 = vmul.f32 %v816, %v827
        %v856 = vmul.f32 %v817, %v827
        %v857 = vmul.f32 %v818, %v827
        %v858 = vmul.f32 %v819, %v827
        %v859 = vmul.f32 %v820, %v827
        %v860 = vmul.f32 %v821, %v827
        %v861 = vld [vmem:[%s290] sm:$0x1]
        %v863 = vlaneseq
        %v864 = vshrl.u32 %v863, 7
        %v865 = vsub.s32 0, %v864
        %v866 = vrot.slane %v861, %v865
        %v868 = vadd.f32 %v829, %v866
        %v869 = vadd.f32 %v830, %v866
        %v870 = vadd.f32 %v831, %v866
        %v871 = vadd.f32 %v832, %v866
        %v872 = vadd.f32 %v833, %v866
        %v873 = vadd.f32 %v834, %v866
        %v874 = vadd.f32 %v835, %v866
        %v875 = vadd.f32 %v836, %v866
        %v876 = vadd.f32 %v837, %v866
        %v877 = vadd.f32 %v838, %v866
        %v878 = vadd.f32 %v839, %v866
        %v879 = vadd.f32 %v840, %v866
        %v880 = vadd.f32 %v841, %v866
        %v881 = vadd.f32 %v842, %v866
        %v882 = vadd.f32 %v843, %v866
        %v883 = vadd.f32 %v844, %v866
        %v884 = vadd.f32 %v845, %v866
        %v885 = vadd.f32 %v846, %v866
        %v886 = vadd.f32 %v847, %v866
        %v887 = vadd.f32 %v848, %v866
        %v888 = vadd.f32 %v849, %v866
        %v889 = vadd.f32 %v850, %v866
        %v890 = vadd.f32 %v851, %v866
        %v891 = vadd.f32 %v852, %v866
        %v892 = vadd.f32 %v853, %v866
        %v893 = vadd.f32 %v854, %v866
        %v894 = vadd.f32 %v855, %v866
        %v895 = vadd.f32 %v856, %v866
        %v896 = vadd.f32 %v857, %v866
        %v897 = vadd.f32 %v858, %v866
        %v898 = vadd.f32 %v859, %v866
        %v899 = vadd.f32 %v860, %v866
        %900 = vst [vmem:[%s298] sm:$0xff] %v868
        %901 = vst [vmem:[%s298 + $0x8] sm:$0xff] %v869
        %902 = vst [vmem:[%s298 + $0x10] sm:$0xff] %v870
        %903 = vst [vmem:[%s298 + $0x18] sm:$0xff] %v871
        %904 = vst [vmem:[%s298 + $0x20] sm:$0xff] %v872
        %905 = vst [vmem:[%s298 + $0x28] sm:$0xff] %v873
        %906 = vst [vmem:[%s298 + $0x30] sm:$0xff] %v874
        %907 = vst [vmem:[%s298 + $0x38] sm:$0xff] %v875
        %908 = vst [vmem:[%s298 + $0x40] sm:$0xff] %v876
        %909 = vst [vmem:[%s298 + $0x48] sm:$0xff] %v877
        %910 = vst [vmem:[%s298 + $0x50] sm:$0xff] %v878
        %911 = vst [vmem:[%s298 + $0x58] sm:$0xff] %v879
        %912 = vst [vmem:[%s298 + $0x60] sm:$0xff] %v880
        %913 = vst [vmem:[%s298 + $0x68] sm:$0xff] %v881
        %914 = vst [vmem:[%s298 + $0x70] sm:$0xff] %v882
        %915 = vst [vmem:[%s298 + $0x78] sm:$0xff] %v883
        %916 = vst [vmem:[%s298 + $0x80] sm:$0xff] %v884
        %917 = vst [vmem:[%s298 + $0x88] sm:$0xff] %v885
        %918 = vst [vmem:[%s298 + $0x90] sm:$0xff] %v886
        %919 = vst [vmem:[%s298 + $0x98] sm:$0xff] %v887
        %920 = vst [vmem:[%s298 + $0xa0] sm:$0xff] %v888
        %921 = vst [vmem:[%s298 + $0xa8] sm:$0xff] %v889
        %922 = vst [vmem:[%s298 + $0xb0] sm:$0xff] %v890
        %923 = vst [vmem:[%s298 + $0xb8] sm:$0xff] %v891
        %924 = vst [vmem:[%s298 + $0xc0] sm:$0xff] %v892
        %925 = vst [vmem:[%s298 + $0xc8] sm:$0xff] %v893
        %926 = vst [vmem:[%s298 + $0xd0] sm:$0xff] %v894
        %927 = vst [vmem:[%s298 + $0xd8] sm:$0xff] %v895
        %928 = vst [vmem:[%s298 + $0xe0] sm:$0xff] %v896
        %929 = vst [vmem:[%s298 + $0xe8] sm:$0xff] %v897
        %930 = vst [vmem:[%s298 + $0xf0] sm:$0xff] %v898
        %931 = vst [vmem:[%s298 + $0xf8] sm:$0xff] %v899
      $region44: #{resnet_unet_forward.13} parent=35 // pred_fallthru
        _
      %s932 = smul.u32 32, %s20
      %p933 = scmp.lt.s32.totalorder %s932, 255
      %s934 = scalar_select %p933, %s932, 255
      %p935 = scmp.lt.s32.totalorder %s21, 0
      %s936 = scalar_select %p935, %s21, 0
      %s937 = sadd.s32 %s936, %s934
      %s938 = smul.addr %s937, 8
      %s939 = scalar_lea.vmem %s4, %s938
      // Predicated region
      $region45: #{resnet_unet_forward.13} parent=35 // pred_check
        %p940 = pneg %p162
      $region46: #{resnet_unet_forward.13} parent=35 // pred_check_branch
        %942 = sbr.rel (%p940) target = $region48
      $region47: #{resnet_unet_forward.13} parent=35 // pred_region
        %s943 = smul.u32 32, %s20
      $region48: #{resnet_unet_forward.13} parent=35 // pred_fallthru
        _
    $region36: #{resnet_unet_forward.13} parent=5 // pred_fallthru
      _
    %p944 = scmp.le.s32.totalorder 2, %s10
    // Predicated region
    $region49: #{resnet_unet_forward.13} parent=5 // pred_check
      %p945 = pneg %p944
    $region50: #{resnet_unet_forward.13} parent=5 // pred_check_branch
      %947 = sbr.rel (%p945) target = $region52
    $region51: #{resnet_unet_forward.13} parent=5 // pred_region
      %s948 = ssub.s32 %s10, 2
      // Predicated region
      $region53: #{resnet_unet_forward.13} parent=51 // pred_check
        %p949 = pneg %p168
      $region54: #{resnet_unet_forward.13} parent=51 // pred_check_branch
        %951 = sbr.rel (%p949) target = $region56
      $region55: #{resnet_unet_forward.13} parent=51 // pred_region
        %s952 = smul.u32 32, %s23
        %p953 = scmp.lt.s32.totalorder %s952, 255
        %s954 = scalar_select %p953, %s952, 255
        %p955 = scmp.lt.s32.totalorder %s24, 0
        %s956 = scalar_select %p955, %s24, 0
        %s957 = sadd.s32 %s956, %s954
        %s958 = smul.addr %s957, 8
        %s959 = scalar_lea.vmem %s4, %s958
      $region56: #{resnet_unet_forward.13} parent=51 // pred_fallthru
        _
    $region52: #{resnet_unet_forward.13} parent=5 // pred_fallthru
      _
  $region6: #{resnet_unet_forward.13} parent=0 // loop_footer
    %s14 = sadd.s32 1, %s10
  $region7: #{resnet_unet_forward.13} parent=0 // loop_footer_branch
    %9 = sbr.rel target = $region3
  $region8: #{resnet_unet_forward.13} parent=0 // loop_exit
    _

// kernel: resnet_unet_forward.11
$region0: #{resnet_unet_forward.11}
  #allocation0 [shape = 'u32[]', space=smem, size = 0x4, offset = 0x4, fixed_abs, tag = 'smem constant byte address 0x4 - core index']
  #allocation1 [shape = 'u32[144,128]{1,0:T(1,128)}', space=vmem, size = 0x12000, scoped, tag = 'internal scratch']
  #allocation2 [shape = 'f32[256,128]{1,0:T(8,128)}', space=vmem, size = 0x20000, scoped, tag = 'scratch operand']
  %s0 = inlined_call_operand.vmem [shape: bf16[2048,1152], index: 0, kind: input, shape index: {}]
  %s1 = inlined_call_operand.vmem [shape: bf16[1152,128], index: 1, kind: input, shape index: {}]
  %s2 = inlined_call_operand.vmem [shape: f32[1,128], index: 2, kind: input, shape index: {}]
  %s3 = inlined_call_operand.vmem [shape: f32[1,128], index: 3, kind: input, shape index: {}]
  %s4 = inlined_call_operand.vmem [shape: f32[2048,128], index: 4, kind: output, shape index: {}]
  %s5 = sld [smem:[#allocation0]]
  $region57: #{resnet_unet_forward.11} parent=0
    _
  %s7 = ssub.s32 1, %s5
  %s8 = scalar_select 0, %s7, %s5
  loop: start=0, step=1, limit=10
  $region2: #{resnet_unet_forward.11} parent=0 // loop_pre_header
    _
  $region3: #{resnet_unet_forward.11} parent=0 // loop_header
    %s10 = sphi 0, %s14
    %p11 = scmp.ge.s32.totalorder %s10, 10
    %s17 = sphi 0, %s36
    %s18 = sphi 0, %s32
    %s19 = sphi 0, %s28
    %s20 = sphi 0, %s17
    %s21 = sphi 0, %s18
    %s22 = sphi 0, %s19
    %s23 = sphi 0, %s20
    %s24 = sphi 0, %s21
    %s25 = sphi 0, %s22
    %s41 = sphi 0, %s43
    %s44 = sphi 0, %s41
    %s45 = sphi 0, %s44
    %s61 = sphi 0, %s45
    %s69 = sphi 0, %s71
    %s72 = sphi 0, %s69
    %s73 = sphi 0, %s72
    %s89 = sphi 0, %s73
    %s95 = sphi 0, %s97
    %s98 = sphi 0, %s95
    %s99 = sphi 0, %s98
    %s115 = sphi 0, %s99
    %s121 = sphi 0, %s123
    %s124 = sphi 0, %s121
    %s125 = sphi 0, %s124
    %s141 = sphi 0, %s125
    %s149 = sphi 0, %s151
    %s152 = sphi 0, %s149
    %s153 = sphi 0, %s152
    %s169 = sphi 0, %s153
  $region4: #{resnet_unet_forward.11} parent=0 // loop_header_branch
    %13 = sbr.rel (%p11) target = $region8
  $region5: #{resnet_unet_forward.11} parent=0 // loop_body
    %s15 = ssub.s32 %s10, 1
    %s16 = ssub.s32 %s10, 2
    %s26 = sadd.s32 1, %s19
    %p27 = scmp.ge.s32.totalorder %s26, 1
    %s28 = scalar_select %p27, 0, %s26
    %s29 = sadd.s32 1, %s18
    %s30 = scalar_select %p27, %s29, %s18
    %p31 = scmp.ge.s32.totalorder %s30, 1
    %s32 = scalar_select %p31, 0, %s30
    %s33 = sadd.s32 1, %s17
    %s34 = scalar_select %p31, %s33, %s17
    %p35 = scmp.ge.s32.totalorder %s34, 8
    %s36 = scalar_select %p35, 0, %s34
    %s37 = ssub.s32 %s17, %s36
    %s38 = ssub.s32 %s19, %s28
    %s39 = sor.u32 %s37, %s38
    %p40 = scmp.eq.s32.totalorder %s39, 0
    %s42 = sadd.s32 %s41, 1
    %s43 = scalar_select %p40, %s41, %s42
    %p46 = pneg %p40
    %p47 = scmp.eq.s32.totalorder %s10, 7
    %p48 = por %p46, %p47
    %p49 = scmp.ne.s32.totalorder %s41, %s44
    %p50 = scmp.eq.s32.totalorder %s10, 0
    %p51 = por %p49, %p50
    %p52 = scmp.ne.s32.totalorder %s41, %s44
    %p53 = scmp.eq.s32.totalorder %s15, 7
    %p54 = por %p52, %p53
    %p55 = scmp.ne.s32.totalorder %s44, %s45
    %p56 = scmp.eq.s32.totalorder %s15, 0
    %p57 = por %p55, %p56
    %p58 = scmp.ne.s32.totalorder %s44, %s45
    %p59 = scmp.eq.s32.totalorder %s16, 7
    %p60 = por %p58, %p59
    %p62 = scmp.ne.s32.totalorder %s45, %s61
    %p63 = scmp.eq.s32.totalorder %s16, 0
    %p64 = por %p62, %p63
    %s65 = ssub.s32 %s19, %s28
    %s66 = ssub.s32 %s18, %s32
    %s67 = sor.u32 %s65, %s66
    %p68 = scmp.eq.s32.totalorder %s67, 0
    %s70 = sadd.s32 %s69, 1
    %s71 = scalar_select %p68, %s69, %s70
    %p74 = pneg %p68
    %p75 = scmp.eq.s32.totalorder %s10, 7
    %p76 = por %p74, %p75
    %p77 = scmp.ne.s32.totalorder %s69, %s72
    %p78 = scmp.eq.s32.totalorder %s10, 0
    %p79 = por %p77, %p78
    %p80 = scmp.ne.s32.totalorder %s69, %s72
    %p81 = scmp.eq.s32.totalorder %s15, 7
    %p82 = por %p80, %p81
    %p83 = scmp.ne.s32.totalorder %s72, %s73
    %p84 = scmp.eq.s32.totalorder %s15, 0
    %p85 = por %p83, %p84
    %p86 = scmp.ne.s32.totalorder %s72, %s73
    %p87 = scmp.eq.s32.totalorder %s16, 7
    %p88 = por %p86, %p87
    %p90 = scmp.ne.s32.totalorder %s73, %s89
    %p91 = scmp.eq.s32.totalorder %s16, 0
    %p92 = por %p90, %p91
    %s93 = ssub.s32 %s18, %s32
    %p94 = scmp.eq.s32.totalorder %s93, 0
    %s96 = sadd.s32 %s95, 1
    %s97 = scalar_select %p94, %s95, %s96
    %p100 = pneg %p94
    %p101 = scmp.eq.s32.totalorder %s10, 7
    %p102 = por %p100, %p101
    %p103 = scmp.ne.s32.totalorder %s95, %s98
    %p104 = scmp.eq.s32.totalorder %s10, 0
    %p105 = por %p103, %p104
    %p106 = scmp.ne.s32.totalorder %s95, %s98
    %p107 = scmp.eq.s32.totalorder %s15, 7
    %p108 = por %p106, %p107
    %p109 = scmp.ne.s32.totalorder %s98, %s99
    %p110 = scmp.eq.s32.totalorder %s15, 0
    %p111 = por %p109, %p110
    %p112 = scmp.ne.s32.totalorder %s98, %s99
    %p113 = scmp.eq.s32.totalorder %s16, 7
    %p114 = por %p112, %p113
    %p116 = scmp.ne.s32.totalorder %s99, %s115
    %p117 = scmp.eq.s32.totalorder %s16, 0
    %p118 = por %p116, %p117
    %s119 = ssub.s32 %s18, %s32
    %p120 = scmp.eq.s32.totalorder %s119, 0
    %s122 = sadd.s32 %s121, 1
    %s123 = scalar_select %p120, %s121, %s122
    %p126 = pneg %p120
    %p127 = scmp.eq.s32.totalorder %s10, 7
    %p128 = por %p126, %p127
    %p129 = scmp.ne.s32.totalorder %s121, %s124
    %p130 = scmp.eq.s32.totalorder %s10, 0
    %p131 = por %p129, %p130
    %p132 = scmp.ne.s32.totalorder %s121, %s124
    %p133 = scmp.eq.s32.totalorder %s15, 7
    %p134 = por %p132, %p133
    %p135 = scmp.ne.s32.totalorder %s124, %s125
    %p136 = scmp.eq.s32.totalorder %s15, 0
    %p137 = por %p135, %p136
    %p138 = scmp.ne.s32.totalorder %s124, %s125
    %p139 = scmp.eq.s32.totalorder %s16, 7
    %p140 = por %p138, %p139
    %p142 = scmp.ne.s32.totalorder %s125, %s141
    %p143 = scmp.eq.s32.totalorder %s16, 0
    %p144 = por %p142, %p143
    %s145 = ssub.s32 %s17, %s36
    %s146 = ssub.s32 %s18, %s32
    %s147 = sor.u32 %s145, %s146
    %p148 = scmp.eq.s32.totalorder %s147, 0
    %s150 = sadd.s32 %s149, 1
    %s151 = scalar_select %p148, %s149, %s150
    %p154 = pneg %p148
    %p155 = scmp.eq.s32.totalorder %s10, 7
    %p156 = por %p154, %p155
    %p157 = scmp.ne.s32.totalorder %s149, %s152
    %p158 = scmp.eq.s32.totalorder %s10, 0
    %p159 = por %p157, %p158
    %p160 = scmp.ne.s32.totalorder %s149, %s152
    %p161 = scmp.eq.s32.totalorder %s15, 7
    %p162 = por %p160, %p161
    %p163 = scmp.ne.s32.totalorder %s152, %s153
    %p164 = scmp.eq.s32.totalorder %s15, 0
    %p165 = por %p163, %p164
    %p166 = scmp.ne.s32.totalorder %s152, %s153
    %p167 = scmp.eq.s32.totalorder %s16, 7
    %p168 = por %p166, %p167
    %p170 = scmp.ne.s32.totalorder %s153, %s169
    %p171 = scmp.eq.s32.totalorder %s16, 0
    %p172 = por %p170, %p171
    %p173 = scmp.le.s32.totalorder 1, %s10
    %p174 = scmp.lt.s32.totalorder %s10, 9
    %p175 = pnand %p173, %p174
    %p176 = pneg %p175
    // Predicated region
    $region9: #{resnet_unet_forward.11} parent=5 // pred_check
      _
    $region10: #{resnet_unet_forward.11} parent=5 // pred_check_branch
      %178 = sbr.rel (%p175) target = $region12
    $region11: #{resnet_unet_forward.11} parent=5 // pred_region
      %s179 = ssub.s32 %s10, 1
      // Predicated region
      $region13: #{resnet_unet_forward.11} parent=11 // pred_check
        %p180 = pneg %p85
      $region14: #{resnet_unet_forward.11} parent=11 // pred_check_branch
        %182 = sbr.rel (%p180) target = $region16
      $region15: #{resnet_unet_forward.11} parent=11 // pred_region
        %s183 = smul.u32 144, %s22
        %p184 = scmp.lt.s32.totalorder %s183, 143
        %s185 = scalar_select %p184, %s183, 143
        %p186 = scmp.lt.s32.totalorder %s21, 0
        %s187 = scalar_select %p186, %s21, 0
        %s188 = sadd.s32 %s187, %s185
        %s189 = smul.addr %s188, 4
        %s190 = scalar_lea.vmem %s1, %s189
        %s191 = smul.u32 144, %s22
      $region16: #{resnet_unet_forward.11} parent=11 // pred_fallthru
        _
      // Predicated region
      $region17: #{resnet_unet_forward.11} parent=11 // pred_check
        %p192 = pneg %p111
      $region18: #{resnet_unet_forward.11} parent=11 // pred_check_branch
        %194 = sbr.rel (%p192) target = $region20
      $region19: #{resnet_unet_forward.11} parent=11 // pred_region
        %p195 = scmp.lt.s32.totalorder %s21, 0
        %s196 = scalar_select %p195, %s21, 0
        %s197 = scalar_lea.vmem %s2, %s196
      $region20: #{resnet_unet_forward.11} parent=11 // pred_fallthru
        _
      // Predicated region
      $region21: #{resnet_unet_forward.11} parent=11 // pred_check
        %p198 = pneg %p137
      $region22: #{resnet_unet_forward.11} parent=11 // pred_check_branch
        %200 = sbr.rel (%p198) target = $region24
      $region23: #{resnet_unet_forward.11} parent=11 // pred_region
        %p201 = scmp.lt.s32.totalorder %s21, 0
        %s202 = scalar_select %p201, %s21, 0
        %s203 = scalar_lea.vmem %s3, %s202
      $region24: #{resnet_unet_forward.11} parent=11 // pred_fallthru
        _
    $region12: #{resnet_unet_forward.11} parent=5 // pred_fallthru
      _
    %p204 = scmp.lt.s32.totalorder %s10, 8
    // Predicated region
    $region25: #{resnet_unet_forward.11} parent=5 // pred_check
      %p205 = pneg %p204
    $region26: #{resnet_unet_forward.11} parent=5 // pred_check_branch
      %207 = sbr.rel (%p205) target = $region28
    $region27: #{resnet_unet_forward.11} parent=5 // pred_region
      // Predicated region
      $region29: #{resnet_unet_forward.11} parent=27 // pred_check
        %p208 = pneg %p51
      $region30: #{resnet_unet_forward.11} parent=27 // pred_check_branch
        %210 = sbr.rel (%p208) target = $region32
      $region31: #{resnet_unet_forward.11} parent=27 // pred_region
        %s211 = smul.u32 32, %s17
        %s212 = smul.u32 9, %s19
        %p213 = scmp.lt.s32.totalorder %s211, 255
        %s214 = scalar_select %p213, %s211, 255
        %p215 = scmp.lt.s32.totalorder %s212, 8
        %s216 = scalar_select %p215, %s212, 8
        %s217 = smul.addr %s214, 9
        %s218 = sadd.s32 %s216, %s217
        %s219 = smul.addr %s218, 4
        %s220 = scalar_lea.vmem %s0, %s219
        %s221 = smul.u32 32, %s17
        %s222 = smul.u32 9, %s19
      $region32: #{resnet_unet_forward.11} parent=27 // pred_fallthru
        _
    $region28: #{resnet_unet_forward.11} parent=5 // pred_fallthru
      _
    %p223 = scmp.le.s32.totalorder 1, %s10
    %p224 = scmp.lt.s32.totalorder %s10, 9
    %p225 = pnand %p223, %p224
    %p226 = pneg %p225
    // Predicated region
    $region33: #{resnet_unet_forward.11} parent=5 // pred_check
      _
    $region34: #{resnet_unet_forward.11} parent=5 // pred_check_branch
      %228 = sbr.rel (%p225) target = $region36
    $region35: #{resnet_unet_forward.11} parent=5 // pred_region
      %s229 = ssub.s32 %s10, 1
      %s230 = smul.u32 32, %s20
      %s231 = smul.u32 9, %s22
      %p232 = scmp.lt.s32.totalorder %s230, 255
      %s233 = scalar_select %p232, %s230, 255
      %p234 = scmp.lt.s32.totalorder %s231, 8
      %s235 = scalar_select %p234, %s231, 8
      %s236 = smul.addr %s233, 9
      %s237 = sadd.s32 %s235, %s236
      %s238 = smul.addr %s237, 4
      %s239 = scalar_lea.vmem %s0, %s238
      %p240 = pneg %p57
      %p241 = pneg %p54
      %s242 = smul.u32 144, %s22
      %p243 = scmp.lt.s32.totalorder %s242, 143
      %s244 = scalar_select %p243, %s242, 143
      %p245 = scmp.lt.s32.totalorder %s21, 0
      %s246 = scalar_select %p245, %s21, 0
      %s247 = sadd.s32 %s246, %s244
      %s248 = smul.addr %s247, 4
      %s249 = scalar_lea.vmem %s1, %s248
      %p250 = pneg %p85
      %p251 = pneg %p82
      %p252 = scmp.lt.s32.totalorder %s21, 0
      %s253 = scalar_select %p252, %s21, 0
      %s254 = scalar_lea.vmem %s2, %s253
      %p255 = pneg %p111
      %p256 = pneg %p108
      %p257 = scmp.lt.s32.totalorder %s21, 0
      %s258 = scalar_select %p257, %s21, 0
      %s259 = scalar_lea.vmem %s3, %s258
      %p260 = pneg %p137
      %p261 = pneg %p134
      %p262 = pneg %p165
      %p263 = pneg %p162
      %s264 = smul.u32 32, %s20
      %p265 = scmp.lt.s32.totalorder %s264, 255
      %s266 = scalar_select %p265, %s264, 255
      %p267 = scmp.lt.s32.totalorder %s21, 0
      %s268 = scalar_select %p267, %s21, 0
      %s269 = sadd.s32 %s268, %s266
      %s270 = smul.addr %s269, 8
      %s271 = scalar_lea.vmem %s4, %s270
      %s272 = smul.u32 32, %s20
      %s273 = smul.u32 9, %s22
      %p274 = scmp.lt.s32.totalorder %s272, 255
      %s275 = scalar_select %p274, %s272, 255
      %p276 = scmp.lt.s32.totalorder %s273, 8
      %s277 = scalar_select %p276, %s273, 8
      %s278 = smul.addr %s275, 9
      %s279 = sadd.s32 %s277, %s278
      %s280 = smul.addr %s279, 4
      %s281 = scalar_lea.vmem %s0, %s280
      %s282 = smul.u32 32, %s20
      %s283 = smul.u32 9, %s22
      %s284 = smul.u32 144, %s22
      %p285 = scmp.lt.s32.totalorder %s284, 143
      %s286 = scalar_select %p285, %s284, 143
      %p287 = scmp.lt.s32.totalorder %s21, 0
      %s288 = scalar_select %p287, %s21, 0
      %s289 = sadd.s32 %s288, %s286
      %s290 = smul.addr %s289, 4
      %s291 = scalar_lea.vmem %s1, %s290
      %s292 = smul.u32 144, %s22
      %p293 = scmp.lt.s32.totalorder %s21, 0
      %s294 = scalar_select %p293, %s21, 0
      %s295 = scalar_lea.vmem %s2, %s294
      %p296 = scmp.lt.s32.totalorder %s21, 0
      %s297 = scalar_select %p296, %s21, 0
      %s298 = scalar_lea.vmem %s3, %s297
      %s299 = smul.u32 32, %s20
      %p300 = scmp.lt.s32.totalorder %s299, 255
      %s301 = scalar_select %p300, %s299, 255
      %p302 = scmp.lt.s32.totalorder %s21, 0
      %s303 = scalar_select %p302, %s21, 0
      %s304 = sadd.s32 %s303, %s301
      %s305 = smul.addr %s304, 8
      %s306 = scalar_lea.vmem %s4, %s305
      %s307 = smul.u32 32, %s20
      %p309 = scmp.eq.s32.totalorder %s22, 0
      // Predicated region
      $region37: #{resnet_unet_forward.11} parent=35 // pred_check
        %p310 = pneg %p309
      $region38: #{resnet_unet_forward.11} parent=35 // pred_check_branch
        %312 = sbr.rel (%p310) target = $region40
      $region39: #{resnet_unet_forward.11} parent=35 // pred_region
        %313 = vst [vmem:[#allocation2] sm:$0xff] 0.0
        %314 = vst [vmem:[#allocation2 + $0x8] sm:$0xff] 0.0
        %315 = vst [vmem:[#allocation2 + $0x10] sm:$0xff] 0.0
        %316 = vst [vmem:[#allocation2 + $0x18] sm:$0xff] 0.0
        %317 = vst [vmem:[#allocation2 + $0x20] sm:$0xff] 0.0
        %318 = vst [vmem:[#allocation2 + $0x28] sm:$0xff] 0.0
        %319 = vst [vmem:[#allocation2 + $0x30] sm:$0xff] 0.0
        %320 = vst [vmem:[#allocation2 + $0x38] sm:$0xff] 0.0
        %321 = vst [vmem:[#allocation2 + $0x40] sm:$0xff] 0.0
        %322 = vst [vmem:[#allocation2 + $0x48] sm:$0xff] 0.0
        %323 = vst [vmem:[#allocation2 + $0x50] sm:$0xff] 0.0
        %324 = vst [vmem:[#allocation2 + $0x58] sm:$0xff] 0.0
        %325 = vst [vmem:[#allocation2 + $0x60] sm:$0xff] 0.0
        %326 = vst [vmem:[#allocation2 + $0x68] sm:$0xff] 0.0
        %327 = vst [vmem:[#allocation2 + $0x70] sm:$0xff] 0.0
        %328 = vst [vmem:[#allocation2 + $0x78] sm:$0xff] 0.0
        %329 = vst [vmem:[#allocation2 + $0x80] sm:$0xff] 0.0
        %330 = vst [vmem:[#allocation2 + $0x88] sm:$0xff] 0.0
        %331 = vst [vmem:[#allocation2 + $0x90] sm:$0xff] 0.0
        %332 = vst [vmem:[#allocation2 + $0x98] sm:$0xff] 0.0
        %333 = vst [vmem:[#allocation2 + $0xa0] sm:$0xff] 0.0
        %334 = vst [vmem:[#allocation2 + $0xa8] sm:$0xff] 0.0
        %335 = vst [vmem:[#allocation2 + $0xb0] sm:$0xff] 0.0
        %336 = vst [vmem:[#allocation2 + $0xb8] sm:$0xff] 0.0
        %337 = vst [vmem:[#allocation2 + $0xc0] sm:$0xff] 0.0
        %338 = vst [vmem:[#allocation2 + $0xc8] sm:$0xff] 0.0
        %339 = vst [vmem:[#allocation2 + $0xd0] sm:$0xff] 0.0
        %340 = vst [vmem:[#allocation2 + $0xd8] sm:$0xff] 0.0
        %341 = vst [vmem:[#allocation2 + $0xe0] sm:$0xff] 0.0
        %342 = vst [vmem:[#allocation2 + $0xe8] sm:$0xff] 0.0
        %343 = vst [vmem:[#allocation2 + $0xf0] sm:$0xff] 0.0
        %344 = vst [vmem:[#allocation2 + $0xf8] sm:$0xff] 0.0
      $region40: #{resnet_unet_forward.11} parent=35 // pred_fallthru
        _
      %v345 = vld [vmem:[#allocation2] sm:$0xff]
      %v346 = vld [vmem:[#allocation2 + $0x8] sm:$0xff]
      %v347 = vld [vmem:[#allocation2 + $0x10] sm:$0xff]
      %v348 = vld [vmem:[#allocation2 + $0x18] sm:$0xff]
      %v349 = vld [vmem:[#allocation2 + $0x20] sm:$0xff]
      %v350 = vld [vmem:[#allocation2 + $0x28] sm:$0xff]
      %v351 = vld [vmem:[#allocation2 + $0x30] sm:$0xff]
      %v352 = vld [vmem:[#allocation2 + $0x38] sm:$0xff]
      %v353 = vld [vmem:[#allocation2 + $0x40] sm:$0xff]
      %v354 = vld [vmem:[#allocation2 + $0x48] sm:$0xff]
      %v355 = vld [vmem:[#allocation2 + $0x50] sm:$0xff]
      %v356 = vld [vmem:[#allocation2 + $0x58] sm:$0xff]
      %v357 = vld [vmem:[#allocation2 + $0x60] sm:$0xff]
      %v358 = vld [vmem:[#allocation2 + $0x68] sm:$0xff]
      %v359 = vld [vmem:[#allocation2 + $0x70] sm:$0xff]
      %v360 = vld [vmem:[#allocation2 + $0x78] sm:$0xff]
      %v361 = vld [vmem:[#allocation2 + $0x80] sm:$0xff]
      %v362 = vld [vmem:[#allocation2 + $0x88] sm:$0xff]
      %v363 = vld [vmem:[#allocation2 + $0x90] sm:$0xff]
      %v364 = vld [vmem:[#allocation2 + $0x98] sm:$0xff]
      %v365 = vld [vmem:[#allocation2 + $0xa0] sm:$0xff]
      %v366 = vld [vmem:[#allocation2 + $0xa8] sm:$0xff]
      %v367 = vld [vmem:[#allocation2 + $0xb0] sm:$0xff]
      %v368 = vld [vmem:[#allocation2 + $0xb8] sm:$0xff]
      %v369 = vld [vmem:[#allocation2 + $0xc0] sm:$0xff]
      %v370 = vld [vmem:[#allocation2 + $0xc8] sm:$0xff]
      %v371 = vld [vmem:[#allocation2 + $0xd0] sm:$0xff]
      %v372 = vld [vmem:[#allocation2 + $0xd8] sm:$0xff]
      %v373 = vld [vmem:[#allocation2 + $0xe0] sm:$0xff]
      %v374 = vld [vmem:[#allocation2 + $0xe8] sm:$0xff]
      %v375 = vld [vmem:[#allocation2 + $0xf0] sm:$0xff]
      %v376 = vld [vmem:[#allocation2 + $0xf8] sm:$0xff]
      %v377 = vld [vmem:[%s281] sm:$0xff]
      %v378 = vld [vmem:[%s281 + $0x8] sm:$0xff]
      %v379 = vld [vmem:[%s281 + $0x10] sm:$0xff]
      %v380 = vld [vmem:[%s281 + $0x18] sm:$0xff]
      %v381 = vld [vmem:[%s281 + $0x20] sm:$0xf]
      %v382 = vld [vmem:[%s281 + $0x24] sm:$0xff]
      %v383 = vld [vmem:[%s281 + $0x2c] sm:$0xff]
      %v384 = vld [vmem:[%s281 + $0x34] sm:$0xff]
      %v385 = vld [vmem:[%s281 + $0x3c] sm:$0xff]
      %v386 = vld [vmem:[%s281 + $0x44] sm:$0xf]
      %v387 = vld [vmem:[%s281 + $0x48] sm:$0xff]
      %v388 = vld [vmem:[%s281 + $0x50] sm:$0xff]
      %v389 = vld [vmem:[%s281 + $0x58] sm:$0xff]
      %v390 = vld [vmem:[%s281 + $0x60] sm:$0xff]
      %v391 = vld [vmem:[%s281 + $0x68] sm:$0xf]
      %v392 = vld [vmem:[%s281 + $0x6c] sm:$0xff]
      %v393 = vld [vmem:[%s281 + $0x74] sm:$0xff]
      %v394 = vld [vmem:[%s281 + $0x7c] sm:$0xff]
      %v395 = vld [vmem:[%s281 + $0x84] sm:$0xff]
      %v396 = vld [vmem:[%s281 + $0x8c] sm:$0xf]
      %v397 = vld [vmem:[%s281 + $0x90] sm:$0xff]
      %v398 = vld [vmem:[%s281 + $0x98] sm:$0xff]
      %v399 = vld [vmem:[%s281 + $0xa0] sm:$0xff]
      %v400 = vld [vmem:[%s281 + $0xa8] sm:$0xff]
      %v401 = vld [vmem:[%s281 + $0xb0] sm:$0xf]
      %v402 = vld [vmem:[%s281 + $0xb4] sm:$0xff]
      %v403 = vld [vmem:[%s281 + $0xbc] sm:$0xff]
      %v404 = vld [vmem:[%s281 + $0xc4] sm:$0xff]
      %v405 = vld [vmem:[%s281 + $0xcc] sm:$0xff]
      %v406 = vld [vmem:[%s281 + $0xd4] sm:$0xf]
      %v407 = vld [vmem:[%s281 + $0xd8] sm:$0xff]
      %v408 = vld [vmem:[%s281 + $0xe0] sm:$0xff]
      %v409 = vld [vmem:[%s281 + $0xe8] sm:$0xff]
      %v410 = vld [vmem:[%s281 + $0xf0] sm:$0xff]
      %v411 = vld [vmem:[%s281 + $0xf8] sm:$0xf]
      %v412 = vld [vmem:[%s281 + $0xfc] sm:$0xff]
      %v413 = vld [vmem:[%s281 + $0x104] sm:$0xff]
      %v414 = vld [vmem:[%s281 + $0x10c] sm:$0xff]
      %v415 = vld [vmem:[%s281 + $0x114] sm:$0xff]
      %v416 = vld [vmem:[%s281 + $0x11c] sm:$0xf]
      %v417 = vld [vmem:[%s281 + $0x120] sm:$0xff]
      %v418 = vld [vmem:[%s281 + $0x128] sm:$0xff]
      %v419 = vld [vmem:[%s281 + $0x130] sm:$0xff]
      %v420 = vld [vmem:[%s281 + $0x138] sm:$0xff]
      %v421 = vld [vmem:[%s281 + $0x140] sm:$0xf]
      %v422 = vld [vmem:[%s281 + $0x144] sm:$0xff]
      %v423 = vld [vmem:[%s281 + $0x14c] sm:$0xff]
      %v424 = vld [vmem:[%s281 + $0x154] sm:$0xff]
      %v425 = vld [vmem:[%s281 + $0x15c] sm:$0xff]
      %v426 = vld [vmem:[%s281 + $0x164] sm:$0xf]
      %v427 = vld [vmem:[%s281 + $0x168] sm:$0xff]
      %v428 = vld [vmem:[%s281 + $0x170] sm:$0xff]
      %v429 = vld [vmem:[%s281 + $0x178] sm:$0xff]
      %v430 = vld [vmem:[%s281 + $0x180] sm:$0xff]
      %v431 = vld [vmem:[%s281 + $0x188] sm:$0xf]
      %v432 = vld [vmem:[%s281 + $0x18c] sm:$0xff]
      %v433 = vld [vmem:[%s281 + $0x194] sm:$0xff]
      %v434 = vld [vmem:[%s281 + $0x19c] sm:$0xff]
      %v435 = vld [vmem:[%s281 + $0x1a4] sm:$0xff]
      %v436 = vld [vmem:[%s281 + $0x1ac] sm:$0xf]
      %v437 = vld [vmem:[%s281 + $0x1b0] sm:$0xff]
      %v438 = vld [vmem:[%s281 + $0x1b8] sm:$0xff]
      %v439 = vld [vmem:[%s281 + $0x1c0] sm:$0xff]
      %v440 = vld [vmem:[%s281 + $0x1c8] sm:$0xff]
      %v441 = vld [vmem:[%s281 + $0x1d0] sm:$0xf]
      %v442 = vld [vmem:[%s281 + $0x1d4] sm:$0xff]
      %v443 = vld [vmem:[%s281 + $0x1dc] sm:$0xff]
      %v444 = vld [vmem:[%s281 + $0x1e4] sm:$0xff]
      %v445 = vld [vmem:[%s281 + $0x1ec] sm:$0xff]
      %v446 = vld [vmem:[%s281 + $0x1f4] sm:$0xf]
      %v447 = vld [vmem:[%s281 + $0x1f8] sm:$0xff]
      %v448 = vld [vmem:[%s281 + $0x200] sm:$0xff]
      %v449 = vld [vmem:[%s281 + $0x208] sm:$0xff]
      %v450 = vld [vmem:[%s281 + $0x210] sm:$0xff]
      %v451 = vld [vmem:[%s281 + $0x218] sm:$0xf]
      %v452 = vld [vmem:[%s281 + $0x21c] sm:$0xff]
      %v453 = vld [vmem:[%s281 + $0x224] sm:$0xff]
      %v454 = vld [vmem:[%s281 + $0x22c] sm:$0xff]
      %v455 = vld [vmem:[%s281 + $0x234] sm:$0xff]
      %v456 = vld [vmem:[%s281 + $0x23c] sm:$0xf]
      %v457 = vld [vmem:[%s281 + $0x240] sm:$0xff]
      %v458 = vld [vmem:[%s281 + $0x248] sm:$0xff]
      %v459 = vld [vmem:[%s281 + $0x250] sm:$0xff]
      %v460 = vld [vmem:[%s281 + $0x258] sm:$0xff]
      %v461 = vld [vmem:[%s281 + $0x260] sm:$0xf]
      %v462 = vld [vmem:[%s281 + $0x264] sm:$0xff]
      %v463 = vld [vmem:[%s281 + $0x26c] sm:$0xff]
      %v464 = vld [vmem:[%s281 + $0x274] sm:$0xff]
      %v465 = vld [vmem:[%s281 + $0x27c] sm:$0xff]
      %v466 = vld [vmem:[%s281 + $0x284] sm:$0xf]
      %v467 = vld [vmem:[%s281 + $0x288] sm:$0xff]
      %v468 = vld [vmem:[%s281 + $0x290] sm:$0xff]
      %v469 = vld [vmem:[%s281 + $0x298] sm:$0xff]
      %v470 = vld [vmem:[%s281 + $0x2a0] sm:$0xff]
      %v471 = vld [vmem:[%s281 + $0x2a8] sm:$0xf]
      %v472 = vld [vmem:[%s281 + $0x2ac] sm:$0xff]
      %v473 = vld [vmem:[%s281 + $0x2b4] sm:$0xff]
      %v474 = vld [vmem:[%s281 + $0x2bc] sm:$0xff]
      %v475 = vld [vmem:[%s281 + $0x2c4] sm:$0xff]
      %v476 = vld [vmem:[%s281 + $0x2cc] sm:$0xf]
      %v477 = vld [vmem:[%s281 + $0x2d0] sm:$0xff]
      %v478 = vld [vmem:[%s281 + $0x2d8] sm:$0xff]
      %v479 = vld [vmem:[%s281 + $0x2e0] sm:$0xff]
      %v480 = vld [vmem:[%s281 + $0x2e8] sm:$0xff]
      %v481 = vld [vmem:[%s281 + $0x2f0] sm:$0xf]
      %v482 = vld [vmem:[%s281 + $0x2f4] sm:$0xff]
      %v483 = vld [vmem:[%s281 + $0x2fc] sm:$0xff]
      %v484 = vld [vmem:[%s281 + $0x304] sm:$0xff]
      %v485 = vld [vmem:[%s281 + $0x30c] sm:$0xff]
      %v486 = vld [vmem:[%s281 + $0x314] sm:$0xf]
      %v487 = vld [vmem:[%s281 + $0x318] sm:$0xff]
      %v488 = vld [vmem:[%s281 + $0x320] sm:$0xff]
      %v489 = vld [vmem:[%s281 + $0x328] sm:$0xff]
      %v490 = vld [vmem:[%s281 + $0x330] sm:$0xff]
      %v491 = vld [vmem:[%s281 + $0x338] sm:$0xf]
      %v492 = vld [vmem:[%s281 + $0x33c] sm:$0xff]
      %v493 = vld [vmem:[%s281 + $0x344] sm:$0xff]
      %v494 = vld [vmem:[%s281 + $0x34c] sm:$0xff]
      %v495 = vld [vmem:[%s281 + $0x354] sm:$0xff]
      %v496 = vld [vmem:[%s281 + $0x35c] sm:$0xf]
      %v497 = vld [vmem:[%s281 + $0x360] sm:$0xff]
      %v498 = vld [vmem:[%s281 + $0x368] sm:$0xff]
      %v499 = vld [vmem:[%s281 + $0x370] sm:$0xff]
      %v500 = vld [vmem:[%s281 + $0x378] sm:$0xff]
      %v501 = vld [vmem:[%s281 + $0x380] sm:$0xf]
      %v502 = vld [vmem:[%s281 + $0x384] sm:$0xff]
      %v503 = vld [vmem:[%s281 + $0x38c] sm:$0xff]
      %v504 = vld [vmem:[%s281 + $0x394] sm:$0xff]
      %v505 = vld [vmem:[%s281 + $0x39c] sm:$0xff]
      %v506 = vld [vmem:[%s281 + $0x3a4] sm:$0xf]
      %v507 = vld [vmem:[%s281 + $0x3a8] sm:$0xff]
      %v508 = vld [vmem:[%s281 + $0x3b0] sm:$0xff]
      %v509 = vld [vmem:[%s281 + $0x3b8] sm:$0xff]
      %v510 = vld [vmem:[%s281 + $0x3c0] sm:$0xff]
      %v511 = vld [vmem:[%s281 + $0x3c8] sm:$0xf]
      %v512 = vld [vmem:[%s281 + $0x3cc] sm:$0xff]
      %v513 = vld [vmem:[%s281 + $0x3d4] sm:$0xff]
      %v514 = vld [vmem:[%s281 + $0x3dc] sm:$0xff]
      %v515 = vld [vmem:[%s281 + $0x3e4] sm:$0xff]
      %v516 = vld [vmem:[%s281 + $0x3ec] sm:$0xf]
      %v517 = vld [vmem:[%s281 + $0x3f0] sm:$0xff]
      %v518 = vld [vmem:[%s281 + $0x3f8] sm:$0xff]
      %v519 = vld [vmem:[%s281 + $0x400] sm:$0xff]
      %v520 = vld [vmem:[%s281 + $0x408] sm:$0xff]
      %v521 = vld [vmem:[%s281 + $0x410] sm:$0xf]
      %v522 = vld [vmem:[%s281 + $0x414] sm:$0xff]
      %v523 = vld [vmem:[%s281 + $0x41c] sm:$0xff]
      %v524 = vld [vmem:[%s281 + $0x424] sm:$0xff]
      %v525 = vld [vmem:[%s281 + $0x42c] sm:$0xff]
      %v526 = vld [vmem:[%s281 + $0x434] sm:$0xf]
      %v527 = vld [vmem:[%s281 + $0x438] sm:$0xff]
      %v528 = vld [vmem:[%s281 + $0x440] sm:$0xff]
      %v529 = vld [vmem:[%s281 + $0x448] sm:$0xff]
      %v530 = vld [vmem:[%s281 + $0x450] sm:$0xff]
      %v531 = vld [vmem:[%s281 + $0x458] sm:$0xf]
      %v532 = vld [vmem:[%s281 + $0x45c] sm:$0xff]
      %v533 = vld [vmem:[%s281 + $0x464] sm:$0xff]
      %v534 = vld [vmem:[%s281 + $0x46c] sm:$0xff]
      %v535 = vld [vmem:[%s281 + $0x474] sm:$0xff]
      %v536 = vld [vmem:[%s281 + $0x47c] sm:$0xf]
      %v537 = vld [vmem:[%s291] sm:$0xf]
      %v538 = vld [vmem:[%s291 + $0x4] sm:$0xf]
      %v539 = vld [vmem:[%s291 + $0x8] sm:$0xf]
      %v540 = vld [vmem:[%s291 + $0xc] sm:$0xf]
      %v541 = vld [vmem:[%s291 + $0x10] sm:$0xf]
      %v542 = vld [vmem:[%s291 + $0x14] sm:$0xf]
      %v543 = vld [vmem:[%s291 + $0x18] sm:$0xf]
      %v544 = vld [vmem:[%s291 + $0x1c] sm:$0xf]
      %v545 = vld [vmem:[%s291 + $0x20] sm:$0xf]
      %v546 = vld [vmem:[%s291 + $0x24] sm:$0xf]
      %v547 = vld [vmem:[%s291 + $0x28] sm:$0xf]
      %v548 = vld [vmem:[%s291 + $0x2c] sm:$0xf]
      %v549 = vld [vmem:[%s291 + $0x30] sm:$0xf]
      %v550 = vld [vmem:[%s291 + $0x34] sm:$0xf]
      %v551 = vld [vmem:[%s291 + $0x38] sm:$0xf]
      %v552 = vld [vmem:[%s291 + $0x3c] sm:$0xf]
      %v553 = vld [vmem:[%s291 + $0x40] sm:$0xf]
      %v554 = vld [vmem:[%s291 + $0x44] sm:$0xf]
      %v555 = vld [vmem:[%s291 + $0x48] sm:$0xf]
      %v556 = vld [vmem:[%s291 + $0x4c] sm:$0xf]
      %v557 = vld [vmem:[%s291 + $0x50] sm:$0xf]
      %v558 = vld [vmem:[%s291 + $0x54] sm:$0xf]
      %v559 = vld [vmem:[%s291 + $0x58] sm:$0xf]
      %v560 = vld [vmem:[%s291 + $0x5c] sm:$0xf]
      %v561 = vld [vmem:[%s291 + $0x60] sm:$0xf]
      %v562 = vld [vmem:[%s291 + $0x64] sm:$0xf]
      %v563 = vld [vmem:[%s291 + $0x68] sm:$0xf]
      %v564 = vld [vmem:[%s291 + $0x6c] sm:$0xf]
      %v565 = vld [vmem:[%s291 + $0x70] sm:$0xf]
      %v566 = vld [vmem:[%s291 + $0x74] sm:$0xf]
      %v567 = vld [vmem:[%s291 + $0x78] sm:$0xf]
      %v568 = vld [vmem:[%s291 + $0x7c] sm:$0xf]
      %v569 = vld [vmem:[%s291 + $0x80] sm:$0xf]
      %v570 = vld [vmem:[%s291 + $0x84] sm:$0xf]
      %v571 = vld [vmem:[%s291 + $0x88] sm:$0xf]
      %v572 = vld [vmem:[%s291 + $0x8c] sm:$0xf]
      %v573 = vld [vmem:[%s291 + $0x90] sm:$0xf]
      %v574 = vld [vmem:[%s291 + $0x94] sm:$0xf]
      %v575 = vld [vmem:[%s291 + $0x98] sm:$0xf]
      %v576 = vld [vmem:[%s291 + $0x9c] sm:$0xf]
      %v577 = vld [vmem:[%s291 + $0xa0] sm:$0xf]
      %v578 = vld [vmem:[%s291 + $0xa4] sm:$0xf]
      %v579 = vld [vmem:[%s291 + $0xa8] sm:$0xf]
      %v580 = vld [vmem:[%s291 + $0xac] sm:$0xf]
      %v581 = vld [vmem:[%s291 + $0xb0] sm:$0xf]
      %v582 = vld [vmem:[%s291 + $0xb4] sm:$0xf]
      %v583 = vld [vmem:[%s291 + $0xb8] sm:$0xf]
      %v584 = vld [vmem:[%s291 + $0xbc] sm:$0xf]
      %v585 = vld [vmem:[%s291 + $0xc0] sm:$0xf]
      %v586 = vld [vmem:[%s291 + $0xc4] sm:$0xf]
      %v587 = vld [vmem:[%s291 + $0xc8] sm:$0xf]
      %v588 = vld [vmem:[%s291 + $0xcc] sm:$0xf]
      %v589 = vld [vmem:[%s291 + $0xd0] sm:$0xf]
      %v590 = vld [vmem:[%s291 + $0xd4] sm:$0xf]
      %v591 = vld [vmem:[%s291 + $0xd8] sm:$0xf]
      %v592 = vld [vmem:[%s291 + $0xdc] sm:$0xf]
      %v593 = vld [vmem:[%s291 + $0xe0] sm:$0xf]
      %v594 = vld [vmem:[%s291 + $0xe4] sm:$0xf]
      %v595 = vld [vmem:[%s291 + $0xe8] sm:$0xf]
      %v596 = vld [vmem:[%s291 + $0xec] sm:$0xf]
      %v597 = vld [vmem:[%s291 + $0xf0] sm:$0xf]
      %v598 = vld [vmem:[%s291 + $0xf4] sm:$0xf]
      %v599 = vld [vmem:[%s291 + $0xf8] sm:$0xf]
      %v600 = vld [vmem:[%s291 + $0xfc] sm:$0xf]
      %v601 = vld [vmem:[%s291 + $0x100] sm:$0xf]
      %v602 = vld [vmem:[%s291 + $0x104] sm:$0xf]
      %v603 = vld [vmem:[%s291 + $0x108] sm:$0xf]
      %v604 = vld [vmem:[%s291 + $0x10c] sm:$0xf]
      %v605 = vld [vmem:[%s291 + $0x110] sm:$0xf]
      %v606 = vld [vmem:[%s291 + $0x114] sm:$0xf]
      %v607 = vld [vmem:[%s291 + $0x118] sm:$0xf]
      %v608 = vld [vmem:[%s291 + $0x11c] sm:$0xf]
      %v609 = vld [vmem:[%s291 + $0x120] sm:$0xf]
      %v610 = vld [vmem:[%s291 + $0x124] sm:$0xf]
      %v611 = vld [vmem:[%s291 + $0x128] sm:$0xf]
      %v612 = vld [vmem:[%s291 + $0x12c] sm:$0xf]
      %v613 = vld [vmem:[%s291 + $0x130] sm:$0xf]
      %v614 = vld [vmem:[%s291 + $0x134] sm:$0xf]
      %v615 = vld [vmem:[%s291 + $0x138] sm:$0xf]
      %v616 = vld [vmem:[%s291 + $0x13c] sm:$0xf]
      %v617 = vld [vmem:[%s291 + $0x140] sm:$0xf]
      %v618 = vld [vmem:[%s291 + $0x144] sm:$0xf]
      %v619 = vld [vmem:[%s291 + $0x148] sm:$0xf]
      %v620 = vld [vmem:[%s291 + $0x14c] sm:$0xf]
      %v621 = vld [vmem:[%s291 + $0x150] sm:$0xf]
      %v622 = vld [vmem:[%s291 + $0x154] sm:$0xf]
      %v623 = vld [vmem:[%s291 + $0x158] sm:$0xf]
      %v624 = vld [vmem:[%s291 + $0x15c] sm:$0xf]
      %v625 = vld [vmem:[%s291 + $0x160] sm:$0xf]
      %v626 = vld [vmem:[%s291 + $0x164] sm:$0xf]
      %v627 = vld [vmem:[%s291 + $0x168] sm:$0xf]
      %v628 = vld [vmem:[%s291 + $0x16c] sm:$0xf]
      %v629 = vld [vmem:[%s291 + $0x170] sm:$0xf]
      %v630 = vld [vmem:[%s291 + $0x174] sm:$0xf]
      %v631 = vld [vmem:[%s291 + $0x178] sm:$0xf]
      %v632 = vld [vmem:[%s291 + $0x17c] sm:$0xf]
      %v633 = vld [vmem:[%s291 + $0x180] sm:$0xf]
      %v634 = vld [vmem:[%s291 + $0x184] sm:$0xf]
      %v635 = vld [vmem:[%s291 + $0x188] sm:$0xf]
      %v636 = vld [vmem:[%s291 + $0x18c] sm:$0xf]
      %v637 = vld [vmem:[%s291 + $0x190] sm:$0xf]
      %v638 = vld [vmem:[%s291 + $0x194] sm:$0xf]
      %v639 = vld [vmem:[%s291 + $0x198] sm:$0xf]
      %v640 = vld [vmem:[%s291 + $0x19c] sm:$0xf]
      %v641 = vld [vmem:[%s291 + $0x1a0] sm:$0xf]
      %v642 = vld [vmem:[%s291 + $0x1a4] sm:$0xf]
      %v643 = vld [vmem:[%s291 + $0x1a8] sm:$0xf]
      %v644 = vld [vmem:[%s291 + $0x1ac] sm:$0xf]
      %v645 = vld [vmem:[%s291 + $0x1b0] sm:$0xf]
      %v646 = vld [vmem:[%s291 + $0x1b4] sm:$0xf]
      %v647 = vld [vmem:[%s291 + $0x1b8] sm:$0xf]
      %v648 = vld [vmem:[%s291 + $0x1bc] sm:$0xf]
      %v649 = vld [vmem:[%s291 + $0x1c0] sm:$0xf]
      %v650 = vld [vmem:[%s291 + $0x1c4] sm:$0xf]
      %v651 = vld [vmem:[%s291 + $0x1c8] sm:$0xf]
      %v652 = vld [vmem:[%s291 + $0x1cc] sm:$0xf]
      %v653 = vld [vmem:[%s291 + $0x1d0] sm:$0xf]
      %v654 = vld [vmem:[%s291 + $0x1d4] sm:$0xf]
      %v655 = vld [vmem:[%s291 + $0x1d8] sm:$0xf]
      %v656 = vld [vmem:[%s291 + $0x1dc] sm:$0xf]
      %v657 = vld [vmem:[%s291 + $0x1e0] sm:$0xf]
      %v658 = vld [vmem:[%s291 + $0x1e4] sm:$0xf]
      %v659 = vld [vmem:[%s291 + $0x1e8] sm:$0xf]
      %v660 = vld [vmem:[%s291 + $0x1ec] sm:$0xf]
      %v661 = vld [vmem:[%s291 + $0x1f0] sm:$0xf]
      %v662 = vld [vmem:[%s291 + $0x1f4] sm:$0xf]
      %v663 = vld [vmem:[%s291 + $0x1f8] sm:$0xf]
      %v664 = vld [vmem:[%s291 + $0x1fc] sm:$0xf]
      %v665 = vld [vmem:[%s291 + $0x200] sm:$0xf]
      %v666 = vld [vmem:[%s291 + $0x204] sm:$0xf]
      %v667 = vld [vmem:[%s291 + $0x208] sm:$0xf]
      %v668 = vld [vmem:[%s291 + $0x20c] sm:$0xf]
      %v669 = vld [vmem:[%s291 + $0x210] sm:$0xf]
      %v670 = vld [vmem:[%s291 + $0x214] sm:$0xf]
      %v671 = vld [vmem:[%s291 + $0x218] sm:$0xf]
      %v672 = vld [vmem:[%s291 + $0x21c] sm:$0xf]
      %v673 = vld [vmem:[%s291 + $0x220] sm:$0xf]
      %v674 = vld [vmem:[%s291 + $0x224] sm:$0xf]
      %v675 = vld [vmem:[%s291 + $0x228] sm:$0xf]
      %v676 = vld [vmem:[%s291 + $0x22c] sm:$0xf]
      %v677 = vld [vmem:[%s291 + $0x230] sm:$0xf]
      %v678 = vld [vmem:[%s291 + $0x234] sm:$0xf]
      %v679 = vld [vmem:[%s291 + $0x238] sm:$0xf]
      %v680 = vld [vmem:[%s291 + $0x23c] sm:$0xf]
      %v841 = vunpack.c.l.b16 %v377
      %v842 = vunpack.c.h.b16 %v377
      %v843 = vunpack.c.l.b16 %v378
      %v844 = vunpack.c.h.b16 %v378
      %v845 = vunpack.c.l.b16 %v379
      %v846 = vunpack.c.h.b16 %v379
      %v847 = vunpack.c.l.b16 %v380
      %v848 = vunpack.c.h.b16 %v380
      %v849 = vunpack.c.l.b16 %v381
      %v850 = vunpack.c.l.b16 %v382
      %v851 = vunpack.c.h.b16 %v382
      %v852 = vunpack.c.l.b16 %v383
      %v853 = vunpack.c.h.b16 %v383
      %v854 = vunpack.c.l.b16 %v384
      %v855 = vunpack.c.h.b16 %v384
      %v856 = vunpack.c.l.b16 %v385
      %v857 = vunpack.c.h.b16 %v385
      %v858 = vunpack.c.l.b16 %v386
      %v859 = vunpack.c.l.b16 %v387
      %v860 = vunpack.c.h.b16 %v387
      %v861 = vunpack.c.l.b16 %v388
      %v862 = vunpack.c.h.b16 %v388
      %v863 = vunpack.c.l.b16 %v389
      %v864 = vunpack.c.h.b16 %v389
      %v865 = vunpack.c.l.b16 %v390
      %v866 = vunpack.c.h.b16 %v390
      %v867 = vunpack.c.l.b16 %v391
      %v868 = vunpack.c.l.b16 %v392
      %v869 = vunpack.c.h.b16 %v392
      %v870 = vunpack.c.l.b16 %v393
      %v871 = vunpack.c.h.b16 %v393
      %v872 = vunpack.c.l.b16 %v394
      %v873 = vunpack.c.h.b16 %v394
      %v874 = vunpack.c.l.b16 %v395
      %v875 = vunpack.c.h.b16 %v395
      %v876 = vunpack.c.l.b16 %v396
      %v877 = vunpack.c.l.b16 %v397
      %v878 = vunpack.c.h.b16 %v397
      %v879 = vunpack.c.l.b16 %v398
      %v880 = vunpack.c.h.b16 %v398
      %v881 = vunpack.c.l.b16 %v399
      %v882 = vunpack.c.h.b16 %v399
      %v883 = vunpack.c.l.b16 %v400
      %v884 = vunpack.c.h.b16 %v400
      %v885 = vunpack.c.l.b16 %v401
      %v886 = vunpack.c.l.b16 %v402
      %v887 = vunpack.c.h.b16 %v402
      %v888 = vunpack.c.l.b16 %v403
      %v889 = vunpack.c.h.b16 %v403
      %v890 = vunpack.c.l.b16 %v404
      %v891 = vunpack.c.h.b16 %v404
      %v892 = vunpack.c.l.b16 %v405
      %v893 = vunpack.c.h.b16 %v405
      %v894 = vunpack.c.l.b16 %v406
      %v895 = vunpack.c.l.b16 %v407
      %v896 = vunpack.c.h.b16 %v407
      %v897 = vunpack.c.l.b16 %v408
      %v898 = vunpack.c.h.b16 %v408
      %v899 = vunpack.c.l.b16 %v409
      %v900 = vunpack.c.h.b16 %v409
      %v901 = vunpack.c.l.b16 %v410
      %v902 = vunpack.c.h.b16 %v410
      %v903 = vunpack.c.l.b16 %v411
      %v904 = vunpack.c.l.b16 %v412
      %v905 = vunpack.c.h.b16 %v412
      %v906 = vunpack.c.l.b16 %v413
      %v907 = vunpack.c.h.b16 %v413
      %v908 = vunpack.c.l.b16 %v414
      %v909 = vunpack.c.h.b16 %v414
      %v910 = vunpack.c.l.b16 %v415
      %v911 = vunpack.c.h.b16 %v415
      %v912 = vunpack.c.l.b16 %v416
      %v913 = vunpack.c.l.b16 %v417
      %v914 = vunpack.c.h.b16 %v417
      %v915 = vunpack.c.l.b16 %v418
      %v916 = vunpack.c.h.b16 %v418
      %v917 = vunpack.c.l.b16 %v419
      %v918 = vunpack.c.h.b16 %v419
      %v919 = vunpack.c.l.b16 %v420
      %v920 = vunpack.c.h.b16 %v420
      %v921 = vunpack.c.l.b16 %v421
      %v922 = vunpack.c.l.b16 %v422
      %v923 = vunpack.c.h.b16 %v422
      %v924 = vunpack.c.l.b16 %v423
      %v925 = vunpack.c.h.b16 %v423
      %v926 = vunpack.c.l.b16 %v424
      %v927 = vunpack.c.h.b16 %v424
      %v928 = vunpack.c.l.b16 %v425
      %v929 = vunpack.c.h.b16 %v425
      %v930 = vunpack.c.l.b16 %v426
      %v931 = vunpack.c.l.b16 %v427
      %v932 = vunpack.c.h.b16 %v427
      %v933 = vunpack.c.l.b16 %v428
      %v934 = vunpack.c.h.b16 %v428
      %v935 = vunpack.c.l.b16 %v429
      %v936 = vunpack.c.h.b16 %v429
      %v937 = vunpack.c.l.b16 %v430
      %v938 = vunpack.c.h.b16 %v430
      %v939 = vunpack.c.l.b16 %v431
      %v940 = vunpack.c.l.b16 %v432
      %v941 = vunpack.c.h.b16 %v432
      %v942 = vunpack.c.l.b16 %v433
      %v943 = vunpack.c.h.b16 %v433
      %v944 = vunpack.c.l.b16 %v434
      %v945 = vunpack.c.h.b16 %v434
      %v946 = vunpack.c.l.b16 %v435
      %v947 = vunpack.c.h.b16 %v435
      %v948 = vunpack.c.l.b16 %v436
      %v949 = vunpack.c.l.b16 %v437
      %v950 = vunpack.c.h.b16 %v437
      %v951 = vunpack.c.l.b16 %v438
      %v952 = vunpack.c.h.b16 %v438
      %v953 = vunpack.c.l.b16 %v439
      %v954 = vunpack.c.h.b16 %v439
      %v955 = vunpack.c.l.b16 %v440
      %v956 = vunpack.c.h.b16 %v440
      %v957 = vunpack.c.l.b16 %v441
      %v958 = vunpack.c.l.b16 %v442
      %v959 = vunpack.c.h.b16 %v442
      %v960 = vunpack.c.l.b16 %v443
      %v961 = vunpack.c.h.b16 %v443
      %v962 = vunpack.c.l.b16 %v444
      %v963 = vunpack.c.h.b16 %v444
      %v964 = vunpack.c.l.b16 %v445
      %v965 = vunpack.c.h.b16 %v445
      %v966 = vunpack.c.l.b16 %v446
      %v967 = vunpack.c.l.b16 %v447
      %v968 = vunpack.c.h.b16 %v447
      %v969 = vunpack.c.l.b16 %v448
      %v970 = vunpack.c.h.b16 %v448
      %v971 = vunpack.c.l.b16 %v449
      %v972 = vunpack.c.h.b16 %v449
      %v973 = vunpack.c.l.b16 %v450
      %v974 = vunpack.c.h.b16 %v450
      %v975 = vunpack.c.l.b16 %v451
      %v976 = vunpack.c.l.b16 %v452
      %v977 = vunpack.c.h.b16 %v452
      %v978 = vunpack.c.l.b16 %v453
      %v979 = vunpack.c.h.b16 %v453
      %v980 = vunpack.c.l.b16 %v454
      %v981 = vunpack.c.h.b16 %v454
      %v982 = vunpack.c.l.b16 %v455
      %v983 = vunpack.c.h.b16 %v455
      %v984 = vunpack.c.l.b16 %v456
      %v985 = vunpack.c.l.b16 %v457
      %v986 = vunpack.c.h.b16 %v457
      %v987 = vunpack.c.l.b16 %v458
      %v988 = vunpack.c.h.b16 %v458
      %v989 = vunpack.c.l.b16 %v459
      %v990 = vunpack.c.h.b16 %v459
      %v991 = vunpack.c.l.b16 %v460
      %v992 = vunpack.c.h.b16 %v460
      %v993 = vunpack.c.l.b16 %v461
      %v994 = vunpack.c.l.b16 %v462
      %v995 = vunpack.c.h.b16 %v462
      %v996 = vunpack.c.l.b16 %v463
      %v997 = vunpack.c.h.b16 %v463
      %v998 = vunpack.c.l.b16 %v464
      %v999 = vunpack.c.h.b16 %v464
      %v1000 = vunpack.c.l.b16 %v465
      %v1001 = vunpack.c.h.b16 %v465
      %v1002 = vunpack.c.l.b16 %v466
      %v1003 = vunpack.c.l.b16 %v467
      %v1004 = vunpack.c.h.b16 %v467
      %v1005 = vunpack.c.l.b16 %v468
      %v1006 = vunpack.c.h.b16 %v468
      %v1007 = vunpack.c.l.b16 %v469
      %v1008 = vunpack.c.h.b16 %v469
      %v1009 = vunpack.c.l.b16 %v470
      %v1010 = vunpack.c.h.b16 %v470
      %v1011 = vunpack.c.l.b16 %v471
      %v1012 = vunpack.c.l.b16 %v472
      %v1013 = vunpack.c.h.b16 %v472
      %v1014 = vunpack.c.l.b16 %v473
      %v1015 = vunpack.c.h.b16 %v473
      %v1016 = vunpack.c.l.b16 %v474
      %v1017 = vunpack.c.h.b16 %v474
      %v1018 = vunpack.c.l.b16 %v475
      %v1019 = vunpack.c.h.b16 %v475
      %v1020 = vunpack.c.l.b16 %v476
      %v1021 = vunpack.c.l.b16 %v477
      %v1022 = vunpack.c.h.b16 %v477
      %v1023 = vunpack.c.l.b16 %v478
      %v1024 = vunpack.c.h.b16 %v478
      %v1025 = vunpack.c.l.b16 %v479
      %v1026 = vunpack.c.h.b16 %v479
      %v1027 = vunpack.c.l.b16 %v480
      %v1028 = vunpack.c.h.b16 %v480
      %v1029 = vunpack.c.l.b16 %v481
      %v1030 = vunpack.c.l.b16 %v482
      %v1031 = vunpack.c.h.b16 %v482
      %v1032 = vunpack.c.l.b16 %v483
      %v1033 = vunpack.c.h.b16 %v483
      %v1034 = vunpack.c.l.b16 %v484
      %v1035 = vunpack.c.h.b16 %v484
      %v1036 = vunpack.c.l.b16 %v485
      %v1037 = vunpack.c.h.b16 %v485
      %v1038 = vunpack.c.l.b16 %v486
      %v1039 = vunpack.c.l.b16 %v487
      %v1040 = vunpack.c.h.b16 %v487
      %v1041 = vunpack.c.l.b16 %v488
      %v1042 = vunpack.c.h.b16 %v488
      %v1043 = vunpack.c.l.b16 %v489
      %v1044 = vunpack.c.h.b16 %v489
      %v1045 = vunpack.c.l.b16 %v490
      %v1046 = vunpack.c.h.b16 %v490
      %v1047 = vunpack.c.l.b16 %v491
      %v1048 = vunpack.c.l.b16 %v492
      %v1049 = vunpack.c.h.b16 %v492
      %v1050 = vunpack.c.l.b16 %v493
      %v1051 = vunpack.c.h.b16 %v493
      %v1052 = vunpack.c.l.b16 %v494
      %v1053 = vunpack.c.h.b16 %v494
      %v1054 = vunpack.c.l.b16 %v495
      %v1055 = vunpack.c.h.b16 %v495
      %v1056 = vunpack.c.l.b16 %v496
      %v1057 = vunpack.c.l.b16 %v497
      %v1058 = vunpack.c.h.b16 %v497
      %v1059 = vunpack.c.l.b16 %v498
      %v1060 = vunpack.c.h.b16 %v498
      %v1061 = vunpack.c.l.b16 %v499
      %v1062 = vunpack.c.h.b16 %v499
      %v1063 = vunpack.c.l.b16 %v500
      %v1064 = vunpack.c.h.b16 %v500
      %v1065 = vunpack.c.l.b16 %v501
      %v1066 = vunpack.c.l.b16 %v502
      %v1067 = vunpack.c.h.b16 %v502
      %v1068 = vunpack.c.l.b16 %v503
      %v1069 = vunpack.c.h.b16 %v503
      %v1070 = vunpack.c.l.b16 %v504
      %v1071 = vunpack.c.h.b16 %v504
      %v1072 = vunpack.c.l.b16 %v505
      %v1073 = vunpack.c.h.b16 %v505
      %v1074 = vunpack.c.l.b16 %v506
      %v1075 = vunpack.c.l.b16 %v507
      %v1076 = vunpack.c.h.b16 %v507
      %v1077 = vunpack.c.l.b16 %v508
      %v1078 = vunpack.c.h.b16 %v508
      %v1079 = vunpack.c.l.b16 %v509
      %v1080 = vunpack.c.h.b16 %v509
      %v1081 = vunpack.c.l.b16 %v510
      %v1082 = vunpack.c.h.b16 %v510
      %v1083 = vunpack.c.l.b16 %v511
      %v1084 = vunpack.c.l.b16 %v512
      %v1085 = vunpack.c.h.b16 %v512
      %v1086 = vunpack.c.l.b16 %v513
      %v1087 = vunpack.c.h.b16 %v513
      %v1088 = vunpack.c.l.b16 %v514
      %v1089 = vunpack.c.h.b16 %v514
      %v1090 = vunpack.c.l.b16 %v515
      %v1091 = vunpack.c.h.b16 %v515
      %v1092 = vunpack.c.l.b16 %v516
      %v1093 = vunpack.c.l.b16 %v517
      %v1094 = vunpack.c.h.b16 %v517
      %v1095 = vunpack.c.l.b16 %v518
      %v1096 = vunpack.c.h.b16 %v518
      %v1097 = vunpack.c.l.b16 %v519
      %v1098 = vunpack.c.h.b16 %v519
      %v1099 = vunpack.c.l.b16 %v520
      %v1100 = vunpack.c.h.b16 %v520
      %v1101 = vunpack.c.l.b16 %v521
      %v1102 = vunpack.c.l.b16 %v522
      %v1103 = vunpack.c.h.b16 %v522
      %v1104 = vunpack.c.l.b16 %v523
      %v1105 = vunpack.c.h.b16 %v523
      %v1106 = vunpack.c.l.b16 %v524
      %v1107 = vunpack.c.h.b16 %v524
      %v1108 = vunpack.c.l.b16 %v525
      %v1109 = vunpack.c.h.b16 %v525
      %v1110 = vunpack.c.l.b16 %v526
      %v1111 = vunpack.c.l.b16 %v527
      %v1112 = vunpack.c.h.b16 %v527
      %v1113 = vunpack.c.l.b16 %v528
      %v1114 = vunpack.c.h.b16 %v528
      %v1115 = vunpack.c.l.b16 %v529
      %v1116 = vunpack.c.h.b16 %v529
      %v1117 = vunpack.c.l.b16 %v530
      %v1118 = vunpack.c.h.b16 %v530
      %v1119 = vunpack.c.l.b16 %v531
      %v1120 = vunpack.c.l.b16 %v532
      %v1121 = vunpack.c.h.b16 %v532
      %v1122 = vunpack.c.l.b16 %v533
      %v1123 = vunpack.c.h.b16 %v533
      %v1124 = vunpack.c.l.b16 %v534
      %v1125 = vunpack.c.h.b16 %v534
      %v1126 = vunpack.c.l.b16 %v535
      %v1127 = vunpack.c.h.b16 %v535
      %v1128 = vunpack.c.l.b16 %v536
      %v1129 = vpack.c.b16 %v850, %v841
      %v1130 = vpack.c.b16 %v851, %v842
      %v1131 = vpack.c.b16 %v852, %v843
      %v1132 = vpack.c.b16 %v853, %v844
      %v1133 = vpack.c.b16 %v854, %v845
      %v1134 = vpack.c.b16 %v855, %v846
      %v1135 = vpack.c.b16 %v856, %v847
      %v1136 = vpack.c.b16 %v857, %v848
      %v1137 = vpack.c.b16 %v858, %v849
      %v1138 = vpack.c.b16 %v868, %v859
      %v1139 = vpack.c.b16 %v869, %v860
      %v1140 = vpack.c.b16 %v870, %v861
      %v1141 = vpack.c.b16 %v871, %v862
      %v1142 = vpack.c.b16 %v872, %v863
      %v1143 = vpack.c.b16 %v873, %v864
      %v1144 = vpack.c.b16 %v874, %v865
      %v1145 = vpack.c.b16 %v875, %v866
      %v1146 = vpack.c.b16 %v876, %v867
      %v1147 = vpack.c.b16 %v886, %v877
      %v1148 = vpack.c.b16 %v887, %v878
      %v1149 = vpack.c.b16 %v888, %v879
      %v1150 = vpack.c.b16 %v889, %v880
      %v1151 = vpack.c.b16 %v890, %v881
      %v1152 = vpack.c.b16 %v891, %v882
      %v1153 = vpack.c.b16 %v892, %v883
      %v1154 = vpack.c.b16 %v893, %v884
      %v1155 = vpack.c.b16 %v894, %v885
      %v1156 = vpack.c.b16 %v904, %v895
      %v1157 = vpack.c.b16 %v905, %v896
      %v1158 = vpack.c.b16 %v906, %v897
      %v1159 = vpack.c.b16 %v907, %v898
      %v1160 = vpack.c.b16 %v908, %v899
      %v1161 = vpack.c.b16 %v909, %v900
      %v1162 = vpack.c.b16 %v910, %v901
      %v1163 = vpack.c.b16 %v911, %v902
      %v1164 = vpack.c.b16 %v912, %v903
      %v1165 = vpack.c.b16 %v922, %v913
      %v1166 = vpack.c.b16 %v923, %v914
      %v1167 = vpack.c.b16 %v924, %v915
      %v1168 = vpack.c.b16 %v925, %v916
      %v1169 = vpack.c.b16 %v926, %v917
      %v1170 = vpack.c.b16 %v927, %v918
      %v1171 = vpack.c.b16 %v928, %v919
      %v1172 = vpack.c.b16 %v929, %v920
      %v1173 = vpack.c.b16 %v930, %v921
      %v1174 = vpack.c.b16 %v940, %v931
      %v1175 = vpack.c.b16 %v941, %v932
      %v1176 = vpack.c.b16 %v942, %v933
      %v1177 = vpack.c.b16 %v943, %v934
      %v1178 = vpack.c.b16 %v944, %v935
      %v1179 = vpack.c.b16 %v945, %v936
      %v1180 = vpack.c.b16 %v946, %v937
      %v1181 = vpack.c.b16 %v947, %v938
      %v1182 = vpack.c.b16 %v948, %v939
      %v1183 = vpack.c.b16 %v958, %v949
      %v1184 = vpack.c.b16 %v959, %v950
      %v1185 = vpack.c.b16 %v960, %v951
      %v1186 = vpack.c.b16 %v961, %v952
      %v1187 = vpack.c.b16 %v962, %v953
      %v1188 = vpack.c.b16 %v963, %v954
      %v1189 = vpack.c.b16 %v964, %v955
      %v1190 = vpack.c.b16 %v965, %v956
      %v1191 = vpack.c.b16 %v966, %v957
      %v1192 = vpack.c.b16 %v976, %v967
      %v1193 = vpack.c.b16 %v977, %v968
      %v1194 = vpack.c.b16 %v978, %v969
      %v1195 = vpack.c.b16 %v979, %v970
      %v1196 = vpack.c.b16 %v980, %v971
      %v1197 = vpack.c.b16 %v981, %v972
      %v1198 = vpack.c.b16 %v982, %v973
      %v1199 = vpack.c.b16 %v983, %v974
      %v1200 = vpack.c.b16 %v984, %v975
      %v1201 = vpack.c.b16 %v994, %v985
      %v1202 = vpack.c.b16 %v995, %v986
      %v1203 = vpack.c.b16 %v996, %v987
      %v1204 = vpack.c.b16 %v997, %v988
      %v1205 = vpack.c.b16 %v998, %v989
      %v1206 = vpack.c.b16 %v999, %v990
      %v1207 = vpack.c.b16 %v1000, %v991
      %v1208 = vpack.c.b16 %v1001, %v992
      %v1209 = vpack.c.b16 %v1002, %v993
      %v1210 = vpack.c.b16 %v1012, %v1003
      %v1211 = vpack.c.b16 %v1013, %v1004
      %v1212 = vpack.c.b16 %v1014, %v1005
      %v1213 = vpack.c.b16 %v1015, %v1006
      %v1214 = vpack.c.b16 %v1016, %v1007
      %v1215 = vpack.c.b16 %v1017, %v1008
      %v1216 = vpack.c.b16 %v1018, %v1009
      %v1217 = vpack.c.b16 %v1019, %v1010
      %v1218 = vpack.c.b16 %v1020, %v1011
      %v1219 = vpack.c.b16 %v1030, %v1021
      %v1220 = vpack.c.b16 %v1031, %v1022
      %v1221 = vpack.c.b16 %v1032, %v1023
      %v1222 = vpack.c.b16 %v1033, %v1024
      %v1223 = vpack.c.b16 %v1034, %v1025
      %v1224 = vpack.c.b16 %v1035, %v1026
      %v1225 = vpack.c.b16 %v1036, %v1027
      %v1226 = vpack.c.b16 %v1037, %v1028
      %v1227 = vpack.c.b16 %v1038, %v1029
      %v1228 = vpack.c.b16 %v1048, %v1039
      %v1229 = vpack.c.b16 %v1049, %v1040
      %v1230 = vpack.c.b16 %v1050, %v1041
      %v1231 = vpack.c.b16 %v1051, %v1042
      %v1232 = vpack.c.b16 %v1052, %v1043
      %v1233 = vpack.c.b16 %v1053, %v1044
      %v1234 = vpack.c.b16 %v1054, %v1045
      %v1235 = vpack.c.b16 %v1055, %v1046
      %v1236 = vpack.c.b16 %v1056, %v1047
      %v1237 = vpack.c.b16 %v1066, %v1057
      %v1238 = vpack.c.b16 %v1067, %v1058
      %v1239 = vpack.c.b16 %v1068, %v1059
      %v1240 = vpack.c.b16 %v1069, %v1060
      %v1241 = vpack.c.b16 %v1070, %v1061
      %v1242 = vpack.c.b16 %v1071, %v1062
      %v1243 = vpack.c.b16 %v1072, %v1063
      %v1244 = vpack.c.b16 %v1073, %v1064
      %v1245 = vpack.c.b16 %v1074, %v1065
      %v1246 = vpack.c.b16 %v1084, %v1075
      %v1247 = vpack.c.b16 %v1085, %v1076
      %v1248 = vpack.c.b16 %v1086, %v1077
      %v1249 = vpack.c.b16 %v1087, %v1078
      %v1250 = vpack.c.b16 %v1088, %v1079
      %v1251 = vpack.c.b16 %v1089, %v1080
      %v1252 = vpack.c.b16 %v1090, %v1081
      %v1253 = vpack.c.b16 %v1091, %v1082
      %v1254 = vpack.c.b16 %v1092, %v1083
      %v1255 = vpack.c.b16 %v1102, %v1093
      %v1256 = vpack.c.b16 %v1103, %v1094
      %v1257 = vpack.c.b16 %v1104, %v1095
      %v1258 = vpack.c.b16 %v1105, %v1096
      %v1259 = vpack.c.b16 %v1106, %v1097
      %v1260 = vpack.c.b16 %v1107, %v1098
      %v1261 = vpack.c.b16 %v1108, %v1099
      %v1262 = vpack.c.b16 %v1109, %v1100
      %v1263 = vpack.c.b16 %v1110, %v1101
      %v1264 = vpack.c.b16 %v1120, %v1111
      %v1265 = vpack.c.b16 %v1121, %v1112
      %v1266 = vpack.c.b16 %v1122, %v1113
      %v1267 = vpack.c.b16 %v1123, %v1114
      %v1268 = vpack.c.b16 %v1124, %v1115
      %v1269 = vpack.c.b16 %v1125, %v1116
      %v1270 = vpack.c.b16 %v1126, %v1117
      %v1271 = vpack.c.b16 %v1127, %v1118
      %v1272 = vpack.c.b16 %v1128, %v1119
      %v1561 = vunpack.c.l.b16 %v537
      %v1562 = vunpack.c.l.b16 %v538
      %v1563 = vunpack.c.l.b16 %v539
      %v1564 = vunpack.c.l.b16 %v540
      %v1565 = vunpack.c.l.b16 %v541
      %v1566 = vunpack.c.l.b16 %v542
      %v1567 = vunpack.c.l.b16 %v543
      %v1568 = vunpack.c.l.b16 %v544
      %v1569 = vunpack.c.l.b16 %v545
      %v1570 = vunpack.c.l.b16 %v546
      %v1571 = vunpack.c.l.b16 %v547
      %v1572 = vunpack.c.l.b16 %v548
      %v1573 = vunpack.c.l.b16 %v549
      %v1574 = vunpack.c.l.b16 %v550
      %v1575 = vunpack.c.l.b16 %v551
      %v1576 = vunpack.c.l.b16 %v552
      %v1577 = vunpack.c.l.b16 %v553
      %v1578 = vunpack.c.l.b16 %v554
      %v1579 = vunpack.c.l.b16 %v555
      %v1580 = vunpack.c.l.b16 %v556
      %v1581 = vunpack.c.l.b16 %v557
      %v1582 = vunpack.c.l.b16 %v558
      %v1583 = vunpack.c.l.b16 %v559
      %v1584 = vunpack.c.l.b16 %v560
      %v1585 = vunpack.c.l.b16 %v561
      %v1586 = vunpack.c.l.b16 %v562
      %v1587 = vunpack.c.l.b16 %v563
      %v1588 = vunpack.c.l.b16 %v564
      %v1589 = vunpack.c.l.b16 %v565
      %v1590 = vunpack.c.l.b16 %v566
      %v1591 = vunpack.c.l.b16 %v567
      %v1592 = vunpack.c.l.b16 %v568
      %v1593 = vunpack.c.l.b16 %v569
      %v1594 = vunpack.c.l.b16 %v570
      %v1595 = vunpack.c.l.b16 %v571
      %v1596 = vunpack.c.l.b16 %v572
      %v1597 = vunpack.c.l.b16 %v573
      %v1598 = vunpack.c.l.b16 %v574
      %v1599 = vunpack.c.l.b16 %v575
      %v1600 = vunpack.c.l.b16 %v576
      %v1601 = vunpack.c.l.b16 %v577
      %v1602 = vunpack.c.l.b16 %v578
      %v1603 = vunpack.c.l.b16 %v579
      %v1604 = vunpack.c.l.b16 %v580
      %v1605 = vunpack.c.l.b16 %v581
      %v1606 = vunpack.c.l.b16 %v582
      %v1607 = vunpack.c.l.b16 %v583
      %v1608 = vunpack.c.l.b16 %v584
      %v1609 = vunpack.c.l.b16 %v585
      %v1610 = vunpack.c.l.b16 %v586
      %v1611 = vunpack.c.l.b16 %v587
      %v1612 = vunpack.c.l.b16 %v588
      %v1613 = vunpack.c.l.b16 %v589
      %v1614 = vunpack.c.l.b16 %v590
      %v1615 = vunpack.c.l.b16 %v591
      %v1616 = vunpack.c.l.b16 %v592
      %v1617 = vunpack.c.l.b16 %v593
      %v1618 = vunpack.c.l.b16 %v594
      %v1619 = vunpack.c.l.b16 %v595
      %v1620 = vunpack.c.l.b16 %v596
      %v1621 = vunpack.c.l.b16 %v597
      %v1622 = vunpack.c.l.b16 %v598
      %v1623 = vunpack.c.l.b16 %v599
      %v1624 = vunpack.c.l.b16 %v600
      %v1625 = vunpack.c.l.b16 %v601
      %v1626 = vunpack.c.l.b16 %v602
      %v1627 = vunpack.c.l.b16 %v603
      %v1628 = vunpack.c.l.b16 %v604
      %v1629 = vunpack.c.l.b16 %v605
      %v1630 = vunpack.c.l.b16 %v606
      %v1631 = vunpack.c.l.b16 %v607
      %v1632 = vunpack.c.l.b16 %v608
      %v1633 = vunpack.c.l.b16 %v609
      %v1634 = vunpack.c.l.b16 %v610
      %v1635 = vunpack.c.l.b16 %v611
      %v1636 = vunpack.c.l.b16 %v612
      %v1637 = vunpack.c.l.b16 %v613
      %v1638 = vunpack.c.l.b16 %v614
      %v1639 = vunpack.c.l.b16 %v615
      %v1640 = vunpack.c.l.b16 %v616
      %v1641 = vunpack.c.l.b16 %v617
      %v1642 = vunpack.c.l.b16 %v618
      %v1643 = vunpack.c.l.b16 %v619
      %v1644 = vunpack.c.l.b16 %v620
      %v1645 = vunpack.c.l.b16 %v621
      %v1646 = vunpack.c.l.b16 %v622
      %v1647 = vunpack.c.l.b16 %v623
      %v1648 = vunpack.c.l.b16 %v624
      %v1649 = vunpack.c.l.b16 %v625
      %v1650 = vunpack.c.l.b16 %v626
      %v1651 = vunpack.c.l.b16 %v627
      %v1652 = vunpack.c.l.b16 %v628
      %v1653 = vunpack.c.l.b16 %v629
      %v1654 = vunpack.c.l.b16 %v630
      %v1655 = vunpack.c.l.b16 %v631
      %v1656 = vunpack.c.l.b16 %v632
      %v1657 = vunpack.c.l.b16 %v633
      %v1658 = vunpack.c.l.b16 %v634
      %v1659 = vunpack.c.l.b16 %v635
      %v1660 = vunpack.c.l.b16 %v636
      %v1661 = vunpack.c.l.b16 %v637
      %v1662 = vunpack.c.l.b16 %v638
      %v1663 = vunpack.c.l.b16 %v639
      %v1664 = vunpack.c.l.b16 %v640
      %v1665 = vunpack.c.l.b16 %v641
      %v1666 = vunpack.c.l.b16 %v642
      %v1667 = vunpack.c.l.b16 %v643
      %v1668 = vunpack.c.l.b16 %v644
      %v1669 = vunpack.c.l.b16 %v645
      %v1670 = vunpack.c.l.b16 %v646
      %v1671 = vunpack.c.l.b16 %v647
      %v1672 = vunpack.c.l.b16 %v648
      %v1673 = vunpack.c.l.b16 %v649
      %v1674 = vunpack.c.l.b16 %v650
      %v1675 = vunpack.c.l.b16 %v651
      %v1676 = vunpack.c.l.b16 %v652
      %v1677 = vunpack.c.l.b16 %v653
      %v1678 = vunpack.c.l.b16 %v654
      %v1679 = vunpack.c.l.b16 %v655
      %v1680 = vunpack.c.l.b16 %v656
      %v1681 = vunpack.c.l.b16 %v657
      %v1682 = vunpack.c.l.b16 %v658
      %v1683 = vunpack.c.l.b16 %v659
      %v1684 = vunpack.c.l.b16 %v660
      %v1685 = vunpack.c.l.b16 %v661
      %v1686 = vunpack.c.l.b16 %v662
      %v1687 = vunpack.c.l.b16 %v663
      %v1688 = vunpack.c.l.b16 %v664
      %v1689 = vunpack.c.l.b16 %v665
      %v1690 = vunpack.c.l.b16 %v666
      %v1691 = vunpack.c.l.b16 %v667
      %v1692 = vunpack.c.l.b16 %v668
      %v1693 = vunpack.c.l.b16 %v669
      %v1694 = vunpack.c.l.b16 %v670
      %v1695 = vunpack.c.l.b16 %v671
      %v1696 = vunpack.c.l.b16 %v672
      %v1697 = vunpack.c.l.b16 %v673
      %v1698 = vunpack.c.l.b16 %v674
      %v1699 = vunpack.c.l.b16 %v675
      %v1700 = vunpack.c.l.b16 %v676
      %v1701 = vunpack.c.l.b16 %v677
      %v1702 = vunpack.c.l.b16 %v678
      %v1703 = vunpack.c.l.b16 %v679
      %v1704 = vunpack.c.l.b16 %v680
      %v1705 = vpack.c.b16 %v1562, %v1561
      %v1706 = vpack.c.b16 %v1564, %v1563
      %v1707 = vpack.c.b16 %v1566, %v1565
      %v1708 = vpack.c.b16 %v1568, %v1567
      %v1709 = vpack.c.b16 %v1570, %v1569
      %v1710 = vpack.c.b16 %v1572, %v1571
      %v1711 = vpack.c.b16 %v1574, %v1573
      %v1712 = vpack.c.b16 %v1576, %v1575
      %v1713 = vpack.c.b16 %v1578, %v1577
      %v1714 = vpack.c.b16 %v1580, %v1579
      %v1715 = vpack.c.b16 %v1582, %v1581
      %v1716 = vpack.c.b16 %v1584, %v1583
      %v1717 = vpack.c.b16 %v1586, %v1585
      %v1718 = vpack.c.b16 %v1588, %v1587
      %v1719 = vpack.c.b16 %v1590, %v1589
      %v1720 = vpack.c.b16 %v1592, %v1591
      %v1721 = vpack.c.b16 %v1594, %v1593
      %v1722 = vpack.c.b16 %v1596, %v1595
      %v1723 = vpack.c.b16 %v1598, %v1597
      %v1724 = vpack.c.b16 %v1600, %v1599
      %v1725 = vpack.c.b16 %v1602, %v1601
      %v1726 = vpack.c.b16 %v1604, %v1603
      %v1727 = vpack.c.b16 %v1606, %v1605
      %v1728 = vpack.c.b16 %v1608, %v1607
      %v1729 = vpack.c.b16 %v1610, %v1609
      %v1730 = vpack.c.b16 %v1612, %v1611
      %v1731 = vpack.c.b16 %v1614, %v1613
      %v1732 = vpack.c.b16 %v1616, %v1615
      %v1733 = vpack.c.b16 %v1618, %v1617
      %v1734 = vpack.c.b16 %v1620, %v1619
      %v1735 = vpack.c.b16 %v1622, %v1621
      %v1736 = vpack.c.b16 %v1624, %v1623
      %v1737 = vpack.c.b16 %v1626, %v1625
      %v1738 = vpack.c.b16 %v1628, %v1627
      %v1739 = vpack.c.b16 %v1630, %v1629
      %v1740 = vpack.c.b16 %v1632, %v1631
      %v1741 = vpack.c.b16 %v1634, %v1633
      %v1742 = vpack.c.b16 %v1636, %v1635
      %v1743 = vpack.c.b16 %v1638, %v1637
      %v1744 = vpack.c.b16 %v1640, %v1639
      %v1745 = vpack.c.b16 %v1642, %v1641
      %v1746 = vpack.c.b16 %v1644, %v1643
      %v1747 = vpack.c.b16 %v1646, %v1645
      %v1748 = vpack.c.b16 %v1648, %v1647
      %v1749 = vpack.c.b16 %v1650, %v1649
      %v1750 = vpack.c.b16 %v1652, %v1651
      %v1751 = vpack.c.b16 %v1654, %v1653
      %v1752 = vpack.c.b16 %v1656, %v1655
      %v1753 = vpack.c.b16 %v1658, %v1657
      %v1754 = vpack.c.b16 %v1660, %v1659
      %v1755 = vpack.c.b16 %v1662, %v1661
      %v1756 = vpack.c.b16 %v1664, %v1663
      %v1757 = vpack.c.b16 %v1666, %v1665
      %v1758 = vpack.c.b16 %v1668, %v1667
      %v1759 = vpack.c.b16 %v1670, %v1669
      %v1760 = vpack.c.b16 %v1672, %v1671
      %v1761 = vpack.c.b16 %v1674, %v1673
      %v1762 = vpack.c.b16 %v1676, %v1675
      %v1763 = vpack.c.b16 %v1678, %v1677
      %v1764 = vpack.c.b16 %v1680, %v1679
      %v1765 = vpack.c.b16 %v1682, %v1681
      %v1766 = vpack.c.b16 %v1684, %v1683
      %v1767 = vpack.c.b16 %v1686, %v1685
      %v1768 = vpack.c.b16 %v1688, %v1687
      %v1769 = vpack.c.b16 %v1690, %v1689
      %v1770 = vpack.c.b16 %v1692, %v1691
      %v1771 = vpack.c.b16 %v1694, %v1693
      %v1772 = vpack.c.b16 %v1696, %v1695
      %v1773 = vpack.c.b16 %v1698, %v1697
      %v1774 = vpack.c.b16 %v1700, %v1699
      %v1775 = vpack.c.b16 %v1702, %v1701
      %v1776 = vpack.c.b16 %v1704, %v1703
      %1849 = vmatprep.subr.bf16.mxu0 0
      %1850 = vmatpush1.bf16.msra.mxu0 %v1705
      %1851 = vmatprep.subr.bf16.mxu0 0
      %1852 = vmatpush1.bf16.msra.mxu0 %v1706
      %1853 = vmatprep.subr.bf16.mxu0 0
      %1854 = vmatpush1.bf16.msra.mxu0 %v1707
      %1855 = vmatprep.subr.bf16.mxu0 0
      %1856 = vmatpush1.bf16.msra.mxu0 %v1708
      %1857 = vmatprep.subr.bf16.mxu0 0
      %1858 = vmatpush1.bf16.msra.mxu0 %v1709
      %1859 = vmatprep.subr.bf16.mxu0 0
      %1860 = vmatpush1.bf16.msra.mxu0 %v1710
      %1861 = vmatprep.subr.bf16.mxu0 0
      %1862 = vmatpush1.bf16.msra.mxu0 %v1711
      %1863 = vmatprep.subr.bf16.mxu0 0
      %1864 = vmatpush1.bf16.msra.mxu0 %v1712
      %1865 = vmatprep.subr.bf16.mxu0 0
      %1866 = vmatpush1.bf16.msra.mxu0 %v1713
      %1867 = vmatprep.subr.bf16.mxu0 0
      %1868 = vmatpush1.bf16.msra.mxu0 %v1714
      %1869 = vmatprep.subr.bf16.mxu0 0
      %1870 = vmatpush1.bf16.msra.mxu0 %v1715
      %1871 = vmatprep.subr.bf16.mxu0 0
      %1872 = vmatpush1.bf16.msra.mxu0 %v1716
      %1873 = vmatprep.subr.bf16.mxu0 0
      %1874 = vmatpush1.bf16.msra.mxu0 %v1717
      %1875 = vmatprep.subr.bf16.mxu0 0
      %1876 = vmatpush1.bf16.msra.mxu0 %v1718
      %1877 = vmatprep.subr.bf16.mxu0 0
      %1878 = vmatpush1.bf16.msra.mxu0 %v1719
      %1879 = vmatprep.subr.bf16.mxu0 0
      %1880 = vmatpush1.bf16.msra.mxu0 %v1720
      %1881 = vmatprep.mubr.bf16.mxu0 %v1130
      %1882 = vmatmul.mubr.bf16.gmra.mrb[0].mxu0 %v1129
      %v1883 = vpop.f32.mrb[0].mxu0
      %v1884 = vadd.f32 0.0, %v1883
      %v1885 = vpop.f32.mrb[0].mxu0
      %v1886 = vpop.f32.mrb[0].mxu0
      %v1887 = vadd.f32 0.0, %v1886
      %v1888 = vpop.f32.mrb[0].mxu0
      %1889 = vmatprep.mubr.bf16.mxu0 %v1139
      %1890 = vmatmul.mubr.bf16.gmra.mrb[0].mxu0 %v1138
      %v1891 = vpop.f32.mrb[0].mxu0
      %v1892 = vadd.f32 0.0, %v1891
      %v1893 = vpop.f32.mrb[0].mxu0
      %v1894 = vpop.f32.mrb[0].mxu0
      %v1895 = vadd.f32 0.0, %v1894
      %v1896 = vpop.f32.mrb[0].mxu0
      %1897 = vmatprep.mubr.bf16.mxu0 %v1148
      %1898 = vmatmul.mubr.bf16.gmra.mrb[0].mxu0 %v1147
      %v1899 = vpop.f32.mrb[0].mxu0
      %v1900 = vadd.f32 0.0, %v1899
      %v1901 = vpop.f32.mrb[0].mxu0
      %v1902 = vpop.f32.mrb[0].mxu0
      %v1903 = vadd.f32 0.0, %v1902
      %v1904 = vpop.f32.mrb[0].mxu0
      %1905 = vmatprep.mubr.bf16.mxu0 %v1157
      %1906 = vmatmul.mubr.bf16.gmra.mrb[0].mxu0 %v1156
      %v1907 = vpop.f32.mrb[0].mxu0
      %v1908 = vadd.f32 0.0, %v1907
      %v1909 = vpop.f32.mrb[0].mxu0
      %v1910 = vpop.f32.mrb[0].mxu0
      %v1911 = vadd.f32 0.0, %v1910
      %v1912 = vpop.f32.mrb[0].mxu0
      %1913 = vmatprep.mubr.bf16.mxu0 %v1166
      %1914 = vmatmul.mubr.bf16.gmra.mrb[0].mxu0 %v1165
      %v1915 = vpop.f32.mrb[0].mxu0
      %v1916 = vadd.f32 0.0, %v1915
      %v1917 = vpop.f32.mrb[0].mxu0
      %v1918 = vpop.f32.mrb[0].mxu0
      %v1919 = vadd.f32 0.0, %v1918
      %v1920 = vpop.f32.mrb[0].mxu0
      %1921 = vmatprep.mubr.bf16.mxu0 %v1175
      %1922 = vmatmul.mubr.bf16.gmra.mrb[0].mxu0 %v1174
      %v1923 = vpop.f32.mrb[0].mxu0
      %v1924 = vadd.f32 0.0, %v1923
      %v1925 = vpop.f32.mrb[0].mxu0
      %v1926 = vpop.f32.mrb[0].mxu0
      %v1927 = vadd.f32 0.0, %v1926
      %v1928 = vpop.f32.mrb[0].mxu0
      %1929 = vmatprep.mubr.bf16.mxu0 %v1184
      %1930 = vmatmul.mubr.bf16.gmra.mrb[0].mxu0 %v1183
      %v1931 = vpop.f32.mrb[0].mxu0
      %v1932 = vadd.f32 0.0, %v1931
      %v1933 = vpop.f32.mrb[0].mxu0
      %v1934 = vpop.f32.mrb[0].mxu0
      %v1935 = vadd.f32 0.0, %v1934
      %v1936 = vpop.f32.mrb[0].mxu0
      %1937 = vmatprep.mubr.bf16.mxu0 %v1193
      %1938 = vmatmul.mubr.bf16.gmra.mrb[0].mxu0 %v1192
      %v1939 = vpop.f32.mrb[0].mxu0
      %v1940 = vadd.f32 0.0, %v1939
      %v1941 = vpop.f32.mrb[0].mxu0
      %v1942 = vpop.f32.mrb[0].mxu0
      %v1943 = vadd.f32 0.0, %v1942
      %v1944 = vpop.f32.mrb[0].mxu0
      %1945 = vmatprep.mubr.bf16.mxu0 %v1202
      %1946 = vmatmul.mubr.bf16.gmra.mrb[0].mxu0 %v1201
      %v1947 = vpop.f32.mrb[0].mxu0
      %v1948 = vadd.f32 0.0, %v1947
      %v1949 = vpop.f32.mrb[0].mxu0
      %v1950 = vpop.f32.mrb[0].mxu0
      %v1951 = vadd.f32 0.0, %v1950
      %v1952 = vpop.f32.mrb[0].mxu0
      %1953 = vmatprep.mubr.bf16.mxu0 %v1211
      %1954 = vmatmul.mubr.bf16.gmra.mrb[0].mxu0 %v1210
      %v1955 = vpop.f32.mrb[0].mxu0
      %v1956 = vadd.f32 0.0, %v1955
      %v1957 = vpop.f32.mrb[0].mxu0
      %v1958 = vpop.f32.mrb[0].mxu0
      %v1959 = vadd.f32 0.0, %v1958
      %v1960 = vpop.f32.mrb[0].mxu0
      %1961 = vmatprep.mubr.bf16.mxu0 %v1220
      %1962 = vmatmul.mubr.bf16.gmra.mrb[0].mxu0 %v1219
      %v1963 = vpop.f32.mrb[0].mxu0
      %v1964 = vadd.f32 0.0, %v1963
      %v1965 = vpop.f32.mrb[0].mxu0
      %v1966 = vpop.f32.mrb[0].mxu0
      %v1967 = vadd.f32 0.0, %v1966
      %v1968 = vpop.f32.mrb[0].mxu0
      %1969 = vmatprep.mubr.bf16.mxu0 %v1229
      %1970 = vmatmul.mubr.bf16.gmra.mrb[0].mxu0 %v1228
      %v1971 = vpop.f32.mrb[0].mxu0
      %v1972 = vadd.f32 0.0, %v1971
      %v1973 = vpop.f32.mrb[0].mxu0
      %v1974 = vpop.f32.mrb[0].mxu0
      %v1975 = vadd.f32 0.0, %v1974
      %v1976 = vpop.f32.mrb[0].mxu0
      %1977 = vmatprep.mubr.bf16.mxu0 %v1238
      %1978 = vmatmul.mubr.bf16.gmra.mrb[0].mxu0 %v1237
      %v1979 = vpop.f32.mrb[0].mxu0
      %v1980 = vadd.f32 0.0, %v1979
      %v1981 = vpop.f32.mrb[0].mxu0
      %v1982 = vpop.f32.mrb[0].mxu0
      %v1983 = vadd.f32 0.0, %v1982
      %v1984 = vpop.f32.mrb[0].mxu0
      %1985 = vmatprep.mubr.bf16.mxu0 %v1247
      %1986 = vmatmul.mubr.bf16.gmra.mrb[0].mxu0 %v1246
      %v1987 = vpop.f32.mrb[0].mxu0
      %v1988 = vadd.f32 0.0, %v1987
      %v1989 = vpop.f32.mrb[0].mxu0
      %v1990 = vpop.f32.mrb[0].mxu0
      %v1991 = vadd.f32 0.0, %v1990
      %v1992 = vpop.f32.mrb[0].mxu0
      %1993 = vmatprep.mubr.bf16.mxu0 %v1256
      %1994 = vmatmul.mubr.bf16.gmra.mrb[0].mxu0 %v1255
      %v1995 = vpop.f32.mrb[0].mxu0
      %v1996 = vadd.f32 0.0, %v1995
      %v1997 = vpop.f32.mrb[0].mxu0
      %v1998 = vpop.f32.mrb[0].mxu0
      %v1999 = vadd.f32 0.0, %v1998
      %v2000 = vpop.f32.mrb[0].mxu0
      %2001 = vmatprep.mubr.bf16.mxu0 %v1265
      %2002 = vmatmul.mubr.bf16.gmra.mrb[0].mxu0 %v1264
      %v2003 = vpop.f32.mrb[0].mxu0
      %v2004 = vadd.f32 0.0, %v2003
      %v2005 = vpop.f32.mrb[0].mxu0
      %v2006 = vpop.f32.mrb[0].mxu0
      %v2007 = vadd.f32 0.0, %v2006
      %v2008 = vpop.f32.mrb[0].mxu0
      %2009 = vdwg.mxu0
      %2010 = vmatprep.subr.bf16.mxu0 0
      %2011 = vmatpush1.bf16.msra.mxu0 %v1721
      %2012 = vmatprep.subr.bf16.mxu0 0
      %2013 = vmatpush1.bf16.msra.mxu0 %v1722
      %2014 = vmatprep.subr.bf16.mxu0 0
      %2015 = vmatpush1.bf16.msra.mxu0 %v1723
      %2016 = vmatprep.subr.bf16.mxu0 0
      %2017 = vmatpush1.bf16.msra.mxu0 %v1724
      %2018 = vmatprep.subr.bf16.mxu0 0
      %2019 = vmatpush1.bf16.msra.mxu0 %v1725
      %2020 = vmatprep.subr.bf16.mxu0 0
      %2021 = vmatpush1.bf16.msra.mxu0 %v1726
      %2022 = vmatprep.subr.bf16.mxu0 0
      %2023 = vmatpush1.bf16.msra.mxu0 %v1727
      %2024 = vmatprep.subr.bf16.mxu0 0
      %2025 = vmatpush1.bf16.msra.mxu0 %v1728
      %2026 = vmatprep.subr.bf16.mxu0 0
      %2027 = vmatpush1.bf16.msra.mxu0 %v1729
      %2028 = vmatprep.subr.bf16.mxu0 0
      %2029 = vmatpush1.bf16.msra.mxu0 %v1730
      %2030 = vmatprep.subr.bf16.mxu0 0
      %2031 = vmatpush1.bf16.msra.mxu0 %v1731
      %2032 = vmatprep.subr.bf16.mxu0 0
      %2033 = vmatpush1.bf16.msra.mxu0 %v1732
      %2034 = vmatprep.subr.bf16.mxu0 0
      %2035 = vmatpush1.bf16.msra.mxu0 %v1733
      %2036 = vmatprep.subr.bf16.mxu0 0
      %2037 = vmatpush1.bf16.msra.mxu0 %v1734
      %2038 = vmatprep.subr.bf16.mxu0 0
      %2039 = vmatpush1.bf16.msra.mxu0 %v1735
      %2040 = vmatprep.subr.bf16.mxu0 0
      %2041 = vmatpush1.bf16.msra.mxu0 %v1736
      %2042 = vmatprep.mubr.bf16.mxu0 %v1132
      %2043 = vmatmul.mubr.bf16.gmra.mrb[0].mxu0 %v1131
      %v2044 = vpop.f32.mrb[0].mxu0
      %v2045 = vadd.f32 %v1884, %v2044
      %v2046 = vpop.f32.mrb[0].mxu0
      %v2047 = vpop.f32.mrb[0].mxu0
      %v2048 = vadd.f32 %v1887, %v2047
      %v2049 = vpop.f32.mrb[0].mxu0
      %2050 = vmatprep.mubr.bf16.mxu0 %v1141
      %2051 = vmatmul.mubr.bf16.gmra.mrb[0].mxu0 %v1140
      %v2052 = vpop.f32.mrb[0].mxu0
      %v2053 = vadd.f32 %v1892, %v2052
      %v2054 = vpop.f32.mrb[0].mxu0
      %v2055 = vpop.f32.mrb[0].mxu0
      %v2056 = vadd.f32 %v1895, %v2055
      %v2057 = vpop.f32.mrb[0].mxu0
      %2058 = vmatprep.mubr.bf16.mxu0 %v1150
      %2059 = vmatmul.mubr.bf16.gmra.mrb[0].mxu0 %v1149
      %v2060 = vpop.f32.mrb[0].mxu0
      %v2061 = vadd.f32 %v1900, %v2060
      %v2062 = vpop.f32.mrb[0].mxu0
      %v2063 = vpop.f32.mrb[0].mxu0
      %v2064 = vadd.f32 %v1903, %v2063
      %v2065 = vpop.f32.mrb[0].mxu0
      %2066 = vmatprep.mubr.bf16.mxu0 %v1159
      %2067 = vmatmul.mubr.bf16.gmra.mrb[0].mxu0 %v1158
      %v2068 = vpop.f32.mrb[0].mxu0
      %v2069 = vadd.f32 %v1908, %v2068
      %v2070 = vpop.f32.mrb[0].mxu0
      %v2071 = vpop.f32.mrb[0].mxu0
      %v2072 = vadd.f32 %v1911, %v2071
      %v2073 = vpop.f32.mrb[0].mxu0
      %2074 = vmatprep.mubr.bf16.mxu0 %v1168
      %2075 = vmatmul.mubr.bf16.gmra.mrb[0].mxu0 %v1167
      %v2076 = vpop.f32.mrb[0].mxu0
      %v2077 = vadd.f32 %v1916, %v2076
      %v2078 = vpop.f32.mrb[0].mxu0
      %v2079 = vpop.f32.mrb[0].mxu0
      %v2080 = vadd.f32 %v1919, %v2079
      %v2081 = vpop.f32.mrb[0].mxu0
      %2082 = vmatprep.mubr.bf16.mxu0 %v1177
      %2083 = vmatmul.mubr.bf16.gmra.mrb[0].mxu0 %v1176
      %v2084 = vpop.f32.mrb[0].mxu0
      %v2085 = vadd.f32 %v1924, %v2084
      %v2086 = vpop.f32.mrb[0].mxu0
      %v2087 = vpop.f32.mrb[0].mxu0
      %v2088 = vadd.f32 %v1927, %v2087
      %v2089 = vpop.f32.mrb[0].mxu0
      %2090 = vmatprep.mubr.bf16.mxu0 %v1186
      %2091 = vmatmul.mubr.bf16.gmra.mrb[0].mxu0 %v1185
      %v2092 = vpop.f32.mrb[0].mxu0
      %v2093 = vadd.f32 %v1932, %v2092
      %v2094 = vpop.f32.mrb[0].mxu0
      %v2095 = vpop.f32.mrb[0].mxu0
      %v2096 = vadd.f32 %v1935, %v2095
      %v2097 = vpop.f32.mrb[0].mxu0
      %2098 = vmatprep.mubr.bf16.mxu0 %v1195
      %2099 = vmatmul.mubr.bf16.gmra.mrb[0].mxu0 %v1194
      %v2100 = vpop.f32.mrb[0].mxu0
      %v2101 = vadd.f32 %v1940, %v2100
      %v2102 = vpop.f32.mrb[0].mxu0
      %v2103 = vpop.f32.mrb[0].mxu0
      %v2104 = vadd.f32 %v1943, %v2103
      %v2105 = vpop.f32.mrb[0].mxu0
      %2106 = vmatprep.mubr.bf16.mxu0 %v1204
      %2107 = vmatmul.mubr.bf16.gmra.mrb[0].mxu0 %v1203
      %v2108 = vpop.f32.mrb[0].mxu0
      %v2109 = vadd.f32 %v1948, %v2108
      %v2110 = vpop.f32.mrb[0].mxu0
      %v2111 = vpop.f32.mrb[0].mxu0
      %v2112 = vadd.f32 %v1951, %v2111
      %v2113 = vpop.f32.mrb[0].mxu0
      %2114 = vmatprep.mubr.bf16.mxu0 %v1213
      %2115 = vmatmul.mubr.bf16.gmra.mrb[0].mxu0 %v1212
      %v2116 = vpop.f32.mrb[0].mxu0
      %v2117 = vadd.f32 %v1956, %v2116
      %v2118 = vpop.f32.mrb[0].mxu0
      %v2119 = vpop.f32.mrb[0].mxu0
      %v2120 = vadd.f32 %v1959, %v2119
      %v2121 = vpop.f32.mrb[0].mxu0
      %2122 = vmatprep.mubr.bf16.mxu0 %v1222
      %2123 = vmatmul.mubr.bf16.gmra.mrb[0].mxu0 %v1221
      %v2124 = vpop.f32.mrb[0].mxu0
      %v2125 = vadd.f32 %v1964, %v2124
      %v2126 = vpop.f32.mrb[0].mxu0
      %v2127 = vpop.f32.mrb[0].mxu0
      %v2128 = vadd.f32 %v1967, %v2127
      %v2129 = vpop.f32.mrb[0].mxu0
      %2130 = vmatprep.mubr.bf16.mxu0 %v1231
      %2131 = vmatmul.mubr.bf16.gmra.mrb[0].mxu0 %v1230
      %v2132 = vpop.f32.mrb[0].mxu0
      %v2133 = vadd.f32 %v1972, %v2132
      %v2134 = vpop.f32.mrb[0].mxu0
      %v2135 = vpop.f32.mrb[0].mxu0
      %v2136 = vadd.f32 %v1975, %v2135
      %v2137 = vpop.f32.mrb[0].mxu0
      %2138 = vmatprep.mubr.bf16.mxu0 %v1240
      %2139 = vmatmul.mubr.bf16.gmra.mrb[0].mxu0 %v1239
      %v2140 = vpop.f32.mrb[0].mxu0
      %v2141 = vadd.f32 %v1980, %v2140
      %v2142 = vpop.f32.mrb[0].mxu0
      %v2143 = vpop.f32.mrb[0].mxu0
      %v2144 = vadd.f32 %v1983, %v2143
      %v2145 = vpop.f32.mrb[0].mxu0
      %2146 = vmatprep.mubr.bf16.mxu0 %v1249
      %2147 = vmatmul.mubr.bf16.gmra.mrb[0].mxu0 %v1248
      %v2148 = vpop.f32.mrb[0].mxu0
      %v2149 = vadd.f32 %v1988, %v2148
      %v2150 = vpop.f32.mrb[0].mxu0
      %v2151 = vpop.f32.mrb[0].mxu0
      %v2152 = vadd.f32 %v1991, %v2151
      %v2153 = vpop.f32.mrb[0].mxu0
      %2154 = vmatprep.mubr.bf16.mxu0 %v1258
      %2155 = vmatmul.mubr.bf16.gmra.mrb[0].mxu0 %v1257
      %v2156 = vpop.f32.mrb[0].mxu0
      %v2157 = vadd.f32 %v1996, %v2156
      %v2158 = vpop.f32.mrb[0].mxu0
      %v2159 = vpop.f32.mrb[0].mxu0
      %v2160 = vadd.f32 %v1999, %v2159
      %v2161 = vpop.f32.mrb[0].mxu0
      %2162 = vmatprep.mubr.bf16.mxu0 %v1267
      %2163 = vmatmul.mubr.bf16.gmra.mrb[0].mxu0 %v1266
      %v2164 = vpop.f32.mrb[0].mxu0
      %v2165 = vadd.f32 %v2004, %v2164
      %v2166 = vpop.f32.mrb[0].mxu0
      %v2167 = vpop.f32.mrb[0].mxu0
      %v2168 = vadd.f32 %v2007, %v2167
      %v2169 = vpop.f32.mrb[0].mxu0
      %2170 = vdwg.mxu0
      %2171 = vmatprep.subr.bf16.mxu0 0
      %2172 = vmatpush1.bf16.msra.mxu0 %v1737
      %2173 = vmatprep.subr.bf16.mxu0 0
      %2174 = vmatpush1.bf16.msra.mxu0 %v1738
      %2175 = vmatprep.subr.bf16.mxu0 0
      %2176 = vmatpush1.bf16.msra.mxu0 %v1739
      %2177 = vmatprep.subr.bf16.mxu0 0
      %2178 = vmatpush1.bf16.msra.mxu0 %v1740
      %2179 = vmatprep.subr.bf16.mxu0 0
      %2180 = vmatpush1.bf16.msra.mxu0 %v1741
      %2181 = vmatprep.subr.bf16.mxu0 0
      %2182 = vmatpush1.bf16.msra.mxu0 %v1742
      %2183 = vmatprep.subr.bf16.mxu0 0
      %2184 = vmatpush1.bf16.msra.mxu0 %v1743
      %2185 = vmatprep.subr.bf16.mxu0 0
      %2186 = vmatpush1.bf16.msra.mxu0 %v1744
      %2187 = vmatprep.subr.bf16.mxu0 0
      %2188 = vmatpush1.bf16.msra.mxu0 %v1745
      %2189 = vmatprep.subr.bf16.mxu0 0
      %2190 = vmatpush1.bf16.msra.mxu0 %v1746
      %2191 = vmatprep.subr.bf16.mxu0 0
      %2192 = vmatpush1.bf16.msra.mxu0 %v1747
      %2193 = vmatprep.subr.bf16.mxu0 0
      %2194 = vmatpush1.bf16.msra.mxu0 %v1748
      %2195 = vmatprep.subr.bf16.mxu0 0
      %2196 = vmatpush1.bf16.msra.mxu0 %v1749
      %2197 = vmatprep.subr.bf16.mxu0 0
      %2198 = vmatpush1.bf16.msra.mxu0 %v1750
      %2199 = vmatprep.subr.bf16.mxu0 0
      %2200 = vmatpush1.bf16.msra.mxu0 %v1751
      %2201 = vmatprep.subr.bf16.mxu0 0
      %2202 = vmatpush1.bf16.msra.mxu0 %v1752
      %2203 = vmatprep.mubr.bf16.mxu0 %v1134
      %2204 = vmatmul.mubr.bf16.gmra.mrb[0].mxu0 %v1133
      %v2205 = vpop.f32.mrb[0].mxu0
      %v2206 = vadd.f32 %v2045, %v2205
      %v2207 = vpop.f32.mrb[0].mxu0
      %v2208 = vpop.f32.mrb[0].mxu0
      %v2209 = vadd.f32 %v2048, %v2208
      %v2210 = vpop.f32.mrb[0].mxu0
      %2211 = vmatprep.mubr.bf16.mxu0 %v1143
      %2212 = vmatmul.mubr.bf16.gmra.mrb[0].mxu0 %v1142
      %v2213 = vpop.f32.mrb[0].mxu0
      %v2214 = vadd.f32 %v2053, %v2213
      %v2215 = vpop.f32.mrb[0].mxu0
      %v2216 = vpop.f32.mrb[0].mxu0
      %v2217 = vadd.f32 %v2056, %v2216
      %v2218 = vpop.f32.mrb[0].mxu0
      %2219 = vmatprep.mubr.bf16.mxu0 %v1152
      %2220 = vmatmul.mubr.bf16.gmra.mrb[0].mxu0 %v1151
      %v2221 = vpop.f32.mrb[0].mxu0
      %v2222 = vadd.f32 %v2061, %v2221
      %v2223 = vpop.f32.mrb[0].mxu0
      %v2224 = vpop.f32.mrb[0].mxu0
      %v2225 = vadd.f32 %v2064, %v2224
      %v2226 = vpop.f32.mrb[0].mxu0
      %2227 = vmatprep.mubr.bf16.mxu0 %v1161
      %2228 = vmatmul.mubr.bf16.gmra.mrb[0].mxu0 %v1160
      %v2229 = vpop.f32.mrb[0].mxu0
      %v2230 = vadd.f32 %v2069, %v2229
      %v2231 = vpop.f32.mrb[0].mxu0
      %v2232 = vpop.f32.mrb[0].mxu0
      %v2233 = vadd.f32 %v2072, %v2232
      %v2234 = vpop.f32.mrb[0].mxu0
      %2235 = vmatprep.mubr.bf16.mxu0 %v1170
      %2236 = vmatmul.mubr.bf16.gmra.mrb[0].mxu0 %v1169
      %v2237 = vpop.f32.mrb[0].mxu0
      %v2238 = vadd.f32 %v2077, %v2237
      %v2239 = vpop.f32.mrb[0].mxu0
      %v2240 = vpop.f32.mrb[0].mxu0
      %v2241 = vadd.f32 %v2080, %v2240
      %v2242 = vpop.f32.mrb[0].mxu0
      %2243 = vmatprep.mubr.bf16.mxu0 %v1179
      %2244 = vmatmul.mubr.bf16.gmra.mrb[0].mxu0 %v1178
      %v2245 = vpop.f32.mrb[0].mxu0
      %v2246 = vadd.f32 %v2085, %v2245
      %v2247 = vpop.f32.mrb[0].mxu0
      %v2248 = vpop.f32.mrb[0].mxu0
      %v2249 = vadd.f32 %v2088, %v2248
      %v2250 = vpop.f32.mrb[0].mxu0
      %2251 = vmatprep.mubr.bf16.mxu0 %v1188
      %2252 = vmatmul.mubr.bf16.gmra.mrb[0].mxu0 %v1187
      %v2253 = vpop.f32.mrb[0].mxu0
      %v2254 = vadd.f32 %v2093, %v2253
      %v2255 = vpop.f32.mrb[0].mxu0
      %v2256 = vpop.f32.mrb[0].mxu0
      %v2257 = vadd.f32 %v2096, %v2256
      %v2258 = vpop.f32.mrb[0].mxu0
      %2259 = vmatprep.mubr.bf16.mxu0 %v1197
      %2260 = vmatmul.mubr.bf16.gmra.mrb[0].mxu0 %v1196
      %v2261 = vpop.f32.mrb[0].mxu0
      %v2262 = vadd.f32 %v2101, %v2261
      %v2263 = vpop.f32.mrb[0].mxu0
      %v2264 = vpop.f32.mrb[0].mxu0
      %v2265 = vadd.f32 %v2104, %v2264
      %v2266 = vpop.f32.mrb[0].mxu0
      %2267 = vmatprep.mubr.bf16.mxu0 %v1206
      %2268 = vmatmul.mubr.bf16.gmra.mrb[0].mxu0 %v1205
      %v2269 = vpop.f32.mrb[0].mxu0
      %v2270 = vadd.f32 %v2109, %v2269
      %v2271 = vpop.f32.mrb[0].mxu0
      %v2272 = vpop.f32.mrb[0].mxu0
      %v2273 = vadd.f32 %v2112, %v2272
      %v2274 = vpop.f32.mrb[0].mxu0
      %2275 = vmatprep.mubr.bf16.mxu0 %v1215
      %2276 = vmatmul.mubr.bf16.gmra.mrb[0].mxu0 %v1214
      %v2277 = vpop.f32.mrb[0].mxu0
      %v2278 = vadd.f32 %v2117, %v2277
      %v2279 = vpop.f32.mrb[0].mxu0
      %v2280 = vpop.f32.mrb[0].mxu0
      %v2281 = vadd.f32 %v2120, %v2280
      %v2282 = vpop.f32.mrb[0].mxu0
      %2283 = vmatprep.mubr.bf16.mxu0 %v1224
      %2284 = vmatmul.mubr.bf16.gmra.mrb[0].mxu0 %v1223
      %v2285 = vpop.f32.mrb[0].mxu0
      %v2286 = vadd.f32 %v2125, %v2285
      %v2287 = vpop.f32.mrb[0].mxu0
      %v2288 = vpop.f32.mrb[0].mxu0
      %v2289 = vadd.f32 %v2128, %v2288
      %v2290 = vpop.f32.mrb[0].mxu0
      %2291 = vmatprep.mubr.bf16.mxu0 %v1233
      %2292 = vmatmul.mubr.bf16.gmra.mrb[0].mxu0 %v1232
      %v2293 = vpop.f32.mrb[0].mxu0
      %v2294 = vadd.f32 %v2133, %v2293
      %v2295 = vpop.f32.mrb[0].mxu0
      %v2296 = vpop.f32.mrb[0].mxu0
      %v2297 = vadd.f32 %v2136, %v2296
      %v2298 = vpop.f32.mrb[0].mxu0
      %2299 = vmatprep.mubr.bf16.mxu0 %v1242
      %2300 = vmatmul.mubr.bf16.gmra.mrb[0].mxu0 %v1241
      %v2301 = vpop.f32.mrb[0].mxu0
      %v2302 = vadd.f32 %v2141, %v2301
      %v2303 = vpop.f32.mrb[0].mxu0
      %v2304 = vpop.f32.mrb[0].mxu0
      %v2305 = vadd.f32 %v2144, %v2304
      %v2306 = vpop.f32.mrb[0].mxu0
      %2307 = vmatprep.mubr.bf16.mxu0 %v1251
      %2308 = vmatmul.mubr.bf16.gmra.mrb[0].mxu0 %v1250
      %v2309 = vpop.f32.mrb[0].mxu0
      %v2310 = vadd.f32 %v2149, %v2309
      %v2311 = vpop.f32.mrb[0].mxu0
      %v2312 = vpop.f32.mrb[0].mxu0
      %v2313 = vadd.f32 %v2152, %v2312
      %v2314 = vpop.f32.mrb[0].mxu0
      %2315 = vmatprep.mubr.bf16.mxu0 %v1260
      %2316 = vmatmul.mubr.bf16.gmra.mrb[0].mxu0 %v1259
      %v2317 = vpop.f32.mrb[0].mxu0
      %v2318 = vadd.f32 %v2157, %v2317
      %v2319 = vpop.f32.mrb[0].mxu0
      %v2320 = vpop.f32.mrb[0].mxu0
      %v2321 = vadd.f32 %v2160, %v2320
      %v2322 = vpop.f32.mrb[0].mxu0
      %2323 = vmatprep.mubr.bf16.mxu0 %v1269
      %2324 = vmatmul.mubr.bf16.gmra.mrb[0].mxu0 %v1268
      %v2325 = vpop.f32.mrb[0].mxu0
      %v2326 = vadd.f32 %v2165, %v2325
      %v2327 = vpop.f32.mrb[0].mxu0
      %v2328 = vpop.f32.mrb[0].mxu0
      %v2329 = vadd.f32 %v2168, %v2328
      %v2330 = vpop.f32.mrb[0].mxu0
      %2331 = vdwg.mxu0
      %2332 = vmatprep.subr.bf16.mxu0 0
      %2333 = vmatpush1.bf16.msra.mxu0 %v1753
      %2334 = vmatprep.subr.bf16.mxu0 0
      %2335 = vmatpush1.bf16.msra.mxu0 %v1754
      %2336 = vmatprep.subr.bf16.mxu0 0
      %2337 = vmatpush1.bf16.msra.mxu0 %v1755
      %2338 = vmatprep.subr.bf16.mxu0 0
      %2339 = vmatpush1.bf16.msra.mxu0 %v1756
      %2340 = vmatprep.subr.bf16.mxu0 0
      %2341 = vmatpush1.bf16.msra.mxu0 %v1757
      %2342 = vmatprep.subr.bf16.mxu0 0
      %2343 = vmatpush1.bf16.msra.mxu0 %v1758
      %2344 = vmatprep.subr.bf16.mxu0 0
      %2345 = vmatpush1.bf16.msra.mxu0 %v1759
      %2346 = vmatprep.subr.bf16.mxu0 0
      %2347 = vmatpush1.bf16.msra.mxu0 %v1760
      %2348 = vmatprep.subr.bf16.mxu0 0
      %2349 = vmatpush1.bf16.msra.mxu0 %v1761
      %2350 = vmatprep.subr.bf16.mxu0 0
      %2351 = vmatpush1.bf16.msra.mxu0 %v1762
      %2352 = vmatprep.subr.bf16.mxu0 0
      %2353 = vmatpush1.bf16.msra.mxu0 %v1763
      %2354 = vmatprep.subr.bf16.mxu0 0
      %2355 = vmatpush1.bf16.msra.mxu0 %v1764
      %2356 = vmatprep.subr.bf16.mxu0 0
      %2357 = vmatpush1.bf16.msra.mxu0 %v1765
      %2358 = vmatprep.subr.bf16.mxu0 0
      %2359 = vmatpush1.bf16.msra.mxu0 %v1766
      %2360 = vmatprep.subr.bf16.mxu0 0
      %2361 = vmatpush1.bf16.msra.mxu0 %v1767
      %2362 = vmatprep.subr.bf16.mxu0 0
      %2363 = vmatpush1.bf16.msra.mxu0 %v1768
      %2364 = vmatprep.mubr.bf16.mxu0 %v1136
      %2365 = vmatmul.mubr.bf16.gmra.mrb[0].mxu0 %v1135
      %v2366 = vpop.f32.mrb[0].mxu0
      %v2367 = vadd.f32 %v2206, %v2366
      %v2368 = vpop.f32.mrb[0].mxu0
      %v2369 = vpop.f32.mrb[0].mxu0
      %v2370 = vadd.f32 %v2209, %v2369
      %v2371 = vpop.f32.mrb[0].mxu0
      %2372 = vmatprep.mubr.bf16.mxu0 %v1145
      %2373 = vmatmul.mubr.bf16.gmra.mrb[0].mxu0 %v1144
      %v2374 = vpop.f32.mrb[0].mxu0
      %v2375 = vadd.f32 %v2214, %v2374
      %v2376 = vpop.f32.mrb[0].mxu0
      %v2377 = vpop.f32.mrb[0].mxu0
      %v2378 = vadd.f32 %v2217, %v2377
      %v2379 = vpop.f32.mrb[0].mxu0
      %2380 = vmatprep.mubr.bf16.mxu0 %v1154
      %2381 = vmatmul.mubr.bf16.gmra.mrb[0].mxu0 %v1153
      %v2382 = vpop.f32.mrb[0].mxu0
      %v2383 = vadd.f32 %v2222, %v2382
      %v2384 = vpop.f32.mrb[0].mxu0
      %v2385 = vpop.f32.mrb[0].mxu0
      %v2386 = vadd.f32 %v2225, %v2385
      %v2387 = vpop.f32.mrb[0].mxu0
      %2388 = vmatprep.mubr.bf16.mxu0 %v1163
      %2389 = vmatmul.mubr.bf16.gmra.mrb[0].mxu0 %v1162
      %v2390 = vpop.f32.mrb[0].mxu0
      %v2391 = vadd.f32 %v2230, %v2390
      %v2392 = vpop.f32.mrb[0].mxu0
      %v2393 = vpop.f32.mrb[0].mxu0
      %v2394 = vadd.f32 %v2233, %v2393
      %v2395 = vpop.f32.mrb[0].mxu0
      %2396 = vmatprep.mubr.bf16.mxu0 %v1172
      %2397 = vmatmul.mubr.bf16.gmra.mrb[0].mxu0 %v1171
      %v2398 = vpop.f32.mrb[0].mxu0
      %v2399 = vadd.f32 %v2238, %v2398
      %v2400 = vpop.f32.mrb[0].mxu0
      %v2401 = vpop.f32.mrb[0].mxu0
      %v2402 = vadd.f32 %v2241, %v2401
      %v2403 = vpop.f32.mrb[0].mxu0
      %2404 = vmatprep.mubr.bf16.mxu0 %v1181
      %2405 = vmatmul.mubr.bf16.gmra.mrb[0].mxu0 %v1180
      %v2406 = vpop.f32.mrb[0].mxu0
      %v2407 = vadd.f32 %v2246, %v2406
      %v2408 = vpop.f32.mrb[0].mxu0
      %v2409 = vpop.f32.mrb[0].mxu0
      %v2410 = vadd.f32 %v2249, %v2409
      %v2411 = vpop.f32.mrb[0].mxu0
      %2412 = vmatprep.mubr.bf16.mxu0 %v1190
      %2413 = vmatmul.mubr.bf16.gmra.mrb[0].mxu0 %v1189
      %v2414 = vpop.f32.mrb[0].mxu0
      %v2415 = vadd.f32 %v2254, %v2414
      %v2416 = vpop.f32.mrb[0].mxu0
      %v2417 = vpop.f32.mrb[0].mxu0
      %v2418 = vadd.f32 %v2257, %v2417
      %v2419 = vpop.f32.mrb[0].mxu0
      %2420 = vmatprep.mubr.bf16.mxu0 %v1199
      %2421 = vmatmul.mubr.bf16.gmra.mrb[0].mxu0 %v1198
      %v2422 = vpop.f32.mrb[0].mxu0
      %v2423 = vadd.f32 %v2262, %v2422
      %v2424 = vpop.f32.mrb[0].mxu0
      %v2425 = vpop.f32.mrb[0].mxu0
      %v2426 = vadd.f32 %v2265, %v2425
      %v2427 = vpop.f32.mrb[0].mxu0
      %2428 = vmatprep.mubr.bf16.mxu0 %v1208
      %2429 = vmatmul.mubr.bf16.gmra.mrb[0].mxu0 %v1207
      %v2430 = vpop.f32.mrb[0].mxu0
      %v2431 = vadd.f32 %v2270, %v2430
      %v2432 = vpop.f32.mrb[0].mxu0
      %v2433 = vpop.f32.mrb[0].mxu0
      %v2434 = vadd.f32 %v2273, %v2433
      %v2435 = vpop.f32.mrb[0].mxu0
      %2436 = vmatprep.mubr.bf16.mxu0 %v1217
      %2437 = vmatmul.mubr.bf16.gmra.mrb[0].mxu0 %v1216
      %v2438 = vpop.f32.mrb[0].mxu0
      %v2439 = vadd.f32 %v2278, %v2438
      %v2440 = vpop.f32.mrb[0].mxu0
      %v2441 = vpop.f32.mrb[0].mxu0
      %v2442 = vadd.f32 %v2281, %v2441
      %v2443 = vpop.f32.mrb[0].mxu0
      %2444 = vmatprep.mubr.bf16.mxu0 %v1226
      %2445 = vmatmul.mubr.bf16.gmra.mrb[0].mxu0 %v1225
      %v2446 = vpop.f32.mrb[0].mxu0
      %v2447 = vadd.f32 %v2286, %v2446
      %v2448 = vpop.f32.mrb[0].mxu0
      %v2449 = vpop.f32.mrb[0].mxu0
      %v2450 = vadd.f32 %v2289, %v2449
      %v2451 = vpop.f32.mrb[0].mxu0
      %2452 = vmatprep.mubr.bf16.mxu0 %v1235
      %2453 = vmatmul.mubr.bf16.gmra.mrb[0].mxu0 %v1234
      %v2454 = vpop.f32.mrb[0].mxu0
      %v2455 = vadd.f32 %v2294, %v2454
      %v2456 = vpop.f32.mrb[0].mxu0
      %v2457 = vpop.f32.mrb[0].mxu0
      %v2458 = vadd.f32 %v2297, %v2457
      %v2459 = vpop.f32.mrb[0].mxu0
      %2460 = vmatprep.mubr.bf16.mxu0 %v1244
      %2461 = vmatmul.mubr.bf16.gmra.mrb[0].mxu0 %v1243
      %v2462 = vpop.f32.mrb[0].mxu0
      %v2463 = vadd.f32 %v2302, %v2462
      %v2464 = vpop.f32.mrb[0].mxu0
      %v2465 = vpop.f32.mrb[0].mxu0
      %v2466 = vadd.f32 %v2305, %v2465
      %v2467 = vpop.f32.mrb[0].mxu0
      %2468 = vmatprep.mubr.bf16.mxu0 %v1253
      %2469 = vmatmul.mubr.bf16.gmra.mrb[0].mxu0 %v1252
      %v2470 = vpop.f32.mrb[0].mxu0
      %v2471 = vadd.f32 %v2310, %v2470
      %v2472 = vpop.f32.mrb[0].mxu0
      %v2473 = vpop.f32.mrb[0].mxu0
      %v2474 = vadd.f32 %v2313, %v2473
      %v2475 = vpop.f32.mrb[0].mxu0
      %2476 = vmatprep.mubr.bf16.mxu0 %v1262
      %2477 = vmatmul.mubr.bf16.gmra.mrb[0].mxu0 %v1261
      %v2478 = vpop.f32.mrb[0].mxu0
      %v2479 = vadd.f32 %v2318, %v2478
      %v2480 = vpop.f32.mrb[0].mxu0
      %v2481 = vpop.f32.mrb[0].mxu0
      %v2482 = vadd.f32 %v2321, %v2481
      %v2483 = vpop.f32.mrb[0].mxu0
      %2484 = vmatprep.mubr.bf16.mxu0 %v1271
      %2485 = vmatmul.mubr.bf16.gmra.mrb[0].mxu0 %v1270
      %v2486 = vpop.f32.mrb[0].mxu0
      %v2487 = vadd.f32 %v2326, %v2486
      %v2488 = vpop.f32.mrb[0].mxu0
      %v2489 = vpop.f32.mrb[0].mxu0
      %v2490 = vadd.f32 %v2329, %v2489
      %v2491 = vpop.f32.mrb[0].mxu0
      %2492 = vdwg.mxu0
      %2493 = vmatprep.subr.bf16.mxu0 0
      %2494 = vmatpush1.bf16.msra.mxu0 %v1769
      %2495 = vmatprep.subr.bf16.mxu0 0
      %2496 = vmatpush1.bf16.msra.mxu0 %v1770
      %2497 = vmatprep.subr.bf16.mxu0 0
      %2498 = vmatpush1.bf16.msra.mxu0 %v1771
      %2499 = vmatprep.subr.bf16.mxu0 0
      %2500 = vmatpush1.bf16.msra.mxu0 %v1772
      %2501 = vmatprep.subr.bf16.mxu0 0
      %2502 = vmatpush1.bf16.msra.mxu0 %v1773
      %2503 = vmatprep.subr.bf16.mxu0 0
      %2504 = vmatpush1.bf16.msra.mxu0 %v1774
      %2505 = vmatprep.subr.bf16.mxu0 0
      %2506 = vmatpush1.bf16.msra.mxu0 %v1775
      %2507 = vmatprep.subr.bf16.mxu0 0
      %2508 = vmatpush1.bf16.msra.mxu0 %v1776
      %2509 = vmatprep.subr.bf16.mxu0 0
      %2510 = vmatpush1.bf16.msra.mxu0 0
      %2511 = vmatprep.subr.bf16.mxu0 0
      %2512 = vmatpush1.bf16.msra.mxu0 0
      %2513 = vmatprep.subr.bf16.mxu0 0
      %2514 = vmatpush1.bf16.msra.mxu0 0
      %2515 = vmatprep.subr.bf16.mxu0 0
      %2516 = vmatpush1.bf16.msra.mxu0 0
      %2517 = vmatprep.subr.bf16.mxu0 0
      %2518 = vmatpush1.bf16.msra.mxu0 0
      %2519 = vmatprep.subr.bf16.mxu0 0
      %2520 = vmatpush1.bf16.msra.mxu0 0
      %2521 = vmatprep.subr.bf16.mxu0 0
      %2522 = vmatpush1.bf16.msra.mxu0 0
      %2523 = vmatprep.subr.bf16.mxu0 0
      %2524 = vmatpush1.bf16.msra.mxu0 0
      %2525 = vmatprep.mubr.bf16.mxu0 0
      %2526 = vmatmul.mubr.bf16.gmra.mrb[0].mxu0 %v1137
      %v2527 = vpop.f32.mrb[0].mxu0
      %v2528 = vadd.f32 %v2367, %v2527
      %v2529 = vpop.f32.mrb[0].mxu0
      %v2530 = vpop.f32.mrb[0].mxu0
      %v2531 = vadd.f32 %v2370, %v2530
      %v2532 = vpop.f32.mrb[0].mxu0
      %2533 = vmatprep.mubr.bf16.mxu0 0
      %2534 = vmatmul.mubr.bf16.gmra.mrb[0].mxu0 %v1146
      %v2535 = vpop.f32.mrb[0].mxu0
      %v2536 = vadd.f32 %v2375, %v2535
      %v2537 = vpop.f32.mrb[0].mxu0
      %v2538 = vpop.f32.mrb[0].mxu0
      %v2539 = vadd.f32 %v2378, %v2538
      %v2540 = vpop.f32.mrb[0].mxu0
      %2541 = vmatprep.mubr.bf16.mxu0 0
      %2542 = vmatmul.mubr.bf16.gmra.mrb[0].mxu0 %v1155
      %v2543 = vpop.f32.mrb[0].mxu0
      %v2544 = vadd.f32 %v2383, %v2543
      %v2545 = vpop.f32.mrb[0].mxu0
      %v2546 = vpop.f32.mrb[0].mxu0
      %v2547 = vadd.f32 %v2386, %v2546
      %v2548 = vpop.f32.mrb[0].mxu0
      %2549 = vmatprep.mubr.bf16.mxu0 0
      %2550 = vmatmul.mubr.bf16.gmra.mrb[0].mxu0 %v1164
      %v2551 = vpop.f32.mrb[0].mxu0
      %v2552 = vadd.f32 %v2391, %v2551
      %v2553 = vpop.f32.mrb[0].mxu0
      %v2554 = vpop.f32.mrb[0].mxu0
      %v2555 = vadd.f32 %v2394, %v2554
      %v2556 = vpop.f32.mrb[0].mxu0
      %2557 = vmatprep.mubr.bf16.mxu0 0
      %2558 = vmatmul.mubr.bf16.gmra.mrb[0].mxu0 %v1173
      %v2559 = vpop.f32.mrb[0].mxu0
      %v2560 = vadd.f32 %v2399, %v2559
      %v2561 = vpop.f32.mrb[0].mxu0
      %v2562 = vpop.f32.mrb[0].mxu0
      %v2563 = vadd.f32 %v2402, %v2562
      %v2564 = vpop.f32.mrb[0].mxu0
      %2565 = vmatprep.mubr.bf16.mxu0 0
      %2566 = vmatmul.mubr.bf16.gmra.mrb[0].mxu0 %v1182
      %v2567 = vpop.f32.mrb[0].mxu0
      %v2568 = vadd.f32 %v2407, %v2567
      %v2569 = vpop.f32.mrb[0].mxu0
      %v2570 = vpop.f32.mrb[0].mxu0
      %v2571 = vadd.f32 %v2410, %v2570
      %v2572 = vpop.f32.mrb[0].mxu0
      %2573 = vmatprep.mubr.bf16.mxu0 0
      %2574 = vmatmul.mubr.bf16.gmra.mrb[0].mxu0 %v1191
      %v2575 = vpop.f32.mrb[0].mxu0
      %v2576 = vadd.f32 %v2415, %v2575
      %v2577 = vpop.f32.mrb[0].mxu0
      %v2578 = vpop.f32.mrb[0].mxu0
      %v2579 = vadd.f32 %v2418, %v2578
      %v2580 = vpop.f32.mrb[0].mxu0
      %2581 = vmatprep.mubr.bf16.mxu0 0
      %2582 = vmatmul.mubr.bf16.gmra.mrb[0].mxu0 %v1200
      %v2583 = vpop.f32.mrb[0].mxu0
      %v2584 = vadd.f32 %v2423, %v2583
      %v2585 = vpop.f32.mrb[0].mxu0
      %v2586 = vpop.f32.mrb[0].mxu0
      %v2587 = vadd.f32 %v2426, %v2586
      %v2588 = vpop.f32.mrb[0].mxu0
      %2589 = vmatprep.mubr.bf16.mxu0 0
      %2590 = vmatmul.mubr.bf16.gmra.mrb[0].mxu0 %v1209
      %v2591 = vpop.f32.mrb[0].mxu0
      %v2592 = vadd.f32 %v2431, %v2591
      %v2593 = vpop.f32.mrb[0].mxu0
      %v2594 = vpop.f32.mrb[0].mxu0
      %v2595 = vadd.f32 %v2434, %v2594
      %v2596 = vpop.f32.mrb[0].mxu0
      %2597 = vmatprep.mubr.bf16.mxu0 0
      %2598 = vmatmul.mubr.bf16.gmra.mrb[0].mxu0 %v1218
      %v2599 = vpop.f32.mrb[0].mxu0
      %v2600 = vadd.f32 %v2439, %v2599
      %v2601 = vpop.f32.mrb[0].mxu0
      %v2602 = vpop.f32.mrb[0].mxu0
      %v2603 = vadd.f32 %v2442, %v2602
      %v2604 = vpop.f32.mrb[0].mxu0
      %2605 = vmatprep.mubr.bf16.mxu0 0
      %2606 = vmatmul.mubr.bf16.gmra.mrb[0].mxu0 %v1227
      %v2607 = vpop.f32.mrb[0].mxu0
      %v2608 = vadd.f32 %v2447, %v2607
      %v2609 = vpop.f32.mrb[0].mxu0
      %v2610 = vpop.f32.mrb[0].mxu0
      %v2611 = vadd.f32 %v2450, %v2610
      %v2612 = vpop.f32.mrb[0].mxu0
      %2613 = vmatprep.mubr.bf16.mxu0 0
      %2614 = vmatmul.mubr.bf16.gmra.mrb[0].mxu0 %v1236
      %v2615 = vpop.f32.mrb[0].mxu0
      %v2616 = vadd.f32 %v2455, %v2615
      %v2617 = vpop.f32.mrb[0].mxu0
      %v2618 = vpop.f32.mrb[0].mxu0
      %v2619 = vadd.f32 %v2458, %v2618
      %v2620 = vpop.f32.mrb[0].mxu0
      %2621 = vmatprep.mubr.bf16.mxu0 0
      %2622 = vmatmul.mubr.bf16.gmra.mrb[0].mxu0 %v1245
      %v2623 = vpop.f32.mrb[0].mxu0
      %v2624 = vadd.f32 %v2463, %v2623
      %v2625 = vpop.f32.mrb[0].mxu0
      %v2626 = vpop.f32.mrb[0].mxu0
      %v2627 = vadd.f32 %v2466, %v2626
      %v2628 = vpop.f32.mrb[0].mxu0
      %2629 = vmatprep.mubr.bf16.mxu0 0
      %2630 = vmatmul.mubr.bf16.gmra.mrb[0].mxu0 %v1254
      %v2631 = vpop.f32.mrb[0].mxu0
      %v2632 = vadd.f32 %v2471, %v2631
      %v2633 = vpop.f32.mrb[0].mxu0
      %v2634 = vpop.f32.mrb[0].mxu0
      %v2635 = vadd.f32 %v2474, %v2634
      %v2636 = vpop.f32.mrb[0].mxu0
      %2637 = vmatprep.mubr.bf16.mxu0 0
      %2638 = vmatmul.mubr.bf16.gmra.mrb[0].mxu0 %v1263
      %v2639 = vpop.f32.mrb[0].mxu0
      %v2640 = vadd.f32 %v2479, %v2639
      %v2641 = vpop.f32.mrb[0].mxu0
      %v2642 = vpop.f32.mrb[0].mxu0
      %v2643 = vadd.f32 %v2482, %v2642
      %v2644 = vpop.f32.mrb[0].mxu0
      %2645 = vmatprep.mubr.bf16.mxu0 0
      %2646 = vmatmul.mubr.bf16.gmra.mrb[0].mxu0 %v1272
      %v2647 = vpop.f32.mrb[0].mxu0
      %v2648 = vadd.f32 %v2487, %v2647
      %v2649 = vpop.f32.mrb[0].mxu0
      %v2650 = vpop.f32.mrb[0].mxu0
      %v2651 = vadd.f32 %v2490, %v2650
      %v2652 = vpop.f32.mrb[0].mxu0
      %2653 = vdwg.mxu0
      %v2654 = vadd.f32 %v345, %v2528
      %v2655 = vadd.f32 %v346, %v2531
      %v2656 = vadd.f32 %v347, %v2536
      %v2657 = vadd.f32 %v348, %v2539
      %v2658 = vadd.f32 %v349, %v2544
      %v2659 = vadd.f32 %v350, %v2547
      %v2660 = vadd.f32 %v351, %v2552
      %v2661 = vadd.f32 %v352, %v2555
      %v2662 = vadd.f32 %v353, %v2560
      %v2663 = vadd.f32 %v354, %v2563
      %v2664 = vadd.f32 %v355, %v2568
      %v2665 = vadd.f32 %v356, %v2571
      %v2666 = vadd.f32 %v357, %v2576
      %v2667 = vadd.f32 %v358, %v2579
      %v2668 = vadd.f32 %v359, %v2584
      %v2669 = vadd.f32 %v360, %v2587
      %v2670 = vadd.f32 %v361, %v2592
      %v2671 = vadd.f32 %v362, %v2595
      %v2672 = vadd.f32 %v363, %v2600
      %v2673 = vadd.f32 %v364, %v2603
      %v2674 = vadd.f32 %v365, %v2608
      %v2675 = vadd.f32 %v366, %v2611
      %v2676 = vadd.f32 %v367, %v2616
      %v2677 = vadd.f32 %v368, %v2619
      %v2678 = vadd.f32 %v369, %v2624
      %v2679 = vadd.f32 %v370, %v2627
      %v2680 = vadd.f32 %v371, %v2632
      %v2681 = vadd.f32 %v372, %v2635
      %v2682 = vadd.f32 %v373, %v2640
      %v2683 = vadd.f32 %v374, %v2643
      %v2684 = vadd.f32 %v375, %v2648
      %v2685 = vadd.f32 %v376, %v2651
      %2686 = vst [vmem:[#allocation2] sm:$0xff] %v2654
      %2687 = vst [vmem:[#allocation2 + $0x8] sm:$0xff] %v2655
      %2688 = vst [vmem:[#allocation2 + $0x10] sm:$0xff] %v2656
      %2689 = vst [vmem:[#allocation2 + $0x18] sm:$0xff] %v2657
      %2690 = vst [vmem:[#allocation2 + $0x20] sm:$0xff] %v2658
      %2691 = vst [vmem:[#allocation2 + $0x28] sm:$0xff] %v2659
      %2692 = vst [vmem:[#allocation2 + $0x30] sm:$0xff] %v2660
      %2693 = vst [vmem:[#allocation2 + $0x38] sm:$0xff] %v2661
      %2694 = vst [vmem:[#allocation2 + $0x40] sm:$0xff] %v2662
      %2695 = vst [vmem:[#allocation2 + $0x48] sm:$0xff] %v2663
      %2696 = vst [vmem:[#allocation2 + $0x50] sm:$0xff] %v2664
      %2697 = vst [vmem:[#allocation2 + $0x58] sm:$0xff] %v2665
      %2698 = vst [vmem:[#allocation2 + $0x60] sm:$0xff] %v2666
      %2699 = vst [vmem:[#allocation2 + $0x68] sm:$0xff] %v2667
      %2700 = vst [vmem:[#allocation2 + $0x70] sm:$0xff] %v2668
      %2701 = vst [vmem:[#allocation2 + $0x78] sm:$0xff] %v2669
      %2702 = vst [vmem:[#allocation2 + $0x80] sm:$0xff] %v2670
      %2703 = vst [vmem:[#allocation2 + $0x88] sm:$0xff] %v2671
      %2704 = vst [vmem:[#allocation2 + $0x90] sm:$0xff] %v2672
      %2705 = vst [vmem:[#allocation2 + $0x98] sm:$0xff] %v2673
      %2706 = vst [vmem:[#allocation2 + $0xa0] sm:$0xff] %v2674
      %2707 = vst [vmem:[#allocation2 + $0xa8] sm:$0xff] %v2675
      %2708 = vst [vmem:[#allocation2 + $0xb0] sm:$0xff] %v2676
      %2709 = vst [vmem:[#allocation2 + $0xb8] sm:$0xff] %v2677
      %2710 = vst [vmem:[#allocation2 + $0xc0] sm:$0xff] %v2678
      %2711 = vst [vmem:[#allocation2 + $0xc8] sm:$0xff] %v2679
      %2712 = vst [vmem:[#allocation2 + $0xd0] sm:$0xff] %v2680
      %2713 = vst [vmem:[#allocation2 + $0xd8] sm:$0xff] %v2681
      %2714 = vst [vmem:[#allocation2 + $0xe0] sm:$0xff] %v2682
      %2715 = vst [vmem:[#allocation2 + $0xe8] sm:$0xff] %v2683
      %2716 = vst [vmem:[#allocation2 + $0xf0] sm:$0xff] %v2684
      %2717 = vst [vmem:[#allocation2 + $0xf8] sm:$0xff] %v2685
      // Predicated region
      $region41: #{resnet_unet_forward.11} parent=35 // pred_check
        %p2718 = pneg %p309
      $region42: #{resnet_unet_forward.11} parent=35 // pred_check_branch
        %2720 = sbr.rel (%p2718) target = $region44
      $region43: #{resnet_unet_forward.11} parent=35 // pred_region
        %v2721 = vld [vmem:[#allocation2] sm:$0xff]
        %v2722 = vld [vmem:[#allocation2 + $0x8] sm:$0xff]
        %v2723 = vld [vmem:[#allocation2 + $0x10] sm:$0xff]
        %v2724 = vld [vmem:[#allocation2 + $0x18] sm:$0xff]
        %v2725 = vld [vmem:[#allocation2 + $0x20] sm:$0xff]
        %v2726 = vld [vmem:[#allocation2 + $0x28] sm:$0xff]
        %v2727 = vld [vmem:[#allocation2 + $0x30] sm:$0xff]
        %v2728 = vld [vmem:[#allocation2 + $0x38] sm:$0xff]
        %v2729 = vld [vmem:[#allocation2 + $0x40] sm:$0xff]
        %v2730 = vld [vmem:[#allocation2 + $0x48] sm:$0xff]
        %v2731 = vld [vmem:[#allocation2 + $0x50] sm:$0xff]
        %v2732 = vld [vmem:[#allocation2 + $0x58] sm:$0xff]
        %v2733 = vld [vmem:[#allocation2 + $0x60] sm:$0xff]
        %v2734 = vld [vmem:[#allocation2 + $0x68] sm:$0xff]
        %v2735 = vld [vmem:[#allocation2 + $0x70] sm:$0xff]
        %v2736 = vld [vmem:[#allocation2 + $0x78] sm:$0xff]
        %v2737 = vld [vmem:[#allocation2 + $0x80] sm:$0xff]
        %v2738 = vld [vmem:[#allocation2 + $0x88] sm:$0xff]
        %v2739 = vld [vmem:[#allocation2 + $0x90] sm:$0xff]
        %v2740 = vld [vmem:[#allocation2 + $0x98] sm:$0xff]
        %v2741 = vld [vmem:[#allocation2 + $0xa0] sm:$0xff]
        %v2742 = vld [vmem:[#allocation2 + $0xa8] sm:$0xff]
        %v2743 = vld [vmem:[#allocation2 + $0xb0] sm:$0xff]
        %v2744 = vld [vmem:[#allocation2 + $0xb8] sm:$0xff]
        %v2745 = vld [vmem:[#allocation2 + $0xc0] sm:$0xff]
        %v2746 = vld [vmem:[#allocation2 + $0xc8] sm:$0xff]
        %v2747 = vld [vmem:[#allocation2 + $0xd0] sm:$0xff]
        %v2748 = vld [vmem:[#allocation2 + $0xd8] sm:$0xff]
        %v2749 = vld [vmem:[#allocation2 + $0xe0] sm:$0xff]
        %v2750 = vld [vmem:[#allocation2 + $0xe8] sm:$0xff]
        %v2751 = vld [vmem:[#allocation2 + $0xf0] sm:$0xff]
        %v2752 = vld [vmem:[#allocation2 + $0xf8] sm:$0xff]
        %v2753 = vld [vmem:[%s295] sm:$0x1]
        %v2755 = vlaneseq
        %v2756 = vshrl.u32 %v2755, 7
        %v2757 = vsub.s32 0, %v2756
        %v2758 = vrot.slane %v2753, %v2757
        %v2760 = vmul.f32 %v2721, %v2758
        %v2761 = vmul.f32 %v2722, %v2758
        %v2762 = vmul.f32 %v2723, %v2758
        %v2763 = vmul.f32 %v2724, %v2758
        %v2764 = vmul.f32 %v2725, %v2758
        %v2765 = vmul.f32 %v2726, %v2758
        %v2766 = vmul.f32 %v2727, %v2758
        %v2767 = vmul.f32 %v2728, %v2758
        %v2768 = vmul.f32 %v2729, %v2758
        %v2769 = vmul.f32 %v2730, %v2758
        %v2770 = vmul.f32 %v2731, %v2758
        %v2771 = vmul.f32 %v2732, %v2758
        %v2772 = vmul.f32 %v2733, %v2758
        %v2773 = vmul.f32 %v2734, %v2758
        %v2774 = vmul.f32 %v2735, %v2758
        %v2775 = vmul.f32 %v2736, %v2758
        %v2776 = vmul.f32 %v2737, %v2758
        %v2777 = vmul.f32 %v2738, %v2758
        %v2778 = vmul.f32 %v2739, %v2758
        %v2779 = vmul.f32 %v2740, %v2758
        %v2780 = vmul.f32 %v2741, %v2758
        %v2781 = vmul.f32 %v2742, %v2758
        %v2782 = vmul.f32 %v2743, %v2758
        %v2783 = vmul.f32 %v2744, %v2758
        %v2784 = vmul.f32 %v2745, %v2758
        %v2785 = vmul.f32 %v2746, %v2758
        %v2786 = vmul.f32 %v2747, %v2758
        %v2787 = vmul.f32 %v2748, %v2758
        %v2788 = vmul.f32 %v2749, %v2758
        %v2789 = vmul.f32 %v2750, %v2758
        %v2790 = vmul.f32 %v2751, %v2758
        %v2791 = vmul.f32 %v2752, %v2758
        %v2792 = vld [vmem:[%s298] sm:$0x1]
        %v2794 = vlaneseq
        %v2795 = vshrl.u32 %v2794, 7
        %v2796 = vsub.s32 0, %v2795
        %v2797 = vrot.slane %v2792, %v2796
        %v2799 = vadd.f32 %v2760, %v2797
        %v2800 = vadd.f32 %v2761, %v2797
        %v2801 = vadd.f32 %v2762, %v2797
        %v2802 = vadd.f32 %v2763, %v2797
        %v2803 = vadd.f32 %v2764, %v2797
        %v2804 = vadd.f32 %v2765, %v2797
        %v2805 = vadd.f32 %v2766, %v2797
        %v2806 = vadd.f32 %v2767, %v2797
        %v2807 = vadd.f32 %v2768, %v2797
        %v2808 = vadd.f32 %v2769, %v2797
        %v2809 = vadd.f32 %v2770, %v2797
        %v2810 = vadd.f32 %v2771, %v2797
        %v2811 = vadd.f32 %v2772, %v2797
        %v2812 = vadd.f32 %v2773, %v2797
        %v2813 = vadd.f32 %v2774, %v2797
        %v2814 = vadd.f32 %v2775, %v2797
        %v2815 = vadd.f32 %v2776, %v2797
        %v2816 = vadd.f32 %v2777, %v2797
        %v2817 = vadd.f32 %v2778, %v2797
        %v2818 = vadd.f32 %v2779, %v2797
        %v2819 = vadd.f32 %v2780, %v2797
        %v2820 = vadd.f32 %v2781, %v2797
        %v2821 = vadd.f32 %v2782, %v2797
        %v2822 = vadd.f32 %v2783, %v2797
        %v2823 = vadd.f32 %v2784, %v2797
        %v2824 = vadd.f32 %v2785, %v2797
        %v2825 = vadd.f32 %v2786, %v2797
        %v2826 = vadd.f32 %v2787, %v2797
        %v2827 = vadd.f32 %v2788, %v2797
        %v2828 = vadd.f32 %v2789, %v2797
        %v2829 = vadd.f32 %v2790, %v2797
        %v2830 = vadd.f32 %v2791, %v2797
        %v2831 = vmax.f32 %v2799, 0.0
        %v2832 = vmax.f32 %v2800, 0.0
        %v2833 = vmax.f32 %v2801, 0.0
        %v2834 = vmax.f32 %v2802, 0.0
        %v2835 = vmax.f32 %v2803, 0.0
        %v2836 = vmax.f32 %v2804, 0.0
        %v2837 = vmax.f32 %v2805, 0.0
        %v2838 = vmax.f32 %v2806, 0.0
        %v2839 = vmax.f32 %v2807, 0.0
        %v2840 = vmax.f32 %v2808, 0.0
        %v2841 = vmax.f32 %v2809, 0.0
        %v2842 = vmax.f32 %v2810, 0.0
        %v2843 = vmax.f32 %v2811, 0.0
        %v2844 = vmax.f32 %v2812, 0.0
        %v2845 = vmax.f32 %v2813, 0.0
        %v2846 = vmax.f32 %v2814, 0.0
        %v2847 = vmax.f32 %v2815, 0.0
        %v2848 = vmax.f32 %v2816, 0.0
        %v2849 = vmax.f32 %v2817, 0.0
        %v2850 = vmax.f32 %v2818, 0.0
        %v2851 = vmax.f32 %v2819, 0.0
        %v2852 = vmax.f32 %v2820, 0.0
        %v2853 = vmax.f32 %v2821, 0.0
        %v2854 = vmax.f32 %v2822, 0.0
        %v2855 = vmax.f32 %v2823, 0.0
        %v2856 = vmax.f32 %v2824, 0.0
        %v2857 = vmax.f32 %v2825, 0.0
        %v2858 = vmax.f32 %v2826, 0.0
        %v2859 = vmax.f32 %v2827, 0.0
        %v2860 = vmax.f32 %v2828, 0.0
        %v2861 = vmax.f32 %v2829, 0.0
        %v2862 = vmax.f32 %v2830, 0.0
        %2863 = vst [vmem:[%s306] sm:$0xff] %v2831
        %2864 = vst [vmem:[%s306 + $0x8] sm:$0xff] %v2832
        %2865 = vst [vmem:[%s306 + $0x10] sm:$0xff] %v2833
        %2866 = vst [vmem:[%s306 + $0x18] sm:$0xff] %v2834
        %2867 = vst [vmem:[%s306 + $0x20] sm:$0xff] %v2835
        %2868 = vst [vmem:[%s306 + $0x28] sm:$0xff] %v2836
        %2869 = vst [vmem:[%s306 + $0x30] sm:$0xff] %v2837
        %2870 = vst [vmem:[%s306 + $0x38] sm:$0xff] %v2838
        %2871 = vst [vmem:[%s306 + $0x40] sm:$0xff] %v2839
        %2872 = vst [vmem:[%s306 + $0x48] sm:$0xff] %v2840
        %2873 = vst [vmem:[%s306 + $0x50] sm:$0xff] %v2841
        %2874 = vst [vmem:[%s306 + $0x58] sm:$0xff] %v2842
        %2875 = vst [vmem:[%s306 + $0x60] sm:$0xff] %v2843
        %2876 = vst [vmem:[%s306 + $0x68] sm:$0xff] %v2844
        %2877 = vst [vmem:[%s306 + $0x70] sm:$0xff] %v2845
        %2878 = vst [vmem:[%s306 + $0x78] sm:$0xff] %v2846
        %2879 = vst [vmem:[%s306 + $0x80] sm:$0xff] %v2847
        %2880 = vst [vmem:[%s306 + $0x88] sm:$0xff] %v2848
        %2881 = vst [vmem:[%s306 + $0x90] sm:$0xff] %v2849
        %2882 = vst [vmem:[%s306 + $0x98] sm:$0xff] %v2850
        %2883 = vst [vmem:[%s306 + $0xa0] sm:$0xff] %v2851
        %2884 = vst [vmem:[%s306 + $0xa8] sm:$0xff] %v2852
        %2885 = vst [vmem:[%s306 + $0xb0] sm:$0xff] %v2853
        %2886 = vst [vmem:[%s306 + $0xb8] sm:$0xff] %v2854
        %2887 = vst [vmem:[%s306 + $0xc0] sm:$0xff] %v2855
        %2888 = vst [vmem:[%s306 + $0xc8] sm:$0xff] %v2856
        %2889 = vst [vmem:[%s306 + $0xd0] sm:$0xff] %v2857
        %2890 = vst [vmem:[%s306 + $0xd8] sm:$0xff] %v2858
        %2891 = vst [vmem:[%s306 + $0xe0] sm:$0xff] %v2859
        %2892 = vst [vmem:[%s306 + $0xe8] sm:$0xff] %v2860
        %2893 = vst [vmem:[%s306 + $0xf0] sm:$0xff] %v2861
        %2894 = vst [vmem:[%s306 + $0xf8] sm:$0xff] %v2862
      $region44: #{resnet_unet_forward.11} parent=35 // pred_fallthru
        _
      %s2895 = smul.u32 32, %s20
      %p2896 = scmp.lt.s32.totalorder %s2895, 255
      %s2897 = scalar_select %p2896, %s2895, 255
      %p2898 = scmp.lt.s32.totalorder %s21, 0
      %s2899 = scalar_select %p2898, %s21, 0
      %s2900 = sadd.s32 %s2899, %s2897
      %s2901 = smul.addr %s2900, 8
      %s2902 = scalar_lea.vmem %s4, %s2901
      // Predicated region
      $region45: #{resnet_unet_forward.11} parent=35 // pred_check
        %p2903 = pneg %p162
      $region46: #{resnet_unet_forward.11} parent=35 // pred_check_branch
        %2905 = sbr.rel (%p2903) target = $region48
      $region47: #{resnet_unet_forward.11} parent=35 // pred_region
        %s2906 = smul.u32 32, %s20
      $region48: #{resnet_unet_forward.11} parent=35 // pred_fallthru
        _
    $region36: #{resnet_unet_forward.11} parent=5 // pred_fallthru
      _
    %p2907 = scmp.le.s32.totalorder 2, %s10
    // Predicated region
    $region49: #{resnet_unet_forward.11} parent=5 // pred_check
      %p2908 = pneg %p2907
    $region50: #{resnet_unet_forward.11} parent=5 // pred_check_branch
      %2910 = sbr.rel (%p2908) target = $region52
    $region51: #{resnet_unet_forward.11} parent=5 // pred_region
      %s2911 = ssub.s32 %s10, 2
      // Predicated region
      $region53: #{resnet_unet_forward.11} parent=51 // pred_check
        %p2912 = pneg %p168
      $region54: #{resnet_unet_forward.11} parent=51 // pred_check_branch
        %2914 = sbr.rel (%p2912) target = $region56
      $region55: #{resnet_unet_forward.11} parent=51 // pred_region
        %s2915 = smul.u32 32, %s23
        %p2916 = scmp.lt.s32.totalorder %s2915, 255
        %s2917 = scalar_select %p2916, %s2915, 255
        %p2918 = scmp.lt.s32.totalorder %s24, 0
        %s2919 = scalar_select %p2918, %s24, 0
        %s2920 = sadd.s32 %s2919, %s2917
        %s2921 = smul.addr %s2920, 8
        %s2922 = scalar_lea.vmem %s4, %s2921
      $region56: #{resnet_unet_forward.11} parent=51 // pred_fallthru
        _
    $region52: #{resnet_unet_forward.11} parent=5 // pred_fallthru
      _
  $region6: #{resnet_unet_forward.11} parent=0 // loop_footer
    %s14 = sadd.s32 1, %s10
  $region7: #{resnet_unet_forward.11} parent=0 // loop_footer_branch
    %9 = sbr.rel target = $region3
  $region8: #{resnet_unet_forward.11} parent=0 // loop_exit
    _

</llo_original>
